<compile_context>
chip_gen: v7x
topology: tpu7x:2x2x1
jax: 0.10.0
libtpu: 0.0.40
codegen_flags: <defaults>
</compile_context>

<pallas_src>
import functools
import math

import jax
import jax.numpy as jnp
from jax.experimental import pallas as pl
from jax.experimental.pallas import tpu as pltpu


KH = 4          # conv kernel size (4x4)
STRIDE = 2      # conv stride


# ----------------------------------------------------------------------------
# In-kernel helpers
# ----------------------------------------------------------------------------
def _row_select(h_in, oh, pad, ki):
    """(oh, h_in) 0/1 matrix: S[r, m] = 1 iff m == 2*r + ki - pad, 0 <= m < h_in.

    Rows that fall into the zero padding along H select nothing (all-zero row),
    which reproduces the conv's zero padding exactly.  Built from 2-D iota so it
    is pure VPU work; the selection itself is a tiny MXU matmul.
    """
    r = jax.lax.broadcasted_iota(jnp.int32, (oh, h_in), 0)
    m = jax.lax.broadcasted_iota(jnp.int32, (oh, h_in), 1)
    return (m == STRIDE * r + ki - pad).astype(jnp.float32)


def _conv_toeplitz(y, t_ref, h_in, oh, pad):
    """One 4x4 / stride-2 conv on y:(h_in, w_in*ic) ->  (oh, ow*oc)."""
    n_out = t_ref.shape[2]
    acc = jnp.zeros((oh, n_out), jnp.float32)
    for ki in range(KH):                                   # statically unrolled
        rows = jnp.dot(_row_select(h_in, oh, pad, ki), y,
                       preferred_element_type=jnp.float32)       # (oh, w_in*ic)
        acc = acc + jnp.dot(rows, t_ref[ki],
                            preferred_element_type=jnp.float32)  # (oh, ow*oc)
    return acc


def _encoder_kernel(x_ref, t1_ref, t2_ref, t3_ref, t4_ref, t5_ref,
                    b2_ref, b3_ref, b4_ref, wfc_ref, bfc_ref, o_ref,
                    *, spatial, slope):
    s0, s1, s2, s3, s4, s5 = spatial                       # 64, 32, 16, 8, 4, 1

    def lrelu(v):
        return jnp.where(v > 0, v, slope * v)

    y = x_ref[0]                                           # (s0, s0*nc)
    # first_conv -> LeakyReLU   (Dropout == identity in eval mode)
    y = lrelu(_conv_toeplitz(y, t1_ref, s0, s1, 1))        # (s1, s1*nf)
    # 3 CurveBlocks: conv -> BN(eval; scale folded into T) -> LeakyReLU
    y = lrelu(_conv_toeplitz(y, t2_ref, s1, s2, 1) + b2_ref[...])   # (s2, 256)
    y = lrelu(_conv_toeplitz(y, t3_ref, s2, s3, 1) + b3_ref[...])   # (s3, 256)
    y = lrelu(_conv_toeplitz(y, t4_ref, s3, s4, 1) + b4_ref[...])   # (s4, 256)
    # last_conv (pad 0, no activation): spatial -> 1x1
    y = _conv_toeplitz(y, t5_ref, s4, s5, 0)               # (1, 8*nf)
    # fc + tanh
    out = jnp.tanh(jnp.dot(y, wfc_ref[...],
                           preferred_element_type=jnp.float32) + bfc_ref[...])
    o_ref[0] = out                                         # (1, emb)


# ----------------------------------------------------------------------------
# Wrapper-side weight packing (parameter-setup glue, plain XLA, tiny)
# ----------------------------------------------------------------------------
def _combine(coeffs, p):
    """Curve parameter: weight_t = sum_i coeffs_t[i] * W_i   (p: (num_bends, ...))."""
    return jnp.tensordot(coeffs, p, axes=1)


def _build_toeplitz(w_oihw, w_in, w_out, pad, scale=None):
    """Banded 'Toeplitz-along-width' weight for one conv layer.

    Returns T of shape (KH, w_in*IC, w_out*OC) with
        T[ki, w*IC + c, ow*OC + oc] = w[oc, c, ki, kj] * scale[oc]
    where kj = w - 2*ow + pad, and zero whenever kj falls outside [0, KW)
    (this encodes both the stride-2 access and the zero padding along W).
    """
    oc, ic, kh, kw = w_oihw.shape
    if scale is not None:
        w_oihw = w_oihw * scale[:, None, None, None]
    wt = jnp.transpose(w_oihw, (2, 3, 1, 0))                     # (kh, kw, ic, oc)
    kj = jnp.arange(w_in)[:, None] - STRIDE * jnp.arange(w_out)[None, :] + pad
    valid = (kj >= 0) & (kj < kw)                                # (w_in, w_out)
    g = wt[:, jnp.clip(kj, 0, kw - 1)]                           # (kh, w_in, w_out, ic, oc)
    g = g * valid[None, :, :, None, None].astype(wt.dtype)
    g = jnp.transpose(g, (0, 1, 3, 2, 4))                        # (kh, w_in, ic, w_out, oc)
    return g.reshape(kh, w_in * ic, w_out * oc).astype(jnp.float32)


def bezier_coeffs(t, num_bends=3):
    return jnp.array(
        [math.comb(num_bends - 1, i) * (t ** i) * ((1 - t) ** (num_bends - 1 - i))
         for i in range(num_bends)],
        jnp.float32,
    )


# ----------------------------------------------------------------------------
# Forward pass (mirrors CelebaEncoderCurve.forward) -- single fused pallas_call
# ----------------------------------------------------------------------------
def celeba_encoder_curve(params, x_nchw, coeffs, lrelu_slope=0.2, eps=1e-5):
    B, nc, H, W = x_nchw.shape
    assert H == 64 and W == 64, "architecture implies 64x64 inputs"
    nf = params["first_conv"].shape[1]
    emb = params["fc_w"].shape[1]
    spatial = (64, 32, 16, 8, 4, 1)                        # per-layer spatial size

    # input: NCHW -> NHWC -> (B, H, W*C)   (lane dim = W*C)
    x = jnp.transpose(x_nchw, (0, 2, 3, 1)).reshape(B, H, W * nc).astype(jnp.float32)

    c = functools.partial(_combine, coeffs)

    # first conv (no BN, no bias)
    ts = [_build_toeplitz(c(params["first_conv"]), spatial[0], spatial[1], 1)]
    biases = []
    for i, blk in enumerate(params["blocks"]):
        w = c(blk["w"])
        gamma, beta = c(blk["gamma"]), c(blk["beta"])
        inv = jax.lax.rsqrt(blk["running_var"] + eps)
        scale = gamma * inv                                 # BN scale folded into T
        bias = beta - blk["running_mean"] * scale
        w_out = spatial[i + 2]
        ts.append(_build_toeplitz(w, spatial[i + 1], w_out, 1, scale=scale))
        biases.append(jnp.tile(bias, w_out).reshape(1, w_out * w.shape[0])
                      .astype(jnp.float32))
    # last conv (pad 0, no BN)
    ts.append(_build_toeplitz(c(params["last_conv"]), spatial[4], spatial[5], 0))

    wfc = c(params["fc_w"]).T.astype(jnp.float32)           # (8*nf, emb)
    bfc = c(params["fc_b"]).reshape(1, emb).astype(jnp.float32)

    kernel = functools.partial(_encoder_kernel, spatial=spatial, slope=lrelu_slope)

    def whole(a):  # full-array block, resident across the batch grid
        return pl.BlockSpec(a.shape, lambda b, _n=a.ndim: (0,) * _n)

    in_specs = ([pl.BlockSpec((1, H, W * nc), lambda b: (b, 0, 0))]
                + [whole(t) for t in ts]
                + [whole(bb) for bb in biases]
                + [whole(wfc), whole(bfc)])

    out = pl.pallas_call(
        kernel,
        out_shape=jax.ShapeDtypeStruct((B, 1, emb), jnp.float32),
        grid_spec=pltpu.PrefetchScalarGridSpec(
            num_scalar_prefetch=0,
            grid=(B,),
            in_specs=in_specs,
            out_specs=pl.BlockSpec((1, 1, emb), lambda b: (b, 0, 0)),
        ),
        compiler_params=pltpu.CompilerParams(
            dimension_semantics=("parallel",),          # batch across v7x's 2 TCs
            vmem_limit_bytes=32 * 1024 * 1024),
    )(x, *ts, *biases, wfc, bfc)
    return out.reshape(B, emb)


# ----------------------------------------------------------------------------
# Parameters (deterministic, shapes from the module __init__)
# ----------------------------------------------------------------------------
def init_params(key, init_num_filters, embedding_dim, nc, num_bends):
    nf = init_num_filters

    def conv_w(k, oc, ic, ks=4):
        return 0.1 * jax.random.normal(k, (num_bends, oc, ic, ks, ks), jnp.float32)

    keys = jax.random.split(key, 14)
    params = {}
    params["first_conv"] = conv_w(keys[0], nf, nc)
    chans = [nf, nf * 2, nf * 4, nf * 8]
    blocks = []
    ki = 1
    for i in range(3):
        w = conv_w(keys[ki], chans[i + 1], chans[i]); ki += 1
        gamma = 1.0 + 0.1 * jax.random.normal(keys[ki], (num_bends, chans[i + 1])); ki += 1
        beta = 0.1 * jax.random.normal(keys[ki], (num_bends, chans[i + 1])); ki += 1
        blocks.append(dict(
            w=w, gamma=gamma, beta=beta,
            running_mean=jnp.zeros((chans[i + 1],), jnp.float32),
            running_var=jnp.ones((chans[i + 1],), jnp.float32)))
    params["blocks"] = blocks
    params["last_conv"] = conv_w(keys[ki], nf * 8, nf * 8); ki += 1
    params["fc_w"] = 0.1 * jax.random.normal(keys[ki], (num_bends, embedding_dim, nf * 8)); ki += 1
    params["fc_b"] = 0.1 * jax.random.normal(keys[ki], (num_bends, embedding_dim)); ki += 1
    return params


# ----------------------------------------------------------------------------
# Plain-JAX reference for correctness check
# ----------------------------------------------------------------------------
def _ref_forward(params, x_nchw, coeffs, slope=0.2, eps=1e-5):
    def conv(x, w, stride, pad):
        return jax.lax.conv_general_dilated(
            x, w, (stride, stride), [(pad, pad), (pad, pad)],
            dimension_numbers=("NCHW", "OIHW", "NCHW"))

    c = lambda p: jnp.tensordot(coeffs, p, axes=1)
    x = conv(x_nchw, c(params["first_conv"]), 2, 1)
    x = jnp.where(x > 0, x, slope * x)
    for blk in params["blocks"]:
        x = conv(x, c(blk["w"]), 2, 1)
        g, b = c(blk["gamma"]), c(blk["beta"])
        inv = jax.lax.rsqrt(blk["running_var"] + eps)
        x = (x - blk["running_mean"][None, :, None, None]) \
            * (g * inv)[None, :, None, None] + b[None, :, None, None]
        x = jnp.where(x > 0, x, slope * x)
    x = conv(x, c(params["last_conv"]), 2, 0)
    x = x.reshape(x.shape[0], -1)
    return jnp.tanh(x @ c(params["fc_w"]).T + c(params["fc_b"]))


# ----------------------------------------------------------------------------
if __name__ == "__main__":
    # Small config consistent with the module: 64x64 input is implied by the
    # architecture (5 stride-2 convs, last one 4x4 pad-0 -> 1x1).
    init_num_filters = 8
    embedding_dim = 32
    nc = 3
    num_bends = 3
    B = 2

    key = jax.random.PRNGKey(0)
    k_x, k_p = jax.random.split(key)
    x = jax.random.normal(k_x, (B, nc, 64, 64), jnp.float32)
    params = init_params(k_p, init_num_filters, embedding_dim, nc, num_bends)
    coeffs_t = bezier_coeffs(0.3, num_bends)                # curve point t = 0.3

    fwd = jax.jit(celeba_encoder_curve)
    out = jax.block_until_ready(fwd(params, x, coeffs_t))
    assert out.shape == (B, embedding_dim), out.shape

    ref = jax.block_until_ready(_ref_forward(params, x, coeffs_t))
    err = float(jnp.max(jnp.abs(out - ref)))
    assert err < 2e-3, err

    print("KERNEL_OK")
</pallas_src>

<mosaic_0001>
module attributes {stable_mosaic.version = 11 : i64} {
  func.func @_encoder_kernel(%arg0: i32, %arg1: memref<1x64x192xf32, #tpu.memory_space<vmem>>, %arg2: memref<4x192x256xf32, #tpu.memory_space<vmem>>, %arg3: memref<4x256x256xf32, #tpu.memory_space<vmem>>, %arg4: memref<4x256x256xf32, #tpu.memory_space<vmem>>, %arg5: memref<4x256x256xf32, #tpu.memory_space<vmem>>, %arg6: memref<4x256x64xf32, #tpu.memory_space<vmem>>, %arg7: memref<1x256xf32, #tpu.memory_space<vmem>>, %arg8: memref<1x256xf32, #tpu.memory_space<vmem>>, %arg9: memref<1x256xf32, #tpu.memory_space<vmem>>, %arg10: memref<64x32xf32, #tpu.memory_space<vmem>>, %arg11: memref<1x32xf32, #tpu.memory_space<vmem>>, %arg12: memref<1x1x32xf32, #tpu.memory_space<vmem>>) attributes {dimension_semantics = [#tpu.dimension_semantics<parallel>], iteration_bounds = array<i64: 2>, scalar_prefetch = 0 : i64, scratch_operands = 0 : i64, tpu.core_type = #tpu.core_type<tc>, window_params = [{transform_indices = @transform_0, window_bounds = array<i64: 1, 64, 192>}, {pipeline_mode = #tpu.pipeline_mode<synchronous>, transform_indices = @transform_1, window_bounds = array<i64: 4, 192, 256>}, {pipeline_mode = #tpu.pipeline_mode<synchronous>, transform_indices = @transform_2, window_bounds = array<i64: 4, 256, 256>}, {pipeline_mode = #tpu.pipeline_mode<synchronous>, transform_indices = @transform_3, window_bounds = array<i64: 4, 256, 256>}, {pipeline_mode = #tpu.pipeline_mode<synchronous>, transform_indices = @transform_4, window_bounds = array<i64: 4, 256, 256>}, {pipeline_mode = #tpu.pipeline_mode<synchronous>, transform_indices = @transform_5, window_bounds = array<i64: 4, 256, 64>}, {pipeline_mode = #tpu.pipeline_mode<synchronous>, transform_indices = @transform_6, window_bounds = array<i64: 1, 256>}, {pipeline_mode = #tpu.pipeline_mode<synchronous>, transform_indices = @transform_7, window_bounds = array<i64: 1, 256>}, {pipeline_mode = #tpu.pipeline_mode<synchronous>, transform_indices = @transform_8, window_bounds = array<i64: 1, 256>}, {pipeline_mode = #tpu.pipeline_mode<synchronous>, transform_indices = @transform_9, window_bounds = array<i64: 64, 32>}, {pipeline_mode = #tpu.pipeline_mode<synchronous>, transform_indices = @transform_10, window_bounds = array<i64: 1, 32>}, {transform_indices = @transform_11, window_bounds = array<i64: 1, 1, 32>}]} {
    %c0 = arith.constant 0 : index
    %c0_0 = arith.constant 0 : index
    %c0_1 = arith.constant 0 : index
    %0 = vector.load %arg1[%c0, %c0_0, %c0_1] : memref<1x64x192xf32, #tpu.memory_space<vmem>>, vector<1x64x192xf32>
    %1 = vector.shape_cast %0 : vector<1x64x192xf32> to vector<64x192xf32>
    %cst = arith.constant 0.000000e+00 : f32
    %2 = vector.broadcast %cst : f32 to vector<32x256xf32>
    %3 = tpu.iota {dimensions = array<i32: 0>} : vector<32x64xi32>
    %4 = tpu.iota {dimensions = array<i32: 1>} : vector<32x64xi32>
    %c2_i32 = arith.constant 2 : i32
    %5 = vector.broadcast %c2_i32 : i32 to vector<32x64xi32>
    %6 = arith.muli %5, %3 : vector<32x64xi32>
    %c0_i32 = arith.constant 0 : i32
    %7 = vector.broadcast %c0_i32 : i32 to vector<32x64xi32>
    %8 = arith.addi %6, %7 : vector<32x64xi32>
    %c1_i32 = arith.constant 1 : i32
    %9 = vector.broadcast %c1_i32 : i32 to vector<32x64xi32>
    %10 = arith.subi %8, %9 : vector<32x64xi32>
    %11 = arith.cmpi eq, %4, %10 : vector<32x64xi32>
    %12 = arith.extui %11 : vector<32x64xi1> to vector<32x64xi32>
    %13 = arith.sitofp %12 : vector<32x64xi32> to vector<32x64xf32>
    %cst_2 = arith.constant dense<0.000000e+00> : vector<32x192xf32>
    %14 = tpu.matmul %13, %1, %cst_2 {dimension_numbers = #tpu.dot_dimension_numbers<[1], [0], [0], [1], [0, 0, 1, 1], [], []>} : vector<32x64xf32>, vector<64x192xf32>, vector<32x192xf32> -> vector<32x192xf32>
    %c0_3 = arith.constant 0 : index
    %c0_4 = arith.constant 0 : index
    %c0_5 = arith.constant 0 : index
    %15 = vector.load %arg2[%c0_3, %c0_4, %c0_5] : memref<4x192x256xf32, #tpu.memory_space<vmem>>, vector<1x192x256xf32>
    %16 = vector.shape_cast %15 : vector<1x192x256xf32> to vector<192x256xf32>
    %cst_6 = arith.constant dense<0.000000e+00> : vector<32x256xf32>
    %17 = tpu.matmul %14, %16, %cst_6 {dimension_numbers = #tpu.dot_dimension_numbers<[1], [0], [0], [1], [0, 0, 1, 1], [], []>} : vector<32x192xf32>, vector<192x256xf32>, vector<32x256xf32> -> vector<32x256xf32>
    %18 = arith.addf %2, %17 : vector<32x256xf32>
    %19 = tpu.iota {dimensions = array<i32: 0>} : vector<32x64xi32>
    %20 = tpu.iota {dimensions = array<i32: 1>} : vector<32x64xi32>
    %c2_i32_7 = arith.constant 2 : i32
    %21 = vector.broadcast %c2_i32_7 : i32 to vector<32x64xi32>
    %22 = arith.muli %21, %19 : vector<32x64xi32>
    %c1_i32_8 = arith.constant 1 : i32
    %23 = vector.broadcast %c1_i32_8 : i32 to vector<32x64xi32>
    %24 = arith.addi %22, %23 : vector<32x64xi32>
    %c1_i32_9 = arith.constant 1 : i32
    %25 = vector.broadcast %c1_i32_9 : i32 to vector<32x64xi32>
    %26 = arith.subi %24, %25 : vector<32x64xi32>
    %27 = arith.cmpi eq, %20, %26 : vector<32x64xi32>
    %28 = arith.extui %27 : vector<32x64xi1> to vector<32x64xi32>
    %29 = arith.sitofp %28 : vector<32x64xi32> to vector<32x64xf32>
    %cst_10 = arith.constant dense<0.000000e+00> : vector<32x192xf32>
    %30 = tpu.matmul %29, %1, %cst_10 {dimension_numbers = #tpu.dot_dimension_numbers<[1], [0], [0], [1], [0, 0, 1, 1], [], []>} : vector<32x64xf32>, vector<64x192xf32>, vector<32x192xf32> -> vector<32x192xf32>
    %c1 = arith.constant 1 : index
    %c0_11 = arith.constant 0 : index
    %c0_12 = arith.constant 0 : index
    %31 = vector.load %arg2[%c1, %c0_11, %c0_12] : memref<4x192x256xf32, #tpu.memory_space<vmem>>, vector<1x192x256xf32>
    %32 = vector.shape_cast %31 : vector<1x192x256xf32> to vector<192x256xf32>
    %cst_13 = arith.constant dense<0.000000e+00> : vector<32x256xf32>
    %33 = tpu.matmul %30, %32, %cst_13 {dimension_numbers = #tpu.dot_dimension_numbers<[1], [0], [0], [1], [0, 0, 1, 1], [], []>} : vector<32x192xf32>, vector<192x256xf32>, vector<32x256xf32> -> vector<32x256xf32>
    %34 = arith.addf %18, %33 : vector<32x256xf32>
    %35 = tpu.iota {dimensions = array<i32: 0>} : vector<32x64xi32>
    %36 = tpu.iota {dimensions = array<i32: 1>} : vector<32x64xi32>
    %c2_i32_14 = arith.constant 2 : i32
    %37 = vector.broadcast %c2_i32_14 : i32 to vector<32x64xi32>
    %38 = arith.muli %37, %35 : vector<32x64xi32>
    %c2_i32_15 = arith.constant 2 : i32
    %39 = vector.broadcast %c2_i32_15 : i32 to vector<32x64xi32>
    %40 = arith.addi %38, %39 : vector<32x64xi32>
    %c1_i32_16 = arith.constant 1 : i32
    %41 = vector.broadcast %c1_i32_16 : i32 to vector<32x64xi32>
    %42 = arith.subi %40, %41 : vector<32x64xi32>
    %43 = arith.cmpi eq, %36, %42 : vector<32x64xi32>
    %44 = arith.extui %43 : vector<32x64xi1> to vector<32x64xi32>
    %45 = arith.sitofp %44 : vector<32x64xi32> to vector<32x64xf32>
    %cst_17 = arith.constant dense<0.000000e+00> : vector<32x192xf32>
    %46 = tpu.matmul %45, %1, %cst_17 {dimension_numbers = #tpu.dot_dimension_numbers<[1], [0], [0], [1], [0, 0, 1, 1], [], []>} : vector<32x64xf32>, vector<64x192xf32>, vector<32x192xf32> -> vector<32x192xf32>
    %c2 = arith.constant 2 : index
    %c0_18 = arith.constant 0 : index
    %c0_19 = arith.constant 0 : index
    %47 = vector.load %arg2[%c2, %c0_18, %c0_19] : memref<4x192x256xf32, #tpu.memory_space<vmem>>, vector<1x192x256xf32>
    %48 = vector.shape_cast %47 : vector<1x192x256xf32> to vector<192x256xf32>
    %cst_20 = arith.constant dense<0.000000e+00> : vector<32x256xf32>
    %49 = tpu.matmul %46, %48, %cst_20 {dimension_numbers = #tpu.dot_dimension_numbers<[1], [0], [0], [1], [0, 0, 1, 1], [], []>} : vector<32x192xf32>, vector<192x256xf32>, vector<32x256xf32> -> vector<32x256xf32>
    %50 = arith.addf %34, %49 : vector<32x256xf32>
    %51 = tpu.iota {dimensions = array<i32: 0>} : vector<32x64xi32>
    %52 = tpu.iota {dimensions = array<i32: 1>} : vector<32x64xi32>
    %c2_i32_21 = arith.constant 2 : i32
    %53 = vector.broadcast %c2_i32_21 : i32 to vector<32x64xi32>
    %54 = arith.muli %53, %51 : vector<32x64xi32>
    %c3_i32 = arith.constant 3 : i32
    %55 = vector.broadcast %c3_i32 : i32 to vector<32x64xi32>
    %56 = arith.addi %54, %55 : vector<32x64xi32>
    %c1_i32_22 = arith.constant 1 : i32
    %57 = vector.broadcast %c1_i32_22 : i32 to vector<32x64xi32>
    %58 = arith.subi %56, %57 : vector<32x64xi32>
    %59 = arith.cmpi eq, %52, %58 : vector<32x64xi32>
    %60 = arith.extui %59 : vector<32x64xi1> to vector<32x64xi32>
    %61 = arith.sitofp %60 : vector<32x64xi32> to vector<32x64xf32>
    %cst_23 = arith.constant dense<0.000000e+00> : vector<32x192xf32>
    %62 = tpu.matmul %61, %1, %cst_23 {dimension_numbers = #tpu.dot_dimension_numbers<[1], [0], [0], [1], [0, 0, 1, 1], [], []>} : vector<32x64xf32>, vector<64x192xf32>, vector<32x192xf32> -> vector<32x192xf32>
    %c3 = arith.constant 3 : index
    %c0_24 = arith.constant 0 : index
    %c0_25 = arith.constant 0 : index
    %63 = vector.load %arg2[%c3, %c0_24, %c0_25] : memref<4x192x256xf32, #tpu.memory_space<vmem>>, vector<1x192x256xf32>
    %64 = vector.shape_cast %63 : vector<1x192x256xf32> to vector<192x256xf32>
    %cst_26 = arith.constant dense<0.000000e+00> : vector<32x256xf32>
    %65 = tpu.matmul %62, %64, %cst_26 {dimension_numbers = #tpu.dot_dimension_numbers<[1], [0], [0], [1], [0, 0, 1, 1], [], []>} : vector<32x192xf32>, vector<192x256xf32>, vector<32x256xf32> -> vector<32x256xf32>
    %66 = arith.addf %50, %65 : vector<32x256xf32>
    %cst_27 = arith.constant 0.000000e+00 : f32
    %67 = vector.broadcast %cst_27 : f32 to vector<32x256xf32>
    %68 = arith.cmpf ogt, %66, %67 : vector<32x256xf32>
    %cst_28 = arith.constant 2.000000e-01 : f32
    %69 = vector.broadcast %cst_28 : f32 to vector<32x256xf32>
    %70 = arith.mulf %69, %66 : vector<32x256xf32>
    %71 = arith.select %68, %66, %70 : vector<32x256xi1>, vector<32x256xf32>
    %cst_29 = arith.constant 0.000000e+00 : f32
    %72 = vector.broadcast %cst_29 : f32 to vector<16x256xf32>
    %73 = tpu.iota {dimensions = array<i32: 0>} : vector<16x32xi32>
    %74 = tpu.iota {dimensions = array<i32: 1>} : vector<16x32xi32>
    %c2_i32_30 = arith.constant 2 : i32
    %75 = vector.broadcast %c2_i32_30 : i32 to vector<16x32xi32>
    %76 = arith.muli %75, %73 : vector<16x32xi32>
    %c0_i32_31 = arith.constant 0 : i32
    %77 = vector.broadcast %c0_i32_31 : i32 to vector<16x32xi32>
    %78 = arith.addi %76, %77 : vector<16x32xi32>
    %c1_i32_32 = arith.constant 1 : i32
    %79 = vector.broadcast %c1_i32_32 : i32 to vector<16x32xi32>
    %80 = arith.subi %78, %79 : vector<16x32xi32>
    %81 = arith.cmpi eq, %74, %80 : vector<16x32xi32>
    %82 = arith.extui %81 : vector<16x32xi1> to vector<16x32xi32>
    %83 = arith.sitofp %82 : vector<16x32xi32> to vector<16x32xf32>
    %cst_33 = arith.constant dense<0.000000e+00> : vector<16x256xf32>
    %84 = tpu.matmul %83, %71, %cst_33 {dimension_numbers = #tpu.dot_dimension_numbers<[1], [0], [0], [1], [0, 0, 1, 1], [], []>} : vector<16x32xf32>, vector<32x256xf32>, vector<16x256xf32> -> vector<16x256xf32>
    %c0_34 = arith.constant 0 : index
    %c0_35 = arith.constant 0 : index
    %c0_36 = arith.constant 0 : index
    %85 = vector.load %arg3[%c0_34, %c0_35, %c0_36] : memref<4x256x256xf32, #tpu.memory_space<vmem>>, vector<1x256x256xf32>
    %86 = vector.shape_cast %85 : vector<1x256x256xf32> to vector<256x256xf32>
    %cst_37 = arith.constant dense<0.000000e+00> : vector<16x256xf32>
    %87 = tpu.matmul %84, %86, %cst_37 {dimension_numbers = #tpu.dot_dimension_numbers<[1], [0], [0], [1], [0, 0, 1, 1], [], []>} : vector<16x256xf32>, vector<256x256xf32>, vector<16x256xf32> -> vector<16x256xf32>
    %88 = arith.addf %72, %87 : vector<16x256xf32>
    %89 = tpu.iota {dimensions = array<i32: 0>} : vector<16x32xi32>
    %90 = tpu.iota {dimensions = array<i32: 1>} : vector<16x32xi32>
    %c2_i32_38 = arith.constant 2 : i32
    %91 = vector.broadcast %c2_i32_38 : i32 to vector<16x32xi32>
    %92 = arith.muli %91, %89 : vector<16x32xi32>
    %c1_i32_39 = arith.constant 1 : i32
    %93 = vector.broadcast %c1_i32_39 : i32 to vector<16x32xi32>
    %94 = arith.addi %92, %93 : vector<16x32xi32>
    %c1_i32_40 = arith.constant 1 : i32
    %95 = vector.broadcast %c1_i32_40 : i32 to vector<16x32xi32>
    %96 = arith.subi %94, %95 : vector<16x32xi32>
    %97 = arith.cmpi eq, %90, %96 : vector<16x32xi32>
    %98 = arith.extui %97 : vector<16x32xi1> to vector<16x32xi32>
    %99 = arith.sitofp %98 : vector<16x32xi32> to vector<16x32xf32>
    %cst_41 = arith.constant dense<0.000000e+00> : vector<16x256xf32>
    %100 = tpu.matmul %99, %71, %cst_41 {dimension_numbers = #tpu.dot_dimension_numbers<[1], [0], [0], [1], [0, 0, 1, 1], [], []>} : vector<16x32xf32>, vector<32x256xf32>, vector<16x256xf32> -> vector<16x256xf32>
    %c1_42 = arith.constant 1 : index
    %c0_43 = arith.constant 0 : index
    %c0_44 = arith.constant 0 : index
    %101 = vector.load %arg3[%c1_42, %c0_43, %c0_44] : memref<4x256x256xf32, #tpu.memory_space<vmem>>, vector<1x256x256xf32>
    %102 = vector.shape_cast %101 : vector<1x256x256xf32> to vector<256x256xf32>
    %cst_45 = arith.constant dense<0.000000e+00> : vector<16x256xf32>
    %103 = tpu.matmul %100, %102, %cst_45 {dimension_numbers = #tpu.dot_dimension_numbers<[1], [0], [0], [1], [0, 0, 1, 1], [], []>} : vector<16x256xf32>, vector<256x256xf32>, vector<16x256xf32> -> vector<16x256xf32>
    %104 = arith.addf %88, %103 : vector<16x256xf32>
    %105 = tpu.iota {dimensions = array<i32: 0>} : vector<16x32xi32>
    %106 = tpu.iota {dimensions = array<i32: 1>} : vector<16x32xi32>
    %c2_i32_46 = arith.constant 2 : i32
    %107 = vector.broadcast %c2_i32_46 : i32 to vector<16x32xi32>
    %108 = arith.muli %107, %105 : vector<16x32xi32>
    %c2_i32_47 = arith.constant 2 : i32
    %109 = vector.broadcast %c2_i32_47 : i32 to vector<16x32xi32>
    %110 = arith.addi %108, %109 : vector<16x32xi32>
    %c1_i32_48 = arith.constant 1 : i32
    %111 = vector.broadcast %c1_i32_48 : i32 to vector<16x32xi32>
    %112 = arith.subi %110, %111 : vector<16x32xi32>
    %113 = arith.cmpi eq, %106, %112 : vector<16x32xi32>
    %114 = arith.extui %113 : vector<16x32xi1> to vector<16x32xi32>
    %115 = arith.sitofp %114 : vector<16x32xi32> to vector<16x32xf32>
    %cst_49 = arith.constant dense<0.000000e+00> : vector<16x256xf32>
    %116 = tpu.matmul %115, %71, %cst_49 {dimension_numbers = #tpu.dot_dimension_numbers<[1], [0], [0], [1], [0, 0, 1, 1], [], []>} : vector<16x32xf32>, vector<32x256xf32>, vector<16x256xf32> -> vector<16x256xf32>
    %c2_50 = arith.constant 2 : index
    %c0_51 = arith.constant 0 : index
    %c0_52 = arith.constant 0 : index
    %117 = vector.load %arg3[%c2_50, %c0_51, %c0_52] : memref<4x256x256xf32, #tpu.memory_space<vmem>>, vector<1x256x256xf32>
    %118 = vector.shape_cast %117 : vector<1x256x256xf32> to vector<256x256xf32>
    %cst_53 = arith.constant dense<0.000000e+00> : vector<16x256xf32>
    %119 = tpu.matmul %116, %118, %cst_53 {dimension_numbers = #tpu.dot_dimension_numbers<[1], [0], [0], [1], [0, 0, 1, 1], [], []>} : vector<16x256xf32>, vector<256x256xf32>, vector<16x256xf32> -> vector<16x256xf32>
    %120 = arith.addf %104, %119 : vector<16x256xf32>
    %121 = tpu.iota {dimensions = array<i32: 0>} : vector<16x32xi32>
    %122 = tpu.iota {dimensions = array<i32: 1>} : vector<16x32xi32>
    %c2_i32_54 = arith.constant 2 : i32
    %123 = vector.broadcast %c2_i32_54 : i32 to vector<16x32xi32>
    %124 = arith.muli %123, %121 : vector<16x32xi32>
    %c3_i32_55 = arith.constant 3 : i32
    %125 = vector.broadcast %c3_i32_55 : i32 to vector<16x32xi32>
    %126 = arith.addi %124, %125 : vector<16x32xi32>
    %c1_i32_56 = arith.constant 1 : i32
    %127 = vector.broadcast %c1_i32_56 : i32 to vector<16x32xi32>
    %128 = arith.subi %126, %127 : vector<16x32xi32>
    %129 = arith.cmpi eq, %122, %128 : vector<16x32xi32>
    %130 = arith.extui %129 : vector<16x32xi1> to vector<16x32xi32>
    %131 = arith.sitofp %130 : vector<16x32xi32> to vector<16x32xf32>
    %cst_57 = arith.constant dense<0.000000e+00> : vector<16x256xf32>
    %132 = tpu.matmul %131, %71, %cst_57 {dimension_numbers = #tpu.dot_dimension_numbers<[1], [0], [0], [1], [0, 0, 1, 1], [], []>} : vector<16x32xf32>, vector<32x256xf32>, vector<16x256xf32> -> vector<16x256xf32>
    %c3_58 = arith.constant 3 : index
    %c0_59 = arith.constant 0 : index
    %c0_60 = arith.constant 0 : index
    %133 = vector.load %arg3[%c3_58, %c0_59, %c0_60] : memref<4x256x256xf32, #tpu.memory_space<vmem>>, vector<1x256x256xf32>
    %134 = vector.shape_cast %133 : vector<1x256x256xf32> to vector<256x256xf32>
    %cst_61 = arith.constant dense<0.000000e+00> : vector<16x256xf32>
    %135 = tpu.matmul %132, %134, %cst_61 {dimension_numbers = #tpu.dot_dimension_numbers<[1], [0], [0], [1], [0, 0, 1, 1], [], []>} : vector<16x256xf32>, vector<256x256xf32>, vector<16x256xf32> -> vector<16x256xf32>
    %136 = arith.addf %120, %135 : vector<16x256xf32>
    %c0_62 = arith.constant 0 : index
    %c0_63 = arith.constant 0 : index
    %137 = vector.load %arg7[%c0_62, %c0_63] : memref<1x256xf32, #tpu.memory_space<vmem>>, vector<1x256xf32>
    %138 = vector.broadcast %137 : vector<1x256xf32> to vector<16x256xf32>
    %139 = arith.addf %136, %138 : vector<16x256xf32>
    %cst_64 = arith.constant 0.000000e+00 : f32
    %140 = vector.broadcast %cst_64 : f32 to vector<16x256xf32>
    %141 = arith.cmpf ogt, %139, %140 : vector<16x256xf32>
    %cst_65 = arith.constant 2.000000e-01 : f32
    %142 = vector.broadcast %cst_65 : f32 to vector<16x256xf32>
    %143 = arith.mulf %142, %139 : vector<16x256xf32>
    %144 = arith.select %141, %139, %143 : vector<16x256xi1>, vector<16x256xf32>
    %cst_66 = arith.constant 0.000000e+00 : f32
    %145 = vector.broadcast %cst_66 : f32 to vector<8x256xf32>
    %146 = tpu.iota {dimensions = array<i32: 0>} : vector<8x16xi32>
    %147 = tpu.iota {dimensions = array<i32: 1>} : vector<8x16xi32>
    %c2_i32_67 = arith.constant 2 : i32
    %148 = vector.broadcast %c2_i32_67 : i32 to vector<8x16xi32>
    %149 = arith.muli %148, %146 : vector<8x16xi32>
    %c0_i32_68 = arith.constant 0 : i32
    %150 = vector.broadcast %c0_i32_68 : i32 to vector<8x16xi32>
    %151 = arith.addi %149, %150 : vector<8x16xi32>
    %c1_i32_69 = arith.constant 1 : i32
    %152 = vector.broadcast %c1_i32_69 : i32 to vector<8x16xi32>
    %153 = arith.subi %151, %152 : vector<8x16xi32>
    %154 = arith.cmpi eq, %147, %153 : vector<8x16xi32>
    %155 = arith.extui %154 : vector<8x16xi1> to vector<8x16xi32>
    %156 = arith.sitofp %155 : vector<8x16xi32> to vector<8x16xf32>
    %cst_70 = arith.constant dense<0.000000e+00> : vector<8x256xf32>
    %157 = tpu.matmul %156, %144, %cst_70 {dimension_numbers = #tpu.dot_dimension_numbers<[1], [0], [0], [1], [0, 0, 1, 1], [], []>} : vector<8x16xf32>, vector<16x256xf32>, vector<8x256xf32> -> vector<8x256xf32>
    %c0_71 = arith.constant 0 : index
    %c0_72 = arith.constant 0 : index
    %c0_73 = arith.constant 0 : index
    %158 = vector.load %arg4[%c0_71, %c0_72, %c0_73] : memref<4x256x256xf32, #tpu.memory_space<vmem>>, vector<1x256x256xf32>
    %159 = vector.shape_cast %158 : vector<1x256x256xf32> to vector<256x256xf32>
    %cst_74 = arith.constant dense<0.000000e+00> : vector<8x256xf32>
    %160 = tpu.matmul %157, %159, %cst_74 {dimension_numbers = #tpu.dot_dimension_numbers<[1], [0], [0], [1], [0, 0, 1, 1], [], []>} : vector<8x256xf32>, vector<256x256xf32>, vector<8x256xf32> -> vector<8x256xf32>
    %161 = arith.addf %145, %160 : vector<8x256xf32>
    %162 = tpu.iota {dimensions = array<i32: 0>} : vector<8x16xi32>
    %163 = tpu.iota {dimensions = array<i32: 1>} : vector<8x16xi32>
    %c2_i32_75 = arith.constant 2 : i32
    %164 = vector.broadcast %c2_i32_75 : i32 to vector<8x16xi32>
    %165 = arith.muli %164, %162 : vector<8x16xi32>
    %c1_i32_76 = arith.constant 1 : i32
    %166 = vector.broadcast %c1_i32_76 : i32 to vector<8x16xi32>
    %167 = arith.addi %165, %166 : vector<8x16xi32>
    %c1_i32_77 = arith.constant 1 : i32
    %168 = vector.broadcast %c1_i32_77 : i32 to vector<8x16xi32>
    %169 = arith.subi %167, %168 : vector<8x16xi32>
    %170 = arith.cmpi eq, %163, %169 : vector<8x16xi32>
    %171 = arith.extui %170 : vector<8x16xi1> to vector<8x16xi32>
    %172 = arith.sitofp %171 : vector<8x16xi32> to vector<8x16xf32>
    %cst_78 = arith.constant dense<0.000000e+00> : vector<8x256xf32>
    %173 = tpu.matmul %172, %144, %cst_78 {dimension_numbers = #tpu.dot_dimension_numbers<[1], [0], [0], [1], [0, 0, 1, 1], [], []>} : vector<8x16xf32>, vector<16x256xf32>, vector<8x256xf32> -> vector<8x256xf32>
    %c1_79 = arith.constant 1 : index
    %c0_80 = arith.constant 0 : index
    %c0_81 = arith.constant 0 : index
    %174 = vector.load %arg4[%c1_79, %c0_80, %c0_81] : memref<4x256x256xf32, #tpu.memory_space<vmem>>, vector<1x256x256xf32>
    %175 = vector.shape_cast %174 : vector<1x256x256xf32> to vector<256x256xf32>
    %cst_82 = arith.constant dense<0.000000e+00> : vector<8x256xf32>
    %176 = tpu.matmul %173, %175, %cst_82 {dimension_numbers = #tpu.dot_dimension_numbers<[1], [0], [0], [1], [0, 0, 1, 1], [], []>} : vector<8x256xf32>, vector<256x256xf32>, vector<8x256xf32> -> vector<8x256xf32>
    %177 = arith.addf %161, %176 : vector<8x256xf32>
    %178 = tpu.iota {dimensions = array<i32: 0>} : vector<8x16xi32>
    %179 = tpu.iota {dimensions = array<i32: 1>} : vector<8x16xi32>
    %c2_i32_83 = arith.constant 2 : i32
    %180 = vector.broadcast %c2_i32_83 : i32 to vector<8x16xi32>
    %181 = arith.muli %180, %178 : vector<8x16xi32>
    %c2_i32_84 = arith.constant 2 : i32
    %182 = vector.broadcast %c2_i32_84 : i32 to vector<8x16xi32>
    %183 = arith.addi %181, %182 : vector<8x16xi32>
    %c1_i32_85 = arith.constant 1 : i32
    %184 = vector.broadcast %c1_i32_85 : i32 to vector<8x16xi32>
    %185 = arith.subi %183, %184 : vector<8x16xi32>
    %186 = arith.cmpi eq, %179, %185 : vector<8x16xi32>
    %187 = arith.extui %186 : vector<8x16xi1> to vector<8x16xi32>
    %188 = arith.sitofp %187 : vector<8x16xi32> to vector<8x16xf32>
    %cst_86 = arith.constant dense<0.000000e+00> : vector<8x256xf32>
    %189 = tpu.matmul %188, %144, %cst_86 {dimension_numbers = #tpu.dot_dimension_numbers<[1], [0], [0], [1], [0, 0, 1, 1], [], []>} : vector<8x16xf32>, vector<16x256xf32>, vector<8x256xf32> -> vector<8x256xf32>
    %c2_87 = arith.constant 2 : index
    %c0_88 = arith.constant 0 : index
    %c0_89 = arith.constant 0 : index
    %190 = vector.load %arg4[%c2_87, %c0_88, %c0_89] : memref<4x256x256xf32, #tpu.memory_space<vmem>>, vector<1x256x256xf32>
    %191 = vector.shape_cast %190 : vector<1x256x256xf32> to vector<256x256xf32>
    %cst_90 = arith.constant dense<0.000000e+00> : vector<8x256xf32>
    %192 = tpu.matmul %189, %191, %cst_90 {dimension_numbers = #tpu.dot_dimension_numbers<[1], [0], [0], [1], [0, 0, 1, 1], [], []>} : vector<8x256xf32>, vector<256x256xf32>, vector<8x256xf32> -> vector<8x256xf32>
    %193 = arith.addf %177, %192 : vector<8x256xf32>
    %194 = tpu.iota {dimensions = array<i32: 0>} : vector<8x16xi32>
    %195 = tpu.iota {dimensions = array<i32: 1>} : vector<8x16xi32>
    %c2_i32_91 = arith.constant 2 : i32
    %196 = vector.broadcast %c2_i32_91 : i32 to vector<8x16xi32>
    %197 = arith.muli %196, %194 : vector<8x16xi32>
    %c3_i32_92 = arith.constant 3 : i32
    %198 = vector.broadcast %c3_i32_92 : i32 to vector<8x16xi32>
    %199 = arith.addi %197, %198 : vector<8x16xi32>
    %c1_i32_93 = arith.constant 1 : i32
    %200 = vector.broadcast %c1_i32_93 : i32 to vector<8x16xi32>
    %201 = arith.subi %199, %200 : vector<8x16xi32>
    %202 = arith.cmpi eq, %195, %201 : vector<8x16xi32>
    %203 = arith.extui %202 : vector<8x16xi1> to vector<8x16xi32>
    %204 = arith.sitofp %203 : vector<8x16xi32> to vector<8x16xf32>
    %cst_94 = arith.constant dense<0.000000e+00> : vector<8x256xf32>
    %205 = tpu.matmul %204, %144, %cst_94 {dimension_numbers = #tpu.dot_dimension_numbers<[1], [0], [0], [1], [0, 0, 1, 1], [], []>} : vector<8x16xf32>, vector<16x256xf32>, vector<8x256xf32> -> vector<8x256xf32>
    %c3_95 = arith.constant 3 : index
    %c0_96 = arith.constant 0 : index
    %c0_97 = arith.constant 0 : index
    %206 = vector.load %arg4[%c3_95, %c0_96, %c0_97] : memref<4x256x256xf32, #tpu.memory_space<vmem>>, vector<1x256x256xf32>
    %207 = vector.shape_cast %206 : vector<1x256x256xf32> to vector<256x256xf32>
    %cst_98 = arith.constant dense<0.000000e+00> : vector<8x256xf32>
    %208 = tpu.matmul %205, %207, %cst_98 {dimension_numbers = #tpu.dot_dimension_numbers<[1], [0], [0], [1], [0, 0, 1, 1], [], []>} : vector<8x256xf32>, vector<256x256xf32>, vector<8x256xf32> -> vector<8x256xf32>
    %209 = arith.addf %193, %208 : vector<8x256xf32>
    %c0_99 = arith.constant 0 : index
    %c0_100 = arith.constant 0 : index
    %210 = vector.load %arg8[%c0_99, %c0_100] : memref<1x256xf32, #tpu.memory_space<vmem>>, vector<1x256xf32>
    %211 = vector.broadcast %210 : vector<1x256xf32> to vector<8x256xf32>
    %212 = arith.addf %209, %211 : vector<8x256xf32>
    %cst_101 = arith.constant 0.000000e+00 : f32
    %213 = vector.broadcast %cst_101 : f32 to vector<8x256xf32>
    %214 = arith.cmpf ogt, %212, %213 : vector<8x256xf32>
    %cst_102 = arith.constant 2.000000e-01 : f32
    %215 = vector.broadcast %cst_102 : f32 to vector<8x256xf32>
    %216 = arith.mulf %215, %212 : vector<8x256xf32>
    %217 = arith.select %214, %212, %216 : vector<8x256xi1>, vector<8x256xf32>
    %cst_103 = arith.constant 0.000000e+00 : f32
    %218 = vector.broadcast %cst_103 : f32 to vector<4x256xf32>
    %219 = tpu.iota {dimensions = array<i32: 0>} : vector<4x8xi32>
    %220 = tpu.iota {dimensions = array<i32: 1>} : vector<4x8xi32>
    %c2_i32_104 = arith.constant 2 : i32
    %221 = vector.broadcast %c2_i32_104 : i32 to vector<4x8xi32>
    %222 = arith.muli %221, %219 : vector<4x8xi32>
    %c0_i32_105 = arith.constant 0 : i32
    %223 = vector.broadcast %c0_i32_105 : i32 to vector<4x8xi32>
    %224 = arith.addi %222, %223 : vector<4x8xi32>
    %c1_i32_106 = arith.constant 1 : i32
    %225 = vector.broadcast %c1_i32_106 : i32 to vector<4x8xi32>
    %226 = arith.subi %224, %225 : vector<4x8xi32>
    %227 = arith.cmpi eq, %220, %226 : vector<4x8xi32>
    %228 = arith.extui %227 : vector<4x8xi1> to vector<4x8xi32>
    %229 = arith.sitofp %228 : vector<4x8xi32> to vector<4x8xf32>
    %cst_107 = arith.constant dense<0.000000e+00> : vector<4x256xf32>
    %230 = tpu.matmul %229, %217, %cst_107 {dimension_numbers = #tpu.dot_dimension_numbers<[1], [0], [0], [1], [0, 0, 1, 1], [], []>} : vector<4x8xf32>, vector<8x256xf32>, vector<4x256xf32> -> vector<4x256xf32>
    %c0_108 = arith.constant 0 : index
    %c0_109 = arith.constant 0 : index
    %c0_110 = arith.constant 0 : index
    %231 = vector.load %arg5[%c0_108, %c0_109, %c0_110] : memref<4x256x256xf32, #tpu.memory_space<vmem>>, vector<1x256x256xf32>
    %232 = vector.shape_cast %231 : vector<1x256x256xf32> to vector<256x256xf32>
    %cst_111 = arith.constant dense<0.000000e+00> : vector<4x256xf32>
    %233 = tpu.matmul %230, %232, %cst_111 {dimension_numbers = #tpu.dot_dimension_numbers<[1], [0], [0], [1], [0, 0, 1, 1], [], []>} : vector<4x256xf32>, vector<256x256xf32>, vector<4x256xf32> -> vector<4x256xf32>
    %234 = arith.addf %218, %233 : vector<4x256xf32>
    %235 = tpu.iota {dimensions = array<i32: 0>} : vector<4x8xi32>
    %236 = tpu.iota {dimensions = array<i32: 1>} : vector<4x8xi32>
    %c2_i32_112 = arith.constant 2 : i32
    %237 = vector.broadcast %c2_i32_112 : i32 to vector<4x8xi32>
    %238 = arith.muli %237, %235 : vector<4x8xi32>
    %c1_i32_113 = arith.constant 1 : i32
    %239 = vector.broadcast %c1_i32_113 : i32 to vector<4x8xi32>
    %240 = arith.addi %238, %239 : vector<4x8xi32>
    %c1_i32_114 = arith.constant 1 : i32
    %241 = vector.broadcast %c1_i32_114 : i32 to vector<4x8xi32>
    %242 = arith.subi %240, %241 : vector<4x8xi32>
    %243 = arith.cmpi eq, %236, %242 : vector<4x8xi32>
    %244 = arith.extui %243 : vector<4x8xi1> to vector<4x8xi32>
    %245 = arith.sitofp %244 : vector<4x8xi32> to vector<4x8xf32>
    %cst_115 = arith.constant dense<0.000000e+00> : vector<4x256xf32>
    %246 = tpu.matmul %245, %217, %cst_115 {dimension_numbers = #tpu.dot_dimension_numbers<[1], [0], [0], [1], [0, 0, 1, 1], [], []>} : vector<4x8xf32>, vector<8x256xf32>, vector<4x256xf32> -> vector<4x256xf32>
    %c1_116 = arith.constant 1 : index
    %c0_117 = arith.constant 0 : index
    %c0_118 = arith.constant 0 : index
    %247 = vector.load %arg5[%c1_116, %c0_117, %c0_118] : memref<4x256x256xf32, #tpu.memory_space<vmem>>, vector<1x256x256xf32>
    %248 = vector.shape_cast %247 : vector<1x256x256xf32> to vector<256x256xf32>
    %cst_119 = arith.constant dense<0.000000e+00> : vector<4x256xf32>
    %249 = tpu.matmul %246, %248, %cst_119 {dimension_numbers = #tpu.dot_dimension_numbers<[1], [0], [0], [1], [0, 0, 1, 1], [], []>} : vector<4x256xf32>, vector<256x256xf32>, vector<4x256xf32> -> vector<4x256xf32>
    %250 = arith.addf %234, %249 : vector<4x256xf32>
    %251 = tpu.iota {dimensions = array<i32: 0>} : vector<4x8xi32>
    %252 = tpu.iota {dimensions = array<i32: 1>} : vector<4x8xi32>
    %c2_i32_120 = arith.constant 2 : i32
    %253 = vector.broadcast %c2_i32_120 : i32 to vector<4x8xi32>
    %254 = arith.muli %253, %251 : vector<4x8xi32>
    %c2_i32_121 = arith.constant 2 : i32
    %255 = vector.broadcast %c2_i32_121 : i32 to vector<4x8xi32>
    %256 = arith.addi %254, %255 : vector<4x8xi32>
    %c1_i32_122 = arith.constant 1 : i32
    %257 = vector.broadcast %c1_i32_122 : i32 to vector<4x8xi32>
    %258 = arith.subi %256, %257 : vector<4x8xi32>
    %259 = arith.cmpi eq, %252, %258 : vector<4x8xi32>
    %260 = arith.extui %259 : vector<4x8xi1> to vector<4x8xi32>
    %261 = arith.sitofp %260 : vector<4x8xi32> to vector<4x8xf32>
    %cst_123 = arith.constant dense<0.000000e+00> : vector<4x256xf32>
    %262 = tpu.matmul %261, %217, %cst_123 {dimension_numbers = #tpu.dot_dimension_numbers<[1], [0], [0], [1], [0, 0, 1, 1], [], []>} : vector<4x8xf32>, vector<8x256xf32>, vector<4x256xf32> -> vector<4x256xf32>
    %c2_124 = arith.constant 2 : index
    %c0_125 = arith.constant 0 : index
    %c0_126 = arith.constant 0 : index
    %263 = vector.load %arg5[%c2_124, %c0_125, %c0_126] : memref<4x256x256xf32, #tpu.memory_space<vmem>>, vector<1x256x256xf32>
    %264 = vector.shape_cast %263 : vector<1x256x256xf32> to vector<256x256xf32>
    %cst_127 = arith.constant dense<0.000000e+00> : vector<4x256xf32>
    %265 = tpu.matmul %262, %264, %cst_127 {dimension_numbers = #tpu.dot_dimension_numbers<[1], [0], [0], [1], [0, 0, 1, 1], [], []>} : vector<4x256xf32>, vector<256x256xf32>, vector<4x256xf32> -> vector<4x256xf32>
    %266 = arith.addf %250, %265 : vector<4x256xf32>
    %267 = tpu.iota {dimensions = array<i32: 0>} : vector<4x8xi32>
    %268 = tpu.iota {dimensions = array<i32: 1>} : vector<4x8xi32>
    %c2_i32_128 = arith.constant 2 : i32
    %269 = vector.broadcast %c2_i32_128 : i32 to vector<4x8xi32>
    %270 = arith.muli %269, %267 : vector<4x8xi32>
    %c3_i32_129 = arith.constant 3 : i32
    %271 = vector.broadcast %c3_i32_129 : i32 to vector<4x8xi32>
    %272 = arith.addi %270, %271 : vector<4x8xi32>
    %c1_i32_130 = arith.constant 1 : i32
    %273 = vector.broadcast %c1_i32_130 : i32 to vector<4x8xi32>
    %274 = arith.subi %272, %273 : vector<4x8xi32>
    %275 = arith.cmpi eq, %268, %274 : vector<4x8xi32>
    %276 = arith.extui %275 : vector<4x8xi1> to vector<4x8xi32>
    %277 = arith.sitofp %276 : vector<4x8xi32> to vector<4x8xf32>
    %cst_131 = arith.constant dense<0.000000e+00> : vector<4x256xf32>
    %278 = tpu.matmul %277, %217, %cst_131 {dimension_numbers = #tpu.dot_dimension_numbers<[1], [0], [0], [1], [0, 0, 1, 1], [], []>} : vector<4x8xf32>, vector<8x256xf32>, vector<4x256xf32> -> vector<4x256xf32>
    %c3_132 = arith.constant 3 : index
    %c0_133 = arith.constant 0 : index
    %c0_134 = arith.constant 0 : index
    %279 = vector.load %arg5[%c3_132, %c0_133, %c0_134] : memref<4x256x256xf32, #tpu.memory_space<vmem>>, vector<1x256x256xf32>
    %280 = vector.shape_cast %279 : vector<1x256x256xf32> to vector<256x256xf32>
    %cst_135 = arith.constant dense<0.000000e+00> : vector<4x256xf32>
    %281 = tpu.matmul %278, %280, %cst_135 {dimension_numbers = #tpu.dot_dimension_numbers<[1], [0], [0], [1], [0, 0, 1, 1], [], []>} : vector<4x256xf32>, vector<256x256xf32>, vector<4x256xf32> -> vector<4x256xf32>
    %282 = arith.addf %266, %281 : vector<4x256xf32>
    %c0_136 = arith.constant 0 : index
    %c0_137 = arith.constant 0 : index
    %283 = vector.load %arg9[%c0_136, %c0_137] : memref<1x256xf32, #tpu.memory_space<vmem>>, vector<1x256xf32>
    %284 = vector.broadcast %283 : vector<1x256xf32> to vector<4x256xf32>
    %285 = arith.addf %282, %284 : vector<4x256xf32>
    %cst_138 = arith.constant 0.000000e+00 : f32
    %286 = vector.broadcast %cst_138 : f32 to vector<4x256xf32>
    %287 = arith.cmpf ogt, %285, %286 : vector<4x256xf32>
    %cst_139 = arith.constant 2.000000e-01 : f32
    %288 = vector.broadcast %cst_139 : f32 to vector<4x256xf32>
    %289 = arith.mulf %288, %285 : vector<4x256xf32>
    %290 = arith.select %287, %285, %289 : vector<4x256xi1>, vector<4x256xf32>
    %cst_140 = arith.constant 0.000000e+00 : f32
    %291 = vector.broadcast %cst_140 : f32 to vector<1x64xf32>
    %292 = tpu.iota {dimensions = array<i32: 0>} : vector<1x4xi32>
    %293 = tpu.iota {dimensions = array<i32: 1>} : vector<1x4xi32>
    %c2_i32_141 = arith.constant 2 : i32
    %294 = vector.broadcast %c2_i32_141 : i32 to vector<1x4xi32>
    %295 = arith.muli %294, %292 : vector<1x4xi32>
    %c0_i32_142 = arith.constant 0 : i32
    %296 = vector.broadcast %c0_i32_142 : i32 to vector<1x4xi32>
    %297 = arith.addi %295, %296 : vector<1x4xi32>
    %c0_i32_143 = arith.constant 0 : i32
    %298 = vector.broadcast %c0_i32_143 : i32 to vector<1x4xi32>
    %299 = arith.subi %297, %298 : vector<1x4xi32>
    %300 = arith.cmpi eq, %293, %299 : vector<1x4xi32>
    %301 = arith.extui %300 : vector<1x4xi1> to vector<1x4xi32>
    %302 = arith.sitofp %301 : vector<1x4xi32> to vector<1x4xf32>
    %cst_144 = arith.constant dense<0.000000e+00> : vector<1x256xf32>
    %303 = tpu.matmul %302, %290, %cst_144 {dimension_numbers = #tpu.dot_dimension_numbers<[1], [0], [0], [1], [0, 0, 1, 1], [], []>} : vector<1x4xf32>, vector<4x256xf32>, vector<1x256xf32> -> vector<1x256xf32>
    %c0_145 = arith.constant 0 : index
    %c0_146 = arith.constant 0 : index
    %c0_147 = arith.constant 0 : index
    %304 = vector.load %arg6[%c0_145, %c0_146, %c0_147] : memref<4x256x64xf32, #tpu.memory_space<vmem>>, vector<1x256x64xf32>
    %305 = vector.shape_cast %304 : vector<1x256x64xf32> to vector<256x64xf32>
    %cst_148 = arith.constant dense<0.000000e+00> : vector<1x64xf32>
    %306 = tpu.matmul %303, %305, %cst_148 {dimension_numbers = #tpu.dot_dimension_numbers<[1], [0], [0], [1], [0, 0, 1, 1], [], []>} : vector<1x256xf32>, vector<256x64xf32>, vector<1x64xf32> -> vector<1x64xf32>
    %307 = arith.addf %291, %306 : vector<1x64xf32>
    %308 = tpu.iota {dimensions = array<i32: 0>} : vector<1x4xi32>
    %309 = tpu.iota {dimensions = array<i32: 1>} : vector<1x4xi32>
    %c2_i32_149 = arith.constant 2 : i32
    %310 = vector.broadcast %c2_i32_149 : i32 to vector<1x4xi32>
    %311 = arith.muli %310, %308 : vector<1x4xi32>
    %c1_i32_150 = arith.constant 1 : i32
    %312 = vector.broadcast %c1_i32_150 : i32 to vector<1x4xi32>
    %313 = arith.addi %311, %312 : vector<1x4xi32>
    %c0_i32_151 = arith.constant 0 : i32
    %314 = vector.broadcast %c0_i32_151 : i32 to vector<1x4xi32>
    %315 = arith.subi %313, %314 : vector<1x4xi32>
    %316 = arith.cmpi eq, %309, %315 : vector<1x4xi32>
    %317 = arith.extui %316 : vector<1x4xi1> to vector<1x4xi32>
    %318 = arith.sitofp %317 : vector<1x4xi32> to vector<1x4xf32>
    %cst_152 = arith.constant dense<0.000000e+00> : vector<1x256xf32>
    %319 = tpu.matmul %318, %290, %cst_152 {dimension_numbers = #tpu.dot_dimension_numbers<[1], [0], [0], [1], [0, 0, 1, 1], [], []>} : vector<1x4xf32>, vector<4x256xf32>, vector<1x256xf32> -> vector<1x256xf32>
    %c1_153 = arith.constant 1 : index
    %c0_154 = arith.constant 0 : index
    %c0_155 = arith.constant 0 : index
    %320 = vector.load %arg6[%c1_153, %c0_154, %c0_155] : memref<4x256x64xf32, #tpu.memory_space<vmem>>, vector<1x256x64xf32>
    %321 = vector.shape_cast %320 : vector<1x256x64xf32> to vector<256x64xf32>
    %cst_156 = arith.constant dense<0.000000e+00> : vector<1x64xf32>
    %322 = tpu.matmul %319, %321, %cst_156 {dimension_numbers = #tpu.dot_dimension_numbers<[1], [0], [0], [1], [0, 0, 1, 1], [], []>} : vector<1x256xf32>, vector<256x64xf32>, vector<1x64xf32> -> vector<1x64xf32>
    %323 = arith.addf %307, %322 : vector<1x64xf32>
    %324 = tpu.iota {dimensions = array<i32: 0>} : vector<1x4xi32>
    %325 = tpu.iota {dimensions = array<i32: 1>} : vector<1x4xi32>
    %c2_i32_157 = arith.constant 2 : i32
    %326 = vector.broadcast %c2_i32_157 : i32 to vector<1x4xi32>
    %327 = arith.muli %326, %324 : vector<1x4xi32>
    %c2_i32_158 = arith.constant 2 : i32
    %328 = vector.broadcast %c2_i32_158 : i32 to vector<1x4xi32>
    %329 = arith.addi %327, %328 : vector<1x4xi32>
    %c0_i32_159 = arith.constant 0 : i32
    %330 = vector.broadcast %c0_i32_159 : i32 to vector<1x4xi32>
    %331 = arith.subi %329, %330 : vector<1x4xi32>
    %332 = arith.cmpi eq, %325, %331 : vector<1x4xi32>
    %333 = arith.extui %332 : vector<1x4xi1> to vector<1x4xi32>
    %334 = arith.sitofp %333 : vector<1x4xi32> to vector<1x4xf32>
    %cst_160 = arith.constant dense<0.000000e+00> : vector<1x256xf32>
    %335 = tpu.matmul %334, %290, %cst_160 {dimension_numbers = #tpu.dot_dimension_numbers<[1], [0], [0], [1], [0, 0, 1, 1], [], []>} : vector<1x4xf32>, vector<4x256xf32>, vector<1x256xf32> -> vector<1x256xf32>
    %c2_161 = arith.constant 2 : index
    %c0_162 = arith.constant 0 : index
    %c0_163 = arith.constant 0 : index
    %336 = vector.load %arg6[%c2_161, %c0_162, %c0_163] : memref<4x256x64xf32, #tpu.memory_space<vmem>>, vector<1x256x64xf32>
    %337 = vector.shape_cast %336 : vector<1x256x64xf32> to vector<256x64xf32>
    %cst_164 = arith.constant dense<0.000000e+00> : vector<1x64xf32>
    %338 = tpu.matmul %335, %337, %cst_164 {dimension_numbers = #tpu.dot_dimension_numbers<[1], [0], [0], [1], [0, 0, 1, 1], [], []>} : vector<1x256xf32>, vector<256x64xf32>, vector<1x64xf32> -> vector<1x64xf32>
    %339 = arith.addf %323, %338 : vector<1x64xf32>
    %340 = tpu.iota {dimensions = array<i32: 0>} : vector<1x4xi32>
    %341 = tpu.iota {dimensions = array<i32: 1>} : vector<1x4xi32>
    %c2_i32_165 = arith.constant 2 : i32
    %342 = vector.broadcast %c2_i32_165 : i32 to vector<1x4xi32>
    %343 = arith.muli %342, %340 : vector<1x4xi32>
    %c3_i32_166 = arith.constant 3 : i32
    %344 = vector.broadcast %c3_i32_166 : i32 to vector<1x4xi32>
    %345 = arith.addi %343, %344 : vector<1x4xi32>
    %c0_i32_167 = arith.constant 0 : i32
    %346 = vector.broadcast %c0_i32_167 : i32 to vector<1x4xi32>
    %347 = arith.subi %345, %346 : vector<1x4xi32>
    %348 = arith.cmpi eq, %341, %347 : vector<1x4xi32>
    %349 = arith.extui %348 : vector<1x4xi1> to vector<1x4xi32>
    %350 = arith.sitofp %349 : vector<1x4xi32> to vector<1x4xf32>
    %cst_168 = arith.constant dense<0.000000e+00> : vector<1x256xf32>
    %351 = tpu.matmul %350, %290, %cst_168 {dimension_numbers = #tpu.dot_dimension_numbers<[1], [0], [0], [1], [0, 0, 1, 1], [], []>} : vector<1x4xf32>, vector<4x256xf32>, vector<1x256xf32> -> vector<1x256xf32>
    %c3_169 = arith.constant 3 : index
    %c0_170 = arith.constant 0 : index
    %c0_171 = arith.constant 0 : index
    %352 = vector.load %arg6[%c3_169, %c0_170, %c0_171] : memref<4x256x64xf32, #tpu.memory_space<vmem>>, vector<1x256x64xf32>
    %353 = vector.shape_cast %352 : vector<1x256x64xf32> to vector<256x64xf32>
    %cst_172 = arith.constant dense<0.000000e+00> : vector<1x64xf32>
    %354 = tpu.matmul %351, %353, %cst_172 {dimension_numbers = #tpu.dot_dimension_numbers<[1], [0], [0], [1], [0, 0, 1, 1], [], []>} : vector<1x256xf32>, vector<256x64xf32>, vector<1x64xf32> -> vector<1x64xf32>
    %355 = arith.addf %339, %354 : vector<1x64xf32>
    %c0_173 = arith.constant 0 : index
    %c0_174 = arith.constant 0 : index
    %356 = vector.load %arg10[%c0_173, %c0_174] : memref<64x32xf32, #tpu.memory_space<vmem>>, vector<64x32xf32>
    %cst_175 = arith.constant dense<0.000000e+00> : vector<1x32xf32>
    %357 = tpu.matmul %355, %356, %cst_175 {dimension_numbers = #tpu.dot_dimension_numbers<[1], [0], [0], [1], [0, 0, 1, 1], [], []>} : vector<1x64xf32>, vector<64x32xf32>, vector<1x32xf32> -> vector<1x32xf32>
    %c0_176 = arith.constant 0 : index
    %c0_177 = arith.constant 0 : index
    %358 = vector.load %arg11[%c0_176, %c0_177] : memref<1x32xf32, #tpu.memory_space<vmem>>, vector<1x32xf32>
    %359 = arith.addf %357, %358 : vector<1x32xf32>
    %360 = math.tanh %359 : vector<1x32xf32>
    %c0_178 = arith.constant 0 : index
    %c0_179 = arith.constant 0 : index
    %c0_180 = arith.constant 0 : index
    %361 = vector.load %arg12[%c0_178, %c0_179, %c0_180] : memref<1x1x32xf32, #tpu.memory_space<vmem>>, vector<1x1x32xf32>
    %362 = vector.shape_cast %361 : vector<1x1x32xf32> to vector<1x32xf32>
    %363 = vector.shape_cast %360 : vector<1x32xf32> to vector<1x1x32xf32>
    tpu.vector_store %arg12[%c0_178, %c0_179, %c0_180], %363 {strides = array<i32>} : memref<1x1x32xf32, #tpu.memory_space<vmem>>, vector<1x1x32xf32>,
    return
  }
  func.func @transform_0(%arg0: i32) -> (i32, i32, i32) {
    %c0_i32 = arith.constant 0 : i32
    %c0_i32_0 = arith.constant 0 : i32
    %c0_i32_1 = arith.constant 0 : i32
    return %arg0, %c0_i32, %c0_i32_0 : i32, i32, i32
  }
  func.func @transform_1(%arg0: i32) -> (i32, i32, i32) {
    %c0_i32 = arith.constant 0 : i32
    %c0_i32_0 = arith.constant 0 : i32
    %c0_i32_1 = arith.constant 0 : i32
    %c0_i32_2 = arith.constant 0 : i32
    return %c0_i32, %c0_i32_0, %c0_i32_1 : i32, i32, i32
  }
  func.func @transform_2(%arg0: i32) -> (i32, i32, i32) {
    %c0_i32 = arith.constant 0 : i32
    %c0_i32_0 = arith.constant 0 : i32
    %c0_i32_1 = arith.constant 0 : i32
    %c0_i32_2 = arith.constant 0 : i32
    return %c0_i32, %c0_i32_0, %c0_i32_1 : i32, i32, i32
  }
  func.func @transform_3(%arg0: i32) -> (i32, i32, i32) {
    %c0_i32 = arith.constant 0 : i32
    %c0_i32_0 = arith.constant 0 : i32
    %c0_i32_1 = arith.constant 0 : i32
    %c0_i32_2 = arith.constant 0 : i32
    return %c0_i32, %c0_i32_0, %c0_i32_1 : i32, i32, i32
  }
  func.func @transform_4(%arg0: i32) -> (i32, i32, i32) {
    %c0_i32 = arith.constant 0 : i32
    %c0_i32_0 = arith.constant 0 : i32
    %c0_i32_1 = arith.constant 0 : i32
    %c0_i32_2 = arith.constant 0 : i32
    return %c0_i32, %c0_i32_0, %c0_i32_1 : i32, i32, i32
  }
  func.func @transform_5(%arg0: i32) -> (i32, i32, i32) {
    %c0_i32 = arith.constant 0 : i32
    %c0_i32_0 = arith.constant 0 : i32
    %c0_i32_1 = arith.constant 0 : i32
    %c0_i32_2 = arith.constant 0 : i32
    return %c0_i32, %c0_i32_0, %c0_i32_1 : i32, i32, i32
  }
  func.func @transform_6(%arg0: i32) -> (i32, i32) {
    %c0_i32 = arith.constant 0 : i32
    %c0_i32_0 = arith.constant 0 : i32
    %c0_i32_1 = arith.constant 0 : i32
    return %c0_i32, %c0_i32_0 : i32, i32
  }
  func.func @transform_7(%arg0: i32) -> (i32, i32) {
    %c0_i32 = arith.constant 0 : i32
    %c0_i32_0 = arith.constant 0 : i32
    %c0_i32_1 = arith.constant 0 : i32
    return %c0_i32, %c0_i32_0 : i32, i32
  }
  func.func @transform_8(%arg0: i32) -> (i32, i32) {
    %c0_i32 = arith.constant 0 : i32
    %c0_i32_0 = arith.constant 0 : i32
    %c0_i32_1 = arith.constant 0 : i32
    return %c0_i32, %c0_i32_0 : i32, i32
  }
  func.func @transform_9(%arg0: i32) -> (i32, i32) {
    %c0_i32 = arith.constant 0 : i32
    %c0_i32_0 = arith.constant 0 : i32
    %c0_i32_1 = arith.constant 0 : i32
    return %c0_i32, %c0_i32_0 : i32, i32
  }
  func.func @transform_10(%arg0: i32) -> (i32, i32) {
    %c0_i32 = arith.constant 0 : i32
    %c0_i32_0 = arith.constant 0 : i32
    %c0_i32_1 = arith.constant 0 : i32
    return %c0_i32, %c0_i32_0 : i32, i32
  }
  func.func @transform_11(%arg0: i32) -> (i32, i32, i32) {
    %c0_i32 = arith.constant 0 : i32
    %c0_i32_0 = arith.constant 0 : i32
    %c0_i32_1 = arith.constant 0 : i32
    return %arg0, %c0_i32, %c0_i32_0 : i32, i32, i32
  }
}

</mosaic_0001>

<llo_original>
// kernel: tile.18
$region0: #{tile.18}
  #allocation0 [shape = 's32[1]{0}', space=sflag, size = 0x4, scoped, tag = 'scoped memory for tile.18']
  %s0 = inlined_call_operand.vmem [shape: f32[16], index: 0, kind: input, shape index: {}]
  %s1 = inlined_call_operand.vmem [shape: f32[16,16], index: 1, kind: output, shape index: {}]
  // Predicated region
  $region2: #{tile.18} parent=0 // pred_check
    _
  $region3: #{tile.18} parent=0 // pred_check_branch
    %3 = sbr.rel (0) target = $region5
  $region4: #{tile.18} parent=0 // pred_region
    _
  $region5: #{tile.18} parent=0 // pred_fallthru
    _
  %v4 = vld [vmem:[%s0] ss:$0 sm:$0xff]
  %5 = vst [vmem:[%s1] sm:$0xff] %v4
  %s6 = scalar_lea.vmem %s1, 8
  %7 = vst [vmem:[%s6] sm:$0xff] %v4

// kernel: tile.19
$region0: #{tile.19}
  %s0 = inlined_call_operand.vmem [shape: f32[16,16], index: 0, kind: input, shape index: {}]
  %s1 = inlined_call_operand.vmem [shape: f32[1,256], index: 1, kind: output, shape index: {}]
  $region1: #{tile.19} parent=0
    #allocation0 [shape = 'u8[8192]{0}', space=vmem, size = 0x2000, scoped, tag = 'scoped mem for output reshape']
    %s2 = smov 3
    %v3 = vld [vmem:[%s0] ss:$8 sm:%s2]
    %vm4 = vcmask 130048
    %5 = vst.msk [vmem:[#allocation0] ss:$8 sm:$0x3] %vm4, %v3
    %s6 = scalar_lea.vmem %s0, 7
    %s7 = smov 3
    %v8 = vld [vmem:[%s6] ss:$8 sm:%s7]
    %9 = vrot.lane.b32.xlu0 %v8, 112
    %v10 = vpop.permute.xlu0 %9
    %vm11 = vcmask 1048448
    %12 = vst.msk [vmem:[#allocation0] ss:$8 sm:$0x3] %vm11, %v10
    %s13 = scalar_lea.vmem %s0, 6
    %s14 = smov 3
    %v15 = vld [vmem:[%s13] ss:$8 sm:%s14]
    %16 = vrot.lane.b32.xlu0 %v15, 96
    %v17 = vpop.permute.xlu0 %16
    %vm18 = vcmask 917248
    %19 = vst.msk [vmem:[#allocation0] ss:$8 sm:$0x3] %vm18, %v17
    %s20 = scalar_lea.vmem %s0, 5
    %s21 = smov 3
    %v22 = vld [vmem:[%s20] ss:$8 sm:%s21]
    %23 = vrot.lane.b32.xlu0 %v22, 80
    %v24 = vpop.permute.xlu0 %23
    %vm25 = vcmask 786048
    %26 = vst.msk [vmem:[#allocation0] ss:$8 sm:$0x3] %vm25, %v24
    %s27 = scalar_lea.vmem %s0, 4
    %s28 = smov 3
    %v29 = vld [vmem:[%s27] ss:$8 sm:%s28]
    %30 = vrot.lane.b32.xlu0 %v29, 64
    %v31 = vpop.permute.xlu0 %30
    %vm32 = vcmask 654848
    %33 = vst.msk [vmem:[#allocation0] ss:$8 sm:$0x3] %vm32, %v31
    %s34 = scalar_lea.vmem %s0, 3
    %s35 = smov 3
    %v36 = vld [vmem:[%s34] ss:$8 sm:%s35]
    %37 = vrot.lane.b32.xlu0 %v36, 48
    %v38 = vpop.permute.xlu0 %37
    %vm39 = vcmask 523648
    %40 = vst.msk [vmem:[#allocation0] ss:$8 sm:$0x3] %vm39, %v38
    %s41 = scalar_lea.vmem %s0, 2
    %s42 = smov 3
    %v43 = vld [vmem:[%s41] ss:$8 sm:%s42]
    %44 = vrot.lane.b32.xlu0 %v43, 32
    %v45 = vpop.permute.xlu0 %44
    %vm46 = vcmask 392448
    %47 = vst.msk [vmem:[#allocation0] ss:$8 sm:$0x3] %vm46, %v45
    %s48 = scalar_lea.vmem %s0, 1
    %s49 = smov 3
    %v50 = vld [vmem:[%s48] ss:$8 sm:%s49]
    %51 = vrot.lane.b32.xlu0 %v50, 16
    %v52 = vpop.permute.xlu0 %51
    %vm53 = vcmask 261248
    %54 = vst.msk [vmem:[#allocation0] ss:$8 sm:$0x3] %vm53, %v52
    %s56 = sshllo.u32 0, 1
    %v58 = vld [vmem:[#allocation0] sm:%s56]
    %s59 = sshllo.u32 0, 1
    %60 = vst [vmem:[%s1] sm:%s59] %v58
    %s61 = scalar_lea.vmem [#allocation0], 8
    %v62 = vld [vmem:[%s61] sm:%s56]
    %s63 = sshllo.u32 0, 1
    %s64 = scalar_lea.vmem %s1, 1
    %65 = vst [vmem:[%s64] sm:%s63] %v62

// kernel: tile.23
$region0: #{tile.23}
  #allocation0 [shape = 's32[1]{0}', space=sflag, size = 0x4, scoped, tag = 'scoped memory for tile.23']
  %s0 = inlined_call_operand.vmem [shape: f32[32], index: 0, kind: input, shape index: {}]
  %s1 = inlined_call_operand.vmem [shape: f32[8,32], index: 1, kind: output, shape index: {}]
  // Predicated region
  $region2: #{tile.23} parent=0 // pred_check
    _
  $region3: #{tile.23} parent=0 // pred_check_branch
    %3 = sbr.rel (0) target = $region5
  $region4: #{tile.23} parent=0 // pred_region
    _
  $region5: #{tile.23} parent=0 // pred_fallthru
    _
  %v4 = vld [vmem:[%s0] ss:$0 sm:$0xff]
  %5 = vst [vmem:[%s1] sm:$0xff] %v4

// kernel: tile.24
$region0: #{tile.24}
  %s0 = inlined_call_operand.vmem [shape: f32[8,32], index: 0, kind: input, shape index: {}]
  %s1 = inlined_call_operand.vmem [shape: f32[1,256], index: 1, kind: output, shape index: {}]
  $region1: #{tile.24} parent=0
    #allocation0 [shape = 'u8[8192]{0}', space=vmem, size = 0x2000, scoped, tag = 'scoped mem for output reshape']
    %s2 = smov 3
    %v3 = vld [vmem:[%s0] ss:$4 sm:%s2]
    %vm4 = vcmask 261120
    %5 = vst.msk [vmem:[#allocation0] ss:$8 sm:$0x3] %vm4, %v3
    %s6 = scalar_lea.vmem %s0, 3
    %s7 = smov 3
    %v8 = vld [vmem:[%s6] ss:$4 sm:%s7]
    %9 = vrot.lane.b32.xlu0 %v8, 96
    %v10 = vpop.permute.xlu0 %9
    %vm11 = vcmask 1048320
    %12 = vst.msk [vmem:[#allocation0] ss:$8 sm:$0x3] %vm11, %v10
    %s13 = scalar_lea.vmem %s0, 2
    %s14 = smov 3
    %v15 = vld [vmem:[%s13] ss:$4 sm:%s14]
    %16 = vrot.lane.b32.xlu0 %v15, 64
    %v17 = vpop.permute.xlu0 %16
    %vm18 = vcmask 785920
    %19 = vst.msk [vmem:[#allocation0] ss:$8 sm:$0x3] %vm18, %v17
    %s20 = scalar_lea.vmem %s0, 1
    %s21 = smov 3
    %v22 = vld [vmem:[%s20] ss:$4 sm:%s21]
    %23 = vrot.lane.b32.xlu0 %v22, 32
    %v24 = vpop.permute.xlu0 %23
    %vm25 = vcmask 523520
    %26 = vst.msk [vmem:[#allocation0] ss:$8 sm:$0x3] %vm25, %v24
    %s28 = sshllo.u32 0, 1
    %v30 = vld [vmem:[#allocation0] sm:%s28]
    %s31 = sshllo.u32 0, 1
    %32 = vst [vmem:[%s1] sm:%s31] %v30
    %s33 = scalar_lea.vmem [#allocation0], 8
    %v34 = vld [vmem:[%s33] sm:%s28]
    %s35 = sshllo.u32 0, 1
    %s36 = scalar_lea.vmem %s1, 1
    %37 = vst [vmem:[%s36] sm:%s35] %v34

// kernel: tile.28
$region0: #{tile.28}
  #allocation0 [shape = 's32[1]{0}', space=sflag, size = 0x4, scoped, tag = 'scoped memory for tile.28']
  %s0 = inlined_call_operand.vmem [shape: f32[64], index: 0, kind: input, shape index: {}]
  %s1 = inlined_call_operand.vmem [shape: f32[4,64], index: 1, kind: output, shape index: {}]
  // Predicated region
  $region2: #{tile.28} parent=0 // pred_check
    _
  $region3: #{tile.28} parent=0 // pred_check_branch
    %3 = sbr.rel (0) target = $region5
  $region4: #{tile.28} parent=0 // pred_region
    _
  $region5: #{tile.28} parent=0 // pred_fallthru
    _
  %v4 = vld [vmem:[%s0] ss:$0 sm:$0xff]
  %5 = vst [vmem:[%s1] sm:$0xf] %v4

// kernel: tile.29
$region0: #{tile.29}
  %s0 = inlined_call_operand.vmem [shape: f32[4,64], index: 0, kind: input, shape index: {}]
  %s1 = inlined_call_operand.vmem [shape: f32[1,256], index: 1, kind: output, shape index: {}]
  $region1: #{tile.29} parent=0
    #allocation0 [shape = 'u8[8192]{0}', space=vmem, size = 0x2000, scoped, tag = 'scoped mem for output reshape']
    #allocation1 [shape = 'u8[4096]{0}', space=vmem, size = 0x1000, scoped, tag = 'scoped mem for input reshape']
    %s3 = sshllo.u32 0, 4
    %v4 = vld [vmem:[%s0] sm:%s3]
    %5 = vst [vmem:[#allocation1] sm:%s3] %v4
    %s6 = smov 3
    %v7 = vld [vmem:[#allocation1] ss:$2 sm:%s6]
    %vm8 = vcmask 523264
    %9 = vst.msk [vmem:[#allocation0] ss:$8 sm:$0x3] %vm8, %v7
    %s10 = scalar_lea.vmem [#allocation1], 1
    %s11 = smov 3
    %v12 = vld [vmem:[%s10] ss:$2 sm:%s11]
    %13 = vrot.lane.b32.xlu0 %v12, 64
    %v14 = vpop.permute.xlu0 %13
    %vm15 = vcmask 1048064
    %16 = vst.msk [vmem:[#allocation0] ss:$8 sm:$0x3] %vm15, %v14
    %s18 = sshllo.u32 0, 1
    %v20 = vld [vmem:[#allocation0] sm:%s18]
    %s21 = sshllo.u32 0, 1
    %22 = vst [vmem:[%s1] sm:%s21] %v20
    %s23 = scalar_lea.vmem [#allocation0], 8
    %v24 = vld [vmem:[%s23] sm:%s18]
    %s25 = sshllo.u32 0, 1
    %s26 = scalar_lea.vmem %s1, 1
    %27 = vst [vmem:[%s26] sm:%s25] %v24

// kernel: celeba_encoder_curve.1
$region0: #{celeba_encoder_curve.1}
  #allocation0 [shape = 'u32[]', space=smem, size = 0x4, offset = 0x4, fixed_abs, tag = 'smem constant byte address 0x4 - core index']
  #allocation1 [shape = 'u32[144,128]{1,0:T(1,128)}', space=vmem, size = 0x12000, scoped, tag = 'internal scratch']
  %s0 = inlined_call_operand.vmem [shape: f32[2,64,192], index: 0, kind: input, shape index: {}]
  %s1 = inlined_call_operand.vmem [shape: f32[4,192,256], index: 1, kind: input, shape index: {}]
  %s2 = inlined_call_operand.vmem [shape: f32[4,256,256], index: 2, kind: input, shape index: {}]
  %s3 = inlined_call_operand.vmem [shape: f32[4,256,256], index: 3, kind: input, shape index: {}]
  %s4 = inlined_call_operand.vmem [shape: f32[4,256,256], index: 4, kind: input, shape index: {}]
  %s5 = inlined_call_operand.vmem [shape: f32[4,256,64], index: 5, kind: input, shape index: {}]
  %s6 = inlined_call_operand.vmem [shape: f32[1,256], index: 6, kind: input, shape index: {}]
  %s7 = inlined_call_operand.vmem [shape: f32[1,256], index: 7, kind: input, shape index: {}]
  %s8 = inlined_call_operand.vmem [shape: f32[1,256], index: 8, kind: input, shape index: {}]
  %s9 = inlined_call_operand.vmem [shape: f32[64,32], index: 9, kind: input, shape index: {}]
  %s10 = inlined_call_operand.vmem [shape: f32[1,32], index: 10, kind: input, shape index: {}]
  %s11 = inlined_call_operand.hbm [shape: f32[2,1,32], index: 11, kind: output, shape index: {}]
  %s12 = sld [smem:[#allocation0]]
  $region77: #{celeba_encoder_curve.1} parent=0
    _
  %s14 = ssub.s32 1, %s12
  %s15 = scalar_select 0, %s14, %s12
  $region1: #{celeba_encoder_curve.1} parent=0
    #allocation2 [shape = 'u8[1024]{0}', space=vmem, size = 0x400, scoped, tag = 'output window, operand 0']
    #allocation3 [shape = 's32[2]{0}', space=sflag, size = 0x8, scoped, tag = 'scoped memory for celeba_encoder_curve.1']
    %16 = vsyncpa [#allocation3], 0
    %s17 = scalar_lea.sflag [#allocation3], 1
    %18 = vsyncpa %s17, 0
    loop: start=0, step=1, limit=4
    $region2: #{celeba_encoder_curve.1} parent=1 // loop_pre_header
      _
    $region3: #{celeba_encoder_curve.1} parent=1 // loop_header
      %s20 = sphi 0, %s24
      %p21 = scmp.ge.s32.totalorder %s20, 4
      %s30 = sphi 0, %s32
      %s33 = sphi 0, %s30
      %s34 = sphi 0, %s33
      %s50 = sphi 0, %s34
      %s54 = sphi 0, %s54
      %s56 = sphi 0, %s54
      %s57 = sphi 0, %s56
      %s71 = sphi 0, %s57
      %s75 = sphi 0, %s75
      %s77 = sphi 0, %s75
      %s78 = sphi 0, %s77
      %s92 = sphi 0, %s78
      %s96 = sphi 0, %s96
      %s98 = sphi 0, %s96
      %s99 = sphi 0, %s98
      %s113 = sphi 0, %s99
      %s117 = sphi 0, %s117
      %s119 = sphi 0, %s117
      %s120 = sphi 0, %s119
      %s134 = sphi 0, %s120
      %s138 = sphi 0, %s138
      %s140 = sphi 0, %s138
      %s141 = sphi 0, %s140
      %s155 = sphi 0, %s141
      %s159 = sphi 0, %s159
      %s161 = sphi 0, %s159
      %s162 = sphi 0, %s161
      %s176 = sphi 0, %s162
      %s180 = sphi 0, %s180
      %s182 = sphi 0, %s180
      %s183 = sphi 0, %s182
      %s197 = sphi 0, %s183
      %s201 = sphi 0, %s201
      %s203 = sphi 0, %s201
      %s204 = sphi 0, %s203
      %s218 = sphi 0, %s204
      %s222 = sphi 0, %s222
      %s224 = sphi 0, %s222
      %s225 = sphi 0, %s224
      %s239 = sphi 0, %s225
      %s243 = sphi 0, %s243
      %s245 = sphi 0, %s243
      %s246 = sphi 0, %s245
      %s260 = sphi 0, %s246
      %s266 = sphi 0, %s268
      %s269 = sphi 0, %s266
      %s270 = sphi 0, %s269
      %s286 = sphi 0, %s270
    $region4: #{celeba_encoder_curve.1} parent=1 // loop_header_branch
      %23 = sbr.rel (%p21) target = $region8
    $region5: #{celeba_encoder_curve.1} parent=1 // loop_body
      %s25 = ssub.s32 %s20, 1
      %s26 = ssub.s32 %s20, 2
      %s27 = sadd.s32 %s20, 1
      %s28 = ssub.s32 %s20, %s27
      %p29 = scmp.eq.s32.totalorder %s28, 0
      %s31 = sadd.s32 %s30, 1
      %s32 = scalar_select %p29, %s30, %s31
      %p35 = pneg %p29
      %p36 = scmp.eq.s32.totalorder %s20, 1
      %p37 = por %p35, %p36
      %p38 = scmp.ne.s32.totalorder %s30, %s33
      %p39 = scmp.eq.s32.totalorder %s20, 0
      %p40 = por %p38, %p39
      %p41 = scmp.ne.s32.totalorder %s30, %s33
      %p42 = scmp.eq.s32.totalorder %s25, 1
      %p43 = por %p41, %p42
      %p44 = scmp.ne.s32.totalorder %s33, %s34
      %p45 = scmp.eq.s32.totalorder %s25, 0
      %p46 = por %p44, %p45
      %p47 = scmp.ne.s32.totalorder %s33, %s34
      %p48 = scmp.eq.s32.totalorder %s26, 1
      %p49 = por %p47, %p48
      %p51 = scmp.ne.s32.totalorder %s34, %s50
      %p52 = scmp.eq.s32.totalorder %s26, 0
      %p53 = por %p51, %p52
      %s55 = sadd.s32 %s54, 1
      %p58 = scmp.eq.s32.totalorder %s20, 1
      %p59 = scmp.ne.s32.totalorder %s54, %s56
      %p60 = scmp.eq.s32.totalorder %s20, 0
      %p61 = por %p59, %p60
      %p62 = scmp.ne.s32.totalorder %s54, %s56
      %p63 = scmp.eq.s32.totalorder %s25, 1
      %p64 = por %p62, %p63
      %p65 = scmp.ne.s32.totalorder %s56, %s57
      %p66 = scmp.eq.s32.totalorder %s25, 0
      %p67 = por %p65, %p66
      %p68 = scmp.ne.s32.totalorder %s56, %s57
      %p69 = scmp.eq.s32.totalorder %s26, 1
      %p70 = por %p68, %p69
      %p72 = scmp.ne.s32.totalorder %s57, %s71
      %p73 = scmp.eq.s32.totalorder %s26, 0
      %p74 = por %p72, %p73
      %s76 = sadd.s32 %s75, 1
      %p79 = scmp.eq.s32.totalorder %s20, 1
      %p80 = scmp.ne.s32.totalorder %s75, %s77
      %p81 = scmp.eq.s32.totalorder %s20, 0
      %p82 = por %p80, %p81
      %p83 = scmp.ne.s32.totalorder %s75, %s77
      %p84 = scmp.eq.s32.totalorder %s25, 1
      %p85 = por %p83, %p84
      %p86 = scmp.ne.s32.totalorder %s77, %s78
      %p87 = scmp.eq.s32.totalorder %s25, 0
      %p88 = por %p86, %p87
      %p89 = scmp.ne.s32.totalorder %s77, %s78
      %p90 = scmp.eq.s32.totalorder %s26, 1
      %p91 = por %p89, %p90
      %p93 = scmp.ne.s32.totalorder %s78, %s92
      %p94 = scmp.eq.s32.totalorder %s26, 0
      %p95 = por %p93, %p94
      %s97 = sadd.s32 %s96, 1
      %p100 = scmp.eq.s32.totalorder %s20, 1
      %p101 = scmp.ne.s32.totalorder %s96, %s98
      %p102 = scmp.eq.s32.totalorder %s20, 0
      %p103 = por %p101, %p102
      %p104 = scmp.ne.s32.totalorder %s96, %s98
      %p105 = scmp.eq.s32.totalorder %s25, 1
      %p106 = por %p104, %p105
      %p107 = scmp.ne.s32.totalorder %s98, %s99
      %p108 = scmp.eq.s32.totalorder %s25, 0
      %p109 = por %p107, %p108
      %p110 = scmp.ne.s32.totalorder %s98, %s99
      %p111 = scmp.eq.s32.totalorder %s26, 1
      %p112 = por %p110, %p111
      %p114 = scmp.ne.s32.totalorder %s99, %s113
      %p115 = scmp.eq.s32.totalorder %s26, 0
      %p116 = por %p114, %p115
      %s118 = sadd.s32 %s117, 1
      %p121 = scmp.eq.s32.totalorder %s20, 1
      %p122 = scmp.ne.s32.totalorder %s117, %s119
      %p123 = scmp.eq.s32.totalorder %s20, 0
      %p124 = por %p122, %p123
      %p125 = scmp.ne.s32.totalorder %s117, %s119
      %p126 = scmp.eq.s32.totalorder %s25, 1
      %p127 = por %p125, %p126
      %p128 = scmp.ne.s32.totalorder %s119, %s120
      %p129 = scmp.eq.s32.totalorder %s25, 0
      %p130 = por %p128, %p129
      %p131 = scmp.ne.s32.totalorder %s119, %s120
      %p132 = scmp.eq.s32.totalorder %s26, 1
      %p133 = por %p131, %p132
      %p135 = scmp.ne.s32.totalorder %s120, %s134
      %p136 = scmp.eq.s32.totalorder %s26, 0
      %p137 = por %p135, %p136
      %s139 = sadd.s32 %s138, 1
      %p142 = scmp.eq.s32.totalorder %s20, 1
      %p143 = scmp.ne.s32.totalorder %s138, %s140
      %p144 = scmp.eq.s32.totalorder %s20, 0
      %p145 = por %p143, %p144
      %p146 = scmp.ne.s32.totalorder %s138, %s140
      %p147 = scmp.eq.s32.totalorder %s25, 1
      %p148 = por %p146, %p147
      %p149 = scmp.ne.s32.totalorder %s140, %s141
      %p150 = scmp.eq.s32.totalorder %s25, 0
      %p151 = por %p149, %p150
      %p152 = scmp.ne.s32.totalorder %s140, %s141
      %p153 = scmp.eq.s32.totalorder %s26, 1
      %p154 = por %p152, %p153
      %p156 = scmp.ne.s32.totalorder %s141, %s155
      %p157 = scmp.eq.s32.totalorder %s26, 0
      %p158 = por %p156, %p157
      %s160 = sadd.s32 %s159, 1
      %p163 = scmp.eq.s32.totalorder %s20, 1
      %p164 = scmp.ne.s32.totalorder %s159, %s161
      %p165 = scmp.eq.s32.totalorder %s20, 0
      %p166 = por %p164, %p165
      %p167 = scmp.ne.s32.totalorder %s159, %s161
      %p168 = scmp.eq.s32.totalorder %s25, 1
      %p169 = por %p167, %p168
      %p170 = scmp.ne.s32.totalorder %s161, %s162
      %p171 = scmp.eq.s32.totalorder %s25, 0
      %p172 = por %p170, %p171
      %p173 = scmp.ne.s32.totalorder %s161, %s162
      %p174 = scmp.eq.s32.totalorder %s26, 1
      %p175 = por %p173, %p174
      %p177 = scmp.ne.s32.totalorder %s162, %s176
      %p178 = scmp.eq.s32.totalorder %s26, 0
      %p179 = por %p177, %p178
      %s181 = sadd.s32 %s180, 1
      %p184 = scmp.eq.s32.totalorder %s20, 1
      %p185 = scmp.ne.s32.totalorder %s180, %s182
      %p186 = scmp.eq.s32.totalorder %s20, 0
      %p187 = por %p185, %p186
      %p188 = scmp.ne.s32.totalorder %s180, %s182
      %p189 = scmp.eq.s32.totalorder %s25, 1
      %p190 = por %p188, %p189
      %p191 = scmp.ne.s32.totalorder %s182, %s183
      %p192 = scmp.eq.s32.totalorder %s25, 0
      %p193 = por %p191, %p192
      %p194 = scmp.ne.s32.totalorder %s182, %s183
      %p195 = scmp.eq.s32.totalorder %s26, 1
      %p196 = por %p194, %p195
      %p198 = scmp.ne.s32.totalorder %s183, %s197
      %p199 = scmp.eq.s32.totalorder %s26, 0
      %p200 = por %p198, %p199
      %s202 = sadd.s32 %s201, 1
      %p205 = scmp.eq.s32.totalorder %s20, 1
      %p206 = scmp.ne.s32.totalorder %s201, %s203
      %p207 = scmp.eq.s32.totalorder %s20, 0
      %p208 = por %p206, %p207
      %p209 = scmp.ne.s32.totalorder %s201, %s203
      %p210 = scmp.eq.s32.totalorder %s25, 1
      %p211 = por %p209, %p210
      %p212 = scmp.ne.s32.totalorder %s203, %s204
      %p213 = scmp.eq.s32.totalorder %s25, 0
      %p214 = por %p212, %p213
      %p215 = scmp.ne.s32.totalorder %s203, %s204
      %p216 = scmp.eq.s32.totalorder %s26, 1
      %p217 = por %p215, %p216
      %p219 = scmp.ne.s32.totalorder %s204, %s218
      %p220 = scmp.eq.s32.totalorder %s26, 0
      %p221 = por %p219, %p220
      %s223 = sadd.s32 %s222, 1
      %p226 = scmp.eq.s32.totalorder %s20, 1
      %p227 = scmp.ne.s32.totalorder %s222, %s224
      %p228 = scmp.eq.s32.totalorder %s20, 0
      %p229 = por %p227, %p228
      %p230 = scmp.ne.s32.totalorder %s222, %s224
      %p231 = scmp.eq.s32.totalorder %s25, 1
      %p232 = por %p230, %p231
      %p233 = scmp.ne.s32.totalorder %s224, %s225
      %p234 = scmp.eq.s32.totalorder %s25, 0
      %p235 = por %p233, %p234
      %p236 = scmp.ne.s32.totalorder %s224, %s225
      %p237 = scmp.eq.s32.totalorder %s26, 1
      %p238 = por %p236, %p237
      %p240 = scmp.ne.s32.totalorder %s225, %s239
      %p241 = scmp.eq.s32.totalorder %s26, 0
      %p242 = por %p240, %p241
      %s244 = sadd.s32 %s243, 1
      %p247 = scmp.eq.s32.totalorder %s20, 1
      %p248 = scmp.ne.s32.totalorder %s243, %s245
      %p249 = scmp.eq.s32.totalorder %s20, 0
      %p250 = por %p248, %p249
      %p251 = scmp.ne.s32.totalorder %s243, %s245
      %p252 = scmp.eq.s32.totalorder %s25, 1
      %p253 = por %p251, %p252
      %p254 = scmp.ne.s32.totalorder %s245, %s246
      %p255 = scmp.eq.s32.totalorder %s25, 0
      %p256 = por %p254, %p255
      %p257 = scmp.ne.s32.totalorder %s245, %s246
      %p258 = scmp.eq.s32.totalorder %s26, 1
      %p259 = por %p257, %p258
      %p261 = scmp.ne.s32.totalorder %s246, %s260
      %p262 = scmp.eq.s32.totalorder %s26, 0
      %p263 = por %p261, %p262
      %s264 = ssub.s32 %s20, %s27
      %p265 = scmp.eq.s32.totalorder %s264, 0
      %s267 = sadd.s32 %s266, 1
      %s268 = scalar_select %p265, %s266, %s267
      %p271 = pneg %p265
      %p272 = scmp.eq.s32.totalorder %s20, 1
      %p273 = por %p271, %p272
      %p274 = scmp.ne.s32.totalorder %s266, %s269
      %p275 = scmp.eq.s32.totalorder %s20, 0
      %p276 = por %p274, %p275
      %p277 = scmp.ne.s32.totalorder %s266, %s269
      %p278 = scmp.eq.s32.totalorder %s25, 1
      %p279 = por %p277, %p278
      %p280 = scmp.ne.s32.totalorder %s269, %s270
      %p281 = scmp.eq.s32.totalorder %s25, 0
      %p282 = por %p280, %p281
      %p283 = scmp.ne.s32.totalorder %s269, %s270
      %p284 = scmp.eq.s32.totalorder %s26, 1
      %p285 = por %p283, %p284
      %p287 = scmp.ne.s32.totalorder %s270, %s286
      %p288 = scmp.eq.s32.totalorder %s26, 0
      %p289 = por %p287, %p288
      %p290 = scmp.le.s32.totalorder 1, %s20
      %p291 = scmp.lt.s32.totalorder %s20, 3
      %p292 = pnand %p290, %p291
      %p293 = pneg %p292
      // Predicated region
      $region9: #{celeba_encoder_curve.1} parent=5 // pred_check
        _
      $region10: #{celeba_encoder_curve.1} parent=5 // pred_check_branch
        %295 = sbr.rel (%p292) target = $region12
      $region11: #{celeba_encoder_curve.1} parent=5 // pred_region
        %s296 = ssub.s32 %s20, 1
        // Predicated region
        $region13: #{celeba_encoder_curve.1} parent=11 // pred_check
          %p297 = pneg %p67
        $region14: #{celeba_encoder_curve.1} parent=11 // pred_check_branch
          %299 = sbr.rel (%p297) target = $region16
        $region15: #{celeba_encoder_curve.1} parent=11 // pred_region
          _
        $region16: #{celeba_encoder_curve.1} parent=11 // pred_fallthru
          _
        // Predicated region
        $region17: #{celeba_encoder_curve.1} parent=11 // pred_check
          %p300 = pneg %p88
        $region18: #{celeba_encoder_curve.1} parent=11 // pred_check_branch
          %302 = sbr.rel (%p300) target = $region20
        $region19: #{celeba_encoder_curve.1} parent=11 // pred_region
          _
        $region20: #{celeba_encoder_curve.1} parent=11 // pred_fallthru
          _
        // Predicated region
        $region21: #{celeba_encoder_curve.1} parent=11 // pred_check
          %p303 = pneg %p109
        $region22: #{celeba_encoder_curve.1} parent=11 // pred_check_branch
          %305 = sbr.rel (%p303) target = $region24
        $region23: #{celeba_encoder_curve.1} parent=11 // pred_region
          _
        $region24: #{celeba_encoder_curve.1} parent=11 // pred_fallthru
          _
        // Predicated region
        $region25: #{celeba_encoder_curve.1} parent=11 // pred_check
          %p306 = pneg %p130
        $region26: #{celeba_encoder_curve.1} parent=11 // pred_check_branch
          %308 = sbr.rel (%p306) target = $region28
        $region27: #{celeba_encoder_curve.1} parent=11 // pred_region
          _
        $region28: #{celeba_encoder_curve.1} parent=11 // pred_fallthru
          _
        // Predicated region
        $region29: #{celeba_encoder_curve.1} parent=11 // pred_check
          %p309 = pneg %p151
        $region30: #{celeba_encoder_curve.1} parent=11 // pred_check_branch
          %311 = sbr.rel (%p309) target = $region32
        $region31: #{celeba_encoder_curve.1} parent=11 // pred_region
          _
        $region32: #{celeba_encoder_curve.1} parent=11 // pred_fallthru
          _
        // Predicated region
        $region33: #{celeba_encoder_curve.1} parent=11 // pred_check
          %p312 = pneg %p172
        $region34: #{celeba_encoder_curve.1} parent=11 // pred_check_branch
          %314 = sbr.rel (%p312) target = $region36
        $region35: #{celeba_encoder_curve.1} parent=11 // pred_region
          _
        $region36: #{celeba_encoder_curve.1} parent=11 // pred_fallthru
          _
        // Predicated region
        $region37: #{celeba_encoder_curve.1} parent=11 // pred_check
          %p315 = pneg %p193
        $region38: #{celeba_encoder_curve.1} parent=11 // pred_check_branch
          %317 = sbr.rel (%p315) target = $region40
        $region39: #{celeba_encoder_curve.1} parent=11 // pred_region
          _
        $region40: #{celeba_encoder_curve.1} parent=11 // pred_fallthru
          _
        // Predicated region
        $region41: #{celeba_encoder_curve.1} parent=11 // pred_check
          %p318 = pneg %p214
        $region42: #{celeba_encoder_curve.1} parent=11 // pred_check_branch
          %320 = sbr.rel (%p318) target = $region44
        $region43: #{celeba_encoder_curve.1} parent=11 // pred_region
          _
        $region44: #{celeba_encoder_curve.1} parent=11 // pred_fallthru
          _
        // Predicated region
        $region45: #{celeba_encoder_curve.1} parent=11 // pred_check
          %p321 = pneg %p235
        $region46: #{celeba_encoder_curve.1} parent=11 // pred_check_branch
          %323 = sbr.rel (%p321) target = $region48
        $region47: #{celeba_encoder_curve.1} parent=11 // pred_region
          _
        $region48: #{celeba_encoder_curve.1} parent=11 // pred_fallthru
          _
        // Predicated region
        $region49: #{celeba_encoder_curve.1} parent=11 // pred_check
          %p324 = pneg %p256
        $region50: #{celeba_encoder_curve.1} parent=11 // pred_check_branch
          %326 = sbr.rel (%p324) target = $region52
        $region51: #{celeba_encoder_curve.1} parent=11 // pred_region
          _
        $region52: #{celeba_encoder_curve.1} parent=11 // pred_fallthru
          _
      $region12: #{celeba_encoder_curve.1} parent=5 // pred_fallthru
        _
      %p327 = scmp.lt.s32.totalorder %s20, 2
      // Predicated region
      $region53: #{celeba_encoder_curve.1} parent=5 // pred_check
        %p328 = pneg %p327
      $region54: #{celeba_encoder_curve.1} parent=5 // pred_check_branch
        %330 = sbr.rel (%p328) target = $region56
      $region55: #{celeba_encoder_curve.1} parent=5 // pred_region
        // Predicated region
        $region57: #{celeba_encoder_curve.1} parent=55 // pred_check
          %p331 = pneg %p40
        $region58: #{celeba_encoder_curve.1} parent=55 // pred_check_branch
          %333 = sbr.rel (%p331) target = $region60
        $region59: #{celeba_encoder_curve.1} parent=55 // pred_region
          %p334 = scmp.lt.s32.totalorder %s20, 1
          %s335 = scalar_select %p334, %s20, 1
          %s336 = smul.addr %s335, 16
          %s337 = smul.addr %s336, 8
          %s338 = scalar_lea.vmem %s0, %s337
        $region60: #{celeba_encoder_curve.1} parent=55 // pred_fallthru
          _
      $region56: #{celeba_encoder_curve.1} parent=5 // pred_fallthru
        _
      %p339 = scmp.le.s32.totalorder 1, %s20
      %p340 = scmp.lt.s32.totalorder %s20, 3
      %p341 = pnand %p339, %p340
      %p342 = pneg %p341
      // Predicated region
      $region61: #{celeba_encoder_curve.1} parent=5 // pred_check
        _
      $region62: #{celeba_encoder_curve.1} parent=5 // pred_check_branch
        %344 = sbr.rel (%p341) target = $region64
      $region63: #{celeba_encoder_curve.1} parent=5 // pred_region
        %s345 = ssub.s32 %s20, 1
        %p346 = scmp.lt.s32.totalorder %s25, 1
        %s347 = scalar_select %p346, %s25, 1
        %s348 = smul.addr %s347, 16
        %s349 = smul.addr %s348, 8
        %s350 = scalar_lea.vmem %s0, %s349
        %p351 = pneg %p46
        %p352 = pneg %p43
        %p353 = pneg %p67
        %p354 = pneg %p64
        %p355 = pneg %p88
        %p356 = pneg %p85
        %p357 = pneg %p109
        %p358 = pneg %p106
        %p359 = pneg %p130
        %p360 = pneg %p127
        %p361 = pneg %p151
        %p362 = pneg %p148
        %p363 = pneg %p172
        %p364 = pneg %p169
        %p365 = pneg %p193
        %p366 = pneg %p190
        %p367 = pneg %p214
        %p368 = pneg %p211
        %p369 = pneg %p235
        %p370 = pneg %p232
        %p371 = pneg %p256
        %p372 = pneg %p253
        %p373 = pneg %p282
        %p374 = pneg %p279
        %s375 = sand.u32 %s269, 1
        %s376 = scalar_lea.sflag [#allocation3], %s375
        %s377 = sand.u32 %s269, 1
        %s378 = scalar_lea.vmem [#allocation2], %s377
        %p379 = scmp.lt.s32.totalorder %s25, 1
        %s380 = scalar_select %p379, %s25, 1
        %s381 = smul.addr %s380, 16
        %s382 = smul.addr %s381, 8
        %s383 = scalar_lea.vmem %s0, %s382
        %v384 = vld [vmem:[%s383] sm:$0xff]
        %v385 = vld [vmem:[%s383 + $0x8] sm:$0xff]
        %v386 = vld [vmem:[%s383 + $0x10] sm:$0xff]
        %v387 = vld [vmem:[%s383 + $0x18] sm:$0xff]
        %v388 = vld [vmem:[%s383 + $0x20] sm:$0xff]
        %v389 = vld [vmem:[%s383 + $0x28] sm:$0xff]
        %v390 = vld [vmem:[%s383 + $0x30] sm:$0xff]
        %v391 = vld [vmem:[%s383 + $0x38] sm:$0xff]
        %v392 = vld [vmem:[%s383 + $0x40] sm:$0xff]
        %v393 = vld [vmem:[%s383 + $0x48] sm:$0xff]
        %v394 = vld [vmem:[%s383 + $0x50] sm:$0xff]
        %v395 = vld [vmem:[%s383 + $0x58] sm:$0xff]
        %v396 = vld [vmem:[%s383 + $0x60] sm:$0xff]
        %v397 = vld [vmem:[%s383 + $0x68] sm:$0xff]
        %v398 = vld [vmem:[%s383 + $0x70] sm:$0xff]
        %v399 = vld [vmem:[%s383 + $0x78] sm:$0xff]
        %v400 = vlaneseq
        %v401 = vshrl.u32 %v400, 7
        %v402 = vadd.s32 %v401, 8
        %v403 = vadd.s32 %v401, 16
        %v404 = vadd.s32 %v401, 24
        %v405 = vlaneseq
        %v406 = vand.u32 %v405, 127
        %v407 = vmul.u32 %v401, 2
        %v408 = vmul.u32 %v402, 2
        %v409 = vmul.u32 %v403, 2
        %v410 = vmul.u32 %v404, 2
        %v411 = vsub.s32 %v407, 1
        %v412 = vsub.s32 %v408, 1
        %v413 = vsub.s32 %v409, 1
        %v414 = vsub.s32 %v410, 1
        %vm415 = vcmp.eq.s32.totalorder %v406, %v411
        %vm416 = vcmp.eq.s32.totalorder %v406, %v412
        %vm417 = vcmp.eq.s32.totalorder %v406, %v413
        %vm418 = vcmp.eq.s32.totalorder %v406, %v414
        %v419 = vsel %vm415, 1, 0
        %v420 = vsel %vm416, 1, 0
        %v421 = vsel %vm417, 1, 0
        %v422 = vsel %vm418, 1, 0
        %v423 = vcvt.s32.f32 %v419
        %v424 = vcvt.s32.f32 %v420
        %v425 = vcvt.s32.f32 %v421
        %v426 = vcvt.s32.f32 %v422
        %vm427 = vcmask 523264
        %v429 = vsel %vm427, %v423, 0
        %v432 = vsel %vm427, %v424, 0
        %v435 = vsel %vm427, %v425, 0
        %v438 = vsel %vm427, %v426, 0
        %440 = vmatprep.subr.mxu0 %v385
        %441 = vmatpush1.msra.mxu0 %v384
        %442 = vmatprep.subr.mxu0 %v387
        %443 = vmatpush1.msra.mxu0 %v386
        %444 = vmatprep.subr.mxu0 %v389
        %445 = vmatpush1.msra.mxu0 %v388
        %446 = vmatprep.subr.mxu0 %v391
        %447 = vmatpush1.msra.mxu0 %v390
        %448 = vmatprep.subr.mxu0 %v393
        %449 = vmatpush1.msra.mxu0 %v392
        %450 = vmatprep.subr.mxu0 %v395
        %451 = vmatpush1.msra.mxu0 %v394
        %452 = vmatprep.subr.mxu0 %v397
        %453 = vmatpush1.msra.mxu0 %v396
        %454 = vmatprep.subr.mxu0 %v399
        %455 = vmatpush1.msra.mxu0 %v398
        %456 = vmatprep.subr.mxu0 0.0
        %457 = vmatpush1.msra.mxu0 0.0
        %458 = vmatprep.subr.mxu0 0.0
        %459 = vmatpush1.msra.mxu0 0.0
        %460 = vmatprep.subr.mxu0 0.0
        %461 = vmatpush1.msra.mxu0 0.0
        %462 = vmatprep.subr.mxu0 0.0
        %463 = vmatpush1.msra.mxu0 0.0
        %464 = vmatprep.subr.mxu0 0.0
        %465 = vmatpush1.msra.mxu0 0.0
        %466 = vmatprep.subr.mxu0 0.0
        %467 = vmatpush1.msra.mxu0 0.0
        %468 = vmatprep.subr.mxu0 0.0
        %469 = vmatpush1.msra.mxu0 0.0
        %470 = vmatprep.subr.mxu0 0.0
        %471 = vmatpush1.msra.mxu0 0.0
        %472 = vmatprep.subr.mxu0 0.0
        %473 = vmatpush1.msra.mxu0 0.0
        %474 = vmatprep.subr.mxu0 0.0
        %475 = vmatpush1.msra.mxu0 0.0
        %476 = vmatprep.subr.mxu0 0.0
        %477 = vmatpush1.msra.mxu0 0.0
        %478 = vmatprep.subr.mxu0 0.0
        %479 = vmatpush1.msra.mxu0 0.0
        %480 = vmatprep.subr.mxu0 0.0
        %481 = vmatpush1.msra.mxu0 0.0
        %482 = vmatprep.subr.mxu0 0.0
        %483 = vmatpush1.msra.mxu0 0.0
        %484 = vmatprep.subr.mxu0 0.0
        %485 = vmatpush1.msra.mxu0 0.0
        %486 = vmatprep.subr.mxu0 0.0
        %487 = vmatpush1.msra.mxu0 0.0
        %488 = vmatprep.subr.mxu0 0.0
        %489 = vmatpush1.msra.mxu0 0.0
        %490 = vmatprep.subr.mxu0 0.0
        %491 = vmatpush1.msra.mxu0 0.0
        %492 = vmatprep.subr.mxu0 0.0
        %493 = vmatpush1.msra.mxu0 0.0
        %494 = vmatprep.subr.mxu0 0.0
        %495 = vmatpush1.msra.mxu0 0.0
        %496 = vmatprep.subr.mxu0 0.0
        %497 = vmatpush1.msra.mxu0 0.0
        %498 = vmatprep.subr.mxu0 0.0
        %499 = vmatpush1.msra.mxu0 0.0
        %500 = vmatprep.subr.mxu0 0.0
        %501 = vmatpush1.msra.mxu0 0.0
        %502 = vmatprep.subr.mxu0 0.0
        %503 = vmatpush1.msra.mxu0 0.0
        %504 = vmatprep.mubr.f32.mxu0 0.0
        %505 = vmatmul.mubr.f32.gmra.mrb[0].mxu0 %v429
        %v506 = vpop.f32.mrb[0].mxu0
        %v507 = vadd.f32 0.0, %v506
        %v508 = vpop.f32.mrb[0].mxu0
        %v509 = vadd.f32 0.0, %v508
        %510 = vmatprep.mubr.f32.mxu0 0.0
        %511 = vmatmul.mubr.f32.gmra.mrb[0].mxu0 %v432
        %v512 = vpop.f32.mrb[0].mxu0
        %v513 = vadd.f32 0.0, %v512
        %v514 = vpop.f32.mrb[0].mxu0
        %v515 = vadd.f32 0.0, %v514
        %516 = vmatprep.mubr.f32.mxu0 0.0
        %517 = vmatmul.mubr.f32.gmra.mrb[0].mxu0 %v435
        %v518 = vpop.f32.mrb[0].mxu0
        %v519 = vadd.f32 0.0, %v518
        %v520 = vpop.f32.mrb[0].mxu0
        %v521 = vadd.f32 0.0, %v520
        %522 = vmatprep.mubr.f32.mxu0 0.0
        %523 = vmatmul.mubr.f32.gmra.mrb[0].mxu0 %v438
        %v524 = vpop.f32.mrb[0].mxu0
        %v525 = vadd.f32 0.0, %v524
        %v526 = vpop.f32.mrb[0].mxu0
        %v527 = vadd.f32 0.0, %v526
        %528 = vdwg.mxu0
        %v529 = vld [vmem:[%s1] sm:$0xff]
        %v530 = vld [vmem:[%s1 + $0x8] sm:$0xff]
        %v531 = vld [vmem:[%s1 + $0x10] sm:$0xff]
        %v532 = vld [vmem:[%s1 + $0x18] sm:$0xff]
        %v533 = vld [vmem:[%s1 + $0x20] sm:$0xff]
        %v534 = vld [vmem:[%s1 + $0x28] sm:$0xff]
        %v535 = vld [vmem:[%s1 + $0x30] sm:$0xff]
        %v536 = vld [vmem:[%s1 + $0x38] sm:$0xff]
        %v537 = vld [vmem:[%s1 + $0x40] sm:$0xff]
        %v538 = vld [vmem:[%s1 + $0x48] sm:$0xff]
        %v539 = vld [vmem:[%s1 + $0x50] sm:$0xff]
        %v540 = vld [vmem:[%s1 + $0x58] sm:$0xff]
        %v541 = vld [vmem:[%s1 + $0x60] sm:$0xff]
        %v542 = vld [vmem:[%s1 + $0x68] sm:$0xff]
        %v543 = vld [vmem:[%s1 + $0x70] sm:$0xff]
        %v544 = vld [vmem:[%s1 + $0x78] sm:$0xff]
        %v545 = vld [vmem:[%s1 + $0x80] sm:$0xff]
        %v546 = vld [vmem:[%s1 + $0x88] sm:$0xff]
        %v547 = vld [vmem:[%s1 + $0x90] sm:$0xff]
        %v548 = vld [vmem:[%s1 + $0x98] sm:$0xff]
        %v549 = vld [vmem:[%s1 + $0xa0] sm:$0xff]
        %v550 = vld [vmem:[%s1 + $0xa8] sm:$0xff]
        %v551 = vld [vmem:[%s1 + $0xb0] sm:$0xff]
        %v552 = vld [vmem:[%s1 + $0xb8] sm:$0xff]
        %v553 = vld [vmem:[%s1 + $0xc0] sm:$0xff]
        %v554 = vld [vmem:[%s1 + $0xc8] sm:$0xff]
        %v555 = vld [vmem:[%s1 + $0xd0] sm:$0xff]
        %v556 = vld [vmem:[%s1 + $0xd8] sm:$0xff]
        %v557 = vld [vmem:[%s1 + $0xe0] sm:$0xff]
        %v558 = vld [vmem:[%s1 + $0xe8] sm:$0xff]
        %v559 = vld [vmem:[%s1 + $0xf0] sm:$0xff]
        %v560 = vld [vmem:[%s1 + $0xf8] sm:$0xff]
        %v561 = vld [vmem:[%s1 + $0x100] sm:$0xff]
        %v562 = vld [vmem:[%s1 + $0x108] sm:$0xff]
        %v563 = vld [vmem:[%s1 + $0x110] sm:$0xff]
        %v564 = vld [vmem:[%s1 + $0x118] sm:$0xff]
        %v565 = vld [vmem:[%s1 + $0x120] sm:$0xff]
        %v566 = vld [vmem:[%s1 + $0x128] sm:$0xff]
        %v567 = vld [vmem:[%s1 + $0x130] sm:$0xff]
        %v568 = vld [vmem:[%s1 + $0x138] sm:$0xff]
        %v569 = vld [vmem:[%s1 + $0x140] sm:$0xff]
        %v570 = vld [vmem:[%s1 + $0x148] sm:$0xff]
        %v571 = vld [vmem:[%s1 + $0x150] sm:$0xff]
        %v572 = vld [vmem:[%s1 + $0x158] sm:$0xff]
        %v573 = vld [vmem:[%s1 + $0x160] sm:$0xff]
        %v574 = vld [vmem:[%s1 + $0x168] sm:$0xff]
        %v575 = vld [vmem:[%s1 + $0x170] sm:$0xff]
        %v576 = vld [vmem:[%s1 + $0x178] sm:$0xff]
        %vm577 = vcmp.eq.s32.totalorder %v406, %v407
        %vm578 = vcmp.eq.s32.totalorder %v406, %v408
        %vm579 = vcmp.eq.s32.totalorder %v406, %v409
        %vm580 = vcmp.eq.s32.totalorder %v406, %v410
        %v581 = vsel %vm577, 1, 0
        %v582 = vsel %vm578, 1, 0
        %v583 = vsel %vm579, 1, 0
        %v584 = vsel %vm580, 1, 0
        %v585 = vcvt.s32.f32 %v581
        %v586 = vcvt.s32.f32 %v582
        %v587 = vcvt.s32.f32 %v583
        %v588 = vcvt.s32.f32 %v584
        %v590 = vsel %vm427, %v585, 0
        %v593 = vsel %vm427, %v586, 0
        %v596 = vsel %vm427, %v587, 0
        %v599 = vsel %vm427, %v588, 0
        %601 = vmatprep.subr.mxu0 %v385
        %602 = vmatpush1.msra.mxu0 %v384
        %603 = vmatprep.subr.mxu0 %v387
        %604 = vmatpush1.msra.mxu0 %v386
        %605 = vmatprep.subr.mxu0 %v389
        %606 = vmatpush1.msra.mxu0 %v388
        %607 = vmatprep.subr.mxu0 %v391
        %608 = vmatpush1.msra.mxu0 %v390
        %609 = vmatprep.subr.mxu0 %v393
        %610 = vmatpush1.msra.mxu0 %v392
        %611 = vmatprep.subr.mxu0 %v395
        %612 = vmatpush1.msra.mxu0 %v394
        %613 = vmatprep.subr.mxu0 %v397
        %614 = vmatpush1.msra.mxu0 %v396
        %615 = vmatprep.subr.mxu0 %v399
        %616 = vmatpush1.msra.mxu0 %v398
        %617 = vmatprep.subr.mxu0 0.0
        %618 = vmatpush1.msra.mxu0 0.0
        %619 = vmatprep.subr.mxu0 0.0
        %620 = vmatpush1.msra.mxu0 0.0
        %621 = vmatprep.subr.mxu0 0.0
        %622 = vmatpush1.msra.mxu0 0.0
        %623 = vmatprep.subr.mxu0 0.0
        %624 = vmatpush1.msra.mxu0 0.0
        %625 = vmatprep.subr.mxu0 0.0
        %626 = vmatpush1.msra.mxu0 0.0
        %627 = vmatprep.subr.mxu0 0.0
        %628 = vmatpush1.msra.mxu0 0.0
        %629 = vmatprep.subr.mxu0 0.0
        %630 = vmatpush1.msra.mxu0 0.0
        %631 = vmatprep.subr.mxu0 0.0
        %632 = vmatpush1.msra.mxu0 0.0
        %633 = vmatprep.subr.mxu0 0.0
        %634 = vmatpush1.msra.mxu0 0.0
        %635 = vmatprep.subr.mxu0 0.0
        %636 = vmatpush1.msra.mxu0 0.0
        %637 = vmatprep.subr.mxu0 0.0
        %638 = vmatpush1.msra.mxu0 0.0
        %639 = vmatprep.subr.mxu0 0.0
        %640 = vmatpush1.msra.mxu0 0.0
        %641 = vmatprep.subr.mxu0 0.0
        %642 = vmatpush1.msra.mxu0 0.0
        %643 = vmatprep.subr.mxu0 0.0
        %644 = vmatpush1.msra.mxu0 0.0
        %645 = vmatprep.subr.mxu0 0.0
        %646 = vmatpush1.msra.mxu0 0.0
        %647 = vmatprep.subr.mxu0 0.0
        %648 = vmatpush1.msra.mxu0 0.0
        %649 = vmatprep.subr.mxu0 0.0
        %650 = vmatpush1.msra.mxu0 0.0
        %651 = vmatprep.subr.mxu0 0.0
        %652 = vmatpush1.msra.mxu0 0.0
        %653 = vmatprep.subr.mxu0 0.0
        %654 = vmatpush1.msra.mxu0 0.0
        %655 = vmatprep.subr.mxu0 0.0
        %656 = vmatpush1.msra.mxu0 0.0
        %657 = vmatprep.subr.mxu0 0.0
        %658 = vmatpush1.msra.mxu0 0.0
        %659 = vmatprep.subr.mxu0 0.0
        %660 = vmatpush1.msra.mxu0 0.0
        %661 = vmatprep.subr.mxu0 0.0
        %662 = vmatpush1.msra.mxu0 0.0
        %663 = vmatprep.subr.mxu0 0.0
        %664 = vmatpush1.msra.mxu0 0.0
        %665 = vmatprep.mubr.f32.mxu0 0.0
        %666 = vmatmul.mubr.f32.gmra.mrb[0].mxu0 %v590
        %v667 = vpop.f32.mrb[0].mxu0
        %v668 = vadd.f32 0.0, %v667
        %v669 = vpop.f32.mrb[0].mxu0
        %v670 = vadd.f32 0.0, %v669
        %671 = vmatprep.mubr.f32.mxu0 0.0
        %672 = vmatmul.mubr.f32.gmra.mrb[0].mxu0 %v593
        %v673 = vpop.f32.mrb[0].mxu0
        %v674 = vadd.f32 0.0, %v673
        %v675 = vpop.f32.mrb[0].mxu0
        %v676 = vadd.f32 0.0, %v675
        %677 = vmatprep.mubr.f32.mxu0 0.0
        %678 = vmatmul.mubr.f32.gmra.mrb[0].mxu0 %v596
        %v679 = vpop.f32.mrb[0].mxu0
        %v680 = vadd.f32 0.0, %v679
        %v681 = vpop.f32.mrb[0].mxu0
        %v682 = vadd.f32 0.0, %v681
        %683 = vmatprep.mubr.f32.mxu0 0.0
        %684 = vmatmul.mubr.f32.gmra.mrb[0].mxu0 %v599
        %v685 = vpop.f32.mrb[0].mxu0
        %v686 = vadd.f32 0.0, %v685
        %v687 = vpop.f32.mrb[0].mxu0
        %v688 = vadd.f32 0.0, %v687
        %689 = vdwg.mxu0
        %s690 = scalar_lea.vmem %s1, 384
        %v691 = vld [vmem:[%s690] sm:$0xff]
        %v692 = vld [vmem:[%s690 + $0x8] sm:$0xff]
        %v693 = vld [vmem:[%s690 + $0x10] sm:$0xff]
        %v694 = vld [vmem:[%s690 + $0x18] sm:$0xff]
        %v695 = vld [vmem:[%s690 + $0x20] sm:$0xff]
        %v696 = vld [vmem:[%s690 + $0x28] sm:$0xff]
        %v697 = vld [vmem:[%s690 + $0x30] sm:$0xff]
        %v698 = vld [vmem:[%s690 + $0x38] sm:$0xff]
        %v699 = vld [vmem:[%s690 + $0x40] sm:$0xff]
        %v700 = vld [vmem:[%s690 + $0x48] sm:$0xff]
        %v701 = vld [vmem:[%s690 + $0x50] sm:$0xff]
        %v702 = vld [vmem:[%s690 + $0x58] sm:$0xff]
        %v703 = vld [vmem:[%s690 + $0x60] sm:$0xff]
        %v704 = vld [vmem:[%s690 + $0x68] sm:$0xff]
        %v705 = vld [vmem:[%s690 + $0x70] sm:$0xff]
        %v706 = vld [vmem:[%s690 + $0x78] sm:$0xff]
        %v707 = vld [vmem:[%s690 + $0x80] sm:$0xff]
        %v708 = vld [vmem:[%s690 + $0x88] sm:$0xff]
        %v709 = vld [vmem:[%s690 + $0x90] sm:$0xff]
        %v710 = vld [vmem:[%s690 + $0x98] sm:$0xff]
        %v711 = vld [vmem:[%s690 + $0xa0] sm:$0xff]
        %v712 = vld [vmem:[%s690 + $0xa8] sm:$0xff]
        %v713 = vld [vmem:[%s690 + $0xb0] sm:$0xff]
        %v714 = vld [vmem:[%s690 + $0xb8] sm:$0xff]
        %v715 = vld [vmem:[%s690 + $0xc0] sm:$0xff]
        %v716 = vld [vmem:[%s690 + $0xc8] sm:$0xff]
        %v717 = vld [vmem:[%s690 + $0xd0] sm:$0xff]
        %v718 = vld [vmem:[%s690 + $0xd8] sm:$0xff]
        %v719 = vld [vmem:[%s690 + $0xe0] sm:$0xff]
        %v720 = vld [vmem:[%s690 + $0xe8] sm:$0xff]
        %v721 = vld [vmem:[%s690 + $0xf0] sm:$0xff]
        %v722 = vld [vmem:[%s690 + $0xf8] sm:$0xff]
        %v723 = vld [vmem:[%s690 + $0x100] sm:$0xff]
        %v724 = vld [vmem:[%s690 + $0x108] sm:$0xff]
        %v725 = vld [vmem:[%s690 + $0x110] sm:$0xff]
        %v726 = vld [vmem:[%s690 + $0x118] sm:$0xff]
        %v727 = vld [vmem:[%s690 + $0x120] sm:$0xff]
        %v728 = vld [vmem:[%s690 + $0x128] sm:$0xff]
        %v729 = vld [vmem:[%s690 + $0x130] sm:$0xff]
        %v730 = vld [vmem:[%s690 + $0x138] sm:$0xff]
        %v731 = vld [vmem:[%s690 + $0x140] sm:$0xff]
        %v732 = vld [vmem:[%s690 + $0x148] sm:$0xff]
        %v733 = vld [vmem:[%s690 + $0x150] sm:$0xff]
        %v734 = vld [vmem:[%s690 + $0x158] sm:$0xff]
        %v735 = vld [vmem:[%s690 + $0x160] sm:$0xff]
        %v736 = vld [vmem:[%s690 + $0x168] sm:$0xff]
        %v737 = vld [vmem:[%s690 + $0x170] sm:$0xff]
        %v738 = vld [vmem:[%s690 + $0x178] sm:$0xff]
        %v740 = vsel %vm427, %v670, 0
        %v743 = vsel %vm427, %v676, 0
        %v746 = vsel %vm427, %v682, 0
        %v749 = vsel %vm427, %v688, 0
        %751 = vmatprep.subr.mxu0 %v692
        %752 = vmatpush1.msra.mxu0 %v691
        %753 = vmatprep.subr.mxu0 %v694
        %754 = vmatpush1.msra.mxu0 %v693
        %755 = vmatprep.subr.mxu0 %v696
        %756 = vmatpush1.msra.mxu0 %v695
        %757 = vmatprep.subr.mxu0 %v698
        %758 = vmatpush1.msra.mxu0 %v697
        %759 = vmatprep.subr.mxu0 %v700
        %760 = vmatpush1.msra.mxu0 %v699
        %761 = vmatprep.subr.mxu0 %v702
        %762 = vmatpush1.msra.mxu0 %v701
        %763 = vmatprep.subr.mxu0 %v704
        %764 = vmatpush1.msra.mxu0 %v703
        %765 = vmatprep.subr.mxu0 %v706
        %766 = vmatpush1.msra.mxu0 %v705
        %767 = vmatprep.subr.mxu0 %v708
        %768 = vmatpush1.msra.mxu0 %v707
        %769 = vmatprep.subr.mxu0 %v710
        %770 = vmatpush1.msra.mxu0 %v709
        %771 = vmatprep.subr.mxu0 %v712
        %772 = vmatpush1.msra.mxu0 %v711
        %773 = vmatprep.subr.mxu0 %v714
        %774 = vmatpush1.msra.mxu0 %v713
        %775 = vmatprep.subr.mxu0 %v716
        %776 = vmatpush1.msra.mxu0 %v715
        %777 = vmatprep.subr.mxu0 %v718
        %778 = vmatpush1.msra.mxu0 %v717
        %779 = vmatprep.subr.mxu0 %v720
        %780 = vmatpush1.msra.mxu0 %v719
        %781 = vmatprep.subr.mxu0 %v722
        %782 = vmatpush1.msra.mxu0 %v721
        %783 = vmatprep.subr.mxu0 %v724
        %784 = vmatpush1.msra.mxu0 %v723
        %785 = vmatprep.subr.mxu0 %v726
        %786 = vmatpush1.msra.mxu0 %v725
        %787 = vmatprep.subr.mxu0 %v728
        %788 = vmatpush1.msra.mxu0 %v727
        %789 = vmatprep.subr.mxu0 %v730
        %790 = vmatpush1.msra.mxu0 %v729
        %791 = vmatprep.subr.mxu0 %v732
        %792 = vmatpush1.msra.mxu0 %v731
        %793 = vmatprep.subr.mxu0 %v734
        %794 = vmatpush1.msra.mxu0 %v733
        %795 = vmatprep.subr.mxu0 %v736
        %796 = vmatpush1.msra.mxu0 %v735
        %797 = vmatprep.subr.mxu0 %v738
        %798 = vmatpush1.msra.mxu0 %v737
        %799 = vmatprep.subr.mxu0 0.0
        %800 = vmatpush1.msra.mxu0 0.0
        %801 = vmatprep.subr.mxu0 0.0
        %802 = vmatpush1.msra.mxu0 0.0
        %803 = vmatprep.subr.mxu0 0.0
        %804 = vmatpush1.msra.mxu0 0.0
        %805 = vmatprep.subr.mxu0 0.0
        %806 = vmatpush1.msra.mxu0 0.0
        %807 = vmatprep.subr.mxu0 0.0
        %808 = vmatpush1.msra.mxu0 0.0
        %809 = vmatprep.subr.mxu0 0.0
        %810 = vmatpush1.msra.mxu0 0.0
        %811 = vmatprep.subr.mxu0 0.0
        %812 = vmatpush1.msra.mxu0 0.0
        %813 = vmatprep.subr.mxu0 0.0
        %814 = vmatpush1.msra.mxu0 0.0
        %815 = vmatprep.mubr.f32.mxu0 %v740
        %816 = vmatmul.mubr.f32.gmra.mrb[0].mxu0 %v668
        %v817 = vpop.f32.mrb[0].mxu0
        %v818 = vadd.f32 0.0, %v817
        %v819 = vpop.f32.mrb[0].mxu0
        %v820 = vadd.f32 0.0, %v819
        %821 = vmatprep.mubr.f32.mxu0 %v743
        %822 = vmatmul.mubr.f32.gmra.mrb[0].mxu0 %v674
        %v823 = vpop.f32.mrb[0].mxu0
        %v824 = vadd.f32 0.0, %v823
        %v825 = vpop.f32.mrb[0].mxu0
        %v826 = vadd.f32 0.0, %v825
        %827 = vmatprep.mubr.f32.mxu0 %v746
        %828 = vmatmul.mubr.f32.gmra.mrb[0].mxu0 %v680
        %v829 = vpop.f32.mrb[0].mxu0
        %v830 = vadd.f32 0.0, %v829
        %v831 = vpop.f32.mrb[0].mxu0
        %v832 = vadd.f32 0.0, %v831
        %833 = vmatprep.mubr.f32.mxu0 %v749
        %834 = vmatmul.mubr.f32.gmra.mrb[0].mxu0 %v686
        %v835 = vpop.f32.mrb[0].mxu0
        %v836 = vadd.f32 0.0, %v835
        %v837 = vpop.f32.mrb[0].mxu0
        %v838 = vadd.f32 0.0, %v837
        %839 = vdwg.mxu0
        %v841 = vsel %vm427, %v509, 0
        %v844 = vsel %vm427, %v515, 0
        %v847 = vsel %vm427, %v521, 0
        %v850 = vsel %vm427, %v527, 0
        %852 = vmatprep.subr.mxu0 %v530
        %853 = vmatpush1.msra.mxu0 %v529
        %854 = vmatprep.subr.mxu0 %v532
        %855 = vmatpush1.msra.mxu0 %v531
        %856 = vmatprep.subr.mxu0 %v534
        %857 = vmatpush1.msra.mxu0 %v533
        %858 = vmatprep.subr.mxu0 %v536
        %859 = vmatpush1.msra.mxu0 %v535
        %860 = vmatprep.subr.mxu0 %v538
        %861 = vmatpush1.msra.mxu0 %v537
        %862 = vmatprep.subr.mxu0 %v540
        %863 = vmatpush1.msra.mxu0 %v539
        %864 = vmatprep.subr.mxu0 %v542
        %865 = vmatpush1.msra.mxu0 %v541
        %866 = vmatprep.subr.mxu0 %v544
        %867 = vmatpush1.msra.mxu0 %v543
        %868 = vmatprep.subr.mxu0 %v546
        %869 = vmatpush1.msra.mxu0 %v545
        %870 = vmatprep.subr.mxu0 %v548
        %871 = vmatpush1.msra.mxu0 %v547
        %872 = vmatprep.subr.mxu0 %v550
        %873 = vmatpush1.msra.mxu0 %v549
        %874 = vmatprep.subr.mxu0 %v552
        %875 = vmatpush1.msra.mxu0 %v551
        %876 = vmatprep.subr.mxu0 %v554
        %877 = vmatpush1.msra.mxu0 %v553
        %878 = vmatprep.subr.mxu0 %v556
        %879 = vmatpush1.msra.mxu0 %v555
        %880 = vmatprep.subr.mxu0 %v558
        %881 = vmatpush1.msra.mxu0 %v557
        %882 = vmatprep.subr.mxu0 %v560
        %883 = vmatpush1.msra.mxu0 %v559
        %884 = vmatprep.subr.mxu0 %v562
        %885 = vmatpush1.msra.mxu0 %v561
        %886 = vmatprep.subr.mxu0 %v564
        %887 = vmatpush1.msra.mxu0 %v563
        %888 = vmatprep.subr.mxu0 %v566
        %889 = vmatpush1.msra.mxu0 %v565
        %890 = vmatprep.subr.mxu0 %v568
        %891 = vmatpush1.msra.mxu0 %v567
        %892 = vmatprep.subr.mxu0 %v570
        %893 = vmatpush1.msra.mxu0 %v569
        %894 = vmatprep.subr.mxu0 %v572
        %895 = vmatpush1.msra.mxu0 %v571
        %896 = vmatprep.subr.mxu0 %v574
        %897 = vmatpush1.msra.mxu0 %v573
        %898 = vmatprep.subr.mxu0 %v576
        %899 = vmatpush1.msra.mxu0 %v575
        %900 = vmatprep.subr.mxu0 0.0
        %901 = vmatpush1.msra.mxu0 0.0
        %902 = vmatprep.subr.mxu0 0.0
        %903 = vmatpush1.msra.mxu0 0.0
        %904 = vmatprep.subr.mxu0 0.0
        %905 = vmatpush1.msra.mxu0 0.0
        %906 = vmatprep.subr.mxu0 0.0
        %907 = vmatpush1.msra.mxu0 0.0
        %908 = vmatprep.subr.mxu0 0.0
        %909 = vmatpush1.msra.mxu0 0.0
        %910 = vmatprep.subr.mxu0 0.0
        %911 = vmatpush1.msra.mxu0 0.0
        %912 = vmatprep.subr.mxu0 0.0
        %913 = vmatpush1.msra.mxu0 0.0
        %914 = vmatprep.subr.mxu0 0.0
        %915 = vmatpush1.msra.mxu0 0.0
        %916 = vmatprep.mubr.f32.mxu0 %v841
        %917 = vmatmul.mubr.f32.gmra.mrb[0].mxu0 %v507
        %v918 = vpop.f32.mrb[0].mxu0
        %v919 = vadd.f32 %v818, %v918
        %v920 = vpop.f32.mrb[0].mxu0
        %v921 = vadd.f32 %v820, %v920
        %922 = vmatprep.mubr.f32.mxu0 %v844
        %923 = vmatmul.mubr.f32.gmra.mrb[0].mxu0 %v513
        %v924 = vpop.f32.mrb[0].mxu0
        %v925 = vadd.f32 %v824, %v924
        %v926 = vpop.f32.mrb[0].mxu0
        %v927 = vadd.f32 %v826, %v926
        %928 = vmatprep.mubr.f32.mxu0 %v847
        %929 = vmatmul.mubr.f32.gmra.mrb[0].mxu0 %v519
        %v930 = vpop.f32.mrb[0].mxu0
        %v931 = vadd.f32 %v830, %v930
        %v932 = vpop.f32.mrb[0].mxu0
        %v933 = vadd.f32 %v832, %v932
        %934 = vmatprep.mubr.f32.mxu0 %v850
        %935 = vmatmul.mubr.f32.gmra.mrb[0].mxu0 %v525
        %v936 = vpop.f32.mrb[0].mxu0
        %v937 = vadd.f32 %v836, %v936
        %v938 = vpop.f32.mrb[0].mxu0
        %v939 = vadd.f32 %v838, %v938
        %940 = vdwg.mxu0
        %v941 = vadd.s32 %v407, 2
        %v942 = vadd.s32 %v408, 2
        %v943 = vadd.s32 %v409, 2
        %v944 = vadd.s32 %v410, 2
        %v945 = vsub.s32 %v941, 1
        %v946 = vsub.s32 %v942, 1
        %v947 = vsub.s32 %v943, 1
        %v948 = vsub.s32 %v944, 1
        %vm949 = vcmp.eq.s32.totalorder %v406, %v945
        %vm950 = vcmp.eq.s32.totalorder %v406, %v946
        %vm951 = vcmp.eq.s32.totalorder %v406, %v947
        %vm952 = vcmp.eq.s32.totalorder %v406, %v948
        %v953 = vsel %vm949, 1, 0
        %v954 = vsel %vm950, 1, 0
        %v955 = vsel %vm951, 1, 0
        %v956 = vsel %vm952, 1, 0
        %v957 = vcvt.s32.f32 %v953
        %v958 = vcvt.s32.f32 %v954
        %v959 = vcvt.s32.f32 %v955
        %v960 = vcvt.s32.f32 %v956
        %v962 = vsel %vm427, %v957, 0
        %v965 = vsel %vm427, %v958, 0
        %v968 = vsel %vm427, %v959, 0
        %v971 = vsel %vm427, %v960, 0
        %973 = vmatprep.subr.mxu0 %v385
        %974 = vmatpush1.msra.mxu0 %v384
        %975 = vmatprep.subr.mxu0 %v387
        %976 = vmatpush1.msra.mxu0 %v386
        %977 = vmatprep.subr.mxu0 %v389
        %978 = vmatpush1.msra.mxu0 %v388
        %979 = vmatprep.subr.mxu0 %v391
        %980 = vmatpush1.msra.mxu0 %v390
        %981 = vmatprep.subr.mxu0 %v393
        %982 = vmatpush1.msra.mxu0 %v392
        %983 = vmatprep.subr.mxu0 %v395
        %984 = vmatpush1.msra.mxu0 %v394
        %985 = vmatprep.subr.mxu0 %v397
        %986 = vmatpush1.msra.mxu0 %v396
        %987 = vmatprep.subr.mxu0 %v399
        %988 = vmatpush1.msra.mxu0 %v398
        %989 = vmatprep.subr.mxu0 0.0
        %990 = vmatpush1.msra.mxu0 0.0
        %991 = vmatprep.subr.mxu0 0.0
        %992 = vmatpush1.msra.mxu0 0.0
        %993 = vmatprep.subr.mxu0 0.0
        %994 = vmatpush1.msra.mxu0 0.0
        %995 = vmatprep.subr.mxu0 0.0
        %996 = vmatpush1.msra.mxu0 0.0
        %997 = vmatprep.subr.mxu0 0.0
        %998 = vmatpush1.msra.mxu0 0.0
        %999 = vmatprep.subr.mxu0 0.0
        %1000 = vmatpush1.msra.mxu0 0.0
        %1001 = vmatprep.subr.mxu0 0.0
        %1002 = vmatpush1.msra.mxu0 0.0
        %1003 = vmatprep.subr.mxu0 0.0
        %1004 = vmatpush1.msra.mxu0 0.0
        %1005 = vmatprep.subr.mxu0 0.0
        %1006 = vmatpush1.msra.mxu0 0.0
        %1007 = vmatprep.subr.mxu0 0.0
        %1008 = vmatpush1.msra.mxu0 0.0
        %1009 = vmatprep.subr.mxu0 0.0
        %1010 = vmatpush1.msra.mxu0 0.0
        %1011 = vmatprep.subr.mxu0 0.0
        %1012 = vmatpush1.msra.mxu0 0.0
        %1013 = vmatprep.subr.mxu0 0.0
        %1014 = vmatpush1.msra.mxu0 0.0
        %1015 = vmatprep.subr.mxu0 0.0
        %1016 = vmatpush1.msra.mxu0 0.0
        %1017 = vmatprep.subr.mxu0 0.0
        %1018 = vmatpush1.msra.mxu0 0.0
        %1019 = vmatprep.subr.mxu0 0.0
        %1020 = vmatpush1.msra.mxu0 0.0
        %1021 = vmatprep.subr.mxu0 0.0
        %1022 = vmatpush1.msra.mxu0 0.0
        %1023 = vmatprep.subr.mxu0 0.0
        %1024 = vmatpush1.msra.mxu0 0.0
        %1025 = vmatprep.subr.mxu0 0.0
        %1026 = vmatpush1.msra.mxu0 0.0
        %1027 = vmatprep.subr.mxu0 0.0
        %1028 = vmatpush1.msra.mxu0 0.0
        %1029 = vmatprep.subr.mxu0 0.0
        %1030 = vmatpush1.msra.mxu0 0.0
        %1031 = vmatprep.subr.mxu0 0.0
        %1032 = vmatpush1.msra.mxu0 0.0
        %1033 = vmatprep.subr.mxu0 0.0
        %1034 = vmatpush1.msra.mxu0 0.0
        %1035 = vmatprep.subr.mxu0 0.0
        %1036 = vmatpush1.msra.mxu0 0.0
        %1037 = vmatprep.mubr.f32.mxu0 0.0
        %1038 = vmatmul.mubr.f32.gmra.mrb[0].mxu0 %v962
        %v1039 = vpop.f32.mrb[0].mxu0
        %v1040 = vadd.f32 0.0, %v1039
        %v1041 = vpop.f32.mrb[0].mxu0
        %v1042 = vadd.f32 0.0, %v1041
        %1043 = vmatprep.mubr.f32.mxu0 0.0
        %1044 = vmatmul.mubr.f32.gmra.mrb[0].mxu0 %v965
        %v1045 = vpop.f32.mrb[0].mxu0
        %v1046 = vadd.f32 0.0, %v1045
        %v1047 = vpop.f32.mrb[0].mxu0
        %v1048 = vadd.f32 0.0, %v1047
        %1049 = vmatprep.mubr.f32.mxu0 0.0
        %1050 = vmatmul.mubr.f32.gmra.mrb[0].mxu0 %v968
        %v1051 = vpop.f32.mrb[0].mxu0
        %v1052 = vadd.f32 0.0, %v1051
        %v1053 = vpop.f32.mrb[0].mxu0
        %v1054 = vadd.f32 0.0, %v1053
        %1055 = vmatprep.mubr.f32.mxu0 0.0
        %1056 = vmatmul.mubr.f32.gmra.mrb[0].mxu0 %v971
        %v1057 = vpop.f32.mrb[0].mxu0
        %v1058 = vadd.f32 0.0, %v1057
        %v1059 = vpop.f32.mrb[0].mxu0
        %v1060 = vadd.f32 0.0, %v1059
        %1061 = vdwg.mxu0
        %s1062 = scalar_lea.vmem %s1, 768
        %v1063 = vld [vmem:[%s1062] sm:$0xff]
        %v1064 = vld [vmem:[%s1062 + $0x8] sm:$0xff]
        %v1065 = vld [vmem:[%s1062 + $0x10] sm:$0xff]
        %v1066 = vld [vmem:[%s1062 + $0x18] sm:$0xff]
        %v1067 = vld [vmem:[%s1062 + $0x20] sm:$0xff]
        %v1068 = vld [vmem:[%s1062 + $0x28] sm:$0xff]
        %v1069 = vld [vmem:[%s1062 + $0x30] sm:$0xff]
        %v1070 = vld [vmem:[%s1062 + $0x38] sm:$0xff]
        %v1071 = vld [vmem:[%s1062 + $0x40] sm:$0xff]
        %v1072 = vld [vmem:[%s1062 + $0x48] sm:$0xff]
        %v1073 = vld [vmem:[%s1062 + $0x50] sm:$0xff]
        %v1074 = vld [vmem:[%s1062 + $0x58] sm:$0xff]
        %v1075 = vld [vmem:[%s1062 + $0x60] sm:$0xff]
        %v1076 = vld [vmem:[%s1062 + $0x68] sm:$0xff]
        %v1077 = vld [vmem:[%s1062 + $0x70] sm:$0xff]
        %v1078 = vld [vmem:[%s1062 + $0x78] sm:$0xff]
        %v1079 = vld [vmem:[%s1062 + $0x80] sm:$0xff]
        %v1080 = vld [vmem:[%s1062 + $0x88] sm:$0xff]
        %v1081 = vld [vmem:[%s1062 + $0x90] sm:$0xff]
        %v1082 = vld [vmem:[%s1062 + $0x98] sm:$0xff]
        %v1083 = vld [vmem:[%s1062 + $0xa0] sm:$0xff]
        %v1084 = vld [vmem:[%s1062 + $0xa8] sm:$0xff]
        %v1085 = vld [vmem:[%s1062 + $0xb0] sm:$0xff]
        %v1086 = vld [vmem:[%s1062 + $0xb8] sm:$0xff]
        %v1087 = vld [vmem:[%s1062 + $0xc0] sm:$0xff]
        %v1088 = vld [vmem:[%s1062 + $0xc8] sm:$0xff]
        %v1089 = vld [vmem:[%s1062 + $0xd0] sm:$0xff]
        %v1090 = vld [vmem:[%s1062 + $0xd8] sm:$0xff]
        %v1091 = vld [vmem:[%s1062 + $0xe0] sm:$0xff]
        %v1092 = vld [vmem:[%s1062 + $0xe8] sm:$0xff]
        %v1093 = vld [vmem:[%s1062 + $0xf0] sm:$0xff]
        %v1094 = vld [vmem:[%s1062 + $0xf8] sm:$0xff]
        %v1095 = vld [vmem:[%s1062 + $0x100] sm:$0xff]
        %v1096 = vld [vmem:[%s1062 + $0x108] sm:$0xff]
        %v1097 = vld [vmem:[%s1062 + $0x110] sm:$0xff]
        %v1098 = vld [vmem:[%s1062 + $0x118] sm:$0xff]
        %v1099 = vld [vmem:[%s1062 + $0x120] sm:$0xff]
        %v1100 = vld [vmem:[%s1062 + $0x128] sm:$0xff]
        %v1101 = vld [vmem:[%s1062 + $0x130] sm:$0xff]
        %v1102 = vld [vmem:[%s1062 + $0x138] sm:$0xff]
        %v1103 = vld [vmem:[%s1062 + $0x140] sm:$0xff]
        %v1104 = vld [vmem:[%s1062 + $0x148] sm:$0xff]
        %v1105 = vld [vmem:[%s1062 + $0x150] sm:$0xff]
        %v1106 = vld [vmem:[%s1062 + $0x158] sm:$0xff]
        %v1107 = vld [vmem:[%s1062 + $0x160] sm:$0xff]
        %v1108 = vld [vmem:[%s1062 + $0x168] sm:$0xff]
        %v1109 = vld [vmem:[%s1062 + $0x170] sm:$0xff]
        %v1110 = vld [vmem:[%s1062 + $0x178] sm:$0xff]
        %v1112 = vsel %vm427, %v1042, 0
        %v1115 = vsel %vm427, %v1048, 0
        %v1118 = vsel %vm427, %v1054, 0
        %v1121 = vsel %vm427, %v1060, 0
        %1123 = vmatprep.subr.mxu0 %v1064
        %1124 = vmatpush1.msra.mxu0 %v1063
        %1125 = vmatprep.subr.mxu0 %v1066
        %1126 = vmatpush1.msra.mxu0 %v1065
        %1127 = vmatprep.subr.mxu0 %v1068
        %1128 = vmatpush1.msra.mxu0 %v1067
        %1129 = vmatprep.subr.mxu0 %v1070
        %1130 = vmatpush1.msra.mxu0 %v1069
        %1131 = vmatprep.subr.mxu0 %v1072
        %1132 = vmatpush1.msra.mxu0 %v1071
        %1133 = vmatprep.subr.mxu0 %v1074
        %1134 = vmatpush1.msra.mxu0 %v1073
        %1135 = vmatprep.subr.mxu0 %v1076
        %1136 = vmatpush1.msra.mxu0 %v1075
        %1137 = vmatprep.subr.mxu0 %v1078
        %1138 = vmatpush1.msra.mxu0 %v1077
        %1139 = vmatprep.subr.mxu0 %v1080
        %1140 = vmatpush1.msra.mxu0 %v1079
        %1141 = vmatprep.subr.mxu0 %v1082
        %1142 = vmatpush1.msra.mxu0 %v1081
        %1143 = vmatprep.subr.mxu0 %v1084
        %1144 = vmatpush1.msra.mxu0 %v1083
        %1145 = vmatprep.subr.mxu0 %v1086
        %1146 = vmatpush1.msra.mxu0 %v1085
        %1147 = vmatprep.subr.mxu0 %v1088
        %1148 = vmatpush1.msra.mxu0 %v1087
        %1149 = vmatprep.subr.mxu0 %v1090
        %1150 = vmatpush1.msra.mxu0 %v1089
        %1151 = vmatprep.subr.mxu0 %v1092
        %1152 = vmatpush1.msra.mxu0 %v1091
        %1153 = vmatprep.subr.mxu0 %v1094
        %1154 = vmatpush1.msra.mxu0 %v1093
        %1155 = vmatprep.subr.mxu0 %v1096
        %1156 = vmatpush1.msra.mxu0 %v1095
        %1157 = vmatprep.subr.mxu0 %v1098
        %1158 = vmatpush1.msra.mxu0 %v1097
        %1159 = vmatprep.subr.mxu0 %v1100
        %1160 = vmatpush1.msra.mxu0 %v1099
        %1161 = vmatprep.subr.mxu0 %v1102
        %1162 = vmatpush1.msra.mxu0 %v1101
        %1163 = vmatprep.subr.mxu0 %v1104
        %1164 = vmatpush1.msra.mxu0 %v1103
        %1165 = vmatprep.subr.mxu0 %v1106
        %1166 = vmatpush1.msra.mxu0 %v1105
        %1167 = vmatprep.subr.mxu0 %v1108
        %1168 = vmatpush1.msra.mxu0 %v1107
        %1169 = vmatprep.subr.mxu0 %v1110
        %1170 = vmatpush1.msra.mxu0 %v1109
        %1171 = vmatprep.subr.mxu0 0.0
        %1172 = vmatpush1.msra.mxu0 0.0
        %1173 = vmatprep.subr.mxu0 0.0
        %1174 = vmatpush1.msra.mxu0 0.0
        %1175 = vmatprep.subr.mxu0 0.0
        %1176 = vmatpush1.msra.mxu0 0.0
        %1177 = vmatprep.subr.mxu0 0.0
        %1178 = vmatpush1.msra.mxu0 0.0
        %1179 = vmatprep.subr.mxu0 0.0
        %1180 = vmatpush1.msra.mxu0 0.0
        %1181 = vmatprep.subr.mxu0 0.0
        %1182 = vmatpush1.msra.mxu0 0.0
        %1183 = vmatprep.subr.mxu0 0.0
        %1184 = vmatpush1.msra.mxu0 0.0
        %1185 = vmatprep.subr.mxu0 0.0
        %1186 = vmatpush1.msra.mxu0 0.0
        %1187 = vmatprep.mubr.f32.mxu0 %v1112
        %1188 = vmatmul.mubr.f32.gmra.mrb[0].mxu0 %v1040
        %v1189 = vpop.f32.mrb[0].mxu0
        %v1190 = vadd.f32 0.0, %v1189
        %v1191 = vpop.f32.mrb[0].mxu0
        %v1192 = vadd.f32 0.0, %v1191
        %1193 = vmatprep.mubr.f32.mxu0 %v1115
        %1194 = vmatmul.mubr.f32.gmra.mrb[0].mxu0 %v1046
        %v1195 = vpop.f32.mrb[0].mxu0
        %v1196 = vadd.f32 0.0, %v1195
        %v1197 = vpop.f32.mrb[0].mxu0
        %v1198 = vadd.f32 0.0, %v1197
        %1199 = vmatprep.mubr.f32.mxu0 %v1118
        %1200 = vmatmul.mubr.f32.gmra.mrb[0].mxu0 %v1052
        %v1201 = vpop.f32.mrb[0].mxu0
        %v1202 = vadd.f32 0.0, %v1201
        %v1203 = vpop.f32.mrb[0].mxu0
        %v1204 = vadd.f32 0.0, %v1203
        %1205 = vmatprep.mubr.f32.mxu0 %v1121
        %1206 = vmatmul.mubr.f32.gmra.mrb[0].mxu0 %v1058
        %v1207 = vpop.f32.mrb[0].mxu0
        %v1208 = vadd.f32 0.0, %v1207
        %v1209 = vpop.f32.mrb[0].mxu0
        %v1210 = vadd.f32 0.0, %v1209
        %1211 = vdwg.mxu0
        %v1212 = vadd.f32 %v919, %v1190
        %v1213 = vadd.f32 %v921, %v1192
        %v1214 = vadd.f32 %v925, %v1196
        %v1215 = vadd.f32 %v927, %v1198
        %v1216 = vadd.f32 %v931, %v1202
        %v1217 = vadd.f32 %v933, %v1204
        %v1218 = vadd.f32 %v937, %v1208
        %v1219 = vadd.f32 %v939, %v1210
        %v1220 = vadd.s32 %v407, 3
        %v1221 = vadd.s32 %v408, 3
        %v1222 = vadd.s32 %v409, 3
        %v1223 = vadd.s32 %v410, 3
        %v1224 = vsub.s32 %v1220, 1
        %v1225 = vsub.s32 %v1221, 1
        %v1226 = vsub.s32 %v1222, 1
        %v1227 = vsub.s32 %v1223, 1
        %vm1228 = vcmp.eq.s32.totalorder %v406, %v1224
        %vm1229 = vcmp.eq.s32.totalorder %v406, %v1225
        %vm1230 = vcmp.eq.s32.totalorder %v406, %v1226
        %vm1231 = vcmp.eq.s32.totalorder %v406, %v1227
        %v1232 = vsel %vm1228, 1, 0
        %v1233 = vsel %vm1229, 1, 0
        %v1234 = vsel %vm1230, 1, 0
        %v1235 = vsel %vm1231, 1, 0
        %v1236 = vcvt.s32.f32 %v1232
        %v1237 = vcvt.s32.f32 %v1233
        %v1238 = vcvt.s32.f32 %v1234
        %v1239 = vcvt.s32.f32 %v1235
        %v1241 = vsel %vm427, %v1236, 0
        %v1244 = vsel %vm427, %v1237, 0
        %v1247 = vsel %vm427, %v1238, 0
        %v1250 = vsel %vm427, %v1239, 0
        %1252 = vmatprep.subr.mxu0 %v385
        %1253 = vmatpush1.msra.mxu0 %v384
        %1254 = vmatprep.subr.mxu0 %v387
        %1255 = vmatpush1.msra.mxu0 %v386
        %1256 = vmatprep.subr.mxu0 %v389
        %1257 = vmatpush1.msra.mxu0 %v388
        %1258 = vmatprep.subr.mxu0 %v391
        %1259 = vmatpush1.msra.mxu0 %v390
        %1260 = vmatprep.subr.mxu0 %v393
        %1261 = vmatpush1.msra.mxu0 %v392
        %1262 = vmatprep.subr.mxu0 %v395
        %1263 = vmatpush1.msra.mxu0 %v394
        %1264 = vmatprep.subr.mxu0 %v397
        %1265 = vmatpush1.msra.mxu0 %v396
        %1266 = vmatprep.subr.mxu0 %v399
        %1267 = vmatpush1.msra.mxu0 %v398
        %1268 = vmatprep.subr.mxu0 0.0
        %1269 = vmatpush1.msra.mxu0 0.0
        %1270 = vmatprep.subr.mxu0 0.0
        %1271 = vmatpush1.msra.mxu0 0.0
        %1272 = vmatprep.subr.mxu0 0.0
        %1273 = vmatpush1.msra.mxu0 0.0
        %1274 = vmatprep.subr.mxu0 0.0
        %1275 = vmatpush1.msra.mxu0 0.0
        %1276 = vmatprep.subr.mxu0 0.0
        %1277 = vmatpush1.msra.mxu0 0.0
        %1278 = vmatprep.subr.mxu0 0.0
        %1279 = vmatpush1.msra.mxu0 0.0
        %1280 = vmatprep.subr.mxu0 0.0
        %1281 = vmatpush1.msra.mxu0 0.0
        %1282 = vmatprep.subr.mxu0 0.0
        %1283 = vmatpush1.msra.mxu0 0.0
        %1284 = vmatprep.subr.mxu0 0.0
        %1285 = vmatpush1.msra.mxu0 0.0
        %1286 = vmatprep.subr.mxu0 0.0
        %1287 = vmatpush1.msra.mxu0 0.0
        %1288 = vmatprep.subr.mxu0 0.0
        %1289 = vmatpush1.msra.mxu0 0.0
        %1290 = vmatprep.subr.mxu0 0.0
        %1291 = vmatpush1.msra.mxu0 0.0
        %1292 = vmatprep.subr.mxu0 0.0
        %1293 = vmatpush1.msra.mxu0 0.0
        %1294 = vmatprep.subr.mxu0 0.0
        %1295 = vmatpush1.msra.mxu0 0.0
        %1296 = vmatprep.subr.mxu0 0.0
        %1297 = vmatpush1.msra.mxu0 0.0
        %1298 = vmatprep.subr.mxu0 0.0
        %1299 = vmatpush1.msra.mxu0 0.0
        %1300 = vmatprep.subr.mxu0 0.0
        %1301 = vmatpush1.msra.mxu0 0.0
        %1302 = vmatprep.subr.mxu0 0.0
        %1303 = vmatpush1.msra.mxu0 0.0
        %1304 = vmatprep.subr.mxu0 0.0
        %1305 = vmatpush1.msra.mxu0 0.0
        %1306 = vmatprep.subr.mxu0 0.0
        %1307 = vmatpush1.msra.mxu0 0.0
        %1308 = vmatprep.subr.mxu0 0.0
        %1309 = vmatpush1.msra.mxu0 0.0
        %1310 = vmatprep.subr.mxu0 0.0
        %1311 = vmatpush1.msra.mxu0 0.0
        %1312 = vmatprep.subr.mxu0 0.0
        %1313 = vmatpush1.msra.mxu0 0.0
        %1314 = vmatprep.subr.mxu0 0.0
        %1315 = vmatpush1.msra.mxu0 0.0
        %1316 = vmatprep.mubr.f32.mxu0 0.0
        %1317 = vmatmul.mubr.f32.gmra.mrb[0].mxu0 %v1241
        %v1318 = vpop.f32.mrb[0].mxu0
        %v1319 = vadd.f32 0.0, %v1318
        %v1320 = vpop.f32.mrb[0].mxu0
        %v1321 = vadd.f32 0.0, %v1320
        %1322 = vmatprep.mubr.f32.mxu0 0.0
        %1323 = vmatmul.mubr.f32.gmra.mrb[0].mxu0 %v1244
        %v1324 = vpop.f32.mrb[0].mxu0
        %v1325 = vadd.f32 0.0, %v1324
        %v1326 = vpop.f32.mrb[0].mxu0
        %v1327 = vadd.f32 0.0, %v1326
        %1328 = vmatprep.mubr.f32.mxu0 0.0
        %1329 = vmatmul.mubr.f32.gmra.mrb[0].mxu0 %v1247
        %v1330 = vpop.f32.mrb[0].mxu0
        %v1331 = vadd.f32 0.0, %v1330
        %v1332 = vpop.f32.mrb[0].mxu0
        %v1333 = vadd.f32 0.0, %v1332
        %1334 = vmatprep.mubr.f32.mxu0 0.0
        %1335 = vmatmul.mubr.f32.gmra.mrb[0].mxu0 %v1250
        %v1336 = vpop.f32.mrb[0].mxu0
        %v1337 = vadd.f32 0.0, %v1336
        %v1338 = vpop.f32.mrb[0].mxu0
        %v1339 = vadd.f32 0.0, %v1338
        %1340 = vdwg.mxu0
        %s1341 = scalar_lea.vmem %s1, 1152
        %v1342 = vld [vmem:[%s1341] sm:$0xff]
        %v1343 = vld [vmem:[%s1341 + $0x8] sm:$0xff]
        %v1344 = vld [vmem:[%s1341 + $0x10] sm:$0xff]
        %v1345 = vld [vmem:[%s1341 + $0x18] sm:$0xff]
        %v1346 = vld [vmem:[%s1341 + $0x20] sm:$0xff]
        %v1347 = vld [vmem:[%s1341 + $0x28] sm:$0xff]
        %v1348 = vld [vmem:[%s1341 + $0x30] sm:$0xff]
        %v1349 = vld [vmem:[%s1341 + $0x38] sm:$0xff]
        %v1350 = vld [vmem:[%s1341 + $0x40] sm:$0xff]
        %v1351 = vld [vmem:[%s1341 + $0x48] sm:$0xff]
        %v1352 = vld [vmem:[%s1341 + $0x50] sm:$0xff]
        %v1353 = vld [vmem:[%s1341 + $0x58] sm:$0xff]
        %v1354 = vld [vmem:[%s1341 + $0x60] sm:$0xff]
        %v1355 = vld [vmem:[%s1341 + $0x68] sm:$0xff]
        %v1356 = vld [vmem:[%s1341 + $0x70] sm:$0xff]
        %v1357 = vld [vmem:[%s1341 + $0x78] sm:$0xff]
        %v1358 = vld [vmem:[%s1341 + $0x80] sm:$0xff]
        %v1359 = vld [vmem:[%s1341 + $0x88] sm:$0xff]
        %v1360 = vld [vmem:[%s1341 + $0x90] sm:$0xff]
        %v1361 = vld [vmem:[%s1341 + $0x98] sm:$0xff]
        %v1362 = vld [vmem:[%s1341 + $0xa0] sm:$0xff]
        %v1363 = vld [vmem:[%s1341 + $0xa8] sm:$0xff]
        %v1364 = vld [vmem:[%s1341 + $0xb0] sm:$0xff]
        %v1365 = vld [vmem:[%s1341 + $0xb8] sm:$0xff]
        %v1366 = vld [vmem:[%s1341 + $0xc0] sm:$0xff]
        %v1367 = vld [vmem:[%s1341 + $0xc8] sm:$0xff]
        %v1368 = vld [vmem:[%s1341 + $0xd0] sm:$0xff]
        %v1369 = vld [vmem:[%s1341 + $0xd8] sm:$0xff]
        %v1370 = vld [vmem:[%s1341 + $0xe0] sm:$0xff]
        %v1371 = vld [vmem:[%s1341 + $0xe8] sm:$0xff]
        %v1372 = vld [vmem:[%s1341 + $0xf0] sm:$0xff]
        %v1373 = vld [vmem:[%s1341 + $0xf8] sm:$0xff]
        %v1374 = vld [vmem:[%s1341 + $0x100] sm:$0xff]
        %v1375 = vld [vmem:[%s1341 + $0x108] sm:$0xff]
        %v1376 = vld [vmem:[%s1341 + $0x110] sm:$0xff]
        %v1377 = vld [vmem:[%s1341 + $0x118] sm:$0xff]
        %v1378 = vld [vmem:[%s1341 + $0x120] sm:$0xff]
        %v1379 = vld [vmem:[%s1341 + $0x128] sm:$0xff]
        %v1380 = vld [vmem:[%s1341 + $0x130] sm:$0xff]
        %v1381 = vld [vmem:[%s1341 + $0x138] sm:$0xff]
        %v1382 = vld [vmem:[%s1341 + $0x140] sm:$0xff]
        %v1383 = vld [vmem:[%s1341 + $0x148] sm:$0xff]
        %v1384 = vld [vmem:[%s1341 + $0x150] sm:$0xff]
        %v1385 = vld [vmem:[%s1341 + $0x158] sm:$0xff]
        %v1386 = vld [vmem:[%s1341 + $0x160] sm:$0xff]
        %v1387 = vld [vmem:[%s1341 + $0x168] sm:$0xff]
        %v1388 = vld [vmem:[%s1341 + $0x170] sm:$0xff]
        %v1389 = vld [vmem:[%s1341 + $0x178] sm:$0xff]
        %v1391 = vsel %vm427, %v1321, 0
        %v1394 = vsel %vm427, %v1327, 0
        %v1397 = vsel %vm427, %v1333, 0
        %v1400 = vsel %vm427, %v1339, 0
        %1402 = vmatprep.subr.mxu0 %v1343
        %1403 = vmatpush1.msra.mxu0 %v1342
        %1404 = vmatprep.subr.mxu0 %v1345
        %1405 = vmatpush1.msra.mxu0 %v1344
        %1406 = vmatprep.subr.mxu0 %v1347
        %1407 = vmatpush1.msra.mxu0 %v1346
        %1408 = vmatprep.subr.mxu0 %v1349
        %1409 = vmatpush1.msra.mxu0 %v1348
        %1410 = vmatprep.subr.mxu0 %v1351
        %1411 = vmatpush1.msra.mxu0 %v1350
        %1412 = vmatprep.subr.mxu0 %v1353
        %1413 = vmatpush1.msra.mxu0 %v1352
        %1414 = vmatprep.subr.mxu0 %v1355
        %1415 = vmatpush1.msra.mxu0 %v1354
        %1416 = vmatprep.subr.mxu0 %v1357
        %1417 = vmatpush1.msra.mxu0 %v1356
        %1418 = vmatprep.subr.mxu0 %v1359
        %1419 = vmatpush1.msra.mxu0 %v1358
        %1420 = vmatprep.subr.mxu0 %v1361
        %1421 = vmatpush1.msra.mxu0 %v1360
        %1422 = vmatprep.subr.mxu0 %v1363
        %1423 = vmatpush1.msra.mxu0 %v1362
        %1424 = vmatprep.subr.mxu0 %v1365
        %1425 = vmatpush1.msra.mxu0 %v1364
        %1426 = vmatprep.subr.mxu0 %v1367
        %1427 = vmatpush1.msra.mxu0 %v1366
        %1428 = vmatprep.subr.mxu0 %v1369
        %1429 = vmatpush1.msra.mxu0 %v1368
        %1430 = vmatprep.subr.mxu0 %v1371
        %1431 = vmatpush1.msra.mxu0 %v1370
        %1432 = vmatprep.subr.mxu0 %v1373
        %1433 = vmatpush1.msra.mxu0 %v1372
        %1434 = vmatprep.subr.mxu0 %v1375
        %1435 = vmatpush1.msra.mxu0 %v1374
        %1436 = vmatprep.subr.mxu0 %v1377
        %1437 = vmatpush1.msra.mxu0 %v1376
        %1438 = vmatprep.subr.mxu0 %v1379
        %1439 = vmatpush1.msra.mxu0 %v1378
        %1440 = vmatprep.subr.mxu0 %v1381
        %1441 = vmatpush1.msra.mxu0 %v1380
        %1442 = vmatprep.subr.mxu0 %v1383
        %1443 = vmatpush1.msra.mxu0 %v1382
        %1444 = vmatprep.subr.mxu0 %v1385
        %1445 = vmatpush1.msra.mxu0 %v1384
        %1446 = vmatprep.subr.mxu0 %v1387
        %1447 = vmatpush1.msra.mxu0 %v1386
        %1448 = vmatprep.subr.mxu0 %v1389
        %1449 = vmatpush1.msra.mxu0 %v1388
        %1450 = vmatprep.subr.mxu0 0.0
        %1451 = vmatpush1.msra.mxu0 0.0
        %1452 = vmatprep.subr.mxu0 0.0
        %1453 = vmatpush1.msra.mxu0 0.0
        %1454 = vmatprep.subr.mxu0 0.0
        %1455 = vmatpush1.msra.mxu0 0.0
        %1456 = vmatprep.subr.mxu0 0.0
        %1457 = vmatpush1.msra.mxu0 0.0
        %1458 = vmatprep.subr.mxu0 0.0
        %1459 = vmatpush1.msra.mxu0 0.0
        %1460 = vmatprep.subr.mxu0 0.0
        %1461 = vmatpush1.msra.mxu0 0.0
        %1462 = vmatprep.subr.mxu0 0.0
        %1463 = vmatpush1.msra.mxu0 0.0
        %1464 = vmatprep.subr.mxu0 0.0
        %1465 = vmatpush1.msra.mxu0 0.0
        %1466 = vmatprep.mubr.f32.mxu0 %v1391
        %1467 = vmatmul.mubr.f32.gmra.mrb[0].mxu0 %v1319
        %v1468 = vpop.f32.mrb[0].mxu0
        %v1469 = vadd.f32 0.0, %v1468
        %v1470 = vpop.f32.mrb[0].mxu0
        %v1471 = vadd.f32 0.0, %v1470
        %1472 = vmatprep.mubr.f32.mxu0 %v1394
        %1473 = vmatmul.mubr.f32.gmra.mrb[0].mxu0 %v1325
        %v1474 = vpop.f32.mrb[0].mxu0
        %v1475 = vadd.f32 0.0, %v1474
        %v1476 = vpop.f32.mrb[0].mxu0
        %v1477 = vadd.f32 0.0, %v1476
        %1478 = vmatprep.mubr.f32.mxu0 %v1397
        %1479 = vmatmul.mubr.f32.gmra.mrb[0].mxu0 %v1331
        %v1480 = vpop.f32.mrb[0].mxu0
        %v1481 = vadd.f32 0.0, %v1480
        %v1482 = vpop.f32.mrb[0].mxu0
        %v1483 = vadd.f32 0.0, %v1482
        %1484 = vmatprep.mubr.f32.mxu0 %v1400
        %1485 = vmatmul.mubr.f32.gmra.mrb[0].mxu0 %v1337
        %v1486 = vpop.f32.mrb[0].mxu0
        %v1487 = vadd.f32 0.0, %v1486
        %v1488 = vpop.f32.mrb[0].mxu0
        %v1489 = vadd.f32 0.0, %v1488
        %1490 = vdwg.mxu0
        %v1491 = vadd.f32 %v1212, %v1469
        %v1492 = vadd.f32 %v1213, %v1471
        %v1493 = vadd.f32 %v1214, %v1475
        %v1494 = vadd.f32 %v1215, %v1477
        %v1495 = vadd.f32 %v1216, %v1481
        %v1496 = vadd.f32 %v1217, %v1483
        %v1497 = vadd.f32 %v1218, %v1487
        %v1498 = vadd.f32 %v1219, %v1489
        %vm1499 = vcmp.gt.f32.partialorder %v1491, 0.0
        %vm1500 = vcmp.gt.f32.partialorder %v1492, 0.0
        %vm1501 = vcmp.gt.f32.partialorder %v1493, 0.0
        %vm1502 = vcmp.gt.f32.partialorder %v1494, 0.0
        %vm1503 = vcmp.gt.f32.partialorder %v1495, 0.0
        %vm1504 = vcmp.gt.f32.partialorder %v1496, 0.0
        %vm1505 = vcmp.gt.f32.partialorder %v1497, 0.0
        %vm1506 = vcmp.gt.f32.partialorder %v1498, 0.0
        %v1507 = vmul.f32 %v1491, 0.2
        %v1508 = vmul.f32 %v1492, 0.2
        %v1509 = vmul.f32 %v1493, 0.2
        %v1510 = vmul.f32 %v1494, 0.2
        %v1511 = vmul.f32 %v1495, 0.2
        %v1512 = vmul.f32 %v1496, 0.2
        %v1513 = vmul.f32 %v1497, 0.2
        %v1514 = vmul.f32 %v1498, 0.2
        %v1515 = vsel %vm1499, %v1491, %v1507
        %v1516 = vsel %vm1500, %v1492, %v1508
        %v1517 = vsel %vm1501, %v1493, %v1509
        %v1518 = vsel %vm1502, %v1494, %v1510
        %v1519 = vsel %vm1503, %v1495, %v1511
        %v1520 = vsel %vm1504, %v1496, %v1512
        %v1521 = vsel %vm1505, %v1497, %v1513
        %v1522 = vsel %vm1506, %v1498, %v1514
        %vm1523 = vcmask 261120
        %v1524 = vsel %vm1523, %v423, 0
        %v1526 = vsel %vm1523, %v424, 0
        %1528 = vmatprep.subr.mxu0 %v1516
        %1529 = vmatpush1.msra.mxu0 %v1515
        %1530 = vmatprep.subr.mxu0 %v1518
        %1531 = vmatpush1.msra.mxu0 %v1517
        %1532 = vmatprep.subr.mxu0 %v1520
        %1533 = vmatpush1.msra.mxu0 %v1519
        %1534 = vmatprep.subr.mxu0 %v1522
        %1535 = vmatpush1.msra.mxu0 %v1521
        %1536 = vmatprep.subr.mxu0 0.0
        %1537 = vmatpush1.msra.mxu0 0.0
        %1538 = vmatprep.subr.mxu0 0.0
        %1539 = vmatpush1.msra.mxu0 0.0
        %1540 = vmatprep.subr.mxu0 0.0
        %1541 = vmatpush1.msra.mxu0 0.0
        %1542 = vmatprep.subr.mxu0 0.0
        %1543 = vmatpush1.msra.mxu0 0.0
        %1544 = vmatprep.subr.mxu0 0.0
        %1545 = vmatpush1.msra.mxu0 0.0
        %1546 = vmatprep.subr.mxu0 0.0
        %1547 = vmatpush1.msra.mxu0 0.0
        %1548 = vmatprep.subr.mxu0 0.0
        %1549 = vmatpush1.msra.mxu0 0.0
        %1550 = vmatprep.subr.mxu0 0.0
        %1551 = vmatpush1.msra.mxu0 0.0
        %1552 = vmatprep.subr.mxu0 0.0
        %1553 = vmatpush1.msra.mxu0 0.0
        %1554 = vmatprep.subr.mxu0 0.0
        %1555 = vmatpush1.msra.mxu0 0.0
        %1556 = vmatprep.subr.mxu0 0.0
        %1557 = vmatpush1.msra.mxu0 0.0
        %1558 = vmatprep.subr.mxu0 0.0
        %1559 = vmatpush1.msra.mxu0 0.0
        %1560 = vmatprep.subr.mxu0 0.0
        %1561 = vmatpush1.msra.mxu0 0.0
        %1562 = vmatprep.subr.mxu0 0.0
        %1563 = vmatpush1.msra.mxu0 0.0
        %1564 = vmatprep.subr.mxu0 0.0
        %1565 = vmatpush1.msra.mxu0 0.0
        %1566 = vmatprep.subr.mxu0 0.0
        %1567 = vmatpush1.msra.mxu0 0.0
        %1568 = vmatprep.subr.mxu0 0.0
        %1569 = vmatpush1.msra.mxu0 0.0
        %1570 = vmatprep.subr.mxu0 0.0
        %1571 = vmatpush1.msra.mxu0 0.0
        %1572 = vmatprep.subr.mxu0 0.0
        %1573 = vmatpush1.msra.mxu0 0.0
        %1574 = vmatprep.subr.mxu0 0.0
        %1575 = vmatpush1.msra.mxu0 0.0
        %1576 = vmatprep.subr.mxu0 0.0
        %1577 = vmatpush1.msra.mxu0 0.0
        %1578 = vmatprep.subr.mxu0 0.0
        %1579 = vmatpush1.msra.mxu0 0.0
        %1580 = vmatprep.subr.mxu0 0.0
        %1581 = vmatpush1.msra.mxu0 0.0
        %1582 = vmatprep.subr.mxu0 0.0
        %1583 = vmatpush1.msra.mxu0 0.0
        %1584 = vmatprep.subr.mxu0 0.0
        %1585 = vmatpush1.msra.mxu0 0.0
        %1586 = vmatprep.subr.mxu0 0.0
        %1587 = vmatpush1.msra.mxu0 0.0
        %1588 = vmatprep.subr.mxu0 0.0
        %1589 = vmatpush1.msra.mxu0 0.0
        %1590 = vmatprep.subr.mxu0 0.0
        %1591 = vmatpush1.msra.mxu0 0.0
        %1592 = vmatprep.mubr.f32.mxu0 0.0
        %1593 = vmatmul.mubr.f32.gmra.mrb[0].mxu0 %v1524
        %v1594 = vpop.f32.mrb[0].mxu0
        %v1595 = vadd.f32 0.0, %v1594
        %v1596 = vpop.f32.mrb[0].mxu0
        %v1597 = vadd.f32 0.0, %v1596
        %1598 = vmatprep.mubr.f32.mxu0 0.0
        %1599 = vmatmul.mubr.f32.gmra.mrb[0].mxu0 %v1526
        %v1600 = vpop.f32.mrb[0].mxu0
        %v1601 = vadd.f32 0.0, %v1600
        %v1602 = vpop.f32.mrb[0].mxu0
        %v1603 = vadd.f32 0.0, %v1602
        %1604 = vdwg.mxu0
        %v1605 = vld [vmem:[%s2] sm:$0xff]
        %v1606 = vld [vmem:[%s2 + $0x8] sm:$0xff]
        %v1607 = vld [vmem:[%s2 + $0x10] sm:$0xff]
        %v1608 = vld [vmem:[%s2 + $0x18] sm:$0xff]
        %v1609 = vld [vmem:[%s2 + $0x20] sm:$0xff]
        %v1610 = vld [vmem:[%s2 + $0x28] sm:$0xff]
        %v1611 = vld [vmem:[%s2 + $0x30] sm:$0xff]
        %v1612 = vld [vmem:[%s2 + $0x38] sm:$0xff]
        %v1613 = vld [vmem:[%s2 + $0x40] sm:$0xff]
        %v1614 = vld [vmem:[%s2 + $0x48] sm:$0xff]
        %v1615 = vld [vmem:[%s2 + $0x50] sm:$0xff]
        %v1616 = vld [vmem:[%s2 + $0x58] sm:$0xff]
        %v1617 = vld [vmem:[%s2 + $0x60] sm:$0xff]
        %v1618 = vld [vmem:[%s2 + $0x68] sm:$0xff]
        %v1619 = vld [vmem:[%s2 + $0x70] sm:$0xff]
        %v1620 = vld [vmem:[%s2 + $0x78] sm:$0xff]
        %v1621 = vld [vmem:[%s2 + $0x80] sm:$0xff]
        %v1622 = vld [vmem:[%s2 + $0x88] sm:$0xff]
        %v1623 = vld [vmem:[%s2 + $0x90] sm:$0xff]
        %v1624 = vld [vmem:[%s2 + $0x98] sm:$0xff]
        %v1625 = vld [vmem:[%s2 + $0xa0] sm:$0xff]
        %v1626 = vld [vmem:[%s2 + $0xa8] sm:$0xff]
        %v1627 = vld [vmem:[%s2 + $0xb0] sm:$0xff]
        %v1628 = vld [vmem:[%s2 + $0xb8] sm:$0xff]
        %v1629 = vld [vmem:[%s2 + $0xc0] sm:$0xff]
        %v1630 = vld [vmem:[%s2 + $0xc8] sm:$0xff]
        %v1631 = vld [vmem:[%s2 + $0xd0] sm:$0xff]
        %v1632 = vld [vmem:[%s2 + $0xd8] sm:$0xff]
        %v1633 = vld [vmem:[%s2 + $0xe0] sm:$0xff]
        %v1634 = vld [vmem:[%s2 + $0xe8] sm:$0xff]
        %v1635 = vld [vmem:[%s2 + $0xf0] sm:$0xff]
        %v1636 = vld [vmem:[%s2 + $0xf8] sm:$0xff]
        %v1637 = vld [vmem:[%s2 + $0x100] sm:$0xff]
        %v1638 = vld [vmem:[%s2 + $0x108] sm:$0xff]
        %v1639 = vld [vmem:[%s2 + $0x110] sm:$0xff]
        %v1640 = vld [vmem:[%s2 + $0x118] sm:$0xff]
        %v1641 = vld [vmem:[%s2 + $0x120] sm:$0xff]
        %v1642 = vld [vmem:[%s2 + $0x128] sm:$0xff]
        %v1643 = vld [vmem:[%s2 + $0x130] sm:$0xff]
        %v1644 = vld [vmem:[%s2 + $0x138] sm:$0xff]
        %v1645 = vld [vmem:[%s2 + $0x140] sm:$0xff]
        %v1646 = vld [vmem:[%s2 + $0x148] sm:$0xff]
        %v1647 = vld [vmem:[%s2 + $0x150] sm:$0xff]
        %v1648 = vld [vmem:[%s2 + $0x158] sm:$0xff]
        %v1649 = vld [vmem:[%s2 + $0x160] sm:$0xff]
        %v1650 = vld [vmem:[%s2 + $0x168] sm:$0xff]
        %v1651 = vld [vmem:[%s2 + $0x170] sm:$0xff]
        %v1652 = vld [vmem:[%s2 + $0x178] sm:$0xff]
        %v1653 = vld [vmem:[%s2 + $0x180] sm:$0xff]
        %v1654 = vld [vmem:[%s2 + $0x188] sm:$0xff]
        %v1655 = vld [vmem:[%s2 + $0x190] sm:$0xff]
        %v1656 = vld [vmem:[%s2 + $0x198] sm:$0xff]
        %v1657 = vld [vmem:[%s2 + $0x1a0] sm:$0xff]
        %v1658 = vld [vmem:[%s2 + $0x1a8] sm:$0xff]
        %v1659 = vld [vmem:[%s2 + $0x1b0] sm:$0xff]
        %v1660 = vld [vmem:[%s2 + $0x1b8] sm:$0xff]
        %v1661 = vld [vmem:[%s2 + $0x1c0] sm:$0xff]
        %v1662 = vld [vmem:[%s2 + $0x1c8] sm:$0xff]
        %v1663 = vld [vmem:[%s2 + $0x1d0] sm:$0xff]
        %v1664 = vld [vmem:[%s2 + $0x1d8] sm:$0xff]
        %v1665 = vld [vmem:[%s2 + $0x1e0] sm:$0xff]
        %v1666 = vld [vmem:[%s2 + $0x1e8] sm:$0xff]
        %v1667 = vld [vmem:[%s2 + $0x1f0] sm:$0xff]
        %v1668 = vld [vmem:[%s2 + $0x1f8] sm:$0xff]
        %v1669 = vsel %vm1523, %v585, 0
        %v1671 = vsel %vm1523, %v586, 0
        %1673 = vmatprep.subr.mxu0 %v1516
        %1674 = vmatpush1.msra.mxu0 %v1515
        %1675 = vmatprep.subr.mxu0 %v1518
        %1676 = vmatpush1.msra.mxu0 %v1517
        %1677 = vmatprep.subr.mxu0 %v1520
        %1678 = vmatpush1.msra.mxu0 %v1519
        %1679 = vmatprep.subr.mxu0 %v1522
        %1680 = vmatpush1.msra.mxu0 %v1521
        %1681 = vmatprep.subr.mxu0 0.0
        %1682 = vmatpush1.msra.mxu0 0.0
        %1683 = vmatprep.subr.mxu0 0.0
        %1684 = vmatpush1.msra.mxu0 0.0
        %1685 = vmatprep.subr.mxu0 0.0
        %1686 = vmatpush1.msra.mxu0 0.0
        %1687 = vmatprep.subr.mxu0 0.0
        %1688 = vmatpush1.msra.mxu0 0.0
        %1689 = vmatprep.subr.mxu0 0.0
        %1690 = vmatpush1.msra.mxu0 0.0
        %1691 = vmatprep.subr.mxu0 0.0
        %1692 = vmatpush1.msra.mxu0 0.0
        %1693 = vmatprep.subr.mxu0 0.0
        %1694 = vmatpush1.msra.mxu0 0.0
        %1695 = vmatprep.subr.mxu0 0.0
        %1696 = vmatpush1.msra.mxu0 0.0
        %1697 = vmatprep.subr.mxu0 0.0
        %1698 = vmatpush1.msra.mxu0 0.0
        %1699 = vmatprep.subr.mxu0 0.0
        %1700 = vmatpush1.msra.mxu0 0.0
        %1701 = vmatprep.subr.mxu0 0.0
        %1702 = vmatpush1.msra.mxu0 0.0
        %1703 = vmatprep.subr.mxu0 0.0
        %1704 = vmatpush1.msra.mxu0 0.0
        %1705 = vmatprep.subr.mxu0 0.0
        %1706 = vmatpush1.msra.mxu0 0.0
        %1707 = vmatprep.subr.mxu0 0.0
        %1708 = vmatpush1.msra.mxu0 0.0
        %1709 = vmatprep.subr.mxu0 0.0
        %1710 = vmatpush1.msra.mxu0 0.0
        %1711 = vmatprep.subr.mxu0 0.0
        %1712 = vmatpush1.msra.mxu0 0.0
        %1713 = vmatprep.subr.mxu0 0.0
        %1714 = vmatpush1.msra.mxu0 0.0
        %1715 = vmatprep.subr.mxu0 0.0
        %1716 = vmatpush1.msra.mxu0 0.0
        %1717 = vmatprep.subr.mxu0 0.0
        %1718 = vmatpush1.msra.mxu0 0.0
        %1719 = vmatprep.subr.mxu0 0.0
        %1720 = vmatpush1.msra.mxu0 0.0
        %1721 = vmatprep.subr.mxu0 0.0
        %1722 = vmatpush1.msra.mxu0 0.0
        %1723 = vmatprep.subr.mxu0 0.0
        %1724 = vmatpush1.msra.mxu0 0.0
        %1725 = vmatprep.subr.mxu0 0.0
        %1726 = vmatpush1.msra.mxu0 0.0
        %1727 = vmatprep.subr.mxu0 0.0
        %1728 = vmatpush1.msra.mxu0 0.0
        %1729 = vmatprep.subr.mxu0 0.0
        %1730 = vmatpush1.msra.mxu0 0.0
        %1731 = vmatprep.subr.mxu0 0.0
        %1732 = vmatpush1.msra.mxu0 0.0
        %1733 = vmatprep.subr.mxu0 0.0
        %1734 = vmatpush1.msra.mxu0 0.0
        %1735 = vmatprep.subr.mxu0 0.0
        %1736 = vmatpush1.msra.mxu0 0.0
        %1737 = vmatprep.mubr.f32.mxu0 0.0
        %1738 = vmatmul.mubr.f32.gmra.mrb[0].mxu0 %v1669
        %v1739 = vpop.f32.mrb[0].mxu0
        %v1740 = vadd.f32 0.0, %v1739
        %v1741 = vpop.f32.mrb[0].mxu0
        %v1742 = vadd.f32 0.0, %v1741
        %1743 = vmatprep.mubr.f32.mxu0 0.0
        %1744 = vmatmul.mubr.f32.gmra.mrb[0].mxu0 %v1671
        %v1745 = vpop.f32.mrb[0].mxu0
        %v1746 = vadd.f32 0.0, %v1745
        %v1747 = vpop.f32.mrb[0].mxu0
        %v1748 = vadd.f32 0.0, %v1747
        %1749 = vdwg.mxu0
        %s1750 = scalar_lea.vmem %s2, 512
        %v1751 = vld [vmem:[%s1750] sm:$0xff]
        %v1752 = vld [vmem:[%s1750 + $0x8] sm:$0xff]
        %v1753 = vld [vmem:[%s1750 + $0x10] sm:$0xff]
        %v1754 = vld [vmem:[%s1750 + $0x18] sm:$0xff]
        %v1755 = vld [vmem:[%s1750 + $0x20] sm:$0xff]
        %v1756 = vld [vmem:[%s1750 + $0x28] sm:$0xff]
        %v1757 = vld [vmem:[%s1750 + $0x30] sm:$0xff]
        %v1758 = vld [vmem:[%s1750 + $0x38] sm:$0xff]
        %v1759 = vld [vmem:[%s1750 + $0x40] sm:$0xff]
        %v1760 = vld [vmem:[%s1750 + $0x48] sm:$0xff]
        %v1761 = vld [vmem:[%s1750 + $0x50] sm:$0xff]
        %v1762 = vld [vmem:[%s1750 + $0x58] sm:$0xff]
        %v1763 = vld [vmem:[%s1750 + $0x60] sm:$0xff]
        %v1764 = vld [vmem:[%s1750 + $0x68] sm:$0xff]
        %v1765 = vld [vmem:[%s1750 + $0x70] sm:$0xff]
        %v1766 = vld [vmem:[%s1750 + $0x78] sm:$0xff]
        %v1767 = vld [vmem:[%s1750 + $0x80] sm:$0xff]
        %v1768 = vld [vmem:[%s1750 + $0x88] sm:$0xff]
        %v1769 = vld [vmem:[%s1750 + $0x90] sm:$0xff]
        %v1770 = vld [vmem:[%s1750 + $0x98] sm:$0xff]
        %v1771 = vld [vmem:[%s1750 + $0xa0] sm:$0xff]
        %v1772 = vld [vmem:[%s1750 + $0xa8] sm:$0xff]
        %v1773 = vld [vmem:[%s1750 + $0xb0] sm:$0xff]
        %v1774 = vld [vmem:[%s1750 + $0xb8] sm:$0xff]
        %v1775 = vld [vmem:[%s1750 + $0xc0] sm:$0xff]
        %v1776 = vld [vmem:[%s1750 + $0xc8] sm:$0xff]
        %v1777 = vld [vmem:[%s1750 + $0xd0] sm:$0xff]
        %v1778 = vld [vmem:[%s1750 + $0xd8] sm:$0xff]
        %v1779 = vld [vmem:[%s1750 + $0xe0] sm:$0xff]
        %v1780 = vld [vmem:[%s1750 + $0xe8] sm:$0xff]
        %v1781 = vld [vmem:[%s1750 + $0xf0] sm:$0xff]
        %v1782 = vld [vmem:[%s1750 + $0xf8] sm:$0xff]
        %v1783 = vld [vmem:[%s1750 + $0x100] sm:$0xff]
        %v1784 = vld [vmem:[%s1750 + $0x108] sm:$0xff]
        %v1785 = vld [vmem:[%s1750 + $0x110] sm:$0xff]
        %v1786 = vld [vmem:[%s1750 + $0x118] sm:$0xff]
        %v1787 = vld [vmem:[%s1750 + $0x120] sm:$0xff]
        %v1788 = vld [vmem:[%s1750 + $0x128] sm:$0xff]
        %v1789 = vld [vmem:[%s1750 + $0x130] sm:$0xff]
        %v1790 = vld [vmem:[%s1750 + $0x138] sm:$0xff]
        %v1791 = vld [vmem:[%s1750 + $0x140] sm:$0xff]
        %v1792 = vld [vmem:[%s1750 + $0x148] sm:$0xff]
        %v1793 = vld [vmem:[%s1750 + $0x150] sm:$0xff]
        %v1794 = vld [vmem:[%s1750 + $0x158] sm:$0xff]
        %v1795 = vld [vmem:[%s1750 + $0x160] sm:$0xff]
        %v1796 = vld [vmem:[%s1750 + $0x168] sm:$0xff]
        %v1797 = vld [vmem:[%s1750 + $0x170] sm:$0xff]
        %v1798 = vld [vmem:[%s1750 + $0x178] sm:$0xff]
        %v1799 = vld [vmem:[%s1750 + $0x180] sm:$0xff]
        %v1800 = vld [vmem:[%s1750 + $0x188] sm:$0xff]
        %v1801 = vld [vmem:[%s1750 + $0x190] sm:$0xff]
        %v1802 = vld [vmem:[%s1750 + $0x198] sm:$0xff]
        %v1803 = vld [vmem:[%s1750 + $0x1a0] sm:$0xff]
        %v1804 = vld [vmem:[%s1750 + $0x1a8] sm:$0xff]
        %v1805 = vld [vmem:[%s1750 + $0x1b0] sm:$0xff]
        %v1806 = vld [vmem:[%s1750 + $0x1b8] sm:$0xff]
        %v1807 = vld [vmem:[%s1750 + $0x1c0] sm:$0xff]
        %v1808 = vld [vmem:[%s1750 + $0x1c8] sm:$0xff]
        %v1809 = vld [vmem:[%s1750 + $0x1d0] sm:$0xff]
        %v1810 = vld [vmem:[%s1750 + $0x1d8] sm:$0xff]
        %v1811 = vld [vmem:[%s1750 + $0x1e0] sm:$0xff]
        %v1812 = vld [vmem:[%s1750 + $0x1e8] sm:$0xff]
        %v1813 = vld [vmem:[%s1750 + $0x1f0] sm:$0xff]
        %v1814 = vld [vmem:[%s1750 + $0x1f8] sm:$0xff]
        %1815 = vmatprep.subr.mxu0 %v1752
        %1816 = vmatpush1.msra.mxu0 %v1751
        %1817 = vmatprep.subr.mxu0 %v1754
        %1818 = vmatpush1.msra.mxu0 %v1753
        %1819 = vmatprep.subr.mxu0 %v1756
        %1820 = vmatpush1.msra.mxu0 %v1755
        %1821 = vmatprep.subr.mxu0 %v1758
        %1822 = vmatpush1.msra.mxu0 %v1757
        %1823 = vmatprep.subr.mxu0 %v1760
        %1824 = vmatpush1.msra.mxu0 %v1759
        %1825 = vmatprep.subr.mxu0 %v1762
        %1826 = vmatpush1.msra.mxu0 %v1761
        %1827 = vmatprep.subr.mxu0 %v1764
        %1828 = vmatpush1.msra.mxu0 %v1763
        %1829 = vmatprep.subr.mxu0 %v1766
        %1830 = vmatpush1.msra.mxu0 %v1765
        %1831 = vmatprep.subr.mxu0 %v1768
        %1832 = vmatpush1.msra.mxu0 %v1767
        %1833 = vmatprep.subr.mxu0 %v1770
        %1834 = vmatpush1.msra.mxu0 %v1769
        %1835 = vmatprep.subr.mxu0 %v1772
        %1836 = vmatpush1.msra.mxu0 %v1771
        %1837 = vmatprep.subr.mxu0 %v1774
        %1838 = vmatpush1.msra.mxu0 %v1773
        %1839 = vmatprep.subr.mxu0 %v1776
        %1840 = vmatpush1.msra.mxu0 %v1775
        %1841 = vmatprep.subr.mxu0 %v1778
        %1842 = vmatpush1.msra.mxu0 %v1777
        %1843 = vmatprep.subr.mxu0 %v1780
        %1844 = vmatpush1.msra.mxu0 %v1779
        %1845 = vmatprep.subr.mxu0 %v1782
        %1846 = vmatpush1.msra.mxu0 %v1781
        %1847 = vmatprep.subr.mxu0 %v1784
        %1848 = vmatpush1.msra.mxu0 %v1783
        %1849 = vmatprep.subr.mxu0 %v1786
        %1850 = vmatpush1.msra.mxu0 %v1785
        %1851 = vmatprep.subr.mxu0 %v1788
        %1852 = vmatpush1.msra.mxu0 %v1787
        %1853 = vmatprep.subr.mxu0 %v1790
        %1854 = vmatpush1.msra.mxu0 %v1789
        %1855 = vmatprep.subr.mxu0 %v1792
        %1856 = vmatpush1.msra.mxu0 %v1791
        %1857 = vmatprep.subr.mxu0 %v1794
        %1858 = vmatpush1.msra.mxu0 %v1793
        %1859 = vmatprep.subr.mxu0 %v1796
        %1860 = vmatpush1.msra.mxu0 %v1795
        %1861 = vmatprep.subr.mxu0 %v1798
        %1862 = vmatpush1.msra.mxu0 %v1797
        %1863 = vmatprep.subr.mxu0 %v1800
        %1864 = vmatpush1.msra.mxu0 %v1799
        %1865 = vmatprep.subr.mxu0 %v1802
        %1866 = vmatpush1.msra.mxu0 %v1801
        %1867 = vmatprep.subr.mxu0 %v1804
        %1868 = vmatpush1.msra.mxu0 %v1803
        %1869 = vmatprep.subr.mxu0 %v1806
        %1870 = vmatpush1.msra.mxu0 %v1805
        %1871 = vmatprep.subr.mxu0 %v1808
        %1872 = vmatpush1.msra.mxu0 %v1807
        %1873 = vmatprep.subr.mxu0 %v1810
        %1874 = vmatpush1.msra.mxu0 %v1809
        %1875 = vmatprep.subr.mxu0 %v1812
        %1876 = vmatpush1.msra.mxu0 %v1811
        %1877 = vmatprep.subr.mxu0 %v1814
        %1878 = vmatpush1.msra.mxu0 %v1813
        %1879 = vmatprep.mubr.f32.mxu0 %v1742
        %1880 = vmatmul.mubr.f32.gmra.mrb[0].mxu0 %v1740
        %v1881 = vpop.f32.mrb[0].mxu0
        %v1882 = vadd.f32 0.0, %v1881
        %v1883 = vpop.f32.mrb[0].mxu0
        %v1884 = vadd.f32 0.0, %v1883
        %1885 = vmatprep.mubr.f32.mxu0 %v1748
        %1886 = vmatmul.mubr.f32.gmra.mrb[0].mxu0 %v1746
        %v1887 = vpop.f32.mrb[0].mxu0
        %v1888 = vadd.f32 0.0, %v1887
        %v1889 = vpop.f32.mrb[0].mxu0
        %v1890 = vadd.f32 0.0, %v1889
        %1891 = vdwg.mxu0
        %1892 = vmatprep.subr.mxu0 %v1606
        %1893 = vmatpush1.msra.mxu0 %v1605
        %1894 = vmatprep.subr.mxu0 %v1608
        %1895 = vmatpush1.msra.mxu0 %v1607
        %1896 = vmatprep.subr.mxu0 %v1610
        %1897 = vmatpush1.msra.mxu0 %v1609
        %1898 = vmatprep.subr.mxu0 %v1612
        %1899 = vmatpush1.msra.mxu0 %v1611
        %1900 = vmatprep.subr.mxu0 %v1614
        %1901 = vmatpush1.msra.mxu0 %v1613
        %1902 = vmatprep.subr.mxu0 %v1616
        %1903 = vmatpush1.msra.mxu0 %v1615
        %1904 = vmatprep.subr.mxu0 %v1618
        %1905 = vmatpush1.msra.mxu0 %v1617
        %1906 = vmatprep.subr.mxu0 %v1620
        %1907 = vmatpush1.msra.mxu0 %v1619
        %1908 = vmatprep.subr.mxu0 %v1622
        %1909 = vmatpush1.msra.mxu0 %v1621
        %1910 = vmatprep.subr.mxu0 %v1624
        %1911 = vmatpush1.msra.mxu0 %v1623
        %1912 = vmatprep.subr.mxu0 %v1626
        %1913 = vmatpush1.msra.mxu0 %v1625
        %1914 = vmatprep.subr.mxu0 %v1628
        %1915 = vmatpush1.msra.mxu0 %v1627
        %1916 = vmatprep.subr.mxu0 %v1630
        %1917 = vmatpush1.msra.mxu0 %v1629
        %1918 = vmatprep.subr.mxu0 %v1632
        %1919 = vmatpush1.msra.mxu0 %v1631
        %1920 = vmatprep.subr.mxu0 %v1634
        %1921 = vmatpush1.msra.mxu0 %v1633
        %1922 = vmatprep.subr.mxu0 %v1636
        %1923 = vmatpush1.msra.mxu0 %v1635
        %1924 = vmatprep.subr.mxu0 %v1638
        %1925 = vmatpush1.msra.mxu0 %v1637
        %1926 = vmatprep.subr.mxu0 %v1640
        %1927 = vmatpush1.msra.mxu0 %v1639
        %1928 = vmatprep.subr.mxu0 %v1642
        %1929 = vmatpush1.msra.mxu0 %v1641
        %1930 = vmatprep.subr.mxu0 %v1644
        %1931 = vmatpush1.msra.mxu0 %v1643
        %1932 = vmatprep.subr.mxu0 %v1646
        %1933 = vmatpush1.msra.mxu0 %v1645
        %1934 = vmatprep.subr.mxu0 %v1648
        %1935 = vmatpush1.msra.mxu0 %v1647
        %1936 = vmatprep.subr.mxu0 %v1650
        %1937 = vmatpush1.msra.mxu0 %v1649
        %1938 = vmatprep.subr.mxu0 %v1652
        %1939 = vmatpush1.msra.mxu0 %v1651
        %1940 = vmatprep.subr.mxu0 %v1654
        %1941 = vmatpush1.msra.mxu0 %v1653
        %1942 = vmatprep.subr.mxu0 %v1656
        %1943 = vmatpush1.msra.mxu0 %v1655
        %1944 = vmatprep.subr.mxu0 %v1658
        %1945 = vmatpush1.msra.mxu0 %v1657
        %1946 = vmatprep.subr.mxu0 %v1660
        %1947 = vmatpush1.msra.mxu0 %v1659
        %1948 = vmatprep.subr.mxu0 %v1662
        %1949 = vmatpush1.msra.mxu0 %v1661
        %1950 = vmatprep.subr.mxu0 %v1664
        %1951 = vmatpush1.msra.mxu0 %v1663
        %1952 = vmatprep.subr.mxu0 %v1666
        %1953 = vmatpush1.msra.mxu0 %v1665
        %1954 = vmatprep.subr.mxu0 %v1668
        %1955 = vmatpush1.msra.mxu0 %v1667
        %1956 = vmatprep.mubr.f32.mxu0 %v1597
        %1957 = vmatmul.mubr.f32.gmra.mrb[0].mxu0 %v1595
        %v1958 = vpop.f32.mrb[0].mxu0
        %v1959 = vadd.f32 %v1882, %v1958
        %v1960 = vpop.f32.mrb[0].mxu0
        %v1961 = vadd.f32 %v1884, %v1960
        %1962 = vmatprep.mubr.f32.mxu0 %v1603
        %1963 = vmatmul.mubr.f32.gmra.mrb[0].mxu0 %v1601
        %v1964 = vpop.f32.mrb[0].mxu0
        %v1965 = vadd.f32 %v1888, %v1964
        %v1966 = vpop.f32.mrb[0].mxu0
        %v1967 = vadd.f32 %v1890, %v1966
        %1968 = vdwg.mxu0
        %v1969 = vsel %vm1523, %v957, 0
        %v1971 = vsel %vm1523, %v958, 0
        %1973 = vmatprep.subr.mxu0 %v1516
        %1974 = vmatpush1.msra.mxu0 %v1515
        %1975 = vmatprep.subr.mxu0 %v1518
        %1976 = vmatpush1.msra.mxu0 %v1517
        %1977 = vmatprep.subr.mxu0 %v1520
        %1978 = vmatpush1.msra.mxu0 %v1519
        %1979 = vmatprep.subr.mxu0 %v1522
        %1980 = vmatpush1.msra.mxu0 %v1521
        %1981 = vmatprep.subr.mxu0 0.0
        %1982 = vmatpush1.msra.mxu0 0.0
        %1983 = vmatprep.subr.mxu0 0.0
        %1984 = vmatpush1.msra.mxu0 0.0
        %1985 = vmatprep.subr.mxu0 0.0
        %1986 = vmatpush1.msra.mxu0 0.0
        %1987 = vmatprep.subr.mxu0 0.0
        %1988 = vmatpush1.msra.mxu0 0.0
        %1989 = vmatprep.subr.mxu0 0.0
        %1990 = vmatpush1.msra.mxu0 0.0
        %1991 = vmatprep.subr.mxu0 0.0
        %1992 = vmatpush1.msra.mxu0 0.0
        %1993 = vmatprep.subr.mxu0 0.0
        %1994 = vmatpush1.msra.mxu0 0.0
        %1995 = vmatprep.subr.mxu0 0.0
        %1996 = vmatpush1.msra.mxu0 0.0
        %1997 = vmatprep.subr.mxu0 0.0
        %1998 = vmatpush1.msra.mxu0 0.0
        %1999 = vmatprep.subr.mxu0 0.0
        %2000 = vmatpush1.msra.mxu0 0.0
        %2001 = vmatprep.subr.mxu0 0.0
        %2002 = vmatpush1.msra.mxu0 0.0
        %2003 = vmatprep.subr.mxu0 0.0
        %2004 = vmatpush1.msra.mxu0 0.0
        %2005 = vmatprep.subr.mxu0 0.0
        %2006 = vmatpush1.msra.mxu0 0.0
        %2007 = vmatprep.subr.mxu0 0.0
        %2008 = vmatpush1.msra.mxu0 0.0
        %2009 = vmatprep.subr.mxu0 0.0
        %2010 = vmatpush1.msra.mxu0 0.0
        %2011 = vmatprep.subr.mxu0 0.0
        %2012 = vmatpush1.msra.mxu0 0.0
        %2013 = vmatprep.subr.mxu0 0.0
        %2014 = vmatpush1.msra.mxu0 0.0
        %2015 = vmatprep.subr.mxu0 0.0
        %2016 = vmatpush1.msra.mxu0 0.0
        %2017 = vmatprep.subr.mxu0 0.0
        %2018 = vmatpush1.msra.mxu0 0.0
        %2019 = vmatprep.subr.mxu0 0.0
        %2020 = vmatpush1.msra.mxu0 0.0
        %2021 = vmatprep.subr.mxu0 0.0
        %2022 = vmatpush1.msra.mxu0 0.0
        %2023 = vmatprep.subr.mxu0 0.0
        %2024 = vmatpush1.msra.mxu0 0.0
        %2025 = vmatprep.subr.mxu0 0.0
        %2026 = vmatpush1.msra.mxu0 0.0
        %2027 = vmatprep.subr.mxu0 0.0
        %2028 = vmatpush1.msra.mxu0 0.0
        %2029 = vmatprep.subr.mxu0 0.0
        %2030 = vmatpush1.msra.mxu0 0.0
        %2031 = vmatprep.subr.mxu0 0.0
        %2032 = vmatpush1.msra.mxu0 0.0
        %2033 = vmatprep.subr.mxu0 0.0
        %2034 = vmatpush1.msra.mxu0 0.0
        %2035 = vmatprep.subr.mxu0 0.0
        %2036 = vmatpush1.msra.mxu0 0.0
        %2037 = vmatprep.mubr.f32.mxu0 0.0
        %2038 = vmatmul.mubr.f32.gmra.mrb[0].mxu0 %v1969
        %v2039 = vpop.f32.mrb[0].mxu0
        %v2040 = vadd.f32 0.0, %v2039
        %v2041 = vpop.f32.mrb[0].mxu0
        %v2042 = vadd.f32 0.0, %v2041
        %2043 = vmatprep.mubr.f32.mxu0 0.0
        %2044 = vmatmul.mubr.f32.gmra.mrb[0].mxu0 %v1971
        %v2045 = vpop.f32.mrb[0].mxu0
        %v2046 = vadd.f32 0.0, %v2045
        %v2047 = vpop.f32.mrb[0].mxu0
        %v2048 = vadd.f32 0.0, %v2047
        %2049 = vdwg.mxu0
        %s2050 = scalar_lea.vmem %s2, 1024
        %v2051 = vld [vmem:[%s2050] sm:$0xff]
        %v2052 = vld [vmem:[%s2050 + $0x8] sm:$0xff]
        %v2053 = vld [vmem:[%s2050 + $0x10] sm:$0xff]
        %v2054 = vld [vmem:[%s2050 + $0x18] sm:$0xff]
        %v2055 = vld [vmem:[%s2050 + $0x20] sm:$0xff]
        %v2056 = vld [vmem:[%s2050 + $0x28] sm:$0xff]
        %v2057 = vld [vmem:[%s2050 + $0x30] sm:$0xff]
        %v2058 = vld [vmem:[%s2050 + $0x38] sm:$0xff]
        %v2059 = vld [vmem:[%s2050 + $0x40] sm:$0xff]
        %v2060 = vld [vmem:[%s2050 + $0x48] sm:$0xff]
        %v2061 = vld [vmem:[%s2050 + $0x50] sm:$0xff]
        %v2062 = vld [vmem:[%s2050 + $0x58] sm:$0xff]
        %v2063 = vld [vmem:[%s2050 + $0x60] sm:$0xff]
        %v2064 = vld [vmem:[%s2050 + $0x68] sm:$0xff]
        %v2065 = vld [vmem:[%s2050 + $0x70] sm:$0xff]
        %v2066 = vld [vmem:[%s2050 + $0x78] sm:$0xff]
        %v2067 = vld [vmem:[%s2050 + $0x80] sm:$0xff]
        %v2068 = vld [vmem:[%s2050 + $0x88] sm:$0xff]
        %v2069 = vld [vmem:[%s2050 + $0x90] sm:$0xff]
        %v2070 = vld [vmem:[%s2050 + $0x98] sm:$0xff]
        %v2071 = vld [vmem:[%s2050 + $0xa0] sm:$0xff]
        %v2072 = vld [vmem:[%s2050 + $0xa8] sm:$0xff]
        %v2073 = vld [vmem:[%s2050 + $0xb0] sm:$0xff]
        %v2074 = vld [vmem:[%s2050 + $0xb8] sm:$0xff]
        %v2075 = vld [vmem:[%s2050 + $0xc0] sm:$0xff]
        %v2076 = vld [vmem:[%s2050 + $0xc8] sm:$0xff]
        %v2077 = vld [vmem:[%s2050 + $0xd0] sm:$0xff]
        %v2078 = vld [vmem:[%s2050 + $0xd8] sm:$0xff]
        %v2079 = vld [vmem:[%s2050 + $0xe0] sm:$0xff]
        %v2080 = vld [vmem:[%s2050 + $0xe8] sm:$0xff]
        %v2081 = vld [vmem:[%s2050 + $0xf0] sm:$0xff]
        %v2082 = vld [vmem:[%s2050 + $0xf8] sm:$0xff]
        %v2083 = vld [vmem:[%s2050 + $0x100] sm:$0xff]
        %v2084 = vld [vmem:[%s2050 + $0x108] sm:$0xff]
        %v2085 = vld [vmem:[%s2050 + $0x110] sm:$0xff]
        %v2086 = vld [vmem:[%s2050 + $0x118] sm:$0xff]
        %v2087 = vld [vmem:[%s2050 + $0x120] sm:$0xff]
        %v2088 = vld [vmem:[%s2050 + $0x128] sm:$0xff]
        %v2089 = vld [vmem:[%s2050 + $0x130] sm:$0xff]
        %v2090 = vld [vmem:[%s2050 + $0x138] sm:$0xff]
        %v2091 = vld [vmem:[%s2050 + $0x140] sm:$0xff]
        %v2092 = vld [vmem:[%s2050 + $0x148] sm:$0xff]
        %v2093 = vld [vmem:[%s2050 + $0x150] sm:$0xff]
        %v2094 = vld [vmem:[%s2050 + $0x158] sm:$0xff]
        %v2095 = vld [vmem:[%s2050 + $0x160] sm:$0xff]
        %v2096 = vld [vmem:[%s2050 + $0x168] sm:$0xff]
        %v2097 = vld [vmem:[%s2050 + $0x170] sm:$0xff]
        %v2098 = vld [vmem:[%s2050 + $0x178] sm:$0xff]
        %v2099 = vld [vmem:[%s2050 + $0x180] sm:$0xff]
        %v2100 = vld [vmem:[%s2050 + $0x188] sm:$0xff]
        %v2101 = vld [vmem:[%s2050 + $0x190] sm:$0xff]
        %v2102 = vld [vmem:[%s2050 + $0x198] sm:$0xff]
        %v2103 = vld [vmem:[%s2050 + $0x1a0] sm:$0xff]
        %v2104 = vld [vmem:[%s2050 + $0x1a8] sm:$0xff]
        %v2105 = vld [vmem:[%s2050 + $0x1b0] sm:$0xff]
        %v2106 = vld [vmem:[%s2050 + $0x1b8] sm:$0xff]
        %v2107 = vld [vmem:[%s2050 + $0x1c0] sm:$0xff]
        %v2108 = vld [vmem:[%s2050 + $0x1c8] sm:$0xff]
        %v2109 = vld [vmem:[%s2050 + $0x1d0] sm:$0xff]
        %v2110 = vld [vmem:[%s2050 + $0x1d8] sm:$0xff]
        %v2111 = vld [vmem:[%s2050 + $0x1e0] sm:$0xff]
        %v2112 = vld [vmem:[%s2050 + $0x1e8] sm:$0xff]
        %v2113 = vld [vmem:[%s2050 + $0x1f0] sm:$0xff]
        %v2114 = vld [vmem:[%s2050 + $0x1f8] sm:$0xff]
        %2115 = vmatprep.subr.mxu0 %v2052
        %2116 = vmatpush1.msra.mxu0 %v2051
        %2117 = vmatprep.subr.mxu0 %v2054
        %2118 = vmatpush1.msra.mxu0 %v2053
        %2119 = vmatprep.subr.mxu0 %v2056
        %2120 = vmatpush1.msra.mxu0 %v2055
        %2121 = vmatprep.subr.mxu0 %v2058
        %2122 = vmatpush1.msra.mxu0 %v2057
        %2123 = vmatprep.subr.mxu0 %v2060
        %2124 = vmatpush1.msra.mxu0 %v2059
        %2125 = vmatprep.subr.mxu0 %v2062
        %2126 = vmatpush1.msra.mxu0 %v2061
        %2127 = vmatprep.subr.mxu0 %v2064
        %2128 = vmatpush1.msra.mxu0 %v2063
        %2129 = vmatprep.subr.mxu0 %v2066
        %2130 = vmatpush1.msra.mxu0 %v2065
        %2131 = vmatprep.subr.mxu0 %v2068
        %2132 = vmatpush1.msra.mxu0 %v2067
        %2133 = vmatprep.subr.mxu0 %v2070
        %2134 = vmatpush1.msra.mxu0 %v2069
        %2135 = vmatprep.subr.mxu0 %v2072
        %2136 = vmatpush1.msra.mxu0 %v2071
        %2137 = vmatprep.subr.mxu0 %v2074
        %2138 = vmatpush1.msra.mxu0 %v2073
        %2139 = vmatprep.subr.mxu0 %v2076
        %2140 = vmatpush1.msra.mxu0 %v2075
        %2141 = vmatprep.subr.mxu0 %v2078
        %2142 = vmatpush1.msra.mxu0 %v2077
        %2143 = vmatprep.subr.mxu0 %v2080
        %2144 = vmatpush1.msra.mxu0 %v2079
        %2145 = vmatprep.subr.mxu0 %v2082
        %2146 = vmatpush1.msra.mxu0 %v2081
        %2147 = vmatprep.subr.mxu0 %v2084
        %2148 = vmatpush1.msra.mxu0 %v2083
        %2149 = vmatprep.subr.mxu0 %v2086
        %2150 = vmatpush1.msra.mxu0 %v2085
        %2151 = vmatprep.subr.mxu0 %v2088
        %2152 = vmatpush1.msra.mxu0 %v2087
        %2153 = vmatprep.subr.mxu0 %v2090
        %2154 = vmatpush1.msra.mxu0 %v2089
        %2155 = vmatprep.subr.mxu0 %v2092
        %2156 = vmatpush1.msra.mxu0 %v2091
        %2157 = vmatprep.subr.mxu0 %v2094
        %2158 = vmatpush1.msra.mxu0 %v2093
        %2159 = vmatprep.subr.mxu0 %v2096
        %2160 = vmatpush1.msra.mxu0 %v2095
        %2161 = vmatprep.subr.mxu0 %v2098
        %2162 = vmatpush1.msra.mxu0 %v2097
        %2163 = vmatprep.subr.mxu0 %v2100
        %2164 = vmatpush1.msra.mxu0 %v2099
        %2165 = vmatprep.subr.mxu0 %v2102
        %2166 = vmatpush1.msra.mxu0 %v2101
        %2167 = vmatprep.subr.mxu0 %v2104
        %2168 = vmatpush1.msra.mxu0 %v2103
        %2169 = vmatprep.subr.mxu0 %v2106
        %2170 = vmatpush1.msra.mxu0 %v2105
        %2171 = vmatprep.subr.mxu0 %v2108
        %2172 = vmatpush1.msra.mxu0 %v2107
        %2173 = vmatprep.subr.mxu0 %v2110
        %2174 = vmatpush1.msra.mxu0 %v2109
        %2175 = vmatprep.subr.mxu0 %v2112
        %2176 = vmatpush1.msra.mxu0 %v2111
        %2177 = vmatprep.subr.mxu0 %v2114
        %2178 = vmatpush1.msra.mxu0 %v2113
        %2179 = vmatprep.mubr.f32.mxu0 %v2042
        %2180 = vmatmul.mubr.f32.gmra.mrb[0].mxu0 %v2040
        %v2181 = vpop.f32.mrb[0].mxu0
        %v2182 = vadd.f32 0.0, %v2181
        %v2183 = vpop.f32.mrb[0].mxu0
        %v2184 = vadd.f32 0.0, %v2183
        %2185 = vmatprep.mubr.f32.mxu0 %v2048
        %2186 = vmatmul.mubr.f32.gmra.mrb[0].mxu0 %v2046
        %v2187 = vpop.f32.mrb[0].mxu0
        %v2188 = vadd.f32 0.0, %v2187
        %v2189 = vpop.f32.mrb[0].mxu0
        %v2190 = vadd.f32 0.0, %v2189
        %2191 = vdwg.mxu0
        %v2192 = vadd.f32 %v1959, %v2182
        %v2193 = vadd.f32 %v1961, %v2184
        %v2194 = vadd.f32 %v1965, %v2188
        %v2195 = vadd.f32 %v1967, %v2190
        %v2196 = vsel %vm1523, %v1236, 0
        %v2198 = vsel %vm1523, %v1237, 0
        %2200 = vmatprep.subr.mxu0 %v1516
        %2201 = vmatpush1.msra.mxu0 %v1515
        %2202 = vmatprep.subr.mxu0 %v1518
        %2203 = vmatpush1.msra.mxu0 %v1517
        %2204 = vmatprep.subr.mxu0 %v1520
        %2205 = vmatpush1.msra.mxu0 %v1519
        %2206 = vmatprep.subr.mxu0 %v1522
        %2207 = vmatpush1.msra.mxu0 %v1521
        %2208 = vmatprep.subr.mxu0 0.0
        %2209 = vmatpush1.msra.mxu0 0.0
        %2210 = vmatprep.subr.mxu0 0.0
        %2211 = vmatpush1.msra.mxu0 0.0
        %2212 = vmatprep.subr.mxu0 0.0
        %2213 = vmatpush1.msra.mxu0 0.0
        %2214 = vmatprep.subr.mxu0 0.0
        %2215 = vmatpush1.msra.mxu0 0.0
        %2216 = vmatprep.subr.mxu0 0.0
        %2217 = vmatpush1.msra.mxu0 0.0
        %2218 = vmatprep.subr.mxu0 0.0
        %2219 = vmatpush1.msra.mxu0 0.0
        %2220 = vmatprep.subr.mxu0 0.0
        %2221 = vmatpush1.msra.mxu0 0.0
        %2222 = vmatprep.subr.mxu0 0.0
        %2223 = vmatpush1.msra.mxu0 0.0
        %2224 = vmatprep.subr.mxu0 0.0
        %2225 = vmatpush1.msra.mxu0 0.0
        %2226 = vmatprep.subr.mxu0 0.0
        %2227 = vmatpush1.msra.mxu0 0.0
        %2228 = vmatprep.subr.mxu0 0.0
        %2229 = vmatpush1.msra.mxu0 0.0
        %2230 = vmatprep.subr.mxu0 0.0
        %2231 = vmatpush1.msra.mxu0 0.0
        %2232 = vmatprep.subr.mxu0 0.0
        %2233 = vmatpush1.msra.mxu0 0.0
        %2234 = vmatprep.subr.mxu0 0.0
        %2235 = vmatpush1.msra.mxu0 0.0
        %2236 = vmatprep.subr.mxu0 0.0
        %2237 = vmatpush1.msra.mxu0 0.0
        %2238 = vmatprep.subr.mxu0 0.0
        %2239 = vmatpush1.msra.mxu0 0.0
        %2240 = vmatprep.subr.mxu0 0.0
        %2241 = vmatpush1.msra.mxu0 0.0
        %2242 = vmatprep.subr.mxu0 0.0
        %2243 = vmatpush1.msra.mxu0 0.0
        %2244 = vmatprep.subr.mxu0 0.0
        %2245 = vmatpush1.msra.mxu0 0.0
        %2246 = vmatprep.subr.mxu0 0.0
        %2247 = vmatpush1.msra.mxu0 0.0
        %2248 = vmatprep.subr.mxu0 0.0
        %2249 = vmatpush1.msra.mxu0 0.0
        %2250 = vmatprep.subr.mxu0 0.0
        %2251 = vmatpush1.msra.mxu0 0.0
        %2252 = vmatprep.subr.mxu0 0.0
        %2253 = vmatpush1.msra.mxu0 0.0
        %2254 = vmatprep.subr.mxu0 0.0
        %2255 = vmatpush1.msra.mxu0 0.0
        %2256 = vmatprep.subr.mxu0 0.0
        %2257 = vmatpush1.msra.mxu0 0.0
        %2258 = vmatprep.subr.mxu0 0.0
        %2259 = vmatpush1.msra.mxu0 0.0
        %2260 = vmatprep.subr.mxu0 0.0
        %2261 = vmatpush1.msra.mxu0 0.0
        %2262 = vmatprep.subr.mxu0 0.0
        %2263 = vmatpush1.msra.mxu0 0.0
        %2264 = vmatprep.mubr.f32.mxu0 0.0
        %2265 = vmatmul.mubr.f32.gmra.mrb[0].mxu0 %v2196
        %v2266 = vpop.f32.mrb[0].mxu0
        %v2267 = vadd.f32 0.0, %v2266
        %v2268 = vpop.f32.mrb[0].mxu0
        %v2269 = vadd.f32 0.0, %v2268
        %2270 = vmatprep.mubr.f32.mxu0 0.0
        %2271 = vmatmul.mubr.f32.gmra.mrb[0].mxu0 %v2198
        %v2272 = vpop.f32.mrb[0].mxu0
        %v2273 = vadd.f32 0.0, %v2272
        %v2274 = vpop.f32.mrb[0].mxu0
        %v2275 = vadd.f32 0.0, %v2274
        %2276 = vdwg.mxu0
        %s2277 = scalar_lea.vmem %s2, 1536
        %v2278 = vld [vmem:[%s2277] sm:$0xff]
        %v2279 = vld [vmem:[%s2277 + $0x8] sm:$0xff]
        %v2280 = vld [vmem:[%s2277 + $0x10] sm:$0xff]
        %v2281 = vld [vmem:[%s2277 + $0x18] sm:$0xff]
        %v2282 = vld [vmem:[%s2277 + $0x20] sm:$0xff]
        %v2283 = vld [vmem:[%s2277 + $0x28] sm:$0xff]
        %v2284 = vld [vmem:[%s2277 + $0x30] sm:$0xff]
        %v2285 = vld [vmem:[%s2277 + $0x38] sm:$0xff]
        %v2286 = vld [vmem:[%s2277 + $0x40] sm:$0xff]
        %v2287 = vld [vmem:[%s2277 + $0x48] sm:$0xff]
        %v2288 = vld [vmem:[%s2277 + $0x50] sm:$0xff]
        %v2289 = vld [vmem:[%s2277 + $0x58] sm:$0xff]
        %v2290 = vld [vmem:[%s2277 + $0x60] sm:$0xff]
        %v2291 = vld [vmem:[%s2277 + $0x68] sm:$0xff]
        %v2292 = vld [vmem:[%s2277 + $0x70] sm:$0xff]
        %v2293 = vld [vmem:[%s2277 + $0x78] sm:$0xff]
        %v2294 = vld [vmem:[%s2277 + $0x80] sm:$0xff]
        %v2295 = vld [vmem:[%s2277 + $0x88] sm:$0xff]
        %v2296 = vld [vmem:[%s2277 + $0x90] sm:$0xff]
        %v2297 = vld [vmem:[%s2277 + $0x98] sm:$0xff]
        %v2298 = vld [vmem:[%s2277 + $0xa0] sm:$0xff]
        %v2299 = vld [vmem:[%s2277 + $0xa8] sm:$0xff]
        %v2300 = vld [vmem:[%s2277 + $0xb0] sm:$0xff]
        %v2301 = vld [vmem:[%s2277 + $0xb8] sm:$0xff]
        %v2302 = vld [vmem:[%s2277 + $0xc0] sm:$0xff]
        %v2303 = vld [vmem:[%s2277 + $0xc8] sm:$0xff]
        %v2304 = vld [vmem:[%s2277 + $0xd0] sm:$0xff]
        %v2305 = vld [vmem:[%s2277 + $0xd8] sm:$0xff]
        %v2306 = vld [vmem:[%s2277 + $0xe0] sm:$0xff]
        %v2307 = vld [vmem:[%s2277 + $0xe8] sm:$0xff]
        %v2308 = vld [vmem:[%s2277 + $0xf0] sm:$0xff]
        %v2309 = vld [vmem:[%s2277 + $0xf8] sm:$0xff]
        %v2310 = vld [vmem:[%s2277 + $0x100] sm:$0xff]
        %v2311 = vld [vmem:[%s2277 + $0x108] sm:$0xff]
        %v2312 = vld [vmem:[%s2277 + $0x110] sm:$0xff]
        %v2313 = vld [vmem:[%s2277 + $0x118] sm:$0xff]
        %v2314 = vld [vmem:[%s2277 + $0x120] sm:$0xff]
        %v2315 = vld [vmem:[%s2277 + $0x128] sm:$0xff]
        %v2316 = vld [vmem:[%s2277 + $0x130] sm:$0xff]
        %v2317 = vld [vmem:[%s2277 + $0x138] sm:$0xff]
        %v2318 = vld [vmem:[%s2277 + $0x140] sm:$0xff]
        %v2319 = vld [vmem:[%s2277 + $0x148] sm:$0xff]
        %v2320 = vld [vmem:[%s2277 + $0x150] sm:$0xff]
        %v2321 = vld [vmem:[%s2277 + $0x158] sm:$0xff]
        %v2322 = vld [vmem:[%s2277 + $0x160] sm:$0xff]
        %v2323 = vld [vmem:[%s2277 + $0x168] sm:$0xff]
        %v2324 = vld [vmem:[%s2277 + $0x170] sm:$0xff]
        %v2325 = vld [vmem:[%s2277 + $0x178] sm:$0xff]
        %v2326 = vld [vmem:[%s2277 + $0x180] sm:$0xff]
        %v2327 = vld [vmem:[%s2277 + $0x188] sm:$0xff]
        %v2328 = vld [vmem:[%s2277 + $0x190] sm:$0xff]
        %v2329 = vld [vmem:[%s2277 + $0x198] sm:$0xff]
        %v2330 = vld [vmem:[%s2277 + $0x1a0] sm:$0xff]
        %v2331 = vld [vmem:[%s2277 + $0x1a8] sm:$0xff]
        %v2332 = vld [vmem:[%s2277 + $0x1b0] sm:$0xff]
        %v2333 = vld [vmem:[%s2277 + $0x1b8] sm:$0xff]
        %v2334 = vld [vmem:[%s2277 + $0x1c0] sm:$0xff]
        %v2335 = vld [vmem:[%s2277 + $0x1c8] sm:$0xff]
        %v2336 = vld [vmem:[%s2277 + $0x1d0] sm:$0xff]
        %v2337 = vld [vmem:[%s2277 + $0x1d8] sm:$0xff]
        %v2338 = vld [vmem:[%s2277 + $0x1e0] sm:$0xff]
        %v2339 = vld [vmem:[%s2277 + $0x1e8] sm:$0xff]
        %v2340 = vld [vmem:[%s2277 + $0x1f0] sm:$0xff]
        %v2341 = vld [vmem:[%s2277 + $0x1f8] sm:$0xff]
        %2342 = vmatprep.subr.mxu0 %v2279
        %2343 = vmatpush1.msra.mxu0 %v2278
        %2344 = vmatprep.subr.mxu0 %v2281
        %2345 = vmatpush1.msra.mxu0 %v2280
        %2346 = vmatprep.subr.mxu0 %v2283
        %2347 = vmatpush1.msra.mxu0 %v2282
        %2348 = vmatprep.subr.mxu0 %v2285
        %2349 = vmatpush1.msra.mxu0 %v2284
        %2350 = vmatprep.subr.mxu0 %v2287
        %2351 = vmatpush1.msra.mxu0 %v2286
        %2352 = vmatprep.subr.mxu0 %v2289
        %2353 = vmatpush1.msra.mxu0 %v2288
        %2354 = vmatprep.subr.mxu0 %v2291
        %2355 = vmatpush1.msra.mxu0 %v2290
        %2356 = vmatprep.subr.mxu0 %v2293
        %2357 = vmatpush1.msra.mxu0 %v2292
        %2358 = vmatprep.subr.mxu0 %v2295
        %2359 = vmatpush1.msra.mxu0 %v2294
        %2360 = vmatprep.subr.mxu0 %v2297
        %2361 = vmatpush1.msra.mxu0 %v2296
        %2362 = vmatprep.subr.mxu0 %v2299
        %2363 = vmatpush1.msra.mxu0 %v2298
        %2364 = vmatprep.subr.mxu0 %v2301
        %2365 = vmatpush1.msra.mxu0 %v2300
        %2366 = vmatprep.subr.mxu0 %v2303
        %2367 = vmatpush1.msra.mxu0 %v2302
        %2368 = vmatprep.subr.mxu0 %v2305
        %2369 = vmatpush1.msra.mxu0 %v2304
        %2370 = vmatprep.subr.mxu0 %v2307
        %2371 = vmatpush1.msra.mxu0 %v2306
        %2372 = vmatprep.subr.mxu0 %v2309
        %2373 = vmatpush1.msra.mxu0 %v2308
        %2374 = vmatprep.subr.mxu0 %v2311
        %2375 = vmatpush1.msra.mxu0 %v2310
        %2376 = vmatprep.subr.mxu0 %v2313
        %2377 = vmatpush1.msra.mxu0 %v2312
        %2378 = vmatprep.subr.mxu0 %v2315
        %2379 = vmatpush1.msra.mxu0 %v2314
        %2380 = vmatprep.subr.mxu0 %v2317
        %2381 = vmatpush1.msra.mxu0 %v2316
        %2382 = vmatprep.subr.mxu0 %v2319
        %2383 = vmatpush1.msra.mxu0 %v2318
        %2384 = vmatprep.subr.mxu0 %v2321
        %2385 = vmatpush1.msra.mxu0 %v2320
        %2386 = vmatprep.subr.mxu0 %v2323
        %2387 = vmatpush1.msra.mxu0 %v2322
        %2388 = vmatprep.subr.mxu0 %v2325
        %2389 = vmatpush1.msra.mxu0 %v2324
        %2390 = vmatprep.subr.mxu0 %v2327
        %2391 = vmatpush1.msra.mxu0 %v2326
        %2392 = vmatprep.subr.mxu0 %v2329
        %2393 = vmatpush1.msra.mxu0 %v2328
        %2394 = vmatprep.subr.mxu0 %v2331
        %2395 = vmatpush1.msra.mxu0 %v2330
        %2396 = vmatprep.subr.mxu0 %v2333
        %2397 = vmatpush1.msra.mxu0 %v2332
        %2398 = vmatprep.subr.mxu0 %v2335
        %2399 = vmatpush1.msra.mxu0 %v2334
        %2400 = vmatprep.subr.mxu0 %v2337
        %2401 = vmatpush1.msra.mxu0 %v2336
        %2402 = vmatprep.subr.mxu0 %v2339
        %2403 = vmatpush1.msra.mxu0 %v2338
        %2404 = vmatprep.subr.mxu0 %v2341
        %2405 = vmatpush1.msra.mxu0 %v2340
        %2406 = vmatprep.mubr.f32.mxu0 %v2269
        %2407 = vmatmul.mubr.f32.gmra.mrb[0].mxu0 %v2267
        %v2408 = vpop.f32.mrb[0].mxu0
        %v2409 = vadd.f32 0.0, %v2408
        %v2410 = vpop.f32.mrb[0].mxu0
        %v2411 = vadd.f32 0.0, %v2410
        %2412 = vmatprep.mubr.f32.mxu0 %v2275
        %2413 = vmatmul.mubr.f32.gmra.mrb[0].mxu0 %v2273
        %v2414 = vpop.f32.mrb[0].mxu0
        %v2415 = vadd.f32 0.0, %v2414
        %v2416 = vpop.f32.mrb[0].mxu0
        %v2417 = vadd.f32 0.0, %v2416
        %2418 = vdwg.mxu0
        %v2419 = vadd.f32 %v2192, %v2409
        %v2420 = vadd.f32 %v2193, %v2411
        %v2421 = vadd.f32 %v2194, %v2415
        %v2422 = vadd.f32 %v2195, %v2417
        %v2423 = vld [vmem:[%s6] sm:$0x3]
        %v2425 = vlaneseq
        %v2426 = vshrl.u32 %v2425, 7
        %v2427 = vsub.s32 0, %v2426
        %v2428 = vrot.slane %v2423, %v2427
        %v2429 = vlaneseq
        %v2430 = vshrl.u32 %v2429, 7
        %v2431 = vsub.s32 1, %v2430
        %v2432 = vrot.slane %v2423, %v2431
        %v2435 = vadd.f32 %v2419, %v2428
        %v2436 = vadd.f32 %v2420, %v2432
        %v2437 = vadd.f32 %v2421, %v2428
        %v2438 = vadd.f32 %v2422, %v2432
        %vm2439 = vcmp.gt.f32.partialorder %v2435, 0.0
        %vm2440 = vcmp.gt.f32.partialorder %v2436, 0.0
        %vm2441 = vcmp.gt.f32.partialorder %v2437, 0.0
        %vm2442 = vcmp.gt.f32.partialorder %v2438, 0.0
        %v2443 = vmul.f32 %v2435, 0.2
        %v2444 = vmul.f32 %v2436, 0.2
        %v2445 = vmul.f32 %v2437, 0.2
        %v2446 = vmul.f32 %v2438, 0.2
        %v2447 = vsel %vm2439, %v2435, %v2443
        %v2448 = vsel %vm2440, %v2436, %v2444
        %v2449 = vsel %vm2441, %v2437, %v2445
        %v2450 = vsel %vm2442, %v2438, %v2446
        %vm2451 = vcmask 130048
        %v2452 = vsel %vm2451, %v423, 0
        %2454 = vmatprep.subr.mxu0 %v2448
        %2455 = vmatpush1.msra.mxu0 %v2447
        %2456 = vmatprep.subr.mxu0 %v2450
        %2457 = vmatpush1.msra.mxu0 %v2449
        %2458 = vmatprep.subr.mxu0 0.0
        %2459 = vmatpush1.msra.mxu0 0.0
        %2460 = vmatprep.subr.mxu0 0.0
        %2461 = vmatpush1.msra.mxu0 0.0
        %2462 = vmatprep.subr.mxu0 0.0
        %2463 = vmatpush1.msra.mxu0 0.0
        %2464 = vmatprep.subr.mxu0 0.0
        %2465 = vmatpush1.msra.mxu0 0.0
        %2466 = vmatprep.subr.mxu0 0.0
        %2467 = vmatpush1.msra.mxu0 0.0
        %2468 = vmatprep.subr.mxu0 0.0
        %2469 = vmatpush1.msra.mxu0 0.0
        %2470 = vmatprep.subr.mxu0 0.0
        %2471 = vmatpush1.msra.mxu0 0.0
        %2472 = vmatprep.subr.mxu0 0.0
        %2473 = vmatpush1.msra.mxu0 0.0
        %2474 = vmatprep.subr.mxu0 0.0
        %2475 = vmatpush1.msra.mxu0 0.0
        %2476 = vmatprep.subr.mxu0 0.0
        %2477 = vmatpush1.msra.mxu0 0.0
        %2478 = vmatprep.subr.mxu0 0.0
        %2479 = vmatpush1.msra.mxu0 0.0
        %2480 = vmatprep.subr.mxu0 0.0
        %2481 = vmatpush1.msra.mxu0 0.0
        %2482 = vmatprep.subr.mxu0 0.0
        %2483 = vmatpush1.msra.mxu0 0.0
        %2484 = vmatprep.subr.mxu0 0.0
        %2485 = vmatpush1.msra.mxu0 0.0
        %2486 = vmatprep.subr.mxu0 0.0
        %2487 = vmatpush1.msra.mxu0 0.0
        %2488 = vmatprep.subr.mxu0 0.0
        %2489 = vmatpush1.msra.mxu0 0.0
        %2490 = vmatprep.subr.mxu0 0.0
        %2491 = vmatpush1.msra.mxu0 0.0
        %2492 = vmatprep.subr.mxu0 0.0
        %2493 = vmatpush1.msra.mxu0 0.0
        %2494 = vmatprep.subr.mxu0 0.0
        %2495 = vmatpush1.msra.mxu0 0.0
        %2496 = vmatprep.subr.mxu0 0.0
        %2497 = vmatpush1.msra.mxu0 0.0
        %2498 = vmatprep.subr.mxu0 0.0
        %2499 = vmatpush1.msra.mxu0 0.0
        %2500 = vmatprep.subr.mxu0 0.0
        %2501 = vmatpush1.msra.mxu0 0.0
        %2502 = vmatprep.subr.mxu0 0.0
        %2503 = vmatpush1.msra.mxu0 0.0
        %2504 = vmatprep.subr.mxu0 0.0
        %2505 = vmatpush1.msra.mxu0 0.0
        %2506 = vmatprep.subr.mxu0 0.0
        %2507 = vmatpush1.msra.mxu0 0.0
        %2508 = vmatprep.subr.mxu0 0.0
        %2509 = vmatpush1.msra.mxu0 0.0
        %2510 = vmatprep.subr.mxu0 0.0
        %2511 = vmatpush1.msra.mxu0 0.0
        %2512 = vmatprep.subr.mxu0 0.0
        %2513 = vmatpush1.msra.mxu0 0.0
        %2514 = vmatprep.subr.mxu0 0.0
        %2515 = vmatpush1.msra.mxu0 0.0
        %2516 = vmatprep.subr.mxu0 0.0
        %2517 = vmatpush1.msra.mxu0 0.0
        %2518 = vmatprep.mubr.f32.mxu0 0.0
        %2519 = vmatmul.mubr.f32.gmra.mrb[0].mxu0 %v2452
        %v2520 = vpop.f32.mrb[0].mxu0
        %v2521 = vadd.f32 0.0, %v2520
        %v2522 = vpop.f32.mrb[0].mxu0
        %v2523 = vadd.f32 0.0, %v2522
        %2524 = vdwg.mxu0
        %v2525 = vld [vmem:[%s3] sm:$0xff]
        %v2526 = vld [vmem:[%s3 + $0x8] sm:$0xff]
        %v2527 = vld [vmem:[%s3 + $0x10] sm:$0xff]
        %v2528 = vld [vmem:[%s3 + $0x18] sm:$0xff]
        %v2529 = vld [vmem:[%s3 + $0x20] sm:$0xff]
        %v2530 = vld [vmem:[%s3 + $0x28] sm:$0xff]
        %v2531 = vld [vmem:[%s3 + $0x30] sm:$0xff]
        %v2532 = vld [vmem:[%s3 + $0x38] sm:$0xff]
        %v2533 = vld [vmem:[%s3 + $0x40] sm:$0xff]
        %v2534 = vld [vmem:[%s3 + $0x48] sm:$0xff]
        %v2535 = vld [vmem:[%s3 + $0x50] sm:$0xff]
        %v2536 = vld [vmem:[%s3 + $0x58] sm:$0xff]
        %v2537 = vld [vmem:[%s3 + $0x60] sm:$0xff]
        %v2538 = vld [vmem:[%s3 + $0x68] sm:$0xff]
        %v2539 = vld [vmem:[%s3 + $0x70] sm:$0xff]
        %v2540 = vld [vmem:[%s3 + $0x78] sm:$0xff]
        %v2541 = vld [vmem:[%s3 + $0x80] sm:$0xff]
        %v2542 = vld [vmem:[%s3 + $0x88] sm:$0xff]
        %v2543 = vld [vmem:[%s3 + $0x90] sm:$0xff]
        %v2544 = vld [vmem:[%s3 + $0x98] sm:$0xff]
        %v2545 = vld [vmem:[%s3 + $0xa0] sm:$0xff]
        %v2546 = vld [vmem:[%s3 + $0xa8] sm:$0xff]
        %v2547 = vld [vmem:[%s3 + $0xb0] sm:$0xff]
        %v2548 = vld [vmem:[%s3 + $0xb8] sm:$0xff]
        %v2549 = vld [vmem:[%s3 + $0xc0] sm:$0xff]
        %v2550 = vld [vmem:[%s3 + $0xc8] sm:$0xff]
        %v2551 = vld [vmem:[%s3 + $0xd0] sm:$0xff]
        %v2552 = vld [vmem:[%s3 + $0xd8] sm:$0xff]
        %v2553 = vld [vmem:[%s3 + $0xe0] sm:$0xff]
        %v2554 = vld [vmem:[%s3 + $0xe8] sm:$0xff]
        %v2555 = vld [vmem:[%s3 + $0xf0] sm:$0xff]
        %v2556 = vld [vmem:[%s3 + $0xf8] sm:$0xff]
        %v2557 = vld [vmem:[%s3 + $0x100] sm:$0xff]
        %v2558 = vld [vmem:[%s3 + $0x108] sm:$0xff]
        %v2559 = vld [vmem:[%s3 + $0x110] sm:$0xff]
        %v2560 = vld [vmem:[%s3 + $0x118] sm:$0xff]
        %v2561 = vld [vmem:[%s3 + $0x120] sm:$0xff]
        %v2562 = vld [vmem:[%s3 + $0x128] sm:$0xff]
        %v2563 = vld [vmem:[%s3 + $0x130] sm:$0xff]
        %v2564 = vld [vmem:[%s3 + $0x138] sm:$0xff]
        %v2565 = vld [vmem:[%s3 + $0x140] sm:$0xff]
        %v2566 = vld [vmem:[%s3 + $0x148] sm:$0xff]
        %v2567 = vld [vmem:[%s3 + $0x150] sm:$0xff]
        %v2568 = vld [vmem:[%s3 + $0x158] sm:$0xff]
        %v2569 = vld [vmem:[%s3 + $0x160] sm:$0xff]
        %v2570 = vld [vmem:[%s3 + $0x168] sm:$0xff]
        %v2571 = vld [vmem:[%s3 + $0x170] sm:$0xff]
        %v2572 = vld [vmem:[%s3 + $0x178] sm:$0xff]
        %v2573 = vld [vmem:[%s3 + $0x180] sm:$0xff]
        %v2574 = vld [vmem:[%s3 + $0x188] sm:$0xff]
        %v2575 = vld [vmem:[%s3 + $0x190] sm:$0xff]
        %v2576 = vld [vmem:[%s3 + $0x198] sm:$0xff]
        %v2577 = vld [vmem:[%s3 + $0x1a0] sm:$0xff]
        %v2578 = vld [vmem:[%s3 + $0x1a8] sm:$0xff]
        %v2579 = vld [vmem:[%s3 + $0x1b0] sm:$0xff]
        %v2580 = vld [vmem:[%s3 + $0x1b8] sm:$0xff]
        %v2581 = vld [vmem:[%s3 + $0x1c0] sm:$0xff]
        %v2582 = vld [vmem:[%s3 + $0x1c8] sm:$0xff]
        %v2583 = vld [vmem:[%s3 + $0x1d0] sm:$0xff]
        %v2584 = vld [vmem:[%s3 + $0x1d8] sm:$0xff]
        %v2585 = vld [vmem:[%s3 + $0x1e0] sm:$0xff]
        %v2586 = vld [vmem:[%s3 + $0x1e8] sm:$0xff]
        %v2587 = vld [vmem:[%s3 + $0x1f0] sm:$0xff]
        %v2588 = vld [vmem:[%s3 + $0x1f8] sm:$0xff]
        %v2589 = vsel %vm2451, %v585, 0
        %2591 = vmatprep.subr.mxu0 %v2448
        %2592 = vmatpush1.msra.mxu0 %v2447
        %2593 = vmatprep.subr.mxu0 %v2450
        %2594 = vmatpush1.msra.mxu0 %v2449
        %2595 = vmatprep.subr.mxu0 0.0
        %2596 = vmatpush1.msra.mxu0 0.0
        %2597 = vmatprep.subr.mxu0 0.0
        %2598 = vmatpush1.msra.mxu0 0.0
        %2599 = vmatprep.subr.mxu0 0.0
        %2600 = vmatpush1.msra.mxu0 0.0
        %2601 = vmatprep.subr.mxu0 0.0
        %2602 = vmatpush1.msra.mxu0 0.0
        %2603 = vmatprep.subr.mxu0 0.0
        %2604 = vmatpush1.msra.mxu0 0.0
        %2605 = vmatprep.subr.mxu0 0.0
        %2606 = vmatpush1.msra.mxu0 0.0
        %2607 = vmatprep.subr.mxu0 0.0
        %2608 = vmatpush1.msra.mxu0 0.0
        %2609 = vmatprep.subr.mxu0 0.0
        %2610 = vmatpush1.msra.mxu0 0.0
        %2611 = vmatprep.subr.mxu0 0.0
        %2612 = vmatpush1.msra.mxu0 0.0
        %2613 = vmatprep.subr.mxu0 0.0
        %2614 = vmatpush1.msra.mxu0 0.0
        %2615 = vmatprep.subr.mxu0 0.0
        %2616 = vmatpush1.msra.mxu0 0.0
        %2617 = vmatprep.subr.mxu0 0.0
        %2618 = vmatpush1.msra.mxu0 0.0
        %2619 = vmatprep.subr.mxu0 0.0
        %2620 = vmatpush1.msra.mxu0 0.0
        %2621 = vmatprep.subr.mxu0 0.0
        %2622 = vmatpush1.msra.mxu0 0.0
        %2623 = vmatprep.subr.mxu0 0.0
        %2624 = vmatpush1.msra.mxu0 0.0
        %2625 = vmatprep.subr.mxu0 0.0
        %2626 = vmatpush1.msra.mxu0 0.0
        %2627 = vmatprep.subr.mxu0 0.0
        %2628 = vmatpush1.msra.mxu0 0.0
        %2629 = vmatprep.subr.mxu0 0.0
        %2630 = vmatpush1.msra.mxu0 0.0
        %2631 = vmatprep.subr.mxu0 0.0
        %2632 = vmatpush1.msra.mxu0 0.0
        %2633 = vmatprep.subr.mxu0 0.0
        %2634 = vmatpush1.msra.mxu0 0.0
        %2635 = vmatprep.subr.mxu0 0.0
        %2636 = vmatpush1.msra.mxu0 0.0
        %2637 = vmatprep.subr.mxu0 0.0
        %2638 = vmatpush1.msra.mxu0 0.0
        %2639 = vmatprep.subr.mxu0 0.0
        %2640 = vmatpush1.msra.mxu0 0.0
        %2641 = vmatprep.subr.mxu0 0.0
        %2642 = vmatpush1.msra.mxu0 0.0
        %2643 = vmatprep.subr.mxu0 0.0
        %2644 = vmatpush1.msra.mxu0 0.0
        %2645 = vmatprep.subr.mxu0 0.0
        %2646 = vmatpush1.msra.mxu0 0.0
        %2647 = vmatprep.subr.mxu0 0.0
        %2648 = vmatpush1.msra.mxu0 0.0
        %2649 = vmatprep.subr.mxu0 0.0
        %2650 = vmatpush1.msra.mxu0 0.0
        %2651 = vmatprep.subr.mxu0 0.0
        %2652 = vmatpush1.msra.mxu0 0.0
        %2653 = vmatprep.subr.mxu0 0.0
        %2654 = vmatpush1.msra.mxu0 0.0
        %2655 = vmatprep.mubr.f32.mxu0 0.0
        %2656 = vmatmul.mubr.f32.gmra.mrb[0].mxu0 %v2589
        %v2657 = vpop.f32.mrb[0].mxu0
        %v2658 = vadd.f32 0.0, %v2657
        %v2659 = vpop.f32.mrb[0].mxu0
        %v2660 = vadd.f32 0.0, %v2659
        %2661 = vdwg.mxu0
        %s2662 = scalar_lea.vmem %s3, 512
        %v2663 = vld [vmem:[%s2662] sm:$0xff]
        %v2664 = vld [vmem:[%s2662 + $0x8] sm:$0xff]
        %v2665 = vld [vmem:[%s2662 + $0x10] sm:$0xff]
        %v2666 = vld [vmem:[%s2662 + $0x18] sm:$0xff]
        %v2667 = vld [vmem:[%s2662 + $0x20] sm:$0xff]
        %v2668 = vld [vmem:[%s2662 + $0x28] sm:$0xff]
        %v2669 = vld [vmem:[%s2662 + $0x30] sm:$0xff]
        %v2670 = vld [vmem:[%s2662 + $0x38] sm:$0xff]
        %v2671 = vld [vmem:[%s2662 + $0x40] sm:$0xff]
        %v2672 = vld [vmem:[%s2662 + $0x48] sm:$0xff]
        %v2673 = vld [vmem:[%s2662 + $0x50] sm:$0xff]
        %v2674 = vld [vmem:[%s2662 + $0x58] sm:$0xff]
        %v2675 = vld [vmem:[%s2662 + $0x60] sm:$0xff]
        %v2676 = vld [vmem:[%s2662 + $0x68] sm:$0xff]
        %v2677 = vld [vmem:[%s2662 + $0x70] sm:$0xff]
        %v2678 = vld [vmem:[%s2662 + $0x78] sm:$0xff]
        %v2679 = vld [vmem:[%s2662 + $0x80] sm:$0xff]
        %v2680 = vld [vmem:[%s2662 + $0x88] sm:$0xff]
        %v2681 = vld [vmem:[%s2662 + $0x90] sm:$0xff]
        %v2682 = vld [vmem:[%s2662 + $0x98] sm:$0xff]
        %v2683 = vld [vmem:[%s2662 + $0xa0] sm:$0xff]
        %v2684 = vld [vmem:[%s2662 + $0xa8] sm:$0xff]
        %v2685 = vld [vmem:[%s2662 + $0xb0] sm:$0xff]
        %v2686 = vld [vmem:[%s2662 + $0xb8] sm:$0xff]
        %v2687 = vld [vmem:[%s2662 + $0xc0] sm:$0xff]
        %v2688 = vld [vmem:[%s2662 + $0xc8] sm:$0xff]
        %v2689 = vld [vmem:[%s2662 + $0xd0] sm:$0xff]
        %v2690 = vld [vmem:[%s2662 + $0xd8] sm:$0xff]
        %v2691 = vld [vmem:[%s2662 + $0xe0] sm:$0xff]
        %v2692 = vld [vmem:[%s2662 + $0xe8] sm:$0xff]
        %v2693 = vld [vmem:[%s2662 + $0xf0] sm:$0xff]
        %v2694 = vld [vmem:[%s2662 + $0xf8] sm:$0xff]
        %v2695 = vld [vmem:[%s2662 + $0x100] sm:$0xff]
        %v2696 = vld [vmem:[%s2662 + $0x108] sm:$0xff]
        %v2697 = vld [vmem:[%s2662 + $0x110] sm:$0xff]
        %v2698 = vld [vmem:[%s2662 + $0x118] sm:$0xff]
        %v2699 = vld [vmem:[%s2662 + $0x120] sm:$0xff]
        %v2700 = vld [vmem:[%s2662 + $0x128] sm:$0xff]
        %v2701 = vld [vmem:[%s2662 + $0x130] sm:$0xff]
        %v2702 = vld [vmem:[%s2662 + $0x138] sm:$0xff]
        %v2703 = vld [vmem:[%s2662 + $0x140] sm:$0xff]
        %v2704 = vld [vmem:[%s2662 + $0x148] sm:$0xff]
        %v2705 = vld [vmem:[%s2662 + $0x150] sm:$0xff]
        %v2706 = vld [vmem:[%s2662 + $0x158] sm:$0xff]
        %v2707 = vld [vmem:[%s2662 + $0x160] sm:$0xff]
        %v2708 = vld [vmem:[%s2662 + $0x168] sm:$0xff]
        %v2709 = vld [vmem:[%s2662 + $0x170] sm:$0xff]
        %v2710 = vld [vmem:[%s2662 + $0x178] sm:$0xff]
        %v2711 = vld [vmem:[%s2662 + $0x180] sm:$0xff]
        %v2712 = vld [vmem:[%s2662 + $0x188] sm:$0xff]
        %v2713 = vld [vmem:[%s2662 + $0x190] sm:$0xff]
        %v2714 = vld [vmem:[%s2662 + $0x198] sm:$0xff]
        %v2715 = vld [vmem:[%s2662 + $0x1a0] sm:$0xff]
        %v2716 = vld [vmem:[%s2662 + $0x1a8] sm:$0xff]
        %v2717 = vld [vmem:[%s2662 + $0x1b0] sm:$0xff]
        %v2718 = vld [vmem:[%s2662 + $0x1b8] sm:$0xff]
        %v2719 = vld [vmem:[%s2662 + $0x1c0] sm:$0xff]
        %v2720 = vld [vmem:[%s2662 + $0x1c8] sm:$0xff]
        %v2721 = vld [vmem:[%s2662 + $0x1d0] sm:$0xff]
        %v2722 = vld [vmem:[%s2662 + $0x1d8] sm:$0xff]
        %v2723 = vld [vmem:[%s2662 + $0x1e0] sm:$0xff]
        %v2724 = vld [vmem:[%s2662 + $0x1e8] sm:$0xff]
        %v2725 = vld [vmem:[%s2662 + $0x1f0] sm:$0xff]
        %v2726 = vld [vmem:[%s2662 + $0x1f8] sm:$0xff]
        %2727 = vmatprep.subr.mxu0 %v2664
        %2728 = vmatpush1.msra.mxu0 %v2663
        %2729 = vmatprep.subr.mxu0 %v2666
        %2730 = vmatpush1.msra.mxu0 %v2665
        %2731 = vmatprep.subr.mxu0 %v2668
        %2732 = vmatpush1.msra.mxu0 %v2667
        %2733 = vmatprep.subr.mxu0 %v2670
        %2734 = vmatpush1.msra.mxu0 %v2669
        %2735 = vmatprep.subr.mxu0 %v2672
        %2736 = vmatpush1.msra.mxu0 %v2671
        %2737 = vmatprep.subr.mxu0 %v2674
        %2738 = vmatpush1.msra.mxu0 %v2673
        %2739 = vmatprep.subr.mxu0 %v2676
        %2740 = vmatpush1.msra.mxu0 %v2675
        %2741 = vmatprep.subr.mxu0 %v2678
        %2742 = vmatpush1.msra.mxu0 %v2677
        %2743 = vmatprep.subr.mxu0 %v2680
        %2744 = vmatpush1.msra.mxu0 %v2679
        %2745 = vmatprep.subr.mxu0 %v2682
        %2746 = vmatpush1.msra.mxu0 %v2681
        %2747 = vmatprep.subr.mxu0 %v2684
        %2748 = vmatpush1.msra.mxu0 %v2683
        %2749 = vmatprep.subr.mxu0 %v2686
        %2750 = vmatpush1.msra.mxu0 %v2685
        %2751 = vmatprep.subr.mxu0 %v2688
        %2752 = vmatpush1.msra.mxu0 %v2687
        %2753 = vmatprep.subr.mxu0 %v2690
        %2754 = vmatpush1.msra.mxu0 %v2689
        %2755 = vmatprep.subr.mxu0 %v2692
        %2756 = vmatpush1.msra.mxu0 %v2691
        %2757 = vmatprep.subr.mxu0 %v2694
        %2758 = vmatpush1.msra.mxu0 %v2693
        %2759 = vmatprep.subr.mxu0 %v2696
        %2760 = vmatpush1.msra.mxu0 %v2695
        %2761 = vmatprep.subr.mxu0 %v2698
        %2762 = vmatpush1.msra.mxu0 %v2697
        %2763 = vmatprep.subr.mxu0 %v2700
        %2764 = vmatpush1.msra.mxu0 %v2699
        %2765 = vmatprep.subr.mxu0 %v2702
        %2766 = vmatpush1.msra.mxu0 %v2701
        %2767 = vmatprep.subr.mxu0 %v2704
        %2768 = vmatpush1.msra.mxu0 %v2703
        %2769 = vmatprep.subr.mxu0 %v2706
        %2770 = vmatpush1.msra.mxu0 %v2705
        %2771 = vmatprep.subr.mxu0 %v2708
        %2772 = vmatpush1.msra.mxu0 %v2707
        %2773 = vmatprep.subr.mxu0 %v2710
        %2774 = vmatpush1.msra.mxu0 %v2709
        %2775 = vmatprep.subr.mxu0 %v2712
        %2776 = vmatpush1.msra.mxu0 %v2711
        %2777 = vmatprep.subr.mxu0 %v2714
        %2778 = vmatpush1.msra.mxu0 %v2713
        %2779 = vmatprep.subr.mxu0 %v2716
        %2780 = vmatpush1.msra.mxu0 %v2715
        %2781 = vmatprep.subr.mxu0 %v2718
        %2782 = vmatpush1.msra.mxu0 %v2717
        %2783 = vmatprep.subr.mxu0 %v2720
        %2784 = vmatpush1.msra.mxu0 %v2719
        %2785 = vmatprep.subr.mxu0 %v2722
        %2786 = vmatpush1.msra.mxu0 %v2721
        %2787 = vmatprep.subr.mxu0 %v2724
        %2788 = vmatpush1.msra.mxu0 %v2723
        %2789 = vmatprep.subr.mxu0 %v2726
        %2790 = vmatpush1.msra.mxu0 %v2725
        %2791 = vmatprep.mubr.f32.mxu0 %v2660
        %2792 = vmatmul.mubr.f32.gmra.mrb[0].mxu0 %v2658
        %v2793 = vpop.f32.mrb[0].mxu0
        %v2794 = vadd.f32 0.0, %v2793
        %v2795 = vpop.f32.mrb[0].mxu0
        %v2796 = vadd.f32 0.0, %v2795
        %2797 = vdwg.mxu0
        %2798 = vmatprep.subr.mxu0 %v2526
        %2799 = vmatpush1.msra.mxu0 %v2525
        %2800 = vmatprep.subr.mxu0 %v2528
        %2801 = vmatpush1.msra.mxu0 %v2527
        %2802 = vmatprep.subr.mxu0 %v2530
        %2803 = vmatpush1.msra.mxu0 %v2529
        %2804 = vmatprep.subr.mxu0 %v2532
        %2805 = vmatpush1.msra.mxu0 %v2531
        %2806 = vmatprep.subr.mxu0 %v2534
        %2807 = vmatpush1.msra.mxu0 %v2533
        %2808 = vmatprep.subr.mxu0 %v2536
        %2809 = vmatpush1.msra.mxu0 %v2535
        %2810 = vmatprep.subr.mxu0 %v2538
        %2811 = vmatpush1.msra.mxu0 %v2537
        %2812 = vmatprep.subr.mxu0 %v2540
        %2813 = vmatpush1.msra.mxu0 %v2539
        %2814 = vmatprep.subr.mxu0 %v2542
        %2815 = vmatpush1.msra.mxu0 %v2541
        %2816 = vmatprep.subr.mxu0 %v2544
        %2817 = vmatpush1.msra.mxu0 %v2543
        %2818 = vmatprep.subr.mxu0 %v2546
        %2819 = vmatpush1.msra.mxu0 %v2545
        %2820 = vmatprep.subr.mxu0 %v2548
        %2821 = vmatpush1.msra.mxu0 %v2547
        %2822 = vmatprep.subr.mxu0 %v2550
        %2823 = vmatpush1.msra.mxu0 %v2549
        %2824 = vmatprep.subr.mxu0 %v2552
        %2825 = vmatpush1.msra.mxu0 %v2551
        %2826 = vmatprep.subr.mxu0 %v2554
        %2827 = vmatpush1.msra.mxu0 %v2553
        %2828 = vmatprep.subr.mxu0 %v2556
        %2829 = vmatpush1.msra.mxu0 %v2555
        %2830 = vmatprep.subr.mxu0 %v2558
        %2831 = vmatpush1.msra.mxu0 %v2557
        %2832 = vmatprep.subr.mxu0 %v2560
        %2833 = vmatpush1.msra.mxu0 %v2559
        %2834 = vmatprep.subr.mxu0 %v2562
        %2835 = vmatpush1.msra.mxu0 %v2561
        %2836 = vmatprep.subr.mxu0 %v2564
        %2837 = vmatpush1.msra.mxu0 %v2563
        %2838 = vmatprep.subr.mxu0 %v2566
        %2839 = vmatpush1.msra.mxu0 %v2565
        %2840 = vmatprep.subr.mxu0 %v2568
        %2841 = vmatpush1.msra.mxu0 %v2567
        %2842 = vmatprep.subr.mxu0 %v2570
        %2843 = vmatpush1.msra.mxu0 %v2569
        %2844 = vmatprep.subr.mxu0 %v2572
        %2845 = vmatpush1.msra.mxu0 %v2571
        %2846 = vmatprep.subr.mxu0 %v2574
        %2847 = vmatpush1.msra.mxu0 %v2573
        %2848 = vmatprep.subr.mxu0 %v2576
        %2849 = vmatpush1.msra.mxu0 %v2575
        %2850 = vmatprep.subr.mxu0 %v2578
        %2851 = vmatpush1.msra.mxu0 %v2577
        %2852 = vmatprep.subr.mxu0 %v2580
        %2853 = vmatpush1.msra.mxu0 %v2579
        %2854 = vmatprep.subr.mxu0 %v2582
        %2855 = vmatpush1.msra.mxu0 %v2581
        %2856 = vmatprep.subr.mxu0 %v2584
        %2857 = vmatpush1.msra.mxu0 %v2583
        %2858 = vmatprep.subr.mxu0 %v2586
        %2859 = vmatpush1.msra.mxu0 %v2585
        %2860 = vmatprep.subr.mxu0 %v2588
        %2861 = vmatpush1.msra.mxu0 %v2587
        %2862 = vmatprep.mubr.f32.mxu0 %v2523
        %2863 = vmatmul.mubr.f32.gmra.mrb[0].mxu0 %v2521
        %v2864 = vpop.f32.mrb[0].mxu0
        %v2865 = vadd.f32 %v2794, %v2864
        %v2866 = vpop.f32.mrb[0].mxu0
        %v2867 = vadd.f32 %v2796, %v2866
        %2868 = vdwg.mxu0
        %v2869 = vsel %vm2451, %v957, 0
        %2871 = vmatprep.subr.mxu0 %v2448
        %2872 = vmatpush1.msra.mxu0 %v2447
        %2873 = vmatprep.subr.mxu0 %v2450
        %2874 = vmatpush1.msra.mxu0 %v2449
        %2875 = vmatprep.subr.mxu0 0.0
        %2876 = vmatpush1.msra.mxu0 0.0
        %2877 = vmatprep.subr.mxu0 0.0
        %2878 = vmatpush1.msra.mxu0 0.0
        %2879 = vmatprep.subr.mxu0 0.0
        %2880 = vmatpush1.msra.mxu0 0.0
        %2881 = vmatprep.subr.mxu0 0.0
        %2882 = vmatpush1.msra.mxu0 0.0
        %2883 = vmatprep.subr.mxu0 0.0
        %2884 = vmatpush1.msra.mxu0 0.0
        %2885 = vmatprep.subr.mxu0 0.0
        %2886 = vmatpush1.msra.mxu0 0.0
        %2887 = vmatprep.subr.mxu0 0.0
        %2888 = vmatpush1.msra.mxu0 0.0
        %2889 = vmatprep.subr.mxu0 0.0
        %2890 = vmatpush1.msra.mxu0 0.0
        %2891 = vmatprep.subr.mxu0 0.0
        %2892 = vmatpush1.msra.mxu0 0.0
        %2893 = vmatprep.subr.mxu0 0.0
        %2894 = vmatpush1.msra.mxu0 0.0
        %2895 = vmatprep.subr.mxu0 0.0
        %2896 = vmatpush1.msra.mxu0 0.0
        %2897 = vmatprep.subr.mxu0 0.0
        %2898 = vmatpush1.msra.mxu0 0.0
        %2899 = vmatprep.subr.mxu0 0.0
        %2900 = vmatpush1.msra.mxu0 0.0
        %2901 = vmatprep.subr.mxu0 0.0
        %2902 = vmatpush1.msra.mxu0 0.0
        %2903 = vmatprep.subr.mxu0 0.0
        %2904 = vmatpush1.msra.mxu0 0.0
        %2905 = vmatprep.subr.mxu0 0.0
        %2906 = vmatpush1.msra.mxu0 0.0
        %2907 = vmatprep.subr.mxu0 0.0
        %2908 = vmatpush1.msra.mxu0 0.0
        %2909 = vmatprep.subr.mxu0 0.0
        %2910 = vmatpush1.msra.mxu0 0.0
        %2911 = vmatprep.subr.mxu0 0.0
        %2912 = vmatpush1.msra.mxu0 0.0
        %2913 = vmatprep.subr.mxu0 0.0
        %2914 = vmatpush1.msra.mxu0 0.0
        %2915 = vmatprep.subr.mxu0 0.0
        %2916 = vmatpush1.msra.mxu0 0.0
        %2917 = vmatprep.subr.mxu0 0.0
        %2918 = vmatpush1.msra.mxu0 0.0
        %2919 = vmatprep.subr.mxu0 0.0
        %2920 = vmatpush1.msra.mxu0 0.0
        %2921 = vmatprep.subr.mxu0 0.0
        %2922 = vmatpush1.msra.mxu0 0.0
        %2923 = vmatprep.subr.mxu0 0.0
        %2924 = vmatpush1.msra.mxu0 0.0
        %2925 = vmatprep.subr.mxu0 0.0
        %2926 = vmatpush1.msra.mxu0 0.0
        %2927 = vmatprep.subr.mxu0 0.0
        %2928 = vmatpush1.msra.mxu0 0.0
        %2929 = vmatprep.subr.mxu0 0.0
        %2930 = vmatpush1.msra.mxu0 0.0
        %2931 = vmatprep.subr.mxu0 0.0
        %2932 = vmatpush1.msra.mxu0 0.0
        %2933 = vmatprep.subr.mxu0 0.0
        %2934 = vmatpush1.msra.mxu0 0.0
        %2935 = vmatprep.mubr.f32.mxu0 0.0
        %2936 = vmatmul.mubr.f32.gmra.mrb[0].mxu0 %v2869
        %v2937 = vpop.f32.mrb[0].mxu0
        %v2938 = vadd.f32 0.0, %v2937
        %v2939 = vpop.f32.mrb[0].mxu0
        %v2940 = vadd.f32 0.0, %v2939
        %2941 = vdwg.mxu0
        %s2942 = scalar_lea.vmem %s3, 1024
        %v2943 = vld [vmem:[%s2942] sm:$0xff]
        %v2944 = vld [vmem:[%s2942 + $0x8] sm:$0xff]
        %v2945 = vld [vmem:[%s2942 + $0x10] sm:$0xff]
        %v2946 = vld [vmem:[%s2942 + $0x18] sm:$0xff]
        %v2947 = vld [vmem:[%s2942 + $0x20] sm:$0xff]
        %v2948 = vld [vmem:[%s2942 + $0x28] sm:$0xff]
        %v2949 = vld [vmem:[%s2942 + $0x30] sm:$0xff]
        %v2950 = vld [vmem:[%s2942 + $0x38] sm:$0xff]
        %v2951 = vld [vmem:[%s2942 + $0x40] sm:$0xff]
        %v2952 = vld [vmem:[%s2942 + $0x48] sm:$0xff]
        %v2953 = vld [vmem:[%s2942 + $0x50] sm:$0xff]
        %v2954 = vld [vmem:[%s2942 + $0x58] sm:$0xff]
        %v2955 = vld [vmem:[%s2942 + $0x60] sm:$0xff]
        %v2956 = vld [vmem:[%s2942 + $0x68] sm:$0xff]
        %v2957 = vld [vmem:[%s2942 + $0x70] sm:$0xff]
        %v2958 = vld [vmem:[%s2942 + $0x78] sm:$0xff]
        %v2959 = vld [vmem:[%s2942 + $0x80] sm:$0xff]
        %v2960 = vld [vmem:[%s2942 + $0x88] sm:$0xff]
        %v2961 = vld [vmem:[%s2942 + $0x90] sm:$0xff]
        %v2962 = vld [vmem:[%s2942 + $0x98] sm:$0xff]
        %v2963 = vld [vmem:[%s2942 + $0xa0] sm:$0xff]
        %v2964 = vld [vmem:[%s2942 + $0xa8] sm:$0xff]
        %v2965 = vld [vmem:[%s2942 + $0xb0] sm:$0xff]
        %v2966 = vld [vmem:[%s2942 + $0xb8] sm:$0xff]
        %v2967 = vld [vmem:[%s2942 + $0xc0] sm:$0xff]
        %v2968 = vld [vmem:[%s2942 + $0xc8] sm:$0xff]
        %v2969 = vld [vmem:[%s2942 + $0xd0] sm:$0xff]
        %v2970 = vld [vmem:[%s2942 + $0xd8] sm:$0xff]
        %v2971 = vld [vmem:[%s2942 + $0xe0] sm:$0xff]
        %v2972 = vld [vmem:[%s2942 + $0xe8] sm:$0xff]
        %v2973 = vld [vmem:[%s2942 + $0xf0] sm:$0xff]
        %v2974 = vld [vmem:[%s2942 + $0xf8] sm:$0xff]
        %v2975 = vld [vmem:[%s2942 + $0x100] sm:$0xff]
        %v2976 = vld [vmem:[%s2942 + $0x108] sm:$0xff]
        %v2977 = vld [vmem:[%s2942 + $0x110] sm:$0xff]
        %v2978 = vld [vmem:[%s2942 + $0x118] sm:$0xff]
        %v2979 = vld [vmem:[%s2942 + $0x120] sm:$0xff]
        %v2980 = vld [vmem:[%s2942 + $0x128] sm:$0xff]
        %v2981 = vld [vmem:[%s2942 + $0x130] sm:$0xff]
        %v2982 = vld [vmem:[%s2942 + $0x138] sm:$0xff]
        %v2983 = vld [vmem:[%s2942 + $0x140] sm:$0xff]
        %v2984 = vld [vmem:[%s2942 + $0x148] sm:$0xff]
        %v2985 = vld [vmem:[%s2942 + $0x150] sm:$0xff]
        %v2986 = vld [vmem:[%s2942 + $0x158] sm:$0xff]
        %v2987 = vld [vmem:[%s2942 + $0x160] sm:$0xff]
        %v2988 = vld [vmem:[%s2942 + $0x168] sm:$0xff]
        %v2989 = vld [vmem:[%s2942 + $0x170] sm:$0xff]
        %v2990 = vld [vmem:[%s2942 + $0x178] sm:$0xff]
        %v2991 = vld [vmem:[%s2942 + $0x180] sm:$0xff]
        %v2992 = vld [vmem:[%s2942 + $0x188] sm:$0xff]
        %v2993 = vld [vmem:[%s2942 + $0x190] sm:$0xff]
        %v2994 = vld [vmem:[%s2942 + $0x198] sm:$0xff]
        %v2995 = vld [vmem:[%s2942 + $0x1a0] sm:$0xff]
        %v2996 = vld [vmem:[%s2942 + $0x1a8] sm:$0xff]
        %v2997 = vld [vmem:[%s2942 + $0x1b0] sm:$0xff]
        %v2998 = vld [vmem:[%s2942 + $0x1b8] sm:$0xff]
        %v2999 = vld [vmem:[%s2942 + $0x1c0] sm:$0xff]
        %v3000 = vld [vmem:[%s2942 + $0x1c8] sm:$0xff]
        %v3001 = vld [vmem:[%s2942 + $0x1d0] sm:$0xff]
        %v3002 = vld [vmem:[%s2942 + $0x1d8] sm:$0xff]
        %v3003 = vld [vmem:[%s2942 + $0x1e0] sm:$0xff]
        %v3004 = vld [vmem:[%s2942 + $0x1e8] sm:$0xff]
        %v3005 = vld [vmem:[%s2942 + $0x1f0] sm:$0xff]
        %v3006 = vld [vmem:[%s2942 + $0x1f8] sm:$0xff]
        %3007 = vmatprep.subr.mxu0 %v2944
        %3008 = vmatpush1.msra.mxu0 %v2943
        %3009 = vmatprep.subr.mxu0 %v2946
        %3010 = vmatpush1.msra.mxu0 %v2945
        %3011 = vmatprep.subr.mxu0 %v2948
        %3012 = vmatpush1.msra.mxu0 %v2947
        %3013 = vmatprep.subr.mxu0 %v2950
        %3014 = vmatpush1.msra.mxu0 %v2949
        %3015 = vmatprep.subr.mxu0 %v2952
        %3016 = vmatpush1.msra.mxu0 %v2951
        %3017 = vmatprep.subr.mxu0 %v2954
        %3018 = vmatpush1.msra.mxu0 %v2953
        %3019 = vmatprep.subr.mxu0 %v2956
        %3020 = vmatpush1.msra.mxu0 %v2955
        %3021 = vmatprep.subr.mxu0 %v2958
        %3022 = vmatpush1.msra.mxu0 %v2957
        %3023 = vmatprep.subr.mxu0 %v2960
        %3024 = vmatpush1.msra.mxu0 %v2959
        %3025 = vmatprep.subr.mxu0 %v2962
        %3026 = vmatpush1.msra.mxu0 %v2961
        %3027 = vmatprep.subr.mxu0 %v2964
        %3028 = vmatpush1.msra.mxu0 %v2963
        %3029 = vmatprep.subr.mxu0 %v2966
        %3030 = vmatpush1.msra.mxu0 %v2965
        %3031 = vmatprep.subr.mxu0 %v2968
        %3032 = vmatpush1.msra.mxu0 %v2967
        %3033 = vmatprep.subr.mxu0 %v2970
        %3034 = vmatpush1.msra.mxu0 %v2969
        %3035 = vmatprep.subr.mxu0 %v2972
        %3036 = vmatpush1.msra.mxu0 %v2971
        %3037 = vmatprep.subr.mxu0 %v2974
        %3038 = vmatpush1.msra.mxu0 %v2973
        %3039 = vmatprep.subr.mxu0 %v2976
        %3040 = vmatpush1.msra.mxu0 %v2975
        %3041 = vmatprep.subr.mxu0 %v2978
        %3042 = vmatpush1.msra.mxu0 %v2977
        %3043 = vmatprep.subr.mxu0 %v2980
        %3044 = vmatpush1.msra.mxu0 %v2979
        %3045 = vmatprep.subr.mxu0 %v2982
        %3046 = vmatpush1.msra.mxu0 %v2981
        %3047 = vmatprep.subr.mxu0 %v2984
        %3048 = vmatpush1.msra.mxu0 %v2983
        %3049 = vmatprep.subr.mxu0 %v2986
        %3050 = vmatpush1.msra.mxu0 %v2985
        %3051 = vmatprep.subr.mxu0 %v2988
        %3052 = vmatpush1.msra.mxu0 %v2987
        %3053 = vmatprep.subr.mxu0 %v2990
        %3054 = vmatpush1.msra.mxu0 %v2989
        %3055 = vmatprep.subr.mxu0 %v2992
        %3056 = vmatpush1.msra.mxu0 %v2991
        %3057 = vmatprep.subr.mxu0 %v2994
        %3058 = vmatpush1.msra.mxu0 %v2993
        %3059 = vmatprep.subr.mxu0 %v2996
        %3060 = vmatpush1.msra.mxu0 %v2995
        %3061 = vmatprep.subr.mxu0 %v2998
        %3062 = vmatpush1.msra.mxu0 %v2997
        %3063 = vmatprep.subr.mxu0 %v3000
        %3064 = vmatpush1.msra.mxu0 %v2999
        %3065 = vmatprep.subr.mxu0 %v3002
        %3066 = vmatpush1.msra.mxu0 %v3001
        %3067 = vmatprep.subr.mxu0 %v3004
        %3068 = vmatpush1.msra.mxu0 %v3003
        %3069 = vmatprep.subr.mxu0 %v3006
        %3070 = vmatpush1.msra.mxu0 %v3005
        %3071 = vmatprep.mubr.f32.mxu0 %v2940
        %3072 = vmatmul.mubr.f32.gmra.mrb[0].mxu0 %v2938
        %v3073 = vpop.f32.mrb[0].mxu0
        %v3074 = vadd.f32 0.0, %v3073
        %v3075 = vpop.f32.mrb[0].mxu0
        %v3076 = vadd.f32 0.0, %v3075
        %3077 = vdwg.mxu0
        %v3078 = vadd.f32 %v2865, %v3074
        %v3079 = vadd.f32 %v2867, %v3076
        %v3080 = vsel %vm2451, %v1236, 0
        %3082 = vmatprep.subr.mxu0 %v2448
        %3083 = vmatpush1.msra.mxu0 %v2447
        %3084 = vmatprep.subr.mxu0 %v2450
        %3085 = vmatpush1.msra.mxu0 %v2449
        %3086 = vmatprep.subr.mxu0 0.0
        %3087 = vmatpush1.msra.mxu0 0.0
        %3088 = vmatprep.subr.mxu0 0.0
        %3089 = vmatpush1.msra.mxu0 0.0
        %3090 = vmatprep.subr.mxu0 0.0
        %3091 = vmatpush1.msra.mxu0 0.0
        %3092 = vmatprep.subr.mxu0 0.0
        %3093 = vmatpush1.msra.mxu0 0.0
        %3094 = vmatprep.subr.mxu0 0.0
        %3095 = vmatpush1.msra.mxu0 0.0
        %3096 = vmatprep.subr.mxu0 0.0
        %3097 = vmatpush1.msra.mxu0 0.0
        %3098 = vmatprep.subr.mxu0 0.0
        %3099 = vmatpush1.msra.mxu0 0.0
        %3100 = vmatprep.subr.mxu0 0.0
        %3101 = vmatpush1.msra.mxu0 0.0
        %3102 = vmatprep.subr.mxu0 0.0
        %3103 = vmatpush1.msra.mxu0 0.0
        %3104 = vmatprep.subr.mxu0 0.0
        %3105 = vmatpush1.msra.mxu0 0.0
        %3106 = vmatprep.subr.mxu0 0.0
        %3107 = vmatpush1.msra.mxu0 0.0
        %3108 = vmatprep.subr.mxu0 0.0
        %3109 = vmatpush1.msra.mxu0 0.0
        %3110 = vmatprep.subr.mxu0 0.0
        %3111 = vmatpush1.msra.mxu0 0.0
        %3112 = vmatprep.subr.mxu0 0.0
        %3113 = vmatpush1.msra.mxu0 0.0
        %3114 = vmatprep.subr.mxu0 0.0
        %3115 = vmatpush1.msra.mxu0 0.0
        %3116 = vmatprep.subr.mxu0 0.0
        %3117 = vmatpush1.msra.mxu0 0.0
        %3118 = vmatprep.subr.mxu0 0.0
        %3119 = vmatpush1.msra.mxu0 0.0
        %3120 = vmatprep.subr.mxu0 0.0
        %3121 = vmatpush1.msra.mxu0 0.0
        %3122 = vmatprep.subr.mxu0 0.0
        %3123 = vmatpush1.msra.mxu0 0.0
        %3124 = vmatprep.subr.mxu0 0.0
        %3125 = vmatpush1.msra.mxu0 0.0
        %3126 = vmatprep.subr.mxu0 0.0
        %3127 = vmatpush1.msra.mxu0 0.0
        %3128 = vmatprep.subr.mxu0 0.0
        %3129 = vmatpush1.msra.mxu0 0.0
        %3130 = vmatprep.subr.mxu0 0.0
        %3131 = vmatpush1.msra.mxu0 0.0
        %3132 = vmatprep.subr.mxu0 0.0
        %3133 = vmatpush1.msra.mxu0 0.0
        %3134 = vmatprep.subr.mxu0 0.0
        %3135 = vmatpush1.msra.mxu0 0.0
        %3136 = vmatprep.subr.mxu0 0.0
        %3137 = vmatpush1.msra.mxu0 0.0
        %3138 = vmatprep.subr.mxu0 0.0
        %3139 = vmatpush1.msra.mxu0 0.0
        %3140 = vmatprep.subr.mxu0 0.0
        %3141 = vmatpush1.msra.mxu0 0.0
        %3142 = vmatprep.subr.mxu0 0.0
        %3143 = vmatpush1.msra.mxu0 0.0
        %3144 = vmatprep.subr.mxu0 0.0
        %3145 = vmatpush1.msra.mxu0 0.0
        %3146 = vmatprep.mubr.f32.mxu0 0.0
        %3147 = vmatmul.mubr.f32.gmra.mrb[0].mxu0 %v3080
        %v3148 = vpop.f32.mrb[0].mxu0
        %v3149 = vadd.f32 0.0, %v3148
        %v3150 = vpop.f32.mrb[0].mxu0
        %v3151 = vadd.f32 0.0, %v3150
        %3152 = vdwg.mxu0
        %s3153 = scalar_lea.vmem %s3, 1536
        %v3154 = vld [vmem:[%s3153] sm:$0xff]
        %v3155 = vld [vmem:[%s3153 + $0x8] sm:$0xff]
        %v3156 = vld [vmem:[%s3153 + $0x10] sm:$0xff]
        %v3157 = vld [vmem:[%s3153 + $0x18] sm:$0xff]
        %v3158 = vld [vmem:[%s3153 + $0x20] sm:$0xff]
        %v3159 = vld [vmem:[%s3153 + $0x28] sm:$0xff]
        %v3160 = vld [vmem:[%s3153 + $0x30] sm:$0xff]
        %v3161 = vld [vmem:[%s3153 + $0x38] sm:$0xff]
        %v3162 = vld [vmem:[%s3153 + $0x40] sm:$0xff]
        %v3163 = vld [vmem:[%s3153 + $0x48] sm:$0xff]
        %v3164 = vld [vmem:[%s3153 + $0x50] sm:$0xff]
        %v3165 = vld [vmem:[%s3153 + $0x58] sm:$0xff]
        %v3166 = vld [vmem:[%s3153 + $0x60] sm:$0xff]
        %v3167 = vld [vmem:[%s3153 + $0x68] sm:$0xff]
        %v3168 = vld [vmem:[%s3153 + $0x70] sm:$0xff]
        %v3169 = vld [vmem:[%s3153 + $0x78] sm:$0xff]
        %v3170 = vld [vmem:[%s3153 + $0x80] sm:$0xff]
        %v3171 = vld [vmem:[%s3153 + $0x88] sm:$0xff]
        %v3172 = vld [vmem:[%s3153 + $0x90] sm:$0xff]
        %v3173 = vld [vmem:[%s3153 + $0x98] sm:$0xff]
        %v3174 = vld [vmem:[%s3153 + $0xa0] sm:$0xff]
        %v3175 = vld [vmem:[%s3153 + $0xa8] sm:$0xff]
        %v3176 = vld [vmem:[%s3153 + $0xb0] sm:$0xff]
        %v3177 = vld [vmem:[%s3153 + $0xb8] sm:$0xff]
        %v3178 = vld [vmem:[%s3153 + $0xc0] sm:$0xff]
        %v3179 = vld [vmem:[%s3153 + $0xc8] sm:$0xff]
        %v3180 = vld [vmem:[%s3153 + $0xd0] sm:$0xff]
        %v3181 = vld [vmem:[%s3153 + $0xd8] sm:$0xff]
        %v3182 = vld [vmem:[%s3153 + $0xe0] sm:$0xff]
        %v3183 = vld [vmem:[%s3153 + $0xe8] sm:$0xff]
        %v3184 = vld [vmem:[%s3153 + $0xf0] sm:$0xff]
        %v3185 = vld [vmem:[%s3153 + $0xf8] sm:$0xff]
        %v3186 = vld [vmem:[%s3153 + $0x100] sm:$0xff]
        %v3187 = vld [vmem:[%s3153 + $0x108] sm:$0xff]
        %v3188 = vld [vmem:[%s3153 + $0x110] sm:$0xff]
        %v3189 = vld [vmem:[%s3153 + $0x118] sm:$0xff]
        %v3190 = vld [vmem:[%s3153 + $0x120] sm:$0xff]
        %v3191 = vld [vmem:[%s3153 + $0x128] sm:$0xff]
        %v3192 = vld [vmem:[%s3153 + $0x130] sm:$0xff]
        %v3193 = vld [vmem:[%s3153 + $0x138] sm:$0xff]
        %v3194 = vld [vmem:[%s3153 + $0x140] sm:$0xff]
        %v3195 = vld [vmem:[%s3153 + $0x148] sm:$0xff]
        %v3196 = vld [vmem:[%s3153 + $0x150] sm:$0xff]
        %v3197 = vld [vmem:[%s3153 + $0x158] sm:$0xff]
        %v3198 = vld [vmem:[%s3153 + $0x160] sm:$0xff]
        %v3199 = vld [vmem:[%s3153 + $0x168] sm:$0xff]
        %v3200 = vld [vmem:[%s3153 + $0x170] sm:$0xff]
        %v3201 = vld [vmem:[%s3153 + $0x178] sm:$0xff]
        %v3202 = vld [vmem:[%s3153 + $0x180] sm:$0xff]
        %v3203 = vld [vmem:[%s3153 + $0x188] sm:$0xff]
        %v3204 = vld [vmem:[%s3153 + $0x190] sm:$0xff]
        %v3205 = vld [vmem:[%s3153 + $0x198] sm:$0xff]
        %v3206 = vld [vmem:[%s3153 + $0x1a0] sm:$0xff]
        %v3207 = vld [vmem:[%s3153 + $0x1a8] sm:$0xff]
        %v3208 = vld [vmem:[%s3153 + $0x1b0] sm:$0xff]
        %v3209 = vld [vmem:[%s3153 + $0x1b8] sm:$0xff]
        %v3210 = vld [vmem:[%s3153 + $0x1c0] sm:$0xff]
        %v3211 = vld [vmem:[%s3153 + $0x1c8] sm:$0xff]
        %v3212 = vld [vmem:[%s3153 + $0x1d0] sm:$0xff]
        %v3213 = vld [vmem:[%s3153 + $0x1d8] sm:$0xff]
        %v3214 = vld [vmem:[%s3153 + $0x1e0] sm:$0xff]
        %v3215 = vld [vmem:[%s3153 + $0x1e8] sm:$0xff]
        %v3216 = vld [vmem:[%s3153 + $0x1f0] sm:$0xff]
        %v3217 = vld [vmem:[%s3153 + $0x1f8] sm:$0xff]
        %3218 = vmatprep.subr.mxu0 %v3155
        %3219 = vmatpush1.msra.mxu0 %v3154
        %3220 = vmatprep.subr.mxu0 %v3157
        %3221 = vmatpush1.msra.mxu0 %v3156
        %3222 = vmatprep.subr.mxu0 %v3159
        %3223 = vmatpush1.msra.mxu0 %v3158
        %3224 = vmatprep.subr.mxu0 %v3161
        %3225 = vmatpush1.msra.mxu0 %v3160
        %3226 = vmatprep.subr.mxu0 %v3163
        %3227 = vmatpush1.msra.mxu0 %v3162
        %3228 = vmatprep.subr.mxu0 %v3165
        %3229 = vmatpush1.msra.mxu0 %v3164
        %3230 = vmatprep.subr.mxu0 %v3167
        %3231 = vmatpush1.msra.mxu0 %v3166
        %3232 = vmatprep.subr.mxu0 %v3169
        %3233 = vmatpush1.msra.mxu0 %v3168
        %3234 = vmatprep.subr.mxu0 %v3171
        %3235 = vmatpush1.msra.mxu0 %v3170
        %3236 = vmatprep.subr.mxu0 %v3173
        %3237 = vmatpush1.msra.mxu0 %v3172
        %3238 = vmatprep.subr.mxu0 %v3175
        %3239 = vmatpush1.msra.mxu0 %v3174
        %3240 = vmatprep.subr.mxu0 %v3177
        %3241 = vmatpush1.msra.mxu0 %v3176
        %3242 = vmatprep.subr.mxu0 %v3179
        %3243 = vmatpush1.msra.mxu0 %v3178
        %3244 = vmatprep.subr.mxu0 %v3181
        %3245 = vmatpush1.msra.mxu0 %v3180
        %3246 = vmatprep.subr.mxu0 %v3183
        %3247 = vmatpush1.msra.mxu0 %v3182
        %3248 = vmatprep.subr.mxu0 %v3185
        %3249 = vmatpush1.msra.mxu0 %v3184
        %3250 = vmatprep.subr.mxu0 %v3187
        %3251 = vmatpush1.msra.mxu0 %v3186
        %3252 = vmatprep.subr.mxu0 %v3189
        %3253 = vmatpush1.msra.mxu0 %v3188
        %3254 = vmatprep.subr.mxu0 %v3191
        %3255 = vmatpush1.msra.mxu0 %v3190
        %3256 = vmatprep.subr.mxu0 %v3193
        %3257 = vmatpush1.msra.mxu0 %v3192
        %3258 = vmatprep.subr.mxu0 %v3195
        %3259 = vmatpush1.msra.mxu0 %v3194
        %3260 = vmatprep.subr.mxu0 %v3197
        %3261 = vmatpush1.msra.mxu0 %v3196
        %3262 = vmatprep.subr.mxu0 %v3199
        %3263 = vmatpush1.msra.mxu0 %v3198
        %3264 = vmatprep.subr.mxu0 %v3201
        %3265 = vmatpush1.msra.mxu0 %v3200
        %3266 = vmatprep.subr.mxu0 %v3203
        %3267 = vmatpush1.msra.mxu0 %v3202
        %3268 = vmatprep.subr.mxu0 %v3205
        %3269 = vmatpush1.msra.mxu0 %v3204
        %3270 = vmatprep.subr.mxu0 %v3207
        %3271 = vmatpush1.msra.mxu0 %v3206
        %3272 = vmatprep.subr.mxu0 %v3209
        %3273 = vmatpush1.msra.mxu0 %v3208
        %3274 = vmatprep.subr.mxu0 %v3211
        %3275 = vmatpush1.msra.mxu0 %v3210
        %3276 = vmatprep.subr.mxu0 %v3213
        %3277 = vmatpush1.msra.mxu0 %v3212
        %3278 = vmatprep.subr.mxu0 %v3215
        %3279 = vmatpush1.msra.mxu0 %v3214
        %3280 = vmatprep.subr.mxu0 %v3217
        %3281 = vmatpush1.msra.mxu0 %v3216
        %3282 = vmatprep.mubr.f32.mxu0 %v3151
        %3283 = vmatmul.mubr.f32.gmra.mrb[0].mxu0 %v3149
        %v3284 = vpop.f32.mrb[0].mxu0
        %v3285 = vadd.f32 0.0, %v3284
        %v3286 = vpop.f32.mrb[0].mxu0
        %v3287 = vadd.f32 0.0, %v3286
        %3288 = vdwg.mxu0
        %v3289 = vadd.f32 %v3078, %v3285
        %v3290 = vadd.f32 %v3079, %v3287
        %v3291 = vld [vmem:[%s7] sm:$0x3]
        %v3293 = vlaneseq
        %v3294 = vshrl.u32 %v3293, 7
        %v3295 = vsub.s32 0, %v3294
        %v3296 = vrot.slane %v3291, %v3295
        %v3297 = vlaneseq
        %v3298 = vshrl.u32 %v3297, 7
        %v3299 = vsub.s32 1, %v3298
        %v3300 = vrot.slane %v3291, %v3299
        %v3303 = vadd.f32 %v3289, %v3296
        %v3304 = vadd.f32 %v3290, %v3300
        %vm3305 = vcmp.gt.f32.partialorder %v3303, 0.0
        %vm3306 = vcmp.gt.f32.partialorder %v3304, 0.0
        %v3307 = vmul.f32 %v3303, 0.2
        %v3308 = vmul.f32 %v3304, 0.2
        %v3309 = vsel %vm3305, %v3303, %v3307
        %v3310 = vsel %vm3306, %v3304, %v3308
        %vm3311 = vcmask 64512
        %v3312 = vsel %vm3311, %v423, 0
        %3314 = vmatprep.subr.mxu0 %v3310
        %3315 = vmatpush1.msra.mxu0 %v3309
        %3316 = vmatprep.subr.mxu0 0.0
        %3317 = vmatpush1.msra.mxu0 0.0
        %3318 = vmatprep.subr.mxu0 0.0
        %3319 = vmatpush1.msra.mxu0 0.0
        %3320 = vmatprep.subr.mxu0 0.0
        %3321 = vmatpush1.msra.mxu0 0.0
        %3322 = vmatprep.subr.mxu0 0.0
        %3323 = vmatpush1.msra.mxu0 0.0
        %3324 = vmatprep.subr.mxu0 0.0
        %3325 = vmatpush1.msra.mxu0 0.0
        %3326 = vmatprep.subr.mxu0 0.0
        %3327 = vmatpush1.msra.mxu0 0.0
        %3328 = vmatprep.subr.mxu0 0.0
        %3329 = vmatpush1.msra.mxu0 0.0
        %3330 = vmatprep.subr.mxu0 0.0
        %3331 = vmatpush1.msra.mxu0 0.0
        %3332 = vmatprep.subr.mxu0 0.0
        %3333 = vmatpush1.msra.mxu0 0.0
        %3334 = vmatprep.subr.mxu0 0.0
        %3335 = vmatpush1.msra.mxu0 0.0
        %3336 = vmatprep.subr.mxu0 0.0
        %3337 = vmatpush1.msra.mxu0 0.0
        %3338 = vmatprep.subr.mxu0 0.0
        %3339 = vmatpush1.msra.mxu0 0.0
        %3340 = vmatprep.subr.mxu0 0.0
        %3341 = vmatpush1.msra.mxu0 0.0
        %3342 = vmatprep.subr.mxu0 0.0
        %3343 = vmatpush1.msra.mxu0 0.0
        %3344 = vmatprep.subr.mxu0 0.0
        %3345 = vmatpush1.msra.mxu0 0.0
        %3346 = vmatprep.subr.mxu0 0.0
        %3347 = vmatpush1.msra.mxu0 0.0
        %3348 = vmatprep.subr.mxu0 0.0
        %3349 = vmatpush1.msra.mxu0 0.0
        %3350 = vmatprep.subr.mxu0 0.0
        %3351 = vmatpush1.msra.mxu0 0.0
        %3352 = vmatprep.subr.mxu0 0.0
        %3353 = vmatpush1.msra.mxu0 0.0
        %3354 = vmatprep.subr.mxu0 0.0
        %3355 = vmatpush1.msra.mxu0 0.0
        %3356 = vmatprep.subr.mxu0 0.0
        %3357 = vmatpush1.msra.mxu0 0.0
        %3358 = vmatprep.subr.mxu0 0.0
        %3359 = vmatpush1.msra.mxu0 0.0
        %3360 = vmatprep.subr.mxu0 0.0
        %3361 = vmatpush1.msra.mxu0 0.0
        %3362 = vmatprep.subr.mxu0 0.0
        %3363 = vmatpush1.msra.mxu0 0.0
        %3364 = vmatprep.subr.mxu0 0.0
        %3365 = vmatpush1.msra.mxu0 0.0
        %3366 = vmatprep.subr.mxu0 0.0
        %3367 = vmatpush1.msra.mxu0 0.0
        %3368 = vmatprep.subr.mxu0 0.0
        %3369 = vmatpush1.msra.mxu0 0.0
        %3370 = vmatprep.subr.mxu0 0.0
        %3371 = vmatpush1.msra.mxu0 0.0
        %3372 = vmatprep.subr.mxu0 0.0
        %3373 = vmatpush1.msra.mxu0 0.0
        %3374 = vmatprep.subr.mxu0 0.0
        %3375 = vmatpush1.msra.mxu0 0.0
        %3376 = vmatprep.subr.mxu0 0.0
        %3377 = vmatpush1.msra.mxu0 0.0
        %3378 = vmatprep.mubr.f32.mxu0 0.0
        %3379 = vmatmul.mubr.f32.gmra.mrb[0].mxu0 %v3312
        %v3380 = vpop.f32.mrb[0].mxu0
        %v3381 = vadd.f32 0.0, %v3380
        %v3382 = vpop.f32.mrb[0].mxu0
        %v3383 = vadd.f32 0.0, %v3382
        %3384 = vdwg.mxu0
        %v3385 = vld [vmem:[%s4] sm:$0xff]
        %v3386 = vld [vmem:[%s4 + $0x8] sm:$0xff]
        %v3387 = vld [vmem:[%s4 + $0x10] sm:$0xff]
        %v3388 = vld [vmem:[%s4 + $0x18] sm:$0xff]
        %v3389 = vld [vmem:[%s4 + $0x20] sm:$0xff]
        %v3390 = vld [vmem:[%s4 + $0x28] sm:$0xff]
        %v3391 = vld [vmem:[%s4 + $0x30] sm:$0xff]
        %v3392 = vld [vmem:[%s4 + $0x38] sm:$0xff]
        %v3393 = vld [vmem:[%s4 + $0x40] sm:$0xff]
        %v3394 = vld [vmem:[%s4 + $0x48] sm:$0xff]
        %v3395 = vld [vmem:[%s4 + $0x50] sm:$0xff]
        %v3396 = vld [vmem:[%s4 + $0x58] sm:$0xff]
        %v3397 = vld [vmem:[%s4 + $0x60] sm:$0xff]
        %v3398 = vld [vmem:[%s4 + $0x68] sm:$0xff]
        %v3399 = vld [vmem:[%s4 + $0x70] sm:$0xff]
        %v3400 = vld [vmem:[%s4 + $0x78] sm:$0xff]
        %v3401 = vld [vmem:[%s4 + $0x80] sm:$0xff]
        %v3402 = vld [vmem:[%s4 + $0x88] sm:$0xff]
        %v3403 = vld [vmem:[%s4 + $0x90] sm:$0xff]
        %v3404 = vld [vmem:[%s4 + $0x98] sm:$0xff]
        %v3405 = vld [vmem:[%s4 + $0xa0] sm:$0xff]
        %v3406 = vld [vmem:[%s4 + $0xa8] sm:$0xff]
        %v3407 = vld [vmem:[%s4 + $0xb0] sm:$0xff]
        %v3408 = vld [vmem:[%s4 + $0xb8] sm:$0xff]
        %v3409 = vld [vmem:[%s4 + $0xc0] sm:$0xff]
        %v3410 = vld [vmem:[%s4 + $0xc8] sm:$0xff]
        %v3411 = vld [vmem:[%s4 + $0xd0] sm:$0xff]
        %v3412 = vld [vmem:[%s4 + $0xd8] sm:$0xff]
        %v3413 = vld [vmem:[%s4 + $0xe0] sm:$0xff]
        %v3414 = vld [vmem:[%s4 + $0xe8] sm:$0xff]
        %v3415 = vld [vmem:[%s4 + $0xf0] sm:$0xff]
        %v3416 = vld [vmem:[%s4 + $0xf8] sm:$0xff]
        %v3417 = vld [vmem:[%s4 + $0x100] sm:$0xff]
        %v3418 = vld [vmem:[%s4 + $0x108] sm:$0xff]
        %v3419 = vld [vmem:[%s4 + $0x110] sm:$0xff]
        %v3420 = vld [vmem:[%s4 + $0x118] sm:$0xff]
        %v3421 = vld [vmem:[%s4 + $0x120] sm:$0xff]
        %v3422 = vld [vmem:[%s4 + $0x128] sm:$0xff]
        %v3423 = vld [vmem:[%s4 + $0x130] sm:$0xff]
        %v3424 = vld [vmem:[%s4 + $0x138] sm:$0xff]
        %v3425 = vld [vmem:[%s4 + $0x140] sm:$0xff]
        %v3426 = vld [vmem:[%s4 + $0x148] sm:$0xff]
        %v3427 = vld [vmem:[%s4 + $0x150] sm:$0xff]
        %v3428 = vld [vmem:[%s4 + $0x158] sm:$0xff]
        %v3429 = vld [vmem:[%s4 + $0x160] sm:$0xff]
        %v3430 = vld [vmem:[%s4 + $0x168] sm:$0xff]
        %v3431 = vld [vmem:[%s4 + $0x170] sm:$0xff]
        %v3432 = vld [vmem:[%s4 + $0x178] sm:$0xff]
        %v3433 = vld [vmem:[%s4 + $0x180] sm:$0xff]
        %v3434 = vld [vmem:[%s4 + $0x188] sm:$0xff]
        %v3435 = vld [vmem:[%s4 + $0x190] sm:$0xff]
        %v3436 = vld [vmem:[%s4 + $0x198] sm:$0xff]
        %v3437 = vld [vmem:[%s4 + $0x1a0] sm:$0xff]
        %v3438 = vld [vmem:[%s4 + $0x1a8] sm:$0xff]
        %v3439 = vld [vmem:[%s4 + $0x1b0] sm:$0xff]
        %v3440 = vld [vmem:[%s4 + $0x1b8] sm:$0xff]
        %v3441 = vld [vmem:[%s4 + $0x1c0] sm:$0xff]
        %v3442 = vld [vmem:[%s4 + $0x1c8] sm:$0xff]
        %v3443 = vld [vmem:[%s4 + $0x1d0] sm:$0xff]
        %v3444 = vld [vmem:[%s4 + $0x1d8] sm:$0xff]
        %v3445 = vld [vmem:[%s4 + $0x1e0] sm:$0xff]
        %v3446 = vld [vmem:[%s4 + $0x1e8] sm:$0xff]
        %v3447 = vld [vmem:[%s4 + $0x1f0] sm:$0xff]
        %v3448 = vld [vmem:[%s4 + $0x1f8] sm:$0xff]
        %v3449 = vsel %vm3311, %v585, 0
        %3451 = vmatprep.subr.mxu0 %v3310
        %3452 = vmatpush1.msra.mxu0 %v3309
        %3453 = vmatprep.subr.mxu0 0.0
        %3454 = vmatpush1.msra.mxu0 0.0
        %3455 = vmatprep.subr.mxu0 0.0
        %3456 = vmatpush1.msra.mxu0 0.0
        %3457 = vmatprep.subr.mxu0 0.0
        %3458 = vmatpush1.msra.mxu0 0.0
        %3459 = vmatprep.subr.mxu0 0.0
        %3460 = vmatpush1.msra.mxu0 0.0
        %3461 = vmatprep.subr.mxu0 0.0
        %3462 = vmatpush1.msra.mxu0 0.0
        %3463 = vmatprep.subr.mxu0 0.0
        %3464 = vmatpush1.msra.mxu0 0.0
        %3465 = vmatprep.subr.mxu0 0.0
        %3466 = vmatpush1.msra.mxu0 0.0
        %3467 = vmatprep.subr.mxu0 0.0
        %3468 = vmatpush1.msra.mxu0 0.0
        %3469 = vmatprep.subr.mxu0 0.0
        %3470 = vmatpush1.msra.mxu0 0.0
        %3471 = vmatprep.subr.mxu0 0.0
        %3472 = vmatpush1.msra.mxu0 0.0
        %3473 = vmatprep.subr.mxu0 0.0
        %3474 = vmatpush1.msra.mxu0 0.0
        %3475 = vmatprep.subr.mxu0 0.0
        %3476 = vmatpush1.msra.mxu0 0.0
        %3477 = vmatprep.subr.mxu0 0.0
        %3478 = vmatpush1.msra.mxu0 0.0
        %3479 = vmatprep.subr.mxu0 0.0
        %3480 = vmatpush1.msra.mxu0 0.0
        %3481 = vmatprep.subr.mxu0 0.0
        %3482 = vmatpush1.msra.mxu0 0.0
        %3483 = vmatprep.subr.mxu0 0.0
        %3484 = vmatpush1.msra.mxu0 0.0
        %3485 = vmatprep.subr.mxu0 0.0
        %3486 = vmatpush1.msra.mxu0 0.0
        %3487 = vmatprep.subr.mxu0 0.0
        %3488 = vmatpush1.msra.mxu0 0.0
        %3489 = vmatprep.subr.mxu0 0.0
        %3490 = vmatpush1.msra.mxu0 0.0
        %3491 = vmatprep.subr.mxu0 0.0
        %3492 = vmatpush1.msra.mxu0 0.0
        %3493 = vmatprep.subr.mxu0 0.0
        %3494 = vmatpush1.msra.mxu0 0.0
        %3495 = vmatprep.subr.mxu0 0.0
        %3496 = vmatpush1.msra.mxu0 0.0
        %3497 = vmatprep.subr.mxu0 0.0
        %3498 = vmatpush1.msra.mxu0 0.0
        %3499 = vmatprep.subr.mxu0 0.0
        %3500 = vmatpush1.msra.mxu0 0.0
        %3501 = vmatprep.subr.mxu0 0.0
        %3502 = vmatpush1.msra.mxu0 0.0
        %3503 = vmatprep.subr.mxu0 0.0
        %3504 = vmatpush1.msra.mxu0 0.0
        %3505 = vmatprep.subr.mxu0 0.0
        %3506 = vmatpush1.msra.mxu0 0.0
        %3507 = vmatprep.subr.mxu0 0.0
        %3508 = vmatpush1.msra.mxu0 0.0
        %3509 = vmatprep.subr.mxu0 0.0
        %3510 = vmatpush1.msra.mxu0 0.0
        %3511 = vmatprep.subr.mxu0 0.0
        %3512 = vmatpush1.msra.mxu0 0.0
        %3513 = vmatprep.subr.mxu0 0.0
        %3514 = vmatpush1.msra.mxu0 0.0
        %3515 = vmatprep.mubr.f32.mxu0 0.0
        %3516 = vmatmul.mubr.f32.gmra.mrb[0].mxu0 %v3449
        %v3517 = vpop.f32.mrb[0].mxu0
        %v3518 = vadd.f32 0.0, %v3517
        %v3519 = vpop.f32.mrb[0].mxu0
        %v3520 = vadd.f32 0.0, %v3519
        %3521 = vdwg.mxu0
        %s3522 = scalar_lea.vmem %s4, 512
        %v3523 = vld [vmem:[%s3522] sm:$0xff]
        %v3524 = vld [vmem:[%s3522 + $0x8] sm:$0xff]
        %v3525 = vld [vmem:[%s3522 + $0x10] sm:$0xff]
        %v3526 = vld [vmem:[%s3522 + $0x18] sm:$0xff]
        %v3527 = vld [vmem:[%s3522 + $0x20] sm:$0xff]
        %v3528 = vld [vmem:[%s3522 + $0x28] sm:$0xff]
        %v3529 = vld [vmem:[%s3522 + $0x30] sm:$0xff]
        %v3530 = vld [vmem:[%s3522 + $0x38] sm:$0xff]
        %v3531 = vld [vmem:[%s3522 + $0x40] sm:$0xff]
        %v3532 = vld [vmem:[%s3522 + $0x48] sm:$0xff]
        %v3533 = vld [vmem:[%s3522 + $0x50] sm:$0xff]
        %v3534 = vld [vmem:[%s3522 + $0x58] sm:$0xff]
        %v3535 = vld [vmem:[%s3522 + $0x60] sm:$0xff]
        %v3536 = vld [vmem:[%s3522 + $0x68] sm:$0xff]
        %v3537 = vld [vmem:[%s3522 + $0x70] sm:$0xff]
        %v3538 = vld [vmem:[%s3522 + $0x78] sm:$0xff]
        %v3539 = vld [vmem:[%s3522 + $0x80] sm:$0xff]
        %v3540 = vld [vmem:[%s3522 + $0x88] sm:$0xff]
        %v3541 = vld [vmem:[%s3522 + $0x90] sm:$0xff]
        %v3542 = vld [vmem:[%s3522 + $0x98] sm:$0xff]
        %v3543 = vld [vmem:[%s3522 + $0xa0] sm:$0xff]
        %v3544 = vld [vmem:[%s3522 + $0xa8] sm:$0xff]
        %v3545 = vld [vmem:[%s3522 + $0xb0] sm:$0xff]
        %v3546 = vld [vmem:[%s3522 + $0xb8] sm:$0xff]
        %v3547 = vld [vmem:[%s3522 + $0xc0] sm:$0xff]
        %v3548 = vld [vmem:[%s3522 + $0xc8] sm:$0xff]
        %v3549 = vld [vmem:[%s3522 + $0xd0] sm:$0xff]
        %v3550 = vld [vmem:[%s3522 + $0xd8] sm:$0xff]
        %v3551 = vld [vmem:[%s3522 + $0xe0] sm:$0xff]
        %v3552 = vld [vmem:[%s3522 + $0xe8] sm:$0xff]
        %v3553 = vld [vmem:[%s3522 + $0xf0] sm:$0xff]
        %v3554 = vld [vmem:[%s3522 + $0xf8] sm:$0xff]
        %v3555 = vld [vmem:[%s3522 + $0x100] sm:$0xff]
        %v3556 = vld [vmem:[%s3522 + $0x108] sm:$0xff]
        %v3557 = vld [vmem:[%s3522 + $0x110] sm:$0xff]
        %v3558 = vld [vmem:[%s3522 + $0x118] sm:$0xff]
        %v3559 = vld [vmem:[%s3522 + $0x120] sm:$0xff]
        %v3560 = vld [vmem:[%s3522 + $0x128] sm:$0xff]
        %v3561 = vld [vmem:[%s3522 + $0x130] sm:$0xff]
        %v3562 = vld [vmem:[%s3522 + $0x138] sm:$0xff]
        %v3563 = vld [vmem:[%s3522 + $0x140] sm:$0xff]
        %v3564 = vld [vmem:[%s3522 + $0x148] sm:$0xff]
        %v3565 = vld [vmem:[%s3522 + $0x150] sm:$0xff]
        %v3566 = vld [vmem:[%s3522 + $0x158] sm:$0xff]
        %v3567 = vld [vmem:[%s3522 + $0x160] sm:$0xff]
        %v3568 = vld [vmem:[%s3522 + $0x168] sm:$0xff]
        %v3569 = vld [vmem:[%s3522 + $0x170] sm:$0xff]
        %v3570 = vld [vmem:[%s3522 + $0x178] sm:$0xff]
        %v3571 = vld [vmem:[%s3522 + $0x180] sm:$0xff]
        %v3572 = vld [vmem:[%s3522 + $0x188] sm:$0xff]
        %v3573 = vld [vmem:[%s3522 + $0x190] sm:$0xff]
        %v3574 = vld [vmem:[%s3522 + $0x198] sm:$0xff]
        %v3575 = vld [vmem:[%s3522 + $0x1a0] sm:$0xff]
        %v3576 = vld [vmem:[%s3522 + $0x1a8] sm:$0xff]
        %v3577 = vld [vmem:[%s3522 + $0x1b0] sm:$0xff]
        %v3578 = vld [vmem:[%s3522 + $0x1b8] sm:$0xff]
        %v3579 = vld [vmem:[%s3522 + $0x1c0] sm:$0xff]
        %v3580 = vld [vmem:[%s3522 + $0x1c8] sm:$0xff]
        %v3581 = vld [vmem:[%s3522 + $0x1d0] sm:$0xff]
        %v3582 = vld [vmem:[%s3522 + $0x1d8] sm:$0xff]
        %v3583 = vld [vmem:[%s3522 + $0x1e0] sm:$0xff]
        %v3584 = vld [vmem:[%s3522 + $0x1e8] sm:$0xff]
        %v3585 = vld [vmem:[%s3522 + $0x1f0] sm:$0xff]
        %v3586 = vld [vmem:[%s3522 + $0x1f8] sm:$0xff]
        %3587 = vmatprep.subr.mxu0 %v3524
        %3588 = vmatpush1.msra.mxu0 %v3523
        %3589 = vmatprep.subr.mxu0 %v3526
        %3590 = vmatpush1.msra.mxu0 %v3525
        %3591 = vmatprep.subr.mxu0 %v3528
        %3592 = vmatpush1.msra.mxu0 %v3527
        %3593 = vmatprep.subr.mxu0 %v3530
        %3594 = vmatpush1.msra.mxu0 %v3529
        %3595 = vmatprep.subr.mxu0 %v3532
        %3596 = vmatpush1.msra.mxu0 %v3531
        %3597 = vmatprep.subr.mxu0 %v3534
        %3598 = vmatpush1.msra.mxu0 %v3533
        %3599 = vmatprep.subr.mxu0 %v3536
        %3600 = vmatpush1.msra.mxu0 %v3535
        %3601 = vmatprep.subr.mxu0 %v3538
        %3602 = vmatpush1.msra.mxu0 %v3537
        %3603 = vmatprep.subr.mxu0 %v3540
        %3604 = vmatpush1.msra.mxu0 %v3539
        %3605 = vmatprep.subr.mxu0 %v3542
        %3606 = vmatpush1.msra.mxu0 %v3541
        %3607 = vmatprep.subr.mxu0 %v3544
        %3608 = vmatpush1.msra.mxu0 %v3543
        %3609 = vmatprep.subr.mxu0 %v3546
        %3610 = vmatpush1.msra.mxu0 %v3545
        %3611 = vmatprep.subr.mxu0 %v3548
        %3612 = vmatpush1.msra.mxu0 %v3547
        %3613 = vmatprep.subr.mxu0 %v3550
        %3614 = vmatpush1.msra.mxu0 %v3549
        %3615 = vmatprep.subr.mxu0 %v3552
        %3616 = vmatpush1.msra.mxu0 %v3551
        %3617 = vmatprep.subr.mxu0 %v3554
        %3618 = vmatpush1.msra.mxu0 %v3553
        %3619 = vmatprep.subr.mxu0 %v3556
        %3620 = vmatpush1.msra.mxu0 %v3555
        %3621 = vmatprep.subr.mxu0 %v3558
        %3622 = vmatpush1.msra.mxu0 %v3557
        %3623 = vmatprep.subr.mxu0 %v3560
        %3624 = vmatpush1.msra.mxu0 %v3559
        %3625 = vmatprep.subr.mxu0 %v3562
        %3626 = vmatpush1.msra.mxu0 %v3561
        %3627 = vmatprep.subr.mxu0 %v3564
        %3628 = vmatpush1.msra.mxu0 %v3563
        %3629 = vmatprep.subr.mxu0 %v3566
        %3630 = vmatpush1.msra.mxu0 %v3565
        %3631 = vmatprep.subr.mxu0 %v3568
        %3632 = vmatpush1.msra.mxu0 %v3567
        %3633 = vmatprep.subr.mxu0 %v3570
        %3634 = vmatpush1.msra.mxu0 %v3569
        %3635 = vmatprep.subr.mxu0 %v3572
        %3636 = vmatpush1.msra.mxu0 %v3571
        %3637 = vmatprep.subr.mxu0 %v3574
        %3638 = vmatpush1.msra.mxu0 %v3573
        %3639 = vmatprep.subr.mxu0 %v3576
        %3640 = vmatpush1.msra.mxu0 %v3575
        %3641 = vmatprep.subr.mxu0 %v3578
        %3642 = vmatpush1.msra.mxu0 %v3577
        %3643 = vmatprep.subr.mxu0 %v3580
        %3644 = vmatpush1.msra.mxu0 %v3579
        %3645 = vmatprep.subr.mxu0 %v3582
        %3646 = vmatpush1.msra.mxu0 %v3581
        %3647 = vmatprep.subr.mxu0 %v3584
        %3648 = vmatpush1.msra.mxu0 %v3583
        %3649 = vmatprep.subr.mxu0 %v3586
        %3650 = vmatpush1.msra.mxu0 %v3585
        %3651 = vmatprep.mubr.f32.mxu0 %v3520
        %3652 = vmatmul.mubr.f32.gmra.mrb[0].mxu0 %v3518
        %v3653 = vpop.f32.mrb[0].mxu0
        %v3654 = vadd.f32 0.0, %v3653
        %v3655 = vpop.f32.mrb[0].mxu0
        %v3656 = vadd.f32 0.0, %v3655
        %3657 = vdwg.mxu0
        %3658 = vmatprep.subr.mxu0 %v3386
        %3659 = vmatpush1.msra.mxu0 %v3385
        %3660 = vmatprep.subr.mxu0 %v3388
        %3661 = vmatpush1.msra.mxu0 %v3387
        %3662 = vmatprep.subr.mxu0 %v3390
        %3663 = vmatpush1.msra.mxu0 %v3389
        %3664 = vmatprep.subr.mxu0 %v3392
        %3665 = vmatpush1.msra.mxu0 %v3391
        %3666 = vmatprep.subr.mxu0 %v3394
        %3667 = vmatpush1.msra.mxu0 %v3393
        %3668 = vmatprep.subr.mxu0 %v3396
        %3669 = vmatpush1.msra.mxu0 %v3395
        %3670 = vmatprep.subr.mxu0 %v3398
        %3671 = vmatpush1.msra.mxu0 %v3397
        %3672 = vmatprep.subr.mxu0 %v3400
        %3673 = vmatpush1.msra.mxu0 %v3399
        %3674 = vmatprep.subr.mxu0 %v3402
        %3675 = vmatpush1.msra.mxu0 %v3401
        %3676 = vmatprep.subr.mxu0 %v3404
        %3677 = vmatpush1.msra.mxu0 %v3403
        %3678 = vmatprep.subr.mxu0 %v3406
        %3679 = vmatpush1.msra.mxu0 %v3405
        %3680 = vmatprep.subr.mxu0 %v3408
        %3681 = vmatpush1.msra.mxu0 %v3407
        %3682 = vmatprep.subr.mxu0 %v3410
        %3683 = vmatpush1.msra.mxu0 %v3409
        %3684 = vmatprep.subr.mxu0 %v3412
        %3685 = vmatpush1.msra.mxu0 %v3411
        %3686 = vmatprep.subr.mxu0 %v3414
        %3687 = vmatpush1.msra.mxu0 %v3413
        %3688 = vmatprep.subr.mxu0 %v3416
        %3689 = vmatpush1.msra.mxu0 %v3415
        %3690 = vmatprep.subr.mxu0 %v3418
        %3691 = vmatpush1.msra.mxu0 %v3417
        %3692 = vmatprep.subr.mxu0 %v3420
        %3693 = vmatpush1.msra.mxu0 %v3419
        %3694 = vmatprep.subr.mxu0 %v3422
        %3695 = vmatpush1.msra.mxu0 %v3421
        %3696 = vmatprep.subr.mxu0 %v3424
        %3697 = vmatpush1.msra.mxu0 %v3423
        %3698 = vmatprep.subr.mxu0 %v3426
        %3699 = vmatpush1.msra.mxu0 %v3425
        %3700 = vmatprep.subr.mxu0 %v3428
        %3701 = vmatpush1.msra.mxu0 %v3427
        %3702 = vmatprep.subr.mxu0 %v3430
        %3703 = vmatpush1.msra.mxu0 %v3429
        %3704 = vmatprep.subr.mxu0 %v3432
        %3705 = vmatpush1.msra.mxu0 %v3431
        %3706 = vmatprep.subr.mxu0 %v3434
        %3707 = vmatpush1.msra.mxu0 %v3433
        %3708 = vmatprep.subr.mxu0 %v3436
        %3709 = vmatpush1.msra.mxu0 %v3435
        %3710 = vmatprep.subr.mxu0 %v3438
        %3711 = vmatpush1.msra.mxu0 %v3437
        %3712 = vmatprep.subr.mxu0 %v3440
        %3713 = vmatpush1.msra.mxu0 %v3439
        %3714 = vmatprep.subr.mxu0 %v3442
        %3715 = vmatpush1.msra.mxu0 %v3441
        %3716 = vmatprep.subr.mxu0 %v3444
        %3717 = vmatpush1.msra.mxu0 %v3443
        %3718 = vmatprep.subr.mxu0 %v3446
        %3719 = vmatpush1.msra.mxu0 %v3445
        %3720 = vmatprep.subr.mxu0 %v3448
        %3721 = vmatpush1.msra.mxu0 %v3447
        %3722 = vmatprep.mubr.f32.mxu0 %v3383
        %3723 = vmatmul.mubr.f32.gmra.mrb[0].mxu0 %v3381
        %v3724 = vpop.f32.mrb[0].mxu0
        %v3725 = vadd.f32 %v3654, %v3724
        %v3726 = vpop.f32.mrb[0].mxu0
        %v3727 = vadd.f32 %v3656, %v3726
        %3728 = vdwg.mxu0
        %v3729 = vsel %vm3311, %v957, 0
        %3731 = vmatprep.subr.mxu0 %v3310
        %3732 = vmatpush1.msra.mxu0 %v3309
        %3733 = vmatprep.subr.mxu0 0.0
        %3734 = vmatpush1.msra.mxu0 0.0
        %3735 = vmatprep.subr.mxu0 0.0
        %3736 = vmatpush1.msra.mxu0 0.0
        %3737 = vmatprep.subr.mxu0 0.0
        %3738 = vmatpush1.msra.mxu0 0.0
        %3739 = vmatprep.subr.mxu0 0.0
        %3740 = vmatpush1.msra.mxu0 0.0
        %3741 = vmatprep.subr.mxu0 0.0
        %3742 = vmatpush1.msra.mxu0 0.0
        %3743 = vmatprep.subr.mxu0 0.0
        %3744 = vmatpush1.msra.mxu0 0.0
        %3745 = vmatprep.subr.mxu0 0.0
        %3746 = vmatpush1.msra.mxu0 0.0
        %3747 = vmatprep.subr.mxu0 0.0
        %3748 = vmatpush1.msra.mxu0 0.0
        %3749 = vmatprep.subr.mxu0 0.0
        %3750 = vmatpush1.msra.mxu0 0.0
        %3751 = vmatprep.subr.mxu0 0.0
        %3752 = vmatpush1.msra.mxu0 0.0
        %3753 = vmatprep.subr.mxu0 0.0
        %3754 = vmatpush1.msra.mxu0 0.0
        %3755 = vmatprep.subr.mxu0 0.0
        %3756 = vmatpush1.msra.mxu0 0.0
        %3757 = vmatprep.subr.mxu0 0.0
        %3758 = vmatpush1.msra.mxu0 0.0
        %3759 = vmatprep.subr.mxu0 0.0
        %3760 = vmatpush1.msra.mxu0 0.0
        %3761 = vmatprep.subr.mxu0 0.0
        %3762 = vmatpush1.msra.mxu0 0.0
        %3763 = vmatprep.subr.mxu0 0.0
        %3764 = vmatpush1.msra.mxu0 0.0
        %3765 = vmatprep.subr.mxu0 0.0
        %3766 = vmatpush1.msra.mxu0 0.0
        %3767 = vmatprep.subr.mxu0 0.0
        %3768 = vmatpush1.msra.mxu0 0.0
        %3769 = vmatprep.subr.mxu0 0.0
        %3770 = vmatpush1.msra.mxu0 0.0
        %3771 = vmatprep.subr.mxu0 0.0
        %3772 = vmatpush1.msra.mxu0 0.0
        %3773 = vmatprep.subr.mxu0 0.0
        %3774 = vmatpush1.msra.mxu0 0.0
        %3775 = vmatprep.subr.mxu0 0.0
        %3776 = vmatpush1.msra.mxu0 0.0
        %3777 = vmatprep.subr.mxu0 0.0
        %3778 = vmatpush1.msra.mxu0 0.0
        %3779 = vmatprep.subr.mxu0 0.0
        %3780 = vmatpush1.msra.mxu0 0.0
        %3781 = vmatprep.subr.mxu0 0.0
        %3782 = vmatpush1.msra.mxu0 0.0
        %3783 = vmatprep.subr.mxu0 0.0
        %3784 = vmatpush1.msra.mxu0 0.0
        %3785 = vmatprep.subr.mxu0 0.0
        %3786 = vmatpush1.msra.mxu0 0.0
        %3787 = vmatprep.subr.mxu0 0.0
        %3788 = vmatpush1.msra.mxu0 0.0
        %3789 = vmatprep.subr.mxu0 0.0
        %3790 = vmatpush1.msra.mxu0 0.0
        %3791 = vmatprep.subr.mxu0 0.0
        %3792 = vmatpush1.msra.mxu0 0.0
        %3793 = vmatprep.subr.mxu0 0.0
        %3794 = vmatpush1.msra.mxu0 0.0
        %3795 = vmatprep.mubr.f32.mxu0 0.0
        %3796 = vmatmul.mubr.f32.gmra.mrb[0].mxu0 %v3729
        %v3797 = vpop.f32.mrb[0].mxu0
        %v3798 = vadd.f32 0.0, %v3797
        %v3799 = vpop.f32.mrb[0].mxu0
        %v3800 = vadd.f32 0.0, %v3799
        %3801 = vdwg.mxu0
        %s3802 = scalar_lea.vmem %s4, 1024
        %v3803 = vld [vmem:[%s3802] sm:$0xff]
        %v3804 = vld [vmem:[%s3802 + $0x8] sm:$0xff]
        %v3805 = vld [vmem:[%s3802 + $0x10] sm:$0xff]
        %v3806 = vld [vmem:[%s3802 + $0x18] sm:$0xff]
        %v3807 = vld [vmem:[%s3802 + $0x20] sm:$0xff]
        %v3808 = vld [vmem:[%s3802 + $0x28] sm:$0xff]
        %v3809 = vld [vmem:[%s3802 + $0x30] sm:$0xff]
        %v3810 = vld [vmem:[%s3802 + $0x38] sm:$0xff]
        %v3811 = vld [vmem:[%s3802 + $0x40] sm:$0xff]
        %v3812 = vld [vmem:[%s3802 + $0x48] sm:$0xff]
        %v3813 = vld [vmem:[%s3802 + $0x50] sm:$0xff]
        %v3814 = vld [vmem:[%s3802 + $0x58] sm:$0xff]
        %v3815 = vld [vmem:[%s3802 + $0x60] sm:$0xff]
        %v3816 = vld [vmem:[%s3802 + $0x68] sm:$0xff]
        %v3817 = vld [vmem:[%s3802 + $0x70] sm:$0xff]
        %v3818 = vld [vmem:[%s3802 + $0x78] sm:$0xff]
        %v3819 = vld [vmem:[%s3802 + $0x80] sm:$0xff]
        %v3820 = vld [vmem:[%s3802 + $0x88] sm:$0xff]
        %v3821 = vld [vmem:[%s3802 + $0x90] sm:$0xff]
        %v3822 = vld [vmem:[%s3802 + $0x98] sm:$0xff]
        %v3823 = vld [vmem:[%s3802 + $0xa0] sm:$0xff]
        %v3824 = vld [vmem:[%s3802 + $0xa8] sm:$0xff]
        %v3825 = vld [vmem:[%s3802 + $0xb0] sm:$0xff]
        %v3826 = vld [vmem:[%s3802 + $0xb8] sm:$0xff]
        %v3827 = vld [vmem:[%s3802 + $0xc0] sm:$0xff]
        %v3828 = vld [vmem:[%s3802 + $0xc8] sm:$0xff]
        %v3829 = vld [vmem:[%s3802 + $0xd0] sm:$0xff]
        %v3830 = vld [vmem:[%s3802 + $0xd8] sm:$0xff]
        %v3831 = vld [vmem:[%s3802 + $0xe0] sm:$0xff]
        %v3832 = vld [vmem:[%s3802 + $0xe8] sm:$0xff]
        %v3833 = vld [vmem:[%s3802 + $0xf0] sm:$0xff]
        %v3834 = vld [vmem:[%s3802 + $0xf8] sm:$0xff]
        %v3835 = vld [vmem:[%s3802 + $0x100] sm:$0xff]
        %v3836 = vld [vmem:[%s3802 + $0x108] sm:$0xff]
        %v3837 = vld [vmem:[%s3802 + $0x110] sm:$0xff]
        %v3838 = vld [vmem:[%s3802 + $0x118] sm:$0xff]
        %v3839 = vld [vmem:[%s3802 + $0x120] sm:$0xff]
        %v3840 = vld [vmem:[%s3802 + $0x128] sm:$0xff]
        %v3841 = vld [vmem:[%s3802 + $0x130] sm:$0xff]
        %v3842 = vld [vmem:[%s3802 + $0x138] sm:$0xff]
        %v3843 = vld [vmem:[%s3802 + $0x140] sm:$0xff]
        %v3844 = vld [vmem:[%s3802 + $0x148] sm:$0xff]
        %v3845 = vld [vmem:[%s3802 + $0x150] sm:$0xff]
        %v3846 = vld [vmem:[%s3802 + $0x158] sm:$0xff]
        %v3847 = vld [vmem:[%s3802 + $0x160] sm:$0xff]
        %v3848 = vld [vmem:[%s3802 + $0x168] sm:$0xff]
        %v3849 = vld [vmem:[%s3802 + $0x170] sm:$0xff]
        %v3850 = vld [vmem:[%s3802 + $0x178] sm:$0xff]
        %v3851 = vld [vmem:[%s3802 + $0x180] sm:$0xff]
        %v3852 = vld [vmem:[%s3802 + $0x188] sm:$0xff]
        %v3853 = vld [vmem:[%s3802 + $0x190] sm:$0xff]
        %v3854 = vld [vmem:[%s3802 + $0x198] sm:$0xff]
        %v3855 = vld [vmem:[%s3802 + $0x1a0] sm:$0xff]
        %v3856 = vld [vmem:[%s3802 + $0x1a8] sm:$0xff]
        %v3857 = vld [vmem:[%s3802 + $0x1b0] sm:$0xff]
        %v3858 = vld [vmem:[%s3802 + $0x1b8] sm:$0xff]
        %v3859 = vld [vmem:[%s3802 + $0x1c0] sm:$0xff]
        %v3860 = vld [vmem:[%s3802 + $0x1c8] sm:$0xff]
        %v3861 = vld [vmem:[%s3802 + $0x1d0] sm:$0xff]
        %v3862 = vld [vmem:[%s3802 + $0x1d8] sm:$0xff]
        %v3863 = vld [vmem:[%s3802 + $0x1e0] sm:$0xff]
        %v3864 = vld [vmem:[%s3802 + $0x1e8] sm:$0xff]
        %v3865 = vld [vmem:[%s3802 + $0x1f0] sm:$0xff]
        %v3866 = vld [vmem:[%s3802 + $0x1f8] sm:$0xff]
        %3867 = vmatprep.subr.mxu0 %v3804
        %3868 = vmatpush1.msra.mxu0 %v3803
        %3869 = vmatprep.subr.mxu0 %v3806
        %3870 = vmatpush1.msra.mxu0 %v3805
        %3871 = vmatprep.subr.mxu0 %v3808
        %3872 = vmatpush1.msra.mxu0 %v3807
        %3873 = vmatprep.subr.mxu0 %v3810
        %3874 = vmatpush1.msra.mxu0 %v3809
        %3875 = vmatprep.subr.mxu0 %v3812
        %3876 = vmatpush1.msra.mxu0 %v3811
        %3877 = vmatprep.subr.mxu0 %v3814
        %3878 = vmatpush1.msra.mxu0 %v3813
        %3879 = vmatprep.subr.mxu0 %v3816
        %3880 = vmatpush1.msra.mxu0 %v3815
        %3881 = vmatprep.subr.mxu0 %v3818
        %3882 = vmatpush1.msra.mxu0 %v3817
        %3883 = vmatprep.subr.mxu0 %v3820
        %3884 = vmatpush1.msra.mxu0 %v3819
        %3885 = vmatprep.subr.mxu0 %v3822
        %3886 = vmatpush1.msra.mxu0 %v3821
        %3887 = vmatprep.subr.mxu0 %v3824
        %3888 = vmatpush1.msra.mxu0 %v3823
        %3889 = vmatprep.subr.mxu0 %v3826
        %3890 = vmatpush1.msra.mxu0 %v3825
        %3891 = vmatprep.subr.mxu0 %v3828
        %3892 = vmatpush1.msra.mxu0 %v3827
        %3893 = vmatprep.subr.mxu0 %v3830
        %3894 = vmatpush1.msra.mxu0 %v3829
        %3895 = vmatprep.subr.mxu0 %v3832
        %3896 = vmatpush1.msra.mxu0 %v3831
        %3897 = vmatprep.subr.mxu0 %v3834
        %3898 = vmatpush1.msra.mxu0 %v3833
        %3899 = vmatprep.subr.mxu0 %v3836
        %3900 = vmatpush1.msra.mxu0 %v3835
        %3901 = vmatprep.subr.mxu0 %v3838
        %3902 = vmatpush1.msra.mxu0 %v3837
        %3903 = vmatprep.subr.mxu0 %v3840
        %3904 = vmatpush1.msra.mxu0 %v3839
        %3905 = vmatprep.subr.mxu0 %v3842
        %3906 = vmatpush1.msra.mxu0 %v3841
        %3907 = vmatprep.subr.mxu0 %v3844
        %3908 = vmatpush1.msra.mxu0 %v3843
        %3909 = vmatprep.subr.mxu0 %v3846
        %3910 = vmatpush1.msra.mxu0 %v3845
        %3911 = vmatprep.subr.mxu0 %v3848
        %3912 = vmatpush1.msra.mxu0 %v3847
        %3913 = vmatprep.subr.mxu0 %v3850
        %3914 = vmatpush1.msra.mxu0 %v3849
        %3915 = vmatprep.subr.mxu0 %v3852
        %3916 = vmatpush1.msra.mxu0 %v3851
        %3917 = vmatprep.subr.mxu0 %v3854
        %3918 = vmatpush1.msra.mxu0 %v3853
        %3919 = vmatprep.subr.mxu0 %v3856
        %3920 = vmatpush1.msra.mxu0 %v3855
        %3921 = vmatprep.subr.mxu0 %v3858
        %3922 = vmatpush1.msra.mxu0 %v3857
        %3923 = vmatprep.subr.mxu0 %v3860
        %3924 = vmatpush1.msra.mxu0 %v3859
        %3925 = vmatprep.subr.mxu0 %v3862
        %3926 = vmatpush1.msra.mxu0 %v3861
        %3927 = vmatprep.subr.mxu0 %v3864
        %3928 = vmatpush1.msra.mxu0 %v3863
        %3929 = vmatprep.subr.mxu0 %v3866
        %3930 = vmatpush1.msra.mxu0 %v3865
        %3931 = vmatprep.mubr.f32.mxu0 %v3800
        %3932 = vmatmul.mubr.f32.gmra.mrb[0].mxu0 %v3798
        %v3933 = vpop.f32.mrb[0].mxu0
        %v3934 = vadd.f32 0.0, %v3933
        %v3935 = vpop.f32.mrb[0].mxu0
        %v3936 = vadd.f32 0.0, %v3935
        %3937 = vdwg.mxu0
        %v3938 = vadd.f32 %v3725, %v3934
        %v3939 = vadd.f32 %v3727, %v3936
        %v3940 = vsel %vm3311, %v1236, 0
        %3942 = vmatprep.subr.mxu0 %v3310
        %3943 = vmatpush1.msra.mxu0 %v3309
        %3944 = vmatprep.subr.mxu0 0.0
        %3945 = vmatpush1.msra.mxu0 0.0
        %3946 = vmatprep.subr.mxu0 0.0
        %3947 = vmatpush1.msra.mxu0 0.0
        %3948 = vmatprep.subr.mxu0 0.0
        %3949 = vmatpush1.msra.mxu0 0.0
        %3950 = vmatprep.subr.mxu0 0.0
        %3951 = vmatpush1.msra.mxu0 0.0
        %3952 = vmatprep.subr.mxu0 0.0
        %3953 = vmatpush1.msra.mxu0 0.0
        %3954 = vmatprep.subr.mxu0 0.0
        %3955 = vmatpush1.msra.mxu0 0.0
        %3956 = vmatprep.subr.mxu0 0.0
        %3957 = vmatpush1.msra.mxu0 0.0
        %3958 = vmatprep.subr.mxu0 0.0
        %3959 = vmatpush1.msra.mxu0 0.0
        %3960 = vmatprep.subr.mxu0 0.0
        %3961 = vmatpush1.msra.mxu0 0.0
        %3962 = vmatprep.subr.mxu0 0.0
        %3963 = vmatpush1.msra.mxu0 0.0
        %3964 = vmatprep.subr.mxu0 0.0
        %3965 = vmatpush1.msra.mxu0 0.0
        %3966 = vmatprep.subr.mxu0 0.0
        %3967 = vmatpush1.msra.mxu0 0.0
        %3968 = vmatprep.subr.mxu0 0.0
        %3969 = vmatpush1.msra.mxu0 0.0
        %3970 = vmatprep.subr.mxu0 0.0
        %3971 = vmatpush1.msra.mxu0 0.0
        %3972 = vmatprep.subr.mxu0 0.0
        %3973 = vmatpush1.msra.mxu0 0.0
        %3974 = vmatprep.subr.mxu0 0.0
        %3975 = vmatpush1.msra.mxu0 0.0
        %3976 = vmatprep.subr.mxu0 0.0
        %3977 = vmatpush1.msra.mxu0 0.0
        %3978 = vmatprep.subr.mxu0 0.0
        %3979 = vmatpush1.msra.mxu0 0.0
        %3980 = vmatprep.subr.mxu0 0.0
        %3981 = vmatpush1.msra.mxu0 0.0
        %3982 = vmatprep.subr.mxu0 0.0
        %3983 = vmatpush1.msra.mxu0 0.0
        %3984 = vmatprep.subr.mxu0 0.0
        %3985 = vmatpush1.msra.mxu0 0.0
        %3986 = vmatprep.subr.mxu0 0.0
        %3987 = vmatpush1.msra.mxu0 0.0
        %3988 = vmatprep.subr.mxu0 0.0
        %3989 = vmatpush1.msra.mxu0 0.0
        %3990 = vmatprep.subr.mxu0 0.0
        %3991 = vmatpush1.msra.mxu0 0.0
        %3992 = vmatprep.subr.mxu0 0.0
        %3993 = vmatpush1.msra.mxu0 0.0
        %3994 = vmatprep.subr.mxu0 0.0
        %3995 = vmatpush1.msra.mxu0 0.0
        %3996 = vmatprep.subr.mxu0 0.0
        %3997 = vmatpush1.msra.mxu0 0.0
        %3998 = vmatprep.subr.mxu0 0.0
        %3999 = vmatpush1.msra.mxu0 0.0
        %4000 = vmatprep.subr.mxu0 0.0
        %4001 = vmatpush1.msra.mxu0 0.0
        %4002 = vmatprep.subr.mxu0 0.0
        %4003 = vmatpush1.msra.mxu0 0.0
        %4004 = vmatprep.subr.mxu0 0.0
        %4005 = vmatpush1.msra.mxu0 0.0
        %4006 = vmatprep.mubr.f32.mxu0 0.0
        %4007 = vmatmul.mubr.f32.gmra.mrb[0].mxu0 %v3940
        %v4008 = vpop.f32.mrb[0].mxu0
        %v4009 = vadd.f32 0.0, %v4008
        %v4010 = vpop.f32.mrb[0].mxu0
        %v4011 = vadd.f32 0.0, %v4010
        %4012 = vdwg.mxu0
        %s4013 = scalar_lea.vmem %s4, 1536
        %v4014 = vld [vmem:[%s4013] sm:$0xff]
        %v4015 = vld [vmem:[%s4013 + $0x8] sm:$0xff]
        %v4016 = vld [vmem:[%s4013 + $0x10] sm:$0xff]
        %v4017 = vld [vmem:[%s4013 + $0x18] sm:$0xff]
        %v4018 = vld [vmem:[%s4013 + $0x20] sm:$0xff]
        %v4019 = vld [vmem:[%s4013 + $0x28] sm:$0xff]
        %v4020 = vld [vmem:[%s4013 + $0x30] sm:$0xff]
        %v4021 = vld [vmem:[%s4013 + $0x38] sm:$0xff]
        %v4022 = vld [vmem:[%s4013 + $0x40] sm:$0xff]
        %v4023 = vld [vmem:[%s4013 + $0x48] sm:$0xff]
        %v4024 = vld [vmem:[%s4013 + $0x50] sm:$0xff]
        %v4025 = vld [vmem:[%s4013 + $0x58] sm:$0xff]
        %v4026 = vld [vmem:[%s4013 + $0x60] sm:$0xff]
        %v4027 = vld [vmem:[%s4013 + $0x68] sm:$0xff]
        %v4028 = vld [vmem:[%s4013 + $0x70] sm:$0xff]
        %v4029 = vld [vmem:[%s4013 + $0x78] sm:$0xff]
        %v4030 = vld [vmem:[%s4013 + $0x80] sm:$0xff]
        %v4031 = vld [vmem:[%s4013 + $0x88] sm:$0xff]
        %v4032 = vld [vmem:[%s4013 + $0x90] sm:$0xff]
        %v4033 = vld [vmem:[%s4013 + $0x98] sm:$0xff]
        %v4034 = vld [vmem:[%s4013 + $0xa0] sm:$0xff]
        %v4035 = vld [vmem:[%s4013 + $0xa8] sm:$0xff]
        %v4036 = vld [vmem:[%s4013 + $0xb0] sm:$0xff]
        %v4037 = vld [vmem:[%s4013 + $0xb8] sm:$0xff]
        %v4038 = vld [vmem:[%s4013 + $0xc0] sm:$0xff]
        %v4039 = vld [vmem:[%s4013 + $0xc8] sm:$0xff]
        %v4040 = vld [vmem:[%s4013 + $0xd0] sm:$0xff]
        %v4041 = vld [vmem:[%s4013 + $0xd8] sm:$0xff]
        %v4042 = vld [vmem:[%s4013 + $0xe0] sm:$0xff]
        %v4043 = vld [vmem:[%s4013 + $0xe8] sm:$0xff]
        %v4044 = vld [vmem:[%s4013 + $0xf0] sm:$0xff]
        %v4045 = vld [vmem:[%s4013 + $0xf8] sm:$0xff]
        %v4046 = vld [vmem:[%s4013 + $0x100] sm:$0xff]
        %v4047 = vld [vmem:[%s4013 + $0x108] sm:$0xff]
        %v4048 = vld [vmem:[%s4013 + $0x110] sm:$0xff]
        %v4049 = vld [vmem:[%s4013 + $0x118] sm:$0xff]
        %v4050 = vld [vmem:[%s4013 + $0x120] sm:$0xff]
        %v4051 = vld [vmem:[%s4013 + $0x128] sm:$0xff]
        %v4052 = vld [vmem:[%s4013 + $0x130] sm:$0xff]
        %v4053 = vld [vmem:[%s4013 + $0x138] sm:$0xff]
        %v4054 = vld [vmem:[%s4013 + $0x140] sm:$0xff]
        %v4055 = vld [vmem:[%s4013 + $0x148] sm:$0xff]
        %v4056 = vld [vmem:[%s4013 + $0x150] sm:$0xff]
        %v4057 = vld [vmem:[%s4013 + $0x158] sm:$0xff]
        %v4058 = vld [vmem:[%s4013 + $0x160] sm:$0xff]
        %v4059 = vld [vmem:[%s4013 + $0x168] sm:$0xff]
        %v4060 = vld [vmem:[%s4013 + $0x170] sm:$0xff]
        %v4061 = vld [vmem:[%s4013 + $0x178] sm:$0xff]
        %v4062 = vld [vmem:[%s4013 + $0x180] sm:$0xff]
        %v4063 = vld [vmem:[%s4013 + $0x188] sm:$0xff]
        %v4064 = vld [vmem:[%s4013 + $0x190] sm:$0xff]
        %v4065 = vld [vmem:[%s4013 + $0x198] sm:$0xff]
        %v4066 = vld [vmem:[%s4013 + $0x1a0] sm:$0xff]
        %v4067 = vld [vmem:[%s4013 + $0x1a8] sm:$0xff]
        %v4068 = vld [vmem:[%s4013 + $0x1b0] sm:$0xff]
        %v4069 = vld [vmem:[%s4013 + $0x1b8] sm:$0xff]
        %v4070 = vld [vmem:[%s4013 + $0x1c0] sm:$0xff]
        %v4071 = vld [vmem:[%s4013 + $0x1c8] sm:$0xff]
        %v4072 = vld [vmem:[%s4013 + $0x1d0] sm:$0xff]
        %v4073 = vld [vmem:[%s4013 + $0x1d8] sm:$0xff]
        %v4074 = vld [vmem:[%s4013 + $0x1e0] sm:$0xff]
        %v4075 = vld [vmem:[%s4013 + $0x1e8] sm:$0xff]
        %v4076 = vld [vmem:[%s4013 + $0x1f0] sm:$0xff]
        %v4077 = vld [vmem:[%s4013 + $0x1f8] sm:$0xff]
        %4078 = vmatprep.subr.mxu0 %v4015
        %4079 = vmatpush1.msra.mxu0 %v4014
        %4080 = vmatprep.subr.mxu0 %v4017
        %4081 = vmatpush1.msra.mxu0 %v4016
        %4082 = vmatprep.subr.mxu0 %v4019
        %4083 = vmatpush1.msra.mxu0 %v4018
        %4084 = vmatprep.subr.mxu0 %v4021
        %4085 = vmatpush1.msra.mxu0 %v4020
        %4086 = vmatprep.subr.mxu0 %v4023
        %4087 = vmatpush1.msra.mxu0 %v4022
        %4088 = vmatprep.subr.mxu0 %v4025
        %4089 = vmatpush1.msra.mxu0 %v4024
        %4090 = vmatprep.subr.mxu0 %v4027
        %4091 = vmatpush1.msra.mxu0 %v4026
        %4092 = vmatprep.subr.mxu0 %v4029
        %4093 = vmatpush1.msra.mxu0 %v4028
        %4094 = vmatprep.subr.mxu0 %v4031
        %4095 = vmatpush1.msra.mxu0 %v4030
        %4096 = vmatprep.subr.mxu0 %v4033
        %4097 = vmatpush1.msra.mxu0 %v4032
        %4098 = vmatprep.subr.mxu0 %v4035
        %4099 = vmatpush1.msra.mxu0 %v4034
        %4100 = vmatprep.subr.mxu0 %v4037
        %4101 = vmatpush1.msra.mxu0 %v4036
        %4102 = vmatprep.subr.mxu0 %v4039
        %4103 = vmatpush1.msra.mxu0 %v4038
        %4104 = vmatprep.subr.mxu0 %v4041
        %4105 = vmatpush1.msra.mxu0 %v4040
        %4106 = vmatprep.subr.mxu0 %v4043
        %4107 = vmatpush1.msra.mxu0 %v4042
        %4108 = vmatprep.subr.mxu0 %v4045
        %4109 = vmatpush1.msra.mxu0 %v4044
        %4110 = vmatprep.subr.mxu0 %v4047
        %4111 = vmatpush1.msra.mxu0 %v4046
        %4112 = vmatprep.subr.mxu0 %v4049
        %4113 = vmatpush1.msra.mxu0 %v4048
        %4114 = vmatprep.subr.mxu0 %v4051
        %4115 = vmatpush1.msra.mxu0 %v4050
        %4116 = vmatprep.subr.mxu0 %v4053
        %4117 = vmatpush1.msra.mxu0 %v4052
        %4118 = vmatprep.subr.mxu0 %v4055
        %4119 = vmatpush1.msra.mxu0 %v4054
        %4120 = vmatprep.subr.mxu0 %v4057
        %4121 = vmatpush1.msra.mxu0 %v4056
        %4122 = vmatprep.subr.mxu0 %v4059
        %4123 = vmatpush1.msra.mxu0 %v4058
        %4124 = vmatprep.subr.mxu0 %v4061
        %4125 = vmatpush1.msra.mxu0 %v4060
        %4126 = vmatprep.subr.mxu0 %v4063
        %4127 = vmatpush1.msra.mxu0 %v4062
        %4128 = vmatprep.subr.mxu0 %v4065
        %4129 = vmatpush1.msra.mxu0 %v4064
        %4130 = vmatprep.subr.mxu0 %v4067
        %4131 = vmatpush1.msra.mxu0 %v4066
        %4132 = vmatprep.subr.mxu0 %v4069
        %4133 = vmatpush1.msra.mxu0 %v4068
        %4134 = vmatprep.subr.mxu0 %v4071
        %4135 = vmatpush1.msra.mxu0 %v4070
        %4136 = vmatprep.subr.mxu0 %v4073
        %4137 = vmatpush1.msra.mxu0 %v4072
        %4138 = vmatprep.subr.mxu0 %v4075
        %4139 = vmatpush1.msra.mxu0 %v4074
        %4140 = vmatprep.subr.mxu0 %v4077
        %4141 = vmatpush1.msra.mxu0 %v4076
        %4142 = vmatprep.mubr.f32.mxu0 %v4011
        %4143 = vmatmul.mubr.f32.gmra.mrb[0].mxu0 %v4009
        %v4144 = vpop.f32.mrb[0].mxu0
        %v4145 = vadd.f32 0.0, %v4144
        %v4146 = vpop.f32.mrb[0].mxu0
        %v4147 = vadd.f32 0.0, %v4146
        %4148 = vdwg.mxu0
        %v4149 = vadd.f32 %v3938, %v4145
        %v4150 = vadd.f32 %v3939, %v4147
        %v4151 = vld [vmem:[%s8] sm:$0x3]
        %v4153 = vlaneseq
        %v4154 = vshrl.u32 %v4153, 7
        %v4155 = vsub.s32 0, %v4154
        %v4156 = vrot.slane %v4151, %v4155
        %v4157 = vlaneseq
        %v4158 = vshrl.u32 %v4157, 7
        %v4159 = vsub.s32 1, %v4158
        %v4160 = vrot.slane %v4151, %v4159
        %v4163 = vadd.f32 %v4149, %v4156
        %v4164 = vadd.f32 %v4150, %v4160
        %vm4165 = vcmp.gt.f32.partialorder %v4163, 0.0
        %vm4166 = vcmp.gt.f32.partialorder %v4164, 0.0
        %v4167 = vmul.f32 %v4163, 0.2
        %v4168 = vmul.f32 %v4164, 0.2
        %v4169 = vsel %vm4165, %v4163, %v4167
        %v4170 = vsel %vm4166, %v4164, %v4168
        %vm4171 = vcmask 31744
        %v4172 = vsel %vm4171, %v585, 0
        %vm4174 = vcmask 1043456
        %v4176 = vsel %vm4174, %v4169, 0
        %v4179 = vsel %vm4174, %v4170, 0
        %4181 = vmatprep.subr.mxu0 %v4179
        %4182 = vmatpush1.msra.mxu0 %v4176
        %4183 = vmatprep.subr.mxu0 0.0
        %4184 = vmatpush1.msra.mxu0 0.0
        %4185 = vmatprep.subr.mxu0 0.0
        %4186 = vmatpush1.msra.mxu0 0.0
        %4187 = vmatprep.subr.mxu0 0.0
        %4188 = vmatpush1.msra.mxu0 0.0
        %4189 = vmatprep.subr.mxu0 0.0
        %4190 = vmatpush1.msra.mxu0 0.0
        %4191 = vmatprep.subr.mxu0 0.0
        %4192 = vmatpush1.msra.mxu0 0.0
        %4193 = vmatprep.subr.mxu0 0.0
        %4194 = vmatpush1.msra.mxu0 0.0
        %4195 = vmatprep.subr.mxu0 0.0
        %4196 = vmatpush1.msra.mxu0 0.0
        %4197 = vmatprep.subr.mxu0 0.0
        %4198 = vmatpush1.msra.mxu0 0.0
        %4199 = vmatprep.subr.mxu0 0.0
        %4200 = vmatpush1.msra.mxu0 0.0
        %4201 = vmatprep.subr.mxu0 0.0
        %4202 = vmatpush1.msra.mxu0 0.0
        %4203 = vmatprep.subr.mxu0 0.0
        %4204 = vmatpush1.msra.mxu0 0.0
        %4205 = vmatprep.subr.mxu0 0.0
        %4206 = vmatpush1.msra.mxu0 0.0
        %4207 = vmatprep.subr.mxu0 0.0
        %4208 = vmatpush1.msra.mxu0 0.0
        %4209 = vmatprep.subr.mxu0 0.0
        %4210 = vmatpush1.msra.mxu0 0.0
        %4211 = vmatprep.subr.mxu0 0.0
        %4212 = vmatpush1.msra.mxu0 0.0
        %4213 = vmatprep.subr.mxu0 0.0
        %4214 = vmatpush1.msra.mxu0 0.0
        %4215 = vmatprep.subr.mxu0 0.0
        %4216 = vmatpush1.msra.mxu0 0.0
        %4217 = vmatprep.subr.mxu0 0.0
        %4218 = vmatpush1.msra.mxu0 0.0
        %4219 = vmatprep.subr.mxu0 0.0
        %4220 = vmatpush1.msra.mxu0 0.0
        %4221 = vmatprep.subr.mxu0 0.0
        %4222 = vmatpush1.msra.mxu0 0.0
        %4223 = vmatprep.subr.mxu0 0.0
        %4224 = vmatpush1.msra.mxu0 0.0
        %4225 = vmatprep.subr.mxu0 0.0
        %4226 = vmatpush1.msra.mxu0 0.0
        %4227 = vmatprep.subr.mxu0 0.0
        %4228 = vmatpush1.msra.mxu0 0.0
        %4229 = vmatprep.subr.mxu0 0.0
        %4230 = vmatpush1.msra.mxu0 0.0
        %4231 = vmatprep.subr.mxu0 0.0
        %4232 = vmatpush1.msra.mxu0 0.0
        %4233 = vmatprep.subr.mxu0 0.0
        %4234 = vmatpush1.msra.mxu0 0.0
        %4235 = vmatprep.subr.mxu0 0.0
        %4236 = vmatpush1.msra.mxu0 0.0
        %4237 = vmatprep.subr.mxu0 0.0
        %4238 = vmatpush1.msra.mxu0 0.0
        %4239 = vmatprep.subr.mxu0 0.0
        %4240 = vmatpush1.msra.mxu0 0.0
        %4241 = vmatprep.subr.mxu0 0.0
        %4242 = vmatpush1.msra.mxu0 0.0
        %4243 = vmatprep.subr.mxu0 0.0
        %4244 = vmatpush1.msra.mxu0 0.0
        %4245 = vmatprep.mubr.f32.mxu0 0.0
        %4246 = vmatmul.mubr.f32.gmra.mrb[0].mxu0 %v4172
        %v4247 = vpop.f32.mrb[0].mxu0
        %v4248 = vadd.f32 0.0, %v4247
        %v4249 = vpop.f32.mrb[0].mxu0
        %v4250 = vadd.f32 0.0, %v4249
        %4251 = vdwg.mxu0
        %v4252 = vld [vmem:[%s5] sm:$0xff]
        %v4253 = vld [vmem:[%s5 + $0x8] sm:$0xff]
        %v4254 = vld [vmem:[%s5 + $0x10] sm:$0xff]
        %v4255 = vld [vmem:[%s5 + $0x18] sm:$0xff]
        %v4256 = vld [vmem:[%s5 + $0x20] sm:$0xff]
        %v4257 = vld [vmem:[%s5 + $0x28] sm:$0xff]
        %v4258 = vld [vmem:[%s5 + $0x30] sm:$0xff]
        %v4259 = vld [vmem:[%s5 + $0x38] sm:$0xff]
        %v4260 = vld [vmem:[%s5 + $0x40] sm:$0xff]
        %v4261 = vld [vmem:[%s5 + $0x48] sm:$0xff]
        %v4262 = vld [vmem:[%s5 + $0x50] sm:$0xff]
        %v4263 = vld [vmem:[%s5 + $0x58] sm:$0xff]
        %v4264 = vld [vmem:[%s5 + $0x60] sm:$0xff]
        %v4265 = vld [vmem:[%s5 + $0x68] sm:$0xff]
        %v4266 = vld [vmem:[%s5 + $0x70] sm:$0xff]
        %v4267 = vld [vmem:[%s5 + $0x78] sm:$0xff]
        %v4268 = vld [vmem:[%s5 + $0x80] sm:$0xff]
        %v4269 = vld [vmem:[%s5 + $0x88] sm:$0xff]
        %v4270 = vld [vmem:[%s5 + $0x90] sm:$0xff]
        %v4271 = vld [vmem:[%s5 + $0x98] sm:$0xff]
        %v4272 = vld [vmem:[%s5 + $0xa0] sm:$0xff]
        %v4273 = vld [vmem:[%s5 + $0xa8] sm:$0xff]
        %v4274 = vld [vmem:[%s5 + $0xb0] sm:$0xff]
        %v4275 = vld [vmem:[%s5 + $0xb8] sm:$0xff]
        %v4276 = vld [vmem:[%s5 + $0xc0] sm:$0xff]
        %v4277 = vld [vmem:[%s5 + $0xc8] sm:$0xff]
        %v4278 = vld [vmem:[%s5 + $0xd0] sm:$0xff]
        %v4279 = vld [vmem:[%s5 + $0xd8] sm:$0xff]
        %v4280 = vld [vmem:[%s5 + $0xe0] sm:$0xff]
        %v4281 = vld [vmem:[%s5 + $0xe8] sm:$0xff]
        %v4282 = vld [vmem:[%s5 + $0xf0] sm:$0xff]
        %v4283 = vld [vmem:[%s5 + $0xf8] sm:$0xff]
        %v4284 = vadd.s32 %v407, 1
        %vm4285 = vcmp.eq.s32.totalorder %v406, %v4284
        %v4286 = vsel %vm4285, 1, 0
        %v4287 = vcvt.s32.f32 %v4286
        %v4289 = vsel %vm4171, %v4287, 0
        %4291 = vmatprep.subr.mxu0 %v4179
        %4292 = vmatpush1.msra.mxu0 %v4176
        %4293 = vmatprep.subr.mxu0 0.0
        %4294 = vmatpush1.msra.mxu0 0.0
        %4295 = vmatprep.subr.mxu0 0.0
        %4296 = vmatpush1.msra.mxu0 0.0
        %4297 = vmatprep.subr.mxu0 0.0
        %4298 = vmatpush1.msra.mxu0 0.0
        %4299 = vmatprep.subr.mxu0 0.0
        %4300 = vmatpush1.msra.mxu0 0.0
        %4301 = vmatprep.subr.mxu0 0.0
        %4302 = vmatpush1.msra.mxu0 0.0
        %4303 = vmatprep.subr.mxu0 0.0
        %4304 = vmatpush1.msra.mxu0 0.0
        %4305 = vmatprep.subr.mxu0 0.0
        %4306 = vmatpush1.msra.mxu0 0.0
        %4307 = vmatprep.subr.mxu0 0.0
        %4308 = vmatpush1.msra.mxu0 0.0
        %4309 = vmatprep.subr.mxu0 0.0
        %4310 = vmatpush1.msra.mxu0 0.0
        %4311 = vmatprep.subr.mxu0 0.0
        %4312 = vmatpush1.msra.mxu0 0.0
        %4313 = vmatprep.subr.mxu0 0.0
        %4314 = vmatpush1.msra.mxu0 0.0
        %4315 = vmatprep.subr.mxu0 0.0
        %4316 = vmatpush1.msra.mxu0 0.0
        %4317 = vmatprep.subr.mxu0 0.0
        %4318 = vmatpush1.msra.mxu0 0.0
        %4319 = vmatprep.subr.mxu0 0.0
        %4320 = vmatpush1.msra.mxu0 0.0
        %4321 = vmatprep.subr.mxu0 0.0
        %4322 = vmatpush1.msra.mxu0 0.0
        %4323 = vmatprep.subr.mxu0 0.0
        %4324 = vmatpush1.msra.mxu0 0.0
        %4325 = vmatprep.subr.mxu0 0.0
        %4326 = vmatpush1.msra.mxu0 0.0
        %4327 = vmatprep.subr.mxu0 0.0
        %4328 = vmatpush1.msra.mxu0 0.0
        %4329 = vmatprep.subr.mxu0 0.0
        %4330 = vmatpush1.msra.mxu0 0.0
        %4331 = vmatprep.subr.mxu0 0.0
        %4332 = vmatpush1.msra.mxu0 0.0
        %4333 = vmatprep.subr.mxu0 0.0
        %4334 = vmatpush1.msra.mxu0 0.0
        %4335 = vmatprep.subr.mxu0 0.0
        %4336 = vmatpush1.msra.mxu0 0.0
        %4337 = vmatprep.subr.mxu0 0.0
        %4338 = vmatpush1.msra.mxu0 0.0
        %4339 = vmatprep.subr.mxu0 0.0
        %4340 = vmatpush1.msra.mxu0 0.0
        %4341 = vmatprep.subr.mxu0 0.0
        %4342 = vmatpush1.msra.mxu0 0.0
        %4343 = vmatprep.subr.mxu0 0.0
        %4344 = vmatpush1.msra.mxu0 0.0
        %4345 = vmatprep.subr.mxu0 0.0
        %4346 = vmatpush1.msra.mxu0 0.0
        %4347 = vmatprep.subr.mxu0 0.0
        %4348 = vmatpush1.msra.mxu0 0.0
        %4349 = vmatprep.subr.mxu0 0.0
        %4350 = vmatpush1.msra.mxu0 0.0
        %4351 = vmatprep.subr.mxu0 0.0
        %4352 = vmatpush1.msra.mxu0 0.0
        %4353 = vmatprep.subr.mxu0 0.0
        %4354 = vmatpush1.msra.mxu0 0.0
        %4355 = vmatprep.mubr.f32.mxu0 0.0
        %4356 = vmatmul.mubr.f32.gmra.mrb[0].mxu0 %v4289
        %v4357 = vpop.f32.mrb[0].mxu0
        %v4358 = vadd.f32 0.0, %v4357
        %v4359 = vpop.f32.mrb[0].mxu0
        %v4360 = vadd.f32 0.0, %v4359
        %4361 = vdwg.mxu0
        %s4362 = scalar_lea.vmem %s5, 256
        %v4363 = vld [vmem:[%s4362] sm:$0xff]
        %v4364 = vld [vmem:[%s4362 + $0x8] sm:$0xff]
        %v4365 = vld [vmem:[%s4362 + $0x10] sm:$0xff]
        %v4366 = vld [vmem:[%s4362 + $0x18] sm:$0xff]
        %v4367 = vld [vmem:[%s4362 + $0x20] sm:$0xff]
        %v4368 = vld [vmem:[%s4362 + $0x28] sm:$0xff]
        %v4369 = vld [vmem:[%s4362 + $0x30] sm:$0xff]
        %v4370 = vld [vmem:[%s4362 + $0x38] sm:$0xff]
        %v4371 = vld [vmem:[%s4362 + $0x40] sm:$0xff]
        %v4372 = vld [vmem:[%s4362 + $0x48] sm:$0xff]
        %v4373 = vld [vmem:[%s4362 + $0x50] sm:$0xff]
        %v4374 = vld [vmem:[%s4362 + $0x58] sm:$0xff]
        %v4375 = vld [vmem:[%s4362 + $0x60] sm:$0xff]
        %v4376 = vld [vmem:[%s4362 + $0x68] sm:$0xff]
        %v4377 = vld [vmem:[%s4362 + $0x70] sm:$0xff]
        %v4378 = vld [vmem:[%s4362 + $0x78] sm:$0xff]
        %v4379 = vld [vmem:[%s4362 + $0x80] sm:$0xff]
        %v4380 = vld [vmem:[%s4362 + $0x88] sm:$0xff]
        %v4381 = vld [vmem:[%s4362 + $0x90] sm:$0xff]
        %v4382 = vld [vmem:[%s4362 + $0x98] sm:$0xff]
        %v4383 = vld [vmem:[%s4362 + $0xa0] sm:$0xff]
        %v4384 = vld [vmem:[%s4362 + $0xa8] sm:$0xff]
        %v4385 = vld [vmem:[%s4362 + $0xb0] sm:$0xff]
        %v4386 = vld [vmem:[%s4362 + $0xb8] sm:$0xff]
        %v4387 = vld [vmem:[%s4362 + $0xc0] sm:$0xff]
        %v4388 = vld [vmem:[%s4362 + $0xc8] sm:$0xff]
        %v4389 = vld [vmem:[%s4362 + $0xd0] sm:$0xff]
        %v4390 = vld [vmem:[%s4362 + $0xd8] sm:$0xff]
        %v4391 = vld [vmem:[%s4362 + $0xe0] sm:$0xff]
        %v4392 = vld [vmem:[%s4362 + $0xe8] sm:$0xff]
        %v4393 = vld [vmem:[%s4362 + $0xf0] sm:$0xff]
        %v4394 = vld [vmem:[%s4362 + $0xf8] sm:$0xff]
        %4395 = vmatprep.subr.mxu0 0.0
        %4396 = vmatpush1.msra.mxu0 %v4363
        %4397 = vmatprep.subr.mxu0 0.0
        %4398 = vmatpush1.msra.mxu0 %v4364
        %4399 = vmatprep.subr.mxu0 0.0
        %4400 = vmatpush1.msra.mxu0 %v4365
        %4401 = vmatprep.subr.mxu0 0.0
        %4402 = vmatpush1.msra.mxu0 %v4366
        %4403 = vmatprep.subr.mxu0 0.0
        %4404 = vmatpush1.msra.mxu0 %v4367
        %4405 = vmatprep.subr.mxu0 0.0
        %4406 = vmatpush1.msra.mxu0 %v4368
        %4407 = vmatprep.subr.mxu0 0.0
        %4408 = vmatpush1.msra.mxu0 %v4369
        %4409 = vmatprep.subr.mxu0 0.0
        %4410 = vmatpush1.msra.mxu0 %v4370
        %4411 = vmatprep.subr.mxu0 0.0
        %4412 = vmatpush1.msra.mxu0 %v4371
        %4413 = vmatprep.subr.mxu0 0.0
        %4414 = vmatpush1.msra.mxu0 %v4372
        %4415 = vmatprep.subr.mxu0 0.0
        %4416 = vmatpush1.msra.mxu0 %v4373
        %4417 = vmatprep.subr.mxu0 0.0
        %4418 = vmatpush1.msra.mxu0 %v4374
        %4419 = vmatprep.subr.mxu0 0.0
        %4420 = vmatpush1.msra.mxu0 %v4375
        %4421 = vmatprep.subr.mxu0 0.0
        %4422 = vmatpush1.msra.mxu0 %v4376
        %4423 = vmatprep.subr.mxu0 0.0
        %4424 = vmatpush1.msra.mxu0 %v4377
        %4425 = vmatprep.subr.mxu0 0.0
        %4426 = vmatpush1.msra.mxu0 %v4378
        %4427 = vmatprep.subr.mxu0 0.0
        %4428 = vmatpush1.msra.mxu0 %v4379
        %4429 = vmatprep.subr.mxu0 0.0
        %4430 = vmatpush1.msra.mxu0 %v4380
        %4431 = vmatprep.subr.mxu0 0.0
        %4432 = vmatpush1.msra.mxu0 %v4381
        %4433 = vmatprep.subr.mxu0 0.0
        %4434 = vmatpush1.msra.mxu0 %v4382
        %4435 = vmatprep.subr.mxu0 0.0
        %4436 = vmatpush1.msra.mxu0 %v4383
        %4437 = vmatprep.subr.mxu0 0.0
        %4438 = vmatpush1.msra.mxu0 %v4384
        %4439 = vmatprep.subr.mxu0 0.0
        %4440 = vmatpush1.msra.mxu0 %v4385
        %4441 = vmatprep.subr.mxu0 0.0
        %4442 = vmatpush1.msra.mxu0 %v4386
        %4443 = vmatprep.subr.mxu0 0.0
        %4444 = vmatpush1.msra.mxu0 %v4387
        %4445 = vmatprep.subr.mxu0 0.0
        %4446 = vmatpush1.msra.mxu0 %v4388
        %4447 = vmatprep.subr.mxu0 0.0
        %4448 = vmatpush1.msra.mxu0 %v4389
        %4449 = vmatprep.subr.mxu0 0.0
        %4450 = vmatpush1.msra.mxu0 %v4390
        %4451 = vmatprep.subr.mxu0 0.0
        %4452 = vmatpush1.msra.mxu0 %v4391
        %4453 = vmatprep.subr.mxu0 0.0
        %4454 = vmatpush1.msra.mxu0 %v4392
        %4455 = vmatprep.subr.mxu0 0.0
        %4456 = vmatpush1.msra.mxu0 %v4393
        %4457 = vmatprep.subr.mxu0 0.0
        %4458 = vmatpush1.msra.mxu0 %v4394
        %4459 = vmatprep.mubr.f32.mxu0 %v4360
        %4460 = vmatmul.mubr.f32.gmra.mrb[0].mxu0 %v4358
        %v4461 = vpop.f32.mrb[0].mxu0
        %v4462 = vadd.f32 0.0, %v4461
        %v4463 = vpop.f32.mrb[0].mxu0
        %4464 = vdwg.mxu0
        %4465 = vmatprep.subr.mxu0 0.0
        %4466 = vmatpush1.msra.mxu0 %v4252
        %4467 = vmatprep.subr.mxu0 0.0
        %4468 = vmatpush1.msra.mxu0 %v4253
        %4469 = vmatprep.subr.mxu0 0.0
        %4470 = vmatpush1.msra.mxu0 %v4254
        %4471 = vmatprep.subr.mxu0 0.0
        %4472 = vmatpush1.msra.mxu0 %v4255
        %4473 = vmatprep.subr.mxu0 0.0
        %4474 = vmatpush1.msra.mxu0 %v4256
        %4475 = vmatprep.subr.mxu0 0.0
        %4476 = vmatpush1.msra.mxu0 %v4257
        %4477 = vmatprep.subr.mxu0 0.0
        %4478 = vmatpush1.msra.mxu0 %v4258
        %4479 = vmatprep.subr.mxu0 0.0
        %4480 = vmatpush1.msra.mxu0 %v4259
        %4481 = vmatprep.subr.mxu0 0.0
        %4482 = vmatpush1.msra.mxu0 %v4260
        %4483 = vmatprep.subr.mxu0 0.0
        %4484 = vmatpush1.msra.mxu0 %v4261
        %4485 = vmatprep.subr.mxu0 0.0
        %4486 = vmatpush1.msra.mxu0 %v4262
        %4487 = vmatprep.subr.mxu0 0.0
        %4488 = vmatpush1.msra.mxu0 %v4263
        %4489 = vmatprep.subr.mxu0 0.0
        %4490 = vmatpush1.msra.mxu0 %v4264
        %4491 = vmatprep.subr.mxu0 0.0
        %4492 = vmatpush1.msra.mxu0 %v4265
        %4493 = vmatprep.subr.mxu0 0.0
        %4494 = vmatpush1.msra.mxu0 %v4266
        %4495 = vmatprep.subr.mxu0 0.0
        %4496 = vmatpush1.msra.mxu0 %v4267
        %4497 = vmatprep.subr.mxu0 0.0
        %4498 = vmatpush1.msra.mxu0 %v4268
        %4499 = vmatprep.subr.mxu0 0.0
        %4500 = vmatpush1.msra.mxu0 %v4269
        %4501 = vmatprep.subr.mxu0 0.0
        %4502 = vmatpush1.msra.mxu0 %v4270
        %4503 = vmatprep.subr.mxu0 0.0
        %4504 = vmatpush1.msra.mxu0 %v4271
        %4505 = vmatprep.subr.mxu0 0.0
        %4506 = vmatpush1.msra.mxu0 %v4272
        %4507 = vmatprep.subr.mxu0 0.0
        %4508 = vmatpush1.msra.mxu0 %v4273
        %4509 = vmatprep.subr.mxu0 0.0
        %4510 = vmatpush1.msra.mxu0 %v4274
        %4511 = vmatprep.subr.mxu0 0.0
        %4512 = vmatpush1.msra.mxu0 %v4275
        %4513 = vmatprep.subr.mxu0 0.0
        %4514 = vmatpush1.msra.mxu0 %v4276
        %4515 = vmatprep.subr.mxu0 0.0
        %4516 = vmatpush1.msra.mxu0 %v4277
        %4517 = vmatprep.subr.mxu0 0.0
        %4518 = vmatpush1.msra.mxu0 %v4278
        %4519 = vmatprep.subr.mxu0 0.0
        %4520 = vmatpush1.msra.mxu0 %v4279
        %4521 = vmatprep.subr.mxu0 0.0
        %4522 = vmatpush1.msra.mxu0 %v4280
        %4523 = vmatprep.subr.mxu0 0.0
        %4524 = vmatpush1.msra.mxu0 %v4281
        %4525 = vmatprep.subr.mxu0 0.0
        %4526 = vmatpush1.msra.mxu0 %v4282
        %4527 = vmatprep.subr.mxu0 0.0
        %4528 = vmatpush1.msra.mxu0 %v4283
        %4529 = vmatprep.mubr.f32.mxu0 %v4250
        %4530 = vmatmul.mubr.f32.gmra.mrb[0].mxu0 %v4248
        %v4531 = vpop.f32.mrb[0].mxu0
        %v4532 = vadd.f32 %v4462, %v4531
        %v4533 = vpop.f32.mrb[0].mxu0
        %4534 = vdwg.mxu0
        %vm4535 = vcmp.eq.s32.totalorder %v406, %v941
        %v4536 = vsel %vm4535, 1, 0
        %v4537 = vcvt.s32.f32 %v4536
        %v4539 = vsel %vm4171, %v4537, 0
        %4541 = vmatprep.subr.mxu0 %v4179
        %4542 = vmatpush1.msra.mxu0 %v4176
        %4543 = vmatprep.subr.mxu0 0.0
        %4544 = vmatpush1.msra.mxu0 0.0
        %4545 = vmatprep.subr.mxu0 0.0
        %4546 = vmatpush1.msra.mxu0 0.0
        %4547 = vmatprep.subr.mxu0 0.0
        %4548 = vmatpush1.msra.mxu0 0.0
        %4549 = vmatprep.subr.mxu0 0.0
        %4550 = vmatpush1.msra.mxu0 0.0
        %4551 = vmatprep.subr.mxu0 0.0
        %4552 = vmatpush1.msra.mxu0 0.0
        %4553 = vmatprep.subr.mxu0 0.0
        %4554 = vmatpush1.msra.mxu0 0.0
        %4555 = vmatprep.subr.mxu0 0.0
        %4556 = vmatpush1.msra.mxu0 0.0
        %4557 = vmatprep.subr.mxu0 0.0
        %4558 = vmatpush1.msra.mxu0 0.0
        %4559 = vmatprep.subr.mxu0 0.0
        %4560 = vmatpush1.msra.mxu0 0.0
        %4561 = vmatprep.subr.mxu0 0.0
        %4562 = vmatpush1.msra.mxu0 0.0
        %4563 = vmatprep.subr.mxu0 0.0
        %4564 = vmatpush1.msra.mxu0 0.0
        %4565 = vmatprep.subr.mxu0 0.0
        %4566 = vmatpush1.msra.mxu0 0.0
        %4567 = vmatprep.subr.mxu0 0.0
        %4568 = vmatpush1.msra.mxu0 0.0
        %4569 = vmatprep.subr.mxu0 0.0
        %4570 = vmatpush1.msra.mxu0 0.0
        %4571 = vmatprep.subr.mxu0 0.0
        %4572 = vmatpush1.msra.mxu0 0.0
        %4573 = vmatprep.subr.mxu0 0.0
        %4574 = vmatpush1.msra.mxu0 0.0
        %4575 = vmatprep.subr.mxu0 0.0
        %4576 = vmatpush1.msra.mxu0 0.0
        %4577 = vmatprep.subr.mxu0 0.0
        %4578 = vmatpush1.msra.mxu0 0.0
        %4579 = vmatprep.subr.mxu0 0.0
        %4580 = vmatpush1.msra.mxu0 0.0
        %4581 = vmatprep.subr.mxu0 0.0
        %4582 = vmatpush1.msra.mxu0 0.0
        %4583 = vmatprep.subr.mxu0 0.0
        %4584 = vmatpush1.msra.mxu0 0.0
        %4585 = vmatprep.subr.mxu0 0.0
        %4586 = vmatpush1.msra.mxu0 0.0
        %4587 = vmatprep.subr.mxu0 0.0
        %4588 = vmatpush1.msra.mxu0 0.0
        %4589 = vmatprep.subr.mxu0 0.0
        %4590 = vmatpush1.msra.mxu0 0.0
        %4591 = vmatprep.subr.mxu0 0.0
        %4592 = vmatpush1.msra.mxu0 0.0
        %4593 = vmatprep.subr.mxu0 0.0
        %4594 = vmatpush1.msra.mxu0 0.0
        %4595 = vmatprep.subr.mxu0 0.0
        %4596 = vmatpush1.msra.mxu0 0.0
        %4597 = vmatprep.subr.mxu0 0.0
        %4598 = vmatpush1.msra.mxu0 0.0
        %4599 = vmatprep.subr.mxu0 0.0
        %4600 = vmatpush1.msra.mxu0 0.0
        %4601 = vmatprep.subr.mxu0 0.0
        %4602 = vmatpush1.msra.mxu0 0.0
        %4603 = vmatprep.subr.mxu0 0.0
        %4604 = vmatpush1.msra.mxu0 0.0
        %4605 = vmatprep.mubr.f32.mxu0 0.0
        %4606 = vmatmul.mubr.f32.gmra.mrb[0].mxu0 %v4539
        %v4607 = vpop.f32.mrb[0].mxu0
        %v4608 = vadd.f32 0.0, %v4607
        %v4609 = vpop.f32.mrb[0].mxu0
        %v4610 = vadd.f32 0.0, %v4609
        %4611 = vdwg.mxu0
        %s4612 = scalar_lea.vmem %s5, 512
        %v4613 = vld [vmem:[%s4612] sm:$0xff]
        %v4614 = vld [vmem:[%s4612 + $0x8] sm:$0xff]
        %v4615 = vld [vmem:[%s4612 + $0x10] sm:$0xff]
        %v4616 = vld [vmem:[%s4612 + $0x18] sm:$0xff]
        %v4617 = vld [vmem:[%s4612 + $0x20] sm:$0xff]
        %v4618 = vld [vmem:[%s4612 + $0x28] sm:$0xff]
        %v4619 = vld [vmem:[%s4612 + $0x30] sm:$0xff]
        %v4620 = vld [vmem:[%s4612 + $0x38] sm:$0xff]
        %v4621 = vld [vmem:[%s4612 + $0x40] sm:$0xff]
        %v4622 = vld [vmem:[%s4612 + $0x48] sm:$0xff]
        %v4623 = vld [vmem:[%s4612 + $0x50] sm:$0xff]
        %v4624 = vld [vmem:[%s4612 + $0x58] sm:$0xff]
        %v4625 = vld [vmem:[%s4612 + $0x60] sm:$0xff]
        %v4626 = vld [vmem:[%s4612 + $0x68] sm:$0xff]
        %v4627 = vld [vmem:[%s4612 + $0x70] sm:$0xff]
        %v4628 = vld [vmem:[%s4612 + $0x78] sm:$0xff]
        %v4629 = vld [vmem:[%s4612 + $0x80] sm:$0xff]
        %v4630 = vld [vmem:[%s4612 + $0x88] sm:$0xff]
        %v4631 = vld [vmem:[%s4612 + $0x90] sm:$0xff]
        %v4632 = vld [vmem:[%s4612 + $0x98] sm:$0xff]
        %v4633 = vld [vmem:[%s4612 + $0xa0] sm:$0xff]
        %v4634 = vld [vmem:[%s4612 + $0xa8] sm:$0xff]
        %v4635 = vld [vmem:[%s4612 + $0xb0] sm:$0xff]
        %v4636 = vld [vmem:[%s4612 + $0xb8] sm:$0xff]
        %v4637 = vld [vmem:[%s4612 + $0xc0] sm:$0xff]
        %v4638 = vld [vmem:[%s4612 + $0xc8] sm:$0xff]
        %v4639 = vld [vmem:[%s4612 + $0xd0] sm:$0xff]
        %v4640 = vld [vmem:[%s4612 + $0xd8] sm:$0xff]
        %v4641 = vld [vmem:[%s4612 + $0xe0] sm:$0xff]
        %v4642 = vld [vmem:[%s4612 + $0xe8] sm:$0xff]
        %v4643 = vld [vmem:[%s4612 + $0xf0] sm:$0xff]
        %v4644 = vld [vmem:[%s4612 + $0xf8] sm:$0xff]
        %4645 = vmatprep.subr.mxu0 0.0
        %4646 = vmatpush1.msra.mxu0 %v4613
        %4647 = vmatprep.subr.mxu0 0.0
        %4648 = vmatpush1.msra.mxu0 %v4614
        %4649 = vmatprep.subr.mxu0 0.0
        %4650 = vmatpush1.msra.mxu0 %v4615
        %4651 = vmatprep.subr.mxu0 0.0
        %4652 = vmatpush1.msra.mxu0 %v4616
        %4653 = vmatprep.subr.mxu0 0.0
        %4654 = vmatpush1.msra.mxu0 %v4617
        %4655 = vmatprep.subr.mxu0 0.0
        %4656 = vmatpush1.msra.mxu0 %v4618
        %4657 = vmatprep.subr.mxu0 0.0
        %4658 = vmatpush1.msra.mxu0 %v4619
        %4659 = vmatprep.subr.mxu0 0.0
        %4660 = vmatpush1.msra.mxu0 %v4620
        %4661 = vmatprep.subr.mxu0 0.0
        %4662 = vmatpush1.msra.mxu0 %v4621
        %4663 = vmatprep.subr.mxu0 0.0
        %4664 = vmatpush1.msra.mxu0 %v4622
        %4665 = vmatprep.subr.mxu0 0.0
        %4666 = vmatpush1.msra.mxu0 %v4623
        %4667 = vmatprep.subr.mxu0 0.0
        %4668 = vmatpush1.msra.mxu0 %v4624
        %4669 = vmatprep.subr.mxu0 0.0
        %4670 = vmatpush1.msra.mxu0 %v4625
        %4671 = vmatprep.subr.mxu0 0.0
        %4672 = vmatpush1.msra.mxu0 %v4626
        %4673 = vmatprep.subr.mxu0 0.0
        %4674 = vmatpush1.msra.mxu0 %v4627
        %4675 = vmatprep.subr.mxu0 0.0
        %4676 = vmatpush1.msra.mxu0 %v4628
        %4677 = vmatprep.subr.mxu0 0.0
        %4678 = vmatpush1.msra.mxu0 %v4629
        %4679 = vmatprep.subr.mxu0 0.0
        %4680 = vmatpush1.msra.mxu0 %v4630
        %4681 = vmatprep.subr.mxu0 0.0
        %4682 = vmatpush1.msra.mxu0 %v4631
        %4683 = vmatprep.subr.mxu0 0.0
        %4684 = vmatpush1.msra.mxu0 %v4632
        %4685 = vmatprep.subr.mxu0 0.0
        %4686 = vmatpush1.msra.mxu0 %v4633
        %4687 = vmatprep.subr.mxu0 0.0
        %4688 = vmatpush1.msra.mxu0 %v4634
        %4689 = vmatprep.subr.mxu0 0.0
        %4690 = vmatpush1.msra.mxu0 %v4635
        %4691 = vmatprep.subr.mxu0 0.0
        %4692 = vmatpush1.msra.mxu0 %v4636
        %4693 = vmatprep.subr.mxu0 0.0
        %4694 = vmatpush1.msra.mxu0 %v4637
        %4695 = vmatprep.subr.mxu0 0.0
        %4696 = vmatpush1.msra.mxu0 %v4638
        %4697 = vmatprep.subr.mxu0 0.0
        %4698 = vmatpush1.msra.mxu0 %v4639
        %4699 = vmatprep.subr.mxu0 0.0
        %4700 = vmatpush1.msra.mxu0 %v4640
        %4701 = vmatprep.subr.mxu0 0.0
        %4702 = vmatpush1.msra.mxu0 %v4641
        %4703 = vmatprep.subr.mxu0 0.0
        %4704 = vmatpush1.msra.mxu0 %v4642
        %4705 = vmatprep.subr.mxu0 0.0
        %4706 = vmatpush1.msra.mxu0 %v4643
        %4707 = vmatprep.subr.mxu0 0.0
        %4708 = vmatpush1.msra.mxu0 %v4644
        %4709 = vmatprep.mubr.f32.mxu0 %v4610
        %4710 = vmatmul.mubr.f32.gmra.mrb[0].mxu0 %v4608
        %v4711 = vpop.f32.mrb[0].mxu0
        %v4712 = vadd.f32 0.0, %v4711
        %v4713 = vpop.f32.mrb[0].mxu0
        %4714 = vdwg.mxu0
        %v4715 = vadd.f32 %v4532, %v4712
        %vm4716 = vcmp.eq.s32.totalorder %v406, %v1220
        %v4717 = vsel %vm4716, 1, 0
        %v4718 = vcvt.s32.f32 %v4717
        %v4720 = vsel %vm4171, %v4718, 0
        %4722 = vmatprep.subr.mxu0 %v4179
        %4723 = vmatpush1.msra.mxu0 %v4176
        %4724 = vmatprep.subr.mxu0 0.0
        %4725 = vmatpush1.msra.mxu0 0.0
        %4726 = vmatprep.subr.mxu0 0.0
        %4727 = vmatpush1.msra.mxu0 0.0
        %4728 = vmatprep.subr.mxu0 0.0
        %4729 = vmatpush1.msra.mxu0 0.0
        %4730 = vmatprep.subr.mxu0 0.0
        %4731 = vmatpush1.msra.mxu0 0.0
        %4732 = vmatprep.subr.mxu0 0.0
        %4733 = vmatpush1.msra.mxu0 0.0
        %4734 = vmatprep.subr.mxu0 0.0
        %4735 = vmatpush1.msra.mxu0 0.0
        %4736 = vmatprep.subr.mxu0 0.0
        %4737 = vmatpush1.msra.mxu0 0.0
        %4738 = vmatprep.subr.mxu0 0.0
        %4739 = vmatpush1.msra.mxu0 0.0
        %4740 = vmatprep.subr.mxu0 0.0
        %4741 = vmatpush1.msra.mxu0 0.0
        %4742 = vmatprep.subr.mxu0 0.0
        %4743 = vmatpush1.msra.mxu0 0.0
        %4744 = vmatprep.subr.mxu0 0.0
        %4745 = vmatpush1.msra.mxu0 0.0
        %4746 = vmatprep.subr.mxu0 0.0
        %4747 = vmatpush1.msra.mxu0 0.0
        %4748 = vmatprep.subr.mxu0 0.0
        %4749 = vmatpush1.msra.mxu0 0.0
        %4750 = vmatprep.subr.mxu0 0.0
        %4751 = vmatpush1.msra.mxu0 0.0
        %4752 = vmatprep.subr.mxu0 0.0
        %4753 = vmatpush1.msra.mxu0 0.0
        %4754 = vmatprep.subr.mxu0 0.0
        %4755 = vmatpush1.msra.mxu0 0.0
        %4756 = vmatprep.subr.mxu0 0.0
        %4757 = vmatpush1.msra.mxu0 0.0
        %4758 = vmatprep.subr.mxu0 0.0
        %4759 = vmatpush1.msra.mxu0 0.0
        %4760 = vmatprep.subr.mxu0 0.0
        %4761 = vmatpush1.msra.mxu0 0.0
        %4762 = vmatprep.subr.mxu0 0.0
        %4763 = vmatpush1.msra.mxu0 0.0
        %4764 = vmatprep.subr.mxu0 0.0
        %4765 = vmatpush1.msra.mxu0 0.0
        %4766 = vmatprep.subr.mxu0 0.0
        %4767 = vmatpush1.msra.mxu0 0.0
        %4768 = vmatprep.subr.mxu0 0.0
        %4769 = vmatpush1.msra.mxu0 0.0
        %4770 = vmatprep.subr.mxu0 0.0
        %4771 = vmatpush1.msra.mxu0 0.0
        %4772 = vmatprep.subr.mxu0 0.0
        %4773 = vmatpush1.msra.mxu0 0.0
        %4774 = vmatprep.subr.mxu0 0.0
        %4775 = vmatpush1.msra.mxu0 0.0
        %4776 = vmatprep.subr.mxu0 0.0
        %4777 = vmatpush1.msra.mxu0 0.0
        %4778 = vmatprep.subr.mxu0 0.0
        %4779 = vmatpush1.msra.mxu0 0.0
        %4780 = vmatprep.subr.mxu0 0.0
        %4781 = vmatpush1.msra.mxu0 0.0
        %4782 = vmatprep.subr.mxu0 0.0
        %4783 = vmatpush1.msra.mxu0 0.0
        %4784 = vmatprep.subr.mxu0 0.0
        %4785 = vmatpush1.msra.mxu0 0.0
        %4786 = vmatprep.mubr.f32.mxu0 0.0
        %4787 = vmatmul.mubr.f32.gmra.mrb[0].mxu0 %v4720
        %v4788 = vpop.f32.mrb[0].mxu0
        %v4789 = vadd.f32 0.0, %v4788
        %v4790 = vpop.f32.mrb[0].mxu0
        %v4791 = vadd.f32 0.0, %v4790
        %4792 = vdwg.mxu0
        %s4793 = scalar_lea.vmem %s5, 768
        %v4794 = vld [vmem:[%s4793] sm:$0xff]
        %v4795 = vld [vmem:[%s4793 + $0x8] sm:$0xff]
        %v4796 = vld [vmem:[%s4793 + $0x10] sm:$0xff]
        %v4797 = vld [vmem:[%s4793 + $0x18] sm:$0xff]
        %v4798 = vld [vmem:[%s4793 + $0x20] sm:$0xff]
        %v4799 = vld [vmem:[%s4793 + $0x28] sm:$0xff]
        %v4800 = vld [vmem:[%s4793 + $0x30] sm:$0xff]
        %v4801 = vld [vmem:[%s4793 + $0x38] sm:$0xff]
        %v4802 = vld [vmem:[%s4793 + $0x40] sm:$0xff]
        %v4803 = vld [vmem:[%s4793 + $0x48] sm:$0xff]
        %v4804 = vld [vmem:[%s4793 + $0x50] sm:$0xff]
        %v4805 = vld [vmem:[%s4793 + $0x58] sm:$0xff]
        %v4806 = vld [vmem:[%s4793 + $0x60] sm:$0xff]
        %v4807 = vld [vmem:[%s4793 + $0x68] sm:$0xff]
        %v4808 = vld [vmem:[%s4793 + $0x70] sm:$0xff]
        %v4809 = vld [vmem:[%s4793 + $0x78] sm:$0xff]
        %v4810 = vld [vmem:[%s4793 + $0x80] sm:$0xff]
        %v4811 = vld [vmem:[%s4793 + $0x88] sm:$0xff]
        %v4812 = vld [vmem:[%s4793 + $0x90] sm:$0xff]
        %v4813 = vld [vmem:[%s4793 + $0x98] sm:$0xff]
        %v4814 = vld [vmem:[%s4793 + $0xa0] sm:$0xff]
        %v4815 = vld [vmem:[%s4793 + $0xa8] sm:$0xff]
        %v4816 = vld [vmem:[%s4793 + $0xb0] sm:$0xff]
        %v4817 = vld [vmem:[%s4793 + $0xb8] sm:$0xff]
        %v4818 = vld [vmem:[%s4793 + $0xc0] sm:$0xff]
        %v4819 = vld [vmem:[%s4793 + $0xc8] sm:$0xff]
        %v4820 = vld [vmem:[%s4793 + $0xd0] sm:$0xff]
        %v4821 = vld [vmem:[%s4793 + $0xd8] sm:$0xff]
        %v4822 = vld [vmem:[%s4793 + $0xe0] sm:$0xff]
        %v4823 = vld [vmem:[%s4793 + $0xe8] sm:$0xff]
        %v4824 = vld [vmem:[%s4793 + $0xf0] sm:$0xff]
        %v4825 = vld [vmem:[%s4793 + $0xf8] sm:$0xff]
        %4826 = vmatprep.subr.mxu0 0.0
        %4827 = vmatpush1.msra.mxu0 %v4794
        %4828 = vmatprep.subr.mxu0 0.0
        %4829 = vmatpush1.msra.mxu0 %v4795
        %4830 = vmatprep.subr.mxu0 0.0
        %4831 = vmatpush1.msra.mxu0 %v4796
        %4832 = vmatprep.subr.mxu0 0.0
        %4833 = vmatpush1.msra.mxu0 %v4797
        %4834 = vmatprep.subr.mxu0 0.0
        %4835 = vmatpush1.msra.mxu0 %v4798
        %4836 = vmatprep.subr.mxu0 0.0
        %4837 = vmatpush1.msra.mxu0 %v4799
        %4838 = vmatprep.subr.mxu0 0.0
        %4839 = vmatpush1.msra.mxu0 %v4800
        %4840 = vmatprep.subr.mxu0 0.0
        %4841 = vmatpush1.msra.mxu0 %v4801
        %4842 = vmatprep.subr.mxu0 0.0
        %4843 = vmatpush1.msra.mxu0 %v4802
        %4844 = vmatprep.subr.mxu0 0.0
        %4845 = vmatpush1.msra.mxu0 %v4803
        %4846 = vmatprep.subr.mxu0 0.0
        %4847 = vmatpush1.msra.mxu0 %v4804
        %4848 = vmatprep.subr.mxu0 0.0
        %4849 = vmatpush1.msra.mxu0 %v4805
        %4850 = vmatprep.subr.mxu0 0.0
        %4851 = vmatpush1.msra.mxu0 %v4806
        %4852 = vmatprep.subr.mxu0 0.0
        %4853 = vmatpush1.msra.mxu0 %v4807
        %4854 = vmatprep.subr.mxu0 0.0
        %4855 = vmatpush1.msra.mxu0 %v4808
        %4856 = vmatprep.subr.mxu0 0.0
        %4857 = vmatpush1.msra.mxu0 %v4809
        %4858 = vmatprep.subr.mxu0 0.0
        %4859 = vmatpush1.msra.mxu0 %v4810
        %4860 = vmatprep.subr.mxu0 0.0
        %4861 = vmatpush1.msra.mxu0 %v4811
        %4862 = vmatprep.subr.mxu0 0.0
        %4863 = vmatpush1.msra.mxu0 %v4812
        %4864 = vmatprep.subr.mxu0 0.0
        %4865 = vmatpush1.msra.mxu0 %v4813
        %4866 = vmatprep.subr.mxu0 0.0
        %4867 = vmatpush1.msra.mxu0 %v4814
        %4868 = vmatprep.subr.mxu0 0.0
        %4869 = vmatpush1.msra.mxu0 %v4815
        %4870 = vmatprep.subr.mxu0 0.0
        %4871 = vmatpush1.msra.mxu0 %v4816
        %4872 = vmatprep.subr.mxu0 0.0
        %4873 = vmatpush1.msra.mxu0 %v4817
        %4874 = vmatprep.subr.mxu0 0.0
        %4875 = vmatpush1.msra.mxu0 %v4818
        %4876 = vmatprep.subr.mxu0 0.0
        %4877 = vmatpush1.msra.mxu0 %v4819
        %4878 = vmatprep.subr.mxu0 0.0
        %4879 = vmatpush1.msra.mxu0 %v4820
        %4880 = vmatprep.subr.mxu0 0.0
        %4881 = vmatpush1.msra.mxu0 %v4821
        %4882 = vmatprep.subr.mxu0 0.0
        %4883 = vmatpush1.msra.mxu0 %v4822
        %4884 = vmatprep.subr.mxu0 0.0
        %4885 = vmatpush1.msra.mxu0 %v4823
        %4886 = vmatprep.subr.mxu0 0.0
        %4887 = vmatpush1.msra.mxu0 %v4824
        %4888 = vmatprep.subr.mxu0 0.0
        %4889 = vmatpush1.msra.mxu0 %v4825
        %4890 = vmatprep.mubr.f32.mxu0 %v4791
        %4891 = vmatmul.mubr.f32.gmra.mrb[0].mxu0 %v4789
        %v4892 = vpop.f32.mrb[0].mxu0
        %v4893 = vadd.f32 0.0, %v4892
        %v4894 = vpop.f32.mrb[0].mxu0
        %4895 = vdwg.mxu0
        %v4896 = vadd.f32 %v4715, %v4893
        %v4897 = vld [vmem:[%s9] sm:$0xff]
        %v4898 = vld [vmem:[%s9 + $0x8] sm:$0xff]
        %v4899 = vld [vmem:[%s9 + $0x10] sm:$0xff]
        %v4900 = vld [vmem:[%s9 + $0x18] sm:$0xff]
        %v4901 = vld [vmem:[%s9 + $0x20] sm:$0xff]
        %v4902 = vld [vmem:[%s9 + $0x28] sm:$0xff]
        %v4903 = vld [vmem:[%s9 + $0x30] sm:$0xff]
        %v4904 = vld [vmem:[%s9 + $0x38] sm:$0xff]
        %v4905 = vld [vmem:[%s10] sm:$0x1]
        %v4907 = vsel %vm427, %v4896, 0
        %4909 = vmatprep.subr.mxu0 0.0
        %4910 = vmatpush1.msra.mxu0 %v4897
        %4911 = vmatprep.subr.mxu0 0.0
        %4912 = vmatpush1.msra.mxu0 %v4898
        %4913 = vmatprep.subr.mxu0 0.0
        %4914 = vmatpush1.msra.mxu0 %v4899
        %4915 = vmatprep.subr.mxu0 0.0
        %4916 = vmatpush1.msra.mxu0 %v4900
        %4917 = vmatprep.subr.mxu0 0.0
        %4918 = vmatpush1.msra.mxu0 %v4901
        %4919 = vmatprep.subr.mxu0 0.0
        %4920 = vmatpush1.msra.mxu0 %v4902
        %4921 = vmatprep.subr.mxu0 0.0
        %4922 = vmatpush1.msra.mxu0 %v4903
        %4923 = vmatprep.subr.mxu0 0.0
        %4924 = vmatpush1.msra.mxu0 %v4904
        %4925 = vmatprep.subr.mxu0 0.0
        %4926 = vmatpush1.msra.mxu0 0.0
        %4927 = vmatprep.subr.mxu0 0.0
        %4928 = vmatpush1.msra.mxu0 0.0
        %4929 = vmatprep.subr.mxu0 0.0
        %4930 = vmatpush1.msra.mxu0 0.0
        %4931 = vmatprep.subr.mxu0 0.0
        %4932 = vmatpush1.msra.mxu0 0.0
        %4933 = vmatprep.subr.mxu0 0.0
        %4934 = vmatpush1.msra.mxu0 0.0
        %4935 = vmatprep.subr.mxu0 0.0
        %4936 = vmatpush1.msra.mxu0 0.0
        %4937 = vmatprep.subr.mxu0 0.0
        %4938 = vmatpush1.msra.mxu0 0.0
        %4939 = vmatprep.subr.mxu0 0.0
        %4940 = vmatpush1.msra.mxu0 0.0
        %4941 = vmatprep.subr.mxu0 0.0
        %4942 = vmatpush1.msra.mxu0 0.0
        %4943 = vmatprep.subr.mxu0 0.0
        %4944 = vmatpush1.msra.mxu0 0.0
        %4945 = vmatprep.subr.mxu0 0.0
        %4946 = vmatpush1.msra.mxu0 0.0
        %4947 = vmatprep.subr.mxu0 0.0
        %4948 = vmatpush1.msra.mxu0 0.0
        %4949 = vmatprep.subr.mxu0 0.0
        %4950 = vmatpush1.msra.mxu0 0.0
        %4951 = vmatprep.subr.mxu0 0.0
        %4952 = vmatpush1.msra.mxu0 0.0
        %4953 = vmatprep.subr.mxu0 0.0
        %4954 = vmatpush1.msra.mxu0 0.0
        %4955 = vmatprep.subr.mxu0 0.0
        %4956 = vmatpush1.msra.mxu0 0.0
        %4957 = vmatprep.subr.mxu0 0.0
        %4958 = vmatpush1.msra.mxu0 0.0
        %4959 = vmatprep.subr.mxu0 0.0
        %4960 = vmatpush1.msra.mxu0 0.0
        %4961 = vmatprep.subr.mxu0 0.0
        %4962 = vmatpush1.msra.mxu0 0.0
        %4963 = vmatprep.subr.mxu0 0.0
        %4964 = vmatpush1.msra.mxu0 0.0
        %4965 = vmatprep.subr.mxu0 0.0
        %4966 = vmatpush1.msra.mxu0 0.0
        %4967 = vmatprep.subr.mxu0 0.0
        %4968 = vmatpush1.msra.mxu0 0.0
        %4969 = vmatprep.subr.mxu0 0.0
        %4970 = vmatpush1.msra.mxu0 0.0
        %4971 = vmatprep.subr.mxu0 0.0
        %4972 = vmatpush1.msra.mxu0 0.0
        %4973 = vmatprep.mubr.f32.mxu0 0.0
        %4974 = vmatmul.mubr.f32.gmra.mrb[0].mxu0 %v4907
        %v4975 = vpop.f32.mrb[0].mxu0
        %v4976 = vadd.f32 %v4905, %v4975
        %v4977 = vpop.f32.mrb[0].mxu0
        %4978 = vdwg.mxu0
        %v4979 = vtanh.pop %v4976
        %vm4980 = vcmask 253952
        %4981 = vst.msk [vmem:[%s378] sm:$0x1] %vm4980, %v4979
        %s4982 = sand.u32 %s269, 1
        %s4983 = scalar_lea.sflag [#allocation3], %s4982
        %s4984 = sand.u32 %s269, 1
        %s4985 = scalar_lea.vmem [#allocation2], %s4984
        // Predicated region
        $region65: #{celeba_encoder_curve.1} parent=63 // pred_check
          %p4986 = pneg %p279
        $region66: #{celeba_encoder_curve.1} parent=63 // pred_check_branch
          %4988 = sbr.rel (%p4986) target = $region68
        $region67: #{celeba_encoder_curve.1} parent=63 // pred_region
          %s4990 = ssub.s32 16, 16
          %4991 = vsyncadd %s4983, %s4990
          %s4992 = smul.addr %s25, 16
          %s4993 = scalar_lea.hbm %s11, %s4992
          %s4995 = sshll.u32 %s4985, 4
          %s4996 = int_to_ptr.vmem [resolvable:$true] %s4995
          %4998 = dma.vmem_to_hbm [thread:$0]  %s4996, 16, %s4993, %s4983
        $region68: #{celeba_encoder_curve.1} parent=63 // pred_fallthru
          _
      $region64: #{celeba_encoder_curve.1} parent=5 // pred_fallthru
        _
      %p4999 = scmp.le.s32.totalorder 2, %s20
      // Predicated region
      $region69: #{celeba_encoder_curve.1} parent=5 // pred_check
        %p5000 = pneg %p4999
      $region70: #{celeba_encoder_curve.1} parent=5 // pred_check_branch
        %5002 = sbr.rel (%p5000) target = $region72
      $region71: #{celeba_encoder_curve.1} parent=5 // pred_region
        %s5003 = ssub.s32 %s20, 2
        // Predicated region
        $region73: #{celeba_encoder_curve.1} parent=71 // pred_check
          %p5004 = pneg %p285
        $region74: #{celeba_encoder_curve.1} parent=71 // pred_check_branch
          %5006 = sbr.rel (%p5004) target = $region76
        $region75: #{celeba_encoder_curve.1} parent=71 // pred_region
          %s5007 = sand.u32 %s270, 1
          %s5008 = scalar_lea.sflag [#allocation3], %s5007
          %s5009 = sand.u32 %s270, 1
          %s5010 = scalar_lea.vmem [#allocation2], %s5009
          %5011 = dma.done %s5008, 16
        $region76: #{celeba_encoder_curve.1} parent=71 // pred_fallthru
          _
      $region72: #{celeba_encoder_curve.1} parent=5 // pred_fallthru
        _
    $region6: #{celeba_encoder_curve.1} parent=1 // loop_footer
      %s24 = sadd.s32 1, %s20
    $region7: #{celeba_encoder_curve.1} parent=1 // loop_footer_branch
      %19 = sbr.rel target = $region3
    $region8: #{celeba_encoder_curve.1} parent=1 // loop_exit
      _
    %5012 = vsyncpa [#allocation3], 1
    %s5013 = scalar_lea.sflag [#allocation3], 1
    %5014 = vsyncpa %s5013, 1

</llo_original>
